<compile_context>
chip_gen: v5e
topology: v5e:2x2
jax: 0.10.0
libtpu: 0.0.40
codegen_flags: <defaults>
</compile_context>

<pallas_src>
import functools

import jax
import jax.numpy as jnp
import numpy as np
from jax.experimental import pallas as pl
from jax.experimental.pallas import tpu as pltpu


# ---------------------------------------------------------------------------
# Fused kernel: layer1 .. layer4 + final 4x4 valid conv, one batch item / step
# ---------------------------------------------------------------------------
def _discriminator_kernel(x1_ref, w1_ref, b1_ref, w2_ref, b2_ref, w3_ref, b3_ref,
                          w4_ref, b4_ref, w5_ref, b5_ref, o_ref,
                          be1, bo1, be2, bo2, be3, bo3, *, negative_slope):
    f32, bf16 = jnp.float32, jnp.bfloat16

    def lrelu(v):
        return jnp.maximum(v, negative_slope * v)

    def store_quadrants(acc, h2, w2, c, be, bo):
        """Scatter a conv output (h2*w2, c) [row-major over (oh, ow)] into the
        next layer's zero-padded buffers.

        be/bo: shape (h2//2+1, w2//2+1, 2*c) holding even/odd PADDED rows, with
        padded-column pairs folded into the channel (lane) dimension.
        Output (oh, ow) lands at padded (oh+1, ow+1)."""
        hh, hw = h2 // 2, w2 // 2
        ap = acc.reshape(h2 * w2 // 2, 2, c)              # (.., ow parity, c)
        ow_even = ap[:, 0, :].reshape(hh, 2, hw, c)       # (oh pair, oh parity, ow pair, c)
        ow_odd = ap[:, 1, :].reshape(hh, 2, hw, c)
        bo[0:hh, 0:hw, c:2 * c] = ow_even[:, 0]           # oh even, ow even
        be[1:hh + 1, 0:hw, c:2 * c] = ow_even[:, 1]       # oh odd,  ow even
        bo[0:hh, 1:hw + 1, 0:c] = ow_odd[:, 0]            # oh even, ow odd
        be[1:hh + 1, 1:hw + 1, 0:c] = ow_odd[:, 1]        # oh odd,  ow odd

    def conv_s2(be, bo, w_ref, b_ref, h2, w2):
        """4x4, stride-2, pad-1 conv + bias + LeakyReLU from the padded buffers.

        w_ref: (8, 2*Cin, Cout) -- taps grouped as (kernel row i, col pair g),
        so each of the 8 matmuls has K = 2*Cin and its LHS is a contiguous
        slab of the buffer (sliced at point of use)."""
        cout, k2 = w_ref.shape[2], w_ref.shape[1]
        bufs = (be, bo)
        acc = jnp.zeros((h2 * w2, cout), f32)
        for i in range(4):                                 # kernel row tap
            buf, r0 = bufs[i % 2], i // 2
            for g in range(2):                             # column taps (2g, 2g+1)
                slab = buf[r0:r0 + h2, g:g + w2, :]        # (h2, w2, 2*Cin)
                lhs = slab.reshape(h2 * w2, k2).astype(bf16)
                acc = acc + jnp.dot(lhs, w_ref[i * 2 + g],
                                    preferred_element_type=f32)
        return lrelu(acc + b_ref[...])

    # Zero the padded scratch buffers: their borders ARE the conv padding.
    for buf_ref in (be1, bo1, be2, bo2, be3, bo3):
        buf_ref[...] = jnp.zeros(buf_ref.shape, buf_ref.dtype)

    # ---- layer 1: 64x64x1 -> 32x32xC1 (host-side im2col -> one MXU matmul) ----
    c1 = w1_ref.shape[1]
    a1 = jnp.dot(x1_ref[...].astype(bf16), w1_ref[...], preferred_element_type=f32)
    a1 = lrelu(a1 + b1_ref[...])                           # (1024, C1)
    store_quadrants(a1, 32, 32, c1, be1, bo1)

    # ---- layer 2: 32x32xC1 -> 16x16xC2 ----
    a2 = conv_s2(be1, bo1, w2_ref, b2_ref, 16, 16)
    store_quadrants(a2, 16, 16, w2_ref.shape[2], be2, bo2)

    # ---- layer 3: 16x16xC2 -> 8x8xC3 ----
    a3 = conv_s2(be2, bo2, w3_ref, b3_ref, 8, 8)
    store_quadrants(a3, 8, 8, w3_ref.shape[2], be3, bo3)

    # ---- layer 4 (8x8xC3 -> 4x4xC4) fused with the final 4x4 valid conv ----
    c4 = w4_ref.shape[2]
    bufs3 = (be3, bo3)
    total = b5_ref[...]                                    # (1, 1) f32
    for r in range(4):                                     # layer-4 output row
        row_acc = jnp.zeros((4, c4), f32)
        for i in range(4):
            buf, m = bufs3[i % 2], r + i // 2
            for g in range(2):
                lhs = buf[m, g:g + 4, :].astype(bf16)      # (4, 2*C3)
                row_acc = row_acc + jnp.dot(lhs, w4_ref[i * 2 + g],
                                            preferred_element_type=f32)
        a4_row = lrelu(row_acc + b4_ref[...])              # (4, C4)
        total = total + jnp.sum(a4_row * w5_ref[r])        # last-conv tap row r (f32)
    o_ref[...] = total


# ---------------------------------------------------------------------------
# Wrapper: layout prep (im2col for layer 1, tap-grouped bf16 weights) + call
# ---------------------------------------------------------------------------
def discriminator_forward(x_nchw, params, *, negative_slope=0.1):
    n, cin, h, w = x_nchw.shape
    assert cin == 1 and h == 64 and w == 64, "Discriminator expects (N, 1, 64, 64)"
    (w1, b1), (w2, b2), (w3, b3), (w4, b4), (w5, b5) = params
    c1, c2, c3, c4 = w1.shape[3], w2.shape[3], w3.shape[3], w4.shape[3]

    # Layer-1 im2col (Cin=1): the 16 taps become the K dim of one matmul.
    xp = jnp.pad(x_nchw[:, 0].astype(jnp.float32), ((0, 0), (1, 1), (1, 1)))
    taps = [xp[:, i:i + 64:2, j:j + 64:2] for i in range(4) for j in range(4)]
    x1 = jnp.stack(taps, axis=-1).reshape(n, 32 * 32, 16)

    def group_taps(wgt):  # (4,4,Cin,Cout) HWIO -> (8, 2*Cin, Cout) bf16, tap pairs
        _, _, ci, co = wgt.shape
        return wgt.reshape(4, 2, 2 * ci, co).reshape(8, 2 * ci, co).astype(jnp.bfloat16)

    w1m = w1.reshape(16, c1).astype(jnp.bfloat16)
    w2g, w3g, w4g = group_taps(w2), group_taps(w3), group_taps(w4)
    w5m = w5[:, :, :, 0].astype(jnp.float32)               # (4, 4, C4)
    b1r, b2r, b3r, b4r = (b.reshape(1, -1) for b in (b1, b2, b3, b4))
    b5r = b5.reshape(1, 1)

    full = lambda shp: pl.BlockSpec(shp, lambda nn: (0,) * len(shp))

    out = pl.pallas_call(
        functools.partial(_discriminator_kernel, negative_slope=negative_slope),
        out_shape=jax.ShapeDtypeStruct((n, 1, 1), jnp.float32),
        grid=(n,),
        in_specs=[
            pl.BlockSpec((None, 32 * 32, 16), lambda nn: (nn, 0, 0)),  # per-image im2col
            full((16, c1)), full((1, c1)),
            full((8, 2 * c1, c2)), full((1, c2)),
            full((8, 2 * c2, c3)), full((1, c3)),
            full((8, 2 * c3, c4)), full((1, c4)),
            full((4, 4, c4)), full((1, 1)),
        ],
        out_specs=pl.BlockSpec((None, 1, 1), lambda nn: (nn, 0, 0)),
        scratch_shapes=[
            pltpu.VMEM((17, 17, 2 * c1), jnp.float32),   # padded layer-1 output (even rows)
            pltpu.VMEM((17, 17, 2 * c1), jnp.float32),   # (odd rows)
            pltpu.VMEM((9, 9, 2 * c2), jnp.float32),
            pltpu.VMEM((9, 9, 2 * c2), jnp.float32),
            pltpu.VMEM((5, 5, 2 * c3), jnp.float32),
            pltpu.VMEM((5, 5, 2 * c3), jnp.float32),
        ],
        compiler_params=pltpu.CompilerParams(dimension_semantics=("parallel",)),
    )(x1, w1m, b1r, w2g, b2r, w3g, b3r, w4g, b4r, w5m, b5r)
    return out.reshape(n, 1, 1, 1)


# ---------------------------------------------------------------------------
# Parameter init (mimics PyTorch Conv2d default init bounds) and reference
# ---------------------------------------------------------------------------
def init_params(key, image_size=16):
    chans = [1, image_size, image_size * 2, image_size * 4, image_size * 8, 1]
    keys = jax.random.split(key, 2 * (len(chans) - 1))
    params = []
    for li in range(len(chans) - 1):
        ci, co = chans[li], chans[li + 1]
        bound = 1.0 / float(np.sqrt(4 * 4 * ci))
        wgt = jax.random.uniform(keys[2 * li], (4, 4, ci, co), jnp.float32, -bound, bound)
        bia = jax.random.uniform(keys[2 * li + 1], (co,), jnp.float32, -bound, bound)
        params.append((wgt, bia))
    return params


def reference_forward(x_nchw, params):
    """lax.conv reference mirroring the kernel's precision (bf16 MXU inputs,
    f32 accumulation for layers 1-4, f32 for the final conv)."""
    x = x_nchw.astype(jnp.float32)
    for idx, (wgt, bia) in enumerate(params):
        w_oihw = jnp.transpose(wgt, (3, 2, 0, 1))
        stride = (2, 2) if idx < 4 else (1, 1)
        pad = ((1, 1), (1, 1)) if idx < 4 else ((0, 0), (0, 0))
        if idx < 4:
            lhs, rhs = x.astype(jnp.bfloat16), w_oihw.astype(jnp.bfloat16)
        else:
            lhs, rhs = x, w_oihw
        x = jax.lax.conv_general_dilated(
            lhs, rhs, stride, pad,
            dimension_numbers=("NCHW", "OIHW", "NCHW"),
            preferred_element_type=jnp.float32)
        x = x + bia.reshape(1, -1, 1, 1)
        if idx < 4:
            x = jnp.maximum(x, 0.1 * x)
    return x


if __name__ == "__main__":
    key = jax.random.PRNGKey(0)
    kx, kp = jax.random.split(key)

    # Small config: channel base 16 (module default is 64); input must be
    # (N, 1, 64, 64) so the final 4x4 valid conv sees a 4x4 feature map.
    image_size = 16
    x = jax.random.normal(kx, (2, 1, 64, 64), jnp.float32)
    params = init_params(kp, image_size=image_size)

    out = jax.block_until_ready(jax.jit(discriminator_forward)(x, params))
    assert out.shape == (2, 1, 1, 1), out.shape

    ref = jax.block_until_ready(reference_forward(x, params))
    np.testing.assert_allclose(np.asarray(out), np.asarray(ref), rtol=2e-2, atol=1e-3)
    print("KERNEL_OK")
</pallas_src>

<mosaic_0001>
module attributes {stable_mosaic.version = 11 : i64} {
  func.func @_discriminator_kernel(%arg0: i32, %arg1: memref<1x1024x16xf32, #tpu.memory_space<vmem>>, %arg2: memref<16x16xbf16, #tpu.memory_space<vmem>>, %arg3: memref<1x16xf32, #tpu.memory_space<vmem>>, %arg4: memref<8x32x32xbf16, #tpu.memory_space<vmem>>, %arg5: memref<1x32xf32, #tpu.memory_space<vmem>>, %arg6: memref<8x64x64xbf16, #tpu.memory_space<vmem>>, %arg7: memref<1x64xf32, #tpu.memory_space<vmem>>, %arg8: memref<8x128x128xbf16, #tpu.memory_space<vmem>>, %arg9: memref<1x128xf32, #tpu.memory_space<vmem>>, %arg10: memref<4x4x128xf32, #tpu.memory_space<vmem>>, %arg11: memref<1x1xf32, #tpu.memory_space<vmem>>, %arg12: memref<1x1x1xf32, #tpu.memory_space<vmem>>, %arg13: memref<17x17x32xf32, #tpu.memory_space<vmem>>, %arg14: memref<17x17x32xf32, #tpu.memory_space<vmem>>, %arg15: memref<9x9x64xf32, #tpu.memory_space<vmem>>, %arg16: memref<9x9x64xf32, #tpu.memory_space<vmem>>, %arg17: memref<5x5x128xf32, #tpu.memory_space<vmem>>, %arg18: memref<5x5x128xf32, #tpu.memory_space<vmem>>) attributes {dimension_semantics = [#tpu.dimension_semantics<parallel>], iteration_bounds = array<i64: 2>, scalar_prefetch = 0 : i64, scratch_operands = 6 : i64, tpu.core_type = #tpu.core_type<tc>, window_params = [{transform_indices = @transform_0, window_bounds = array<i64: 1, 1024, 16>}, {pipeline_mode = #tpu.pipeline_mode<synchronous>, transform_indices = @transform_1, window_bounds = array<i64: 16, 16>}, {pipeline_mode = #tpu.pipeline_mode<synchronous>, transform_indices = @transform_2, window_bounds = array<i64: 1, 16>}, {pipeline_mode = #tpu.pipeline_mode<synchronous>, transform_indices = @transform_3, window_bounds = array<i64: 8, 32, 32>}, {pipeline_mode = #tpu.pipeline_mode<synchronous>, transform_indices = @transform_4, window_bounds = array<i64: 1, 32>}, {pipeline_mode = #tpu.pipeline_mode<synchronous>, transform_indices = @transform_5, window_bounds = array<i64: 8, 64, 64>}, {pipeline_mode = #tpu.pipeline_mode<synchronous>, transform_indices = @transform_6, window_bounds = array<i64: 1, 64>}, {pipeline_mode = #tpu.pipeline_mode<synchronous>, transform_indices = @transform_7, window_bounds = array<i64: 8, 128, 128>}, {pipeline_mode = #tpu.pipeline_mode<synchronous>, transform_indices = @transform_8, window_bounds = array<i64: 1, 128>}, {pipeline_mode = #tpu.pipeline_mode<synchronous>, transform_indices = @transform_9, window_bounds = array<i64: 4, 4, 128>}, {pipeline_mode = #tpu.pipeline_mode<synchronous>, transform_indices = @transform_10, window_bounds = array<i64: 1, 1>}, {transform_indices = @transform_11, window_bounds = array<i64: 1, 1, 1>}]} {
    %cst = arith.constant 0.000000e+00 : f32
    %0 = vector.broadcast %cst : f32 to vector<17x17x32xf32>
    %c0 = arith.constant 0 : index
    %c0_0 = arith.constant 0 : index
    %c0_1 = arith.constant 0 : index
    %1 = vector.load %arg13[%c0, %c0_0, %c0_1] : memref<17x17x32xf32, #tpu.memory_space<vmem>>, vector<17x17x32xf32>
    tpu.vector_store %arg13[%c0, %c0_0, %c0_1], %0 {strides = array<i32>} : memref<17x17x32xf32, #tpu.memory_space<vmem>>, vector<17x17x32xf32>,
    %cst_2 = arith.constant 0.000000e+00 : f32
    %2 = vector.broadcast %cst_2 : f32 to vector<17x17x32xf32>
    %c0_3 = arith.constant 0 : index
    %c0_4 = arith.constant 0 : index
    %c0_5 = arith.constant 0 : index
    %3 = vector.load %arg14[%c0_3, %c0_4, %c0_5] : memref<17x17x32xf32, #tpu.memory_space<vmem>>, vector<17x17x32xf32>
    tpu.vector_store %arg14[%c0_3, %c0_4, %c0_5], %2 {strides = array<i32>} : memref<17x17x32xf32, #tpu.memory_space<vmem>>, vector<17x17x32xf32>,
    %cst_6 = arith.constant 0.000000e+00 : f32
    %4 = vector.broadcast %cst_6 : f32 to vector<9x9x64xf32>
    %c0_7 = arith.constant 0 : index
    %c0_8 = arith.constant 0 : index
    %c0_9 = arith.constant 0 : index
    %5 = vector.load %arg15[%c0_7, %c0_8, %c0_9] : memref<9x9x64xf32, #tpu.memory_space<vmem>>, vector<9x9x64xf32>
    tpu.vector_store %arg15[%c0_7, %c0_8, %c0_9], %4 {strides = array<i32>} : memref<9x9x64xf32, #tpu.memory_space<vmem>>, vector<9x9x64xf32>,
    %cst_10 = arith.constant 0.000000e+00 : f32
    %6 = vector.broadcast %cst_10 : f32 to vector<9x9x64xf32>
    %c0_11 = arith.constant 0 : index
    %c0_12 = arith.constant 0 : index
    %c0_13 = arith.constant 0 : index
    %7 = vector.load %arg16[%c0_11, %c0_12, %c0_13] : memref<9x9x64xf32, #tpu.memory_space<vmem>>, vector<9x9x64xf32>
    tpu.vector_store %arg16[%c0_11, %c0_12, %c0_13], %6 {strides = array<i32>} : memref<9x9x64xf32, #tpu.memory_space<vmem>>, vector<9x9x64xf32>,
    %cst_14 = arith.constant 0.000000e+00 : f32
    %8 = vector.broadcast %cst_14 : f32 to vector<5x5x128xf32>
    %c0_15 = arith.constant 0 : index
    %c0_16 = arith.constant 0 : index
    %c0_17 = arith.constant 0 : index
    %9 = vector.load %arg17[%c0_15, %c0_16, %c0_17] : memref<5x5x128xf32, #tpu.memory_space<vmem>>, vector<5x5x128xf32>
    tpu.vector_store %arg17[%c0_15, %c0_16, %c0_17], %8 {strides = array<i32>} : memref<5x5x128xf32, #tpu.memory_space<vmem>>, vector<5x5x128xf32>,
    %cst_18 = arith.constant 0.000000e+00 : f32
    %10 = vector.broadcast %cst_18 : f32 to vector<5x5x128xf32>
    %c0_19 = arith.constant 0 : index
    %c0_20 = arith.constant 0 : index
    %c0_21 = arith.constant 0 : index
    %11 = vector.load %arg18[%c0_19, %c0_20, %c0_21] : memref<5x5x128xf32, #tpu.memory_space<vmem>>, vector<5x5x128xf32>
    tpu.vector_store %arg18[%c0_19, %c0_20, %c0_21], %10 {strides = array<i32>} : memref<5x5x128xf32, #tpu.memory_space<vmem>>, vector<5x5x128xf32>,
    %c0_22 = arith.constant 0 : index
    %c0_23 = arith.constant 0 : index
    %c0_24 = arith.constant 0 : index
    %12 = vector.load %arg1[%c0_22, %c0_23, %c0_24] : memref<1x1024x16xf32, #tpu.memory_space<vmem>>, vector<1x1024x16xf32>
    %13 = vector.shape_cast %12 : vector<1x1024x16xf32> to vector<1024x16xf32>
    %14 = arith.truncf %13 : vector<1024x16xf32> to vector<1024x16xbf16>
    %c0_25 = arith.constant 0 : index
    %c0_26 = arith.constant 0 : index
    %15 = vector.load %arg2[%c0_25, %c0_26] : memref<16x16xbf16, #tpu.memory_space<vmem>>, vector<16x16xbf16>
    %cst_27 = arith.constant dense<0.000000e+00> : vector<1024x16xf32>
    %16 = tpu.matmul %14, %15, %cst_27 {dimension_numbers = #tpu.dot_dimension_numbers<[1], [0], [0], [1], [0, 0, 1, 1], [], []>} : vector<1024x16xbf16>, vector<16x16xbf16>, vector<1024x16xf32> -> vector<1024x16xf32>
    %c0_28 = arith.constant 0 : index
    %c0_29 = arith.constant 0 : index
    %17 = vector.load %arg3[%c0_28, %c0_29] : memref<1x16xf32, #tpu.memory_space<vmem>>, vector<1x16xf32>
    %18 = vector.broadcast %17 : vector<1x16xf32> to vector<1024x16xf32>
    %19 = arith.addf %16, %18 : vector<1024x16xf32>
    %cst_30 = arith.constant 1.000000e-01 : f32
    %20 = vector.broadcast %cst_30 : f32 to vector<1024x16xf32>
    %21 = arith.mulf %20, %19 : vector<1024x16xf32>
    %22 = arith.maximumf %19, %21 : vector<1024x16xf32>
    %23 = vector.shape_cast %22 : vector<1024x16xf32> to vector<512x2x16xf32>
    %24 = vector.extract_strided_slice %23 {offsets = [0, 0, 0], sizes = [512, 1, 16], strides = [1, 1, 1]} : vector<512x2x16xf32> to vector<512x1x16xf32>
    %25 = vector.shape_cast %24 : vector<512x1x16xf32> to vector<512x16xf32>
    %26 = vector.shape_cast %25 : vector<512x16xf32> to vector<16x2x16x16xf32>
    %27 = vector.extract_strided_slice %23 {offsets = [0, 1, 0], sizes = [512, 1, 16], strides = [1, 1, 1]} : vector<512x2x16xf32> to vector<512x1x16xf32>
    %28 = vector.shape_cast %27 : vector<512x1x16xf32> to vector<512x16xf32>
    %29 = vector.shape_cast %28 : vector<512x16xf32> to vector<16x2x16x16xf32>
    %30 = vector.extract_strided_slice %26 {offsets = [0, 0, 0, 0], sizes = [16, 1, 16, 16], strides = [1, 1, 1, 1]} : vector<16x2x16x16xf32> to vector<16x1x16x16xf32>
    %31 = vector.shape_cast %30 : vector<16x1x16x16xf32> to vector<16x16x16xf32>
    %c0_31 = arith.constant 0 : index
    %c0_32 = arith.constant 0 : index
    %c16 = arith.constant 16 : index
    %32 = vector.load %arg14[%c0_31, %c0_32, %c16] : memref<17x17x32xf32, #tpu.memory_space<vmem>>, vector<16x16x16xf32>
    tpu.vector_store %arg14[%c0_31, %c0_32, %c16], %31 {strides = array<i32>} : memref<17x17x32xf32, #tpu.memory_space<vmem>>, vector<16x16x16xf32>,
    %33 = vector.extract_strided_slice %26 {offsets = [0, 1, 0, 0], sizes = [16, 1, 16, 16], strides = [1, 1, 1, 1]} : vector<16x2x16x16xf32> to vector<16x1x16x16xf32>
    %34 = vector.shape_cast %33 : vector<16x1x16x16xf32> to vector<16x16x16xf32>
    %c1 = arith.constant 1 : index
    %c0_33 = arith.constant 0 : index
    %c16_34 = arith.constant 16 : index
    %35 = vector.load %arg13[%c1, %c0_33, %c16_34] : memref<17x17x32xf32, #tpu.memory_space<vmem>>, vector<16x16x16xf32>
    tpu.vector_store %arg13[%c1, %c0_33, %c16_34], %34 {strides = array<i32>} : memref<17x17x32xf32, #tpu.memory_space<vmem>>, vector<16x16x16xf32>,
    %36 = vector.extract_strided_slice %29 {offsets = [0, 0, 0, 0], sizes = [16, 1, 16, 16], strides = [1, 1, 1, 1]} : vector<16x2x16x16xf32> to vector<16x1x16x16xf32>
    %37 = vector.shape_cast %36 : vector<16x1x16x16xf32> to vector<16x16x16xf32>
    %c0_35 = arith.constant 0 : index
    %c1_36 = arith.constant 1 : index
    %c0_37 = arith.constant 0 : index
    %38 = vector.load %arg14[%c0_35, %c1_36, %c0_37] : memref<17x17x32xf32, #tpu.memory_space<vmem>>, vector<16x16x16xf32>
    tpu.vector_store %arg14[%c0_35, %c1_36, %c0_37], %37 {strides = array<i32>} : memref<17x17x32xf32, #tpu.memory_space<vmem>>, vector<16x16x16xf32>,
    %39 = vector.extract_strided_slice %29 {offsets = [0, 1, 0, 0], sizes = [16, 1, 16, 16], strides = [1, 1, 1, 1]} : vector<16x2x16x16xf32> to vector<16x1x16x16xf32>
    %40 = vector.shape_cast %39 : vector<16x1x16x16xf32> to vector<16x16x16xf32>
    %c1_38 = arith.constant 1 : index
    %c1_39 = arith.constant 1 : index
    %c0_40 = arith.constant 0 : index
    %41 = vector.load %arg13[%c1_38, %c1_39, %c0_40] : memref<17x17x32xf32, #tpu.memory_space<vmem>>, vector<16x16x16xf32>
    tpu.vector_store %arg13[%c1_38, %c1_39, %c0_40], %40 {strides = array<i32>} : memref<17x17x32xf32, #tpu.memory_space<vmem>>, vector<16x16x16xf32>,
    %cst_41 = arith.constant 0.000000e+00 : f32
    %42 = vector.broadcast %cst_41 : f32 to vector<256x32xf32>
    %c0_42 = arith.constant 0 : index
    %c0_43 = arith.constant 0 : index
    %c0_44 = arith.constant 0 : index
    %43 = vector.load %arg13[%c0_42, %c0_43, %c0_44] : memref<17x17x32xf32, #tpu.memory_space<vmem>>, vector<16x16x32xf32>
    %44 = vector.shape_cast %43 : vector<16x16x32xf32> to vector<256x32xf32>
    %45 = arith.truncf %44 : vector<256x32xf32> to vector<256x32xbf16>
    %c0_45 = arith.constant 0 : index
    %c0_46 = arith.constant 0 : index
    %c0_47 = arith.constant 0 : index
    %46 = vector.load %arg4[%c0_45, %c0_46, %c0_47] : memref<8x32x32xbf16, #tpu.memory_space<vmem>>, vector<1x32x32xbf16>
    %47 = vector.shape_cast %46 : vector<1x32x32xbf16> to vector<32x32xbf16>
    %cst_48 = arith.constant dense<0.000000e+00> : vector<256x32xf32>
    %48 = tpu.matmul %45, %47, %cst_48 {dimension_numbers = #tpu.dot_dimension_numbers<[1], [0], [0], [1], [0, 0, 1, 1], [], []>} : vector<256x32xbf16>, vector<32x32xbf16>, vector<256x32xf32> -> vector<256x32xf32>
    %49 = arith.addf %42, %48 : vector<256x32xf32>
    %c0_49 = arith.constant 0 : index
    %c1_50 = arith.constant 1 : index
    %c0_51 = arith.constant 0 : index
    %50 = vector.load %arg13[%c0_49, %c1_50, %c0_51] : memref<17x17x32xf32, #tpu.memory_space<vmem>>, vector<16x16x32xf32>
    %51 = vector.shape_cast %50 : vector<16x16x32xf32> to vector<256x32xf32>
    %52 = arith.truncf %51 : vector<256x32xf32> to vector<256x32xbf16>
    %c1_52 = arith.constant 1 : index
    %c0_53 = arith.constant 0 : index
    %c0_54 = arith.constant 0 : index
    %53 = vector.load %arg4[%c1_52, %c0_53, %c0_54] : memref<8x32x32xbf16, #tpu.memory_space<vmem>>, vector<1x32x32xbf16>
    %54 = vector.shape_cast %53 : vector<1x32x32xbf16> to vector<32x32xbf16>
    %cst_55 = arith.constant dense<0.000000e+00> : vector<256x32xf32>
    %55 = tpu.matmul %52, %54, %cst_55 {dimension_numbers = #tpu.dot_dimension_numbers<[1], [0], [0], [1], [0, 0, 1, 1], [], []>} : vector<256x32xbf16>, vector<32x32xbf16>, vector<256x32xf32> -> vector<256x32xf32>
    %56 = arith.addf %49, %55 : vector<256x32xf32>
    %c0_56 = arith.constant 0 : index
    %c0_57 = arith.constant 0 : index
    %c0_58 = arith.constant 0 : index
    %57 = vector.load %arg14[%c0_56, %c0_57, %c0_58] : memref<17x17x32xf32, #tpu.memory_space<vmem>>, vector<16x16x32xf32>
    %58 = vector.shape_cast %57 : vector<16x16x32xf32> to vector<256x32xf32>
    %59 = arith.truncf %58 : vector<256x32xf32> to vector<256x32xbf16>
    %c2 = arith.constant 2 : index
    %c0_59 = arith.constant 0 : index
    %c0_60 = arith.constant 0 : index
    %60 = vector.load %arg4[%c2, %c0_59, %c0_60] : memref<8x32x32xbf16, #tpu.memory_space<vmem>>, vector<1x32x32xbf16>
    %61 = vector.shape_cast %60 : vector<1x32x32xbf16> to vector<32x32xbf16>
    %cst_61 = arith.constant dense<0.000000e+00> : vector<256x32xf32>
    %62 = tpu.matmul %59, %61, %cst_61 {dimension_numbers = #tpu.dot_dimension_numbers<[1], [0], [0], [1], [0, 0, 1, 1], [], []>} : vector<256x32xbf16>, vector<32x32xbf16>, vector<256x32xf32> -> vector<256x32xf32>
    %63 = arith.addf %56, %62 : vector<256x32xf32>
    %c0_62 = arith.constant 0 : index
    %c1_63 = arith.constant 1 : index
    %c0_64 = arith.constant 0 : index
    %64 = vector.load %arg14[%c0_62, %c1_63, %c0_64] : memref<17x17x32xf32, #tpu.memory_space<vmem>>, vector<16x16x32xf32>
    %65 = vector.shape_cast %64 : vector<16x16x32xf32> to vector<256x32xf32>
    %66 = arith.truncf %65 : vector<256x32xf32> to vector<256x32xbf16>
    %c3 = arith.constant 3 : index
    %c0_65 = arith.constant 0 : index
    %c0_66 = arith.constant 0 : index
    %67 = vector.load %arg4[%c3, %c0_65, %c0_66] : memref<8x32x32xbf16, #tpu.memory_space<vmem>>, vector<1x32x32xbf16>
    %68 = vector.shape_cast %67 : vector<1x32x32xbf16> to vector<32x32xbf16>
    %cst_67 = arith.constant dense<0.000000e+00> : vector<256x32xf32>
    %69 = tpu.matmul %66, %68, %cst_67 {dimension_numbers = #tpu.dot_dimension_numbers<[1], [0], [0], [1], [0, 0, 1, 1], [], []>} : vector<256x32xbf16>, vector<32x32xbf16>, vector<256x32xf32> -> vector<256x32xf32>
    %70 = arith.addf %63, %69 : vector<256x32xf32>
    %c1_68 = arith.constant 1 : index
    %c0_69 = arith.constant 0 : index
    %c0_70 = arith.constant 0 : index
    %71 = vector.load %arg13[%c1_68, %c0_69, %c0_70] : memref<17x17x32xf32, #tpu.memory_space<vmem>>, vector<16x16x32xf32>
    %72 = vector.shape_cast %71 : vector<16x16x32xf32> to vector<256x32xf32>
    %73 = arith.truncf %72 : vector<256x32xf32> to vector<256x32xbf16>
    %c4 = arith.constant 4 : index
    %c0_71 = arith.constant 0 : index
    %c0_72 = arith.constant 0 : index
    %74 = vector.load %arg4[%c4, %c0_71, %c0_72] : memref<8x32x32xbf16, #tpu.memory_space<vmem>>, vector<1x32x32xbf16>
    %75 = vector.shape_cast %74 : vector<1x32x32xbf16> to vector<32x32xbf16>
    %cst_73 = arith.constant dense<0.000000e+00> : vector<256x32xf32>
    %76 = tpu.matmul %73, %75, %cst_73 {dimension_numbers = #tpu.dot_dimension_numbers<[1], [0], [0], [1], [0, 0, 1, 1], [], []>} : vector<256x32xbf16>, vector<32x32xbf16>, vector<256x32xf32> -> vector<256x32xf32>
    %77 = arith.addf %70, %76 : vector<256x32xf32>
    %c1_74 = arith.constant 1 : index
    %c1_75 = arith.constant 1 : index
    %c0_76 = arith.constant 0 : index
    %78 = vector.load %arg13[%c1_74, %c1_75, %c0_76] : memref<17x17x32xf32, #tpu.memory_space<vmem>>, vector<16x16x32xf32>
    %79 = vector.shape_cast %78 : vector<16x16x32xf32> to vector<256x32xf32>
    %80 = arith.truncf %79 : vector<256x32xf32> to vector<256x32xbf16>
    %c5 = arith.constant 5 : index
    %c0_77 = arith.constant 0 : index
    %c0_78 = arith.constant 0 : index
    %81 = vector.load %arg4[%c5, %c0_77, %c0_78] : memref<8x32x32xbf16, #tpu.memory_space<vmem>>, vector<1x32x32xbf16>
    %82 = vector.shape_cast %81 : vector<1x32x32xbf16> to vector<32x32xbf16>
    %cst_79 = arith.constant dense<0.000000e+00> : vector<256x32xf32>
    %83 = tpu.matmul %80, %82, %cst_79 {dimension_numbers = #tpu.dot_dimension_numbers<[1], [0], [0], [1], [0, 0, 1, 1], [], []>} : vector<256x32xbf16>, vector<32x32xbf16>, vector<256x32xf32> -> vector<256x32xf32>
    %84 = arith.addf %77, %83 : vector<256x32xf32>
    %c1_80 = arith.constant 1 : index
    %c0_81 = arith.constant 0 : index
    %c0_82 = arith.constant 0 : index
    %85 = vector.load %arg14[%c1_80, %c0_81, %c0_82] : memref<17x17x32xf32, #tpu.memory_space<vmem>>, vector<16x16x32xf32>
    %86 = vector.shape_cast %85 : vector<16x16x32xf32> to vector<256x32xf32>
    %87 = arith.truncf %86 : vector<256x32xf32> to vector<256x32xbf16>
    %c6 = arith.constant 6 : index
    %c0_83 = arith.constant 0 : index
    %c0_84 = arith.constant 0 : index
    %88 = vector.load %arg4[%c6, %c0_83, %c0_84] : memref<8x32x32xbf16, #tpu.memory_space<vmem>>, vector<1x32x32xbf16>
    %89 = vector.shape_cast %88 : vector<1x32x32xbf16> to vector<32x32xbf16>
    %cst_85 = arith.constant dense<0.000000e+00> : vector<256x32xf32>
    %90 = tpu.matmul %87, %89, %cst_85 {dimension_numbers = #tpu.dot_dimension_numbers<[1], [0], [0], [1], [0, 0, 1, 1], [], []>} : vector<256x32xbf16>, vector<32x32xbf16>, vector<256x32xf32> -> vector<256x32xf32>
    %91 = arith.addf %84, %90 : vector<256x32xf32>
    %c1_86 = arith.constant 1 : index
    %c1_87 = arith.constant 1 : index
    %c0_88 = arith.constant 0 : index
    %92 = vector.load %arg14[%c1_86, %c1_87, %c0_88] : memref<17x17x32xf32, #tpu.memory_space<vmem>>, vector<16x16x32xf32>
    %93 = vector.shape_cast %92 : vector<16x16x32xf32> to vector<256x32xf32>
    %94 = arith.truncf %93 : vector<256x32xf32> to vector<256x32xbf16>
    %c7 = arith.constant 7 : index
    %c0_89 = arith.constant 0 : index
    %c0_90 = arith.constant 0 : index
    %95 = vector.load %arg4[%c7, %c0_89, %c0_90] : memref<8x32x32xbf16, #tpu.memory_space<vmem>>, vector<1x32x32xbf16>
    %96 = vector.shape_cast %95 : vector<1x32x32xbf16> to vector<32x32xbf16>
    %cst_91 = arith.constant dense<0.000000e+00> : vector<256x32xf32>
    %97 = tpu.matmul %94, %96, %cst_91 {dimension_numbers = #tpu.dot_dimension_numbers<[1], [0], [0], [1], [0, 0, 1, 1], [], []>} : vector<256x32xbf16>, vector<32x32xbf16>, vector<256x32xf32> -> vector<256x32xf32>
    %98 = arith.addf %91, %97 : vector<256x32xf32>
    %c0_92 = arith.constant 0 : index
    %c0_93 = arith.constant 0 : index
    %99 = vector.load %arg5[%c0_92, %c0_93] : memref<1x32xf32, #tpu.memory_space<vmem>>, vector<1x32xf32>
    %100 = vector.broadcast %99 : vector<1x32xf32> to vector<256x32xf32>
    %101 = arith.addf %98, %100 : vector<256x32xf32>
    %cst_94 = arith.constant 1.000000e-01 : f32
    %102 = vector.broadcast %cst_94 : f32 to vector<256x32xf32>
    %103 = arith.mulf %102, %101 : vector<256x32xf32>
    %104 = arith.maximumf %101, %103 : vector<256x32xf32>
    %105 = vector.shape_cast %104 : vector<256x32xf32> to vector<128x2x32xf32>
    %106 = vector.extract_strided_slice %105 {offsets = [0, 0, 0], sizes = [128, 1, 32], strides = [1, 1, 1]} : vector<128x2x32xf32> to vector<128x1x32xf32>
    %107 = vector.shape_cast %106 : vector<128x1x32xf32> to vector<128x32xf32>
    %108 = vector.shape_cast %107 : vector<128x32xf32> to vector<8x2x8x32xf32>
    %109 = vector.extract_strided_slice %105 {offsets = [0, 1, 0], sizes = [128, 1, 32], strides = [1, 1, 1]} : vector<128x2x32xf32> to vector<128x1x32xf32>
    %110 = vector.shape_cast %109 : vector<128x1x32xf32> to vector<128x32xf32>
    %111 = vector.shape_cast %110 : vector<128x32xf32> to vector<8x2x8x32xf32>
    %112 = vector.extract_strided_slice %108 {offsets = [0, 0, 0, 0], sizes = [8, 1, 8, 32], strides = [1, 1, 1, 1]} : vector<8x2x8x32xf32> to vector<8x1x8x32xf32>
    %113 = vector.shape_cast %112 : vector<8x1x8x32xf32> to vector<8x8x32xf32>
    %c0_95 = arith.constant 0 : index
    %c0_96 = arith.constant 0 : index
    %c32 = arith.constant 32 : index
    %114 = vector.load %arg16[%c0_95, %c0_96, %c32] : memref<9x9x64xf32, #tpu.memory_space<vmem>>, vector<8x8x32xf32>
    tpu.vector_store %arg16[%c0_95, %c0_96, %c32], %113 {strides = array<i32>} : memref<9x9x64xf32, #tpu.memory_space<vmem>>, vector<8x8x32xf32>,
    %115 = vector.extract_strided_slice %108 {offsets = [0, 1, 0, 0], sizes = [8, 1, 8, 32], strides = [1, 1, 1, 1]} : vector<8x2x8x32xf32> to vector<8x1x8x32xf32>
    %116 = vector.shape_cast %115 : vector<8x1x8x32xf32> to vector<8x8x32xf32>
    %c1_97 = arith.constant 1 : index
    %c0_98 = arith.constant 0 : index
    %c32_99 = arith.constant 32 : index
    %117 = vector.load %arg15[%c1_97, %c0_98, %c32_99] : memref<9x9x64xf32, #tpu.memory_space<vmem>>, vector<8x8x32xf32>
    tpu.vector_store %arg15[%c1_97, %c0_98, %c32_99], %116 {strides = array<i32>} : memref<9x9x64xf32, #tpu.memory_space<vmem>>, vector<8x8x32xf32>,
    %118 = vector.extract_strided_slice %111 {offsets = [0, 0, 0, 0], sizes = [8, 1, 8, 32], strides = [1, 1, 1, 1]} : vector<8x2x8x32xf32> to vector<8x1x8x32xf32>
    %119 = vector.shape_cast %118 : vector<8x1x8x32xf32> to vector<8x8x32xf32>
    %c0_100 = arith.constant 0 : index
    %c1_101 = arith.constant 1 : index
    %c0_102 = arith.constant 0 : index
    %120 = vector.load %arg16[%c0_100, %c1_101, %c0_102] : memref<9x9x64xf32, #tpu.memory_space<vmem>>, vector<8x8x32xf32>
    tpu.vector_store %arg16[%c0_100, %c1_101, %c0_102], %119 {strides = array<i32>} : memref<9x9x64xf32, #tpu.memory_space<vmem>>, vector<8x8x32xf32>,
    %121 = vector.extract_strided_slice %111 {offsets = [0, 1, 0, 0], sizes = [8, 1, 8, 32], strides = [1, 1, 1, 1]} : vector<8x2x8x32xf32> to vector<8x1x8x32xf32>
    %122 = vector.shape_cast %121 : vector<8x1x8x32xf32> to vector<8x8x32xf32>
    %c1_103 = arith.constant 1 : index
    %c1_104 = arith.constant 1 : index
    %c0_105 = arith.constant 0 : index
    %123 = vector.load %arg15[%c1_103, %c1_104, %c0_105] : memref<9x9x64xf32, #tpu.memory_space<vmem>>, vector<8x8x32xf32>
    tpu.vector_store %arg15[%c1_103, %c1_104, %c0_105], %122 {strides = array<i32>} : memref<9x9x64xf32, #tpu.memory_space<vmem>>, vector<8x8x32xf32>,
    %cst_106 = arith.constant 0.000000e+00 : f32
    %124 = vector.broadcast %cst_106 : f32 to vector<64x64xf32>
    %c0_107 = arith.constant 0 : index
    %c0_108 = arith.constant 0 : index
    %c0_109 = arith.constant 0 : index
    %125 = vector.load %arg15[%c0_107, %c0_108, %c0_109] : memref<9x9x64xf32, #tpu.memory_space<vmem>>, vector<8x8x64xf32>
    %126 = vector.shape_cast %125 : vector<8x8x64xf32> to vector<64x64xf32>
    %127 = arith.truncf %126 : vector<64x64xf32> to vector<64x64xbf16>
    %c0_110 = arith.constant 0 : index
    %c0_111 = arith.constant 0 : index
    %c0_112 = arith.constant 0 : index
    %128 = vector.load %arg6[%c0_110, %c0_111, %c0_112] : memref<8x64x64xbf16, #tpu.memory_space<vmem>>, vector<1x64x64xbf16>
    %129 = vector.shape_cast %128 : vector<1x64x64xbf16> to vector<64x64xbf16>
    %cst_113 = arith.constant dense<0.000000e+00> : vector<64x64xf32>
    %130 = tpu.matmul %127, %129, %cst_113 {dimension_numbers = #tpu.dot_dimension_numbers<[1], [0], [0], [1], [0, 0, 1, 1], [], []>} : vector<64x64xbf16>, vector<64x64xbf16>, vector<64x64xf32> -> vector<64x64xf32>
    %131 = arith.addf %124, %130 : vector<64x64xf32>
    %c0_114 = arith.constant 0 : index
    %c1_115 = arith.constant 1 : index
    %c0_116 = arith.constant 0 : index
    %132 = vector.load %arg15[%c0_114, %c1_115, %c0_116] : memref<9x9x64xf32, #tpu.memory_space<vmem>>, vector<8x8x64xf32>
    %133 = vector.shape_cast %132 : vector<8x8x64xf32> to vector<64x64xf32>
    %134 = arith.truncf %133 : vector<64x64xf32> to vector<64x64xbf16>
    %c1_117 = arith.constant 1 : index
    %c0_118 = arith.constant 0 : index
    %c0_119 = arith.constant 0 : index
    %135 = vector.load %arg6[%c1_117, %c0_118, %c0_119] : memref<8x64x64xbf16, #tpu.memory_space<vmem>>, vector<1x64x64xbf16>
    %136 = vector.shape_cast %135 : vector<1x64x64xbf16> to vector<64x64xbf16>
    %cst_120 = arith.constant dense<0.000000e+00> : vector<64x64xf32>
    %137 = tpu.matmul %134, %136, %cst_120 {dimension_numbers = #tpu.dot_dimension_numbers<[1], [0], [0], [1], [0, 0, 1, 1], [], []>} : vector<64x64xbf16>, vector<64x64xbf16>, vector<64x64xf32> -> vector<64x64xf32>
    %138 = arith.addf %131, %137 : vector<64x64xf32>
    %c0_121 = arith.constant 0 : index
    %c0_122 = arith.constant 0 : index
    %c0_123 = arith.constant 0 : index
    %139 = vector.load %arg16[%c0_121, %c0_122, %c0_123] : memref<9x9x64xf32, #tpu.memory_space<vmem>>, vector<8x8x64xf32>
    %140 = vector.shape_cast %139 : vector<8x8x64xf32> to vector<64x64xf32>
    %141 = arith.truncf %140 : vector<64x64xf32> to vector<64x64xbf16>
    %c2_124 = arith.constant 2 : index
    %c0_125 = arith.constant 0 : index
    %c0_126 = arith.constant 0 : index
    %142 = vector.load %arg6[%c2_124, %c0_125, %c0_126] : memref<8x64x64xbf16, #tpu.memory_space<vmem>>, vector<1x64x64xbf16>
    %143 = vector.shape_cast %142 : vector<1x64x64xbf16> to vector<64x64xbf16>
    %cst_127 = arith.constant dense<0.000000e+00> : vector<64x64xf32>
    %144 = tpu.matmul %141, %143, %cst_127 {dimension_numbers = #tpu.dot_dimension_numbers<[1], [0], [0], [1], [0, 0, 1, 1], [], []>} : vector<64x64xbf16>, vector<64x64xbf16>, vector<64x64xf32> -> vector<64x64xf32>
    %145 = arith.addf %138, %144 : vector<64x64xf32>
    %c0_128 = arith.constant 0 : index
    %c1_129 = arith.constant 1 : index
    %c0_130 = arith.constant 0 : index
    %146 = vector.load %arg16[%c0_128, %c1_129, %c0_130] : memref<9x9x64xf32, #tpu.memory_space<vmem>>, vector<8x8x64xf32>
    %147 = vector.shape_cast %146 : vector<8x8x64xf32> to vector<64x64xf32>
    %148 = arith.truncf %147 : vector<64x64xf32> to vector<64x64xbf16>
    %c3_131 = arith.constant 3 : index
    %c0_132 = arith.constant 0 : index
    %c0_133 = arith.constant 0 : index
    %149 = vector.load %arg6[%c3_131, %c0_132, %c0_133] : memref<8x64x64xbf16, #tpu.memory_space<vmem>>, vector<1x64x64xbf16>
    %150 = vector.shape_cast %149 : vector<1x64x64xbf16> to vector<64x64xbf16>
    %cst_134 = arith.constant dense<0.000000e+00> : vector<64x64xf32>
    %151 = tpu.matmul %148, %150, %cst_134 {dimension_numbers = #tpu.dot_dimension_numbers<[1], [0], [0], [1], [0, 0, 1, 1], [], []>} : vector<64x64xbf16>, vector<64x64xbf16>, vector<64x64xf32> -> vector<64x64xf32>
    %152 = arith.addf %145, %151 : vector<64x64xf32>
    %c1_135 = arith.constant 1 : index
    %c0_136 = arith.constant 0 : index
    %c0_137 = arith.constant 0 : index
    %153 = vector.load %arg15[%c1_135, %c0_136, %c0_137] : memref<9x9x64xf32, #tpu.memory_space<vmem>>, vector<8x8x64xf32>
    %154 = vector.shape_cast %153 : vector<8x8x64xf32> to vector<64x64xf32>
    %155 = arith.truncf %154 : vector<64x64xf32> to vector<64x64xbf16>
    %c4_138 = arith.constant 4 : index
    %c0_139 = arith.constant 0 : index
    %c0_140 = arith.constant 0 : index
    %156 = vector.load %arg6[%c4_138, %c0_139, %c0_140] : memref<8x64x64xbf16, #tpu.memory_space<vmem>>, vector<1x64x64xbf16>
    %157 = vector.shape_cast %156 : vector<1x64x64xbf16> to vector<64x64xbf16>
    %cst_141 = arith.constant dense<0.000000e+00> : vector<64x64xf32>
    %158 = tpu.matmul %155, %157, %cst_141 {dimension_numbers = #tpu.dot_dimension_numbers<[1], [0], [0], [1], [0, 0, 1, 1], [], []>} : vector<64x64xbf16>, vector<64x64xbf16>, vector<64x64xf32> -> vector<64x64xf32>
    %159 = arith.addf %152, %158 : vector<64x64xf32>
    %c1_142 = arith.constant 1 : index
    %c1_143 = arith.constant 1 : index
    %c0_144 = arith.constant 0 : index
    %160 = vector.load %arg15[%c1_142, %c1_143, %c0_144] : memref<9x9x64xf32, #tpu.memory_space<vmem>>, vector<8x8x64xf32>
    %161 = vector.shape_cast %160 : vector<8x8x64xf32> to vector<64x64xf32>
    %162 = arith.truncf %161 : vector<64x64xf32> to vector<64x64xbf16>
    %c5_145 = arith.constant 5 : index
    %c0_146 = arith.constant 0 : index
    %c0_147 = arith.constant 0 : index
    %163 = vector.load %arg6[%c5_145, %c0_146, %c0_147] : memref<8x64x64xbf16, #tpu.memory_space<vmem>>, vector<1x64x64xbf16>
    %164 = vector.shape_cast %163 : vector<1x64x64xbf16> to vector<64x64xbf16>
    %cst_148 = arith.constant dense<0.000000e+00> : vector<64x64xf32>
    %165 = tpu.matmul %162, %164, %cst_148 {dimension_numbers = #tpu.dot_dimension_numbers<[1], [0], [0], [1], [0, 0, 1, 1], [], []>} : vector<64x64xbf16>, vector<64x64xbf16>, vector<64x64xf32> -> vector<64x64xf32>
    %166 = arith.addf %159, %165 : vector<64x64xf32>
    %c1_149 = arith.constant 1 : index
    %c0_150 = arith.constant 0 : index
    %c0_151 = arith.constant 0 : index
    %167 = vector.load %arg16[%c1_149, %c0_150, %c0_151] : memref<9x9x64xf32, #tpu.memory_space<vmem>>, vector<8x8x64xf32>
    %168 = vector.shape_cast %167 : vector<8x8x64xf32> to vector<64x64xf32>
    %169 = arith.truncf %168 : vector<64x64xf32> to vector<64x64xbf16>
    %c6_152 = arith.constant 6 : index
    %c0_153 = arith.constant 0 : index
    %c0_154 = arith.constant 0 : index
    %170 = vector.load %arg6[%c6_152, %c0_153, %c0_154] : memref<8x64x64xbf16, #tpu.memory_space<vmem>>, vector<1x64x64xbf16>
    %171 = vector.shape_cast %170 : vector<1x64x64xbf16> to vector<64x64xbf16>
    %cst_155 = arith.constant dense<0.000000e+00> : vector<64x64xf32>
    %172 = tpu.matmul %169, %171, %cst_155 {dimension_numbers = #tpu.dot_dimension_numbers<[1], [0], [0], [1], [0, 0, 1, 1], [], []>} : vector<64x64xbf16>, vector<64x64xbf16>, vector<64x64xf32> -> vector<64x64xf32>
    %173 = arith.addf %166, %172 : vector<64x64xf32>
    %c1_156 = arith.constant 1 : index
    %c1_157 = arith.constant 1 : index
    %c0_158 = arith.constant 0 : index
    %174 = vector.load %arg16[%c1_156, %c1_157, %c0_158] : memref<9x9x64xf32, #tpu.memory_space<vmem>>, vector<8x8x64xf32>
    %175 = vector.shape_cast %174 : vector<8x8x64xf32> to vector<64x64xf32>
    %176 = arith.truncf %175 : vector<64x64xf32> to vector<64x64xbf16>
    %c7_159 = arith.constant 7 : index
    %c0_160 = arith.constant 0 : index
    %c0_161 = arith.constant 0 : index
    %177 = vector.load %arg6[%c7_159, %c0_160, %c0_161] : memref<8x64x64xbf16, #tpu.memory_space<vmem>>, vector<1x64x64xbf16>
    %178 = vector.shape_cast %177 : vector<1x64x64xbf16> to vector<64x64xbf16>
    %cst_162 = arith.constant dense<0.000000e+00> : vector<64x64xf32>
    %179 = tpu.matmul %176, %178, %cst_162 {dimension_numbers = #tpu.dot_dimension_numbers<[1], [0], [0], [1], [0, 0, 1, 1], [], []>} : vector<64x64xbf16>, vector<64x64xbf16>, vector<64x64xf32> -> vector<64x64xf32>
    %180 = arith.addf %173, %179 : vector<64x64xf32>
    %c0_163 = arith.constant 0 : index
    %c0_164 = arith.constant 0 : index
    %181 = vector.load %arg7[%c0_163, %c0_164] : memref<1x64xf32, #tpu.memory_space<vmem>>, vector<1x64xf32>
    %182 = vector.broadcast %181 : vector<1x64xf32> to vector<64x64xf32>
    %183 = arith.addf %180, %182 : vector<64x64xf32>
    %cst_165 = arith.constant 1.000000e-01 : f32
    %184 = vector.broadcast %cst_165 : f32 to vector<64x64xf32>
    %185 = arith.mulf %184, %183 : vector<64x64xf32>
    %186 = arith.maximumf %183, %185 : vector<64x64xf32>
    %187 = vector.shape_cast %186 : vector<64x64xf32> to vector<32x2x64xf32>
    %188 = vector.extract_strided_slice %187 {offsets = [0, 0, 0], sizes = [32, 1, 64], strides = [1, 1, 1]} : vector<32x2x64xf32> to vector<32x1x64xf32>
    %189 = vector.shape_cast %188 : vector<32x1x64xf32> to vector<32x64xf32>
    %190 = vector.shape_cast %189 : vector<32x64xf32> to vector<4x2x4x64xf32>
    %191 = vector.extract_strided_slice %187 {offsets = [0, 1, 0], sizes = [32, 1, 64], strides = [1, 1, 1]} : vector<32x2x64xf32> to vector<32x1x64xf32>
    %192 = vector.shape_cast %191 : vector<32x1x64xf32> to vector<32x64xf32>
    %193 = vector.shape_cast %192 : vector<32x64xf32> to vector<4x2x4x64xf32>
    %194 = vector.extract_strided_slice %190 {offsets = [0, 0, 0, 0], sizes = [4, 1, 4, 64], strides = [1, 1, 1, 1]} : vector<4x2x4x64xf32> to vector<4x1x4x64xf32>
    %195 = vector.shape_cast %194 : vector<4x1x4x64xf32> to vector<4x4x64xf32>
    %c0_166 = arith.constant 0 : index
    %c0_167 = arith.constant 0 : index
    %c64 = arith.constant 64 : index
    %196 = vector.load %arg18[%c0_166, %c0_167, %c64] : memref<5x5x128xf32, #tpu.memory_space<vmem>>, vector<4x4x64xf32>
    tpu.vector_store %arg18[%c0_166, %c0_167, %c64], %195 {strides = array<i32>} : memref<5x5x128xf32, #tpu.memory_space<vmem>>, vector<4x4x64xf32>,
    %197 = vector.extract_strided_slice %190 {offsets = [0, 1, 0, 0], sizes = [4, 1, 4, 64], strides = [1, 1, 1, 1]} : vector<4x2x4x64xf32> to vector<4x1x4x64xf32>
    %198 = vector.shape_cast %197 : vector<4x1x4x64xf32> to vector<4x4x64xf32>
    %c1_168 = arith.constant 1 : index
    %c0_169 = arith.constant 0 : index
    %c64_170 = arith.constant 64 : index
    %199 = vector.load %arg17[%c1_168, %c0_169, %c64_170] : memref<5x5x128xf32, #tpu.memory_space<vmem>>, vector<4x4x64xf32>
    tpu.vector_store %arg17[%c1_168, %c0_169, %c64_170], %198 {strides = array<i32>} : memref<5x5x128xf32, #tpu.memory_space<vmem>>, vector<4x4x64xf32>,
    %200 = vector.extract_strided_slice %193 {offsets = [0, 0, 0, 0], sizes = [4, 1, 4, 64], strides = [1, 1, 1, 1]} : vector<4x2x4x64xf32> to vector<4x1x4x64xf32>
    %201 = vector.shape_cast %200 : vector<4x1x4x64xf32> to vector<4x4x64xf32>
    %c0_171 = arith.constant 0 : index
    %c1_172 = arith.constant 1 : index
    %c0_173 = arith.constant 0 : index
    %202 = vector.load %arg18[%c0_171, %c1_172, %c0_173] : memref<5x5x128xf32, #tpu.memory_space<vmem>>, vector<4x4x64xf32>
    tpu.vector_store %arg18[%c0_171, %c1_172, %c0_173], %201 {strides = array<i32>} : memref<5x5x128xf32, #tpu.memory_space<vmem>>, vector<4x4x64xf32>,
    %203 = vector.extract_strided_slice %193 {offsets = [0, 1, 0, 0], sizes = [4, 1, 4, 64], strides = [1, 1, 1, 1]} : vector<4x2x4x64xf32> to vector<4x1x4x64xf32>
    %204 = vector.shape_cast %203 : vector<4x1x4x64xf32> to vector<4x4x64xf32>
    %c1_174 = arith.constant 1 : index
    %c1_175 = arith.constant 1 : index
    %c0_176 = arith.constant 0 : index
    %205 = vector.load %arg17[%c1_174, %c1_175, %c0_176] : memref<5x5x128xf32, #tpu.memory_space<vmem>>, vector<4x4x64xf32>
    tpu.vector_store %arg17[%c1_174, %c1_175, %c0_176], %204 {strides = array<i32>} : memref<5x5x128xf32, #tpu.memory_space<vmem>>, vector<4x4x64xf32>,
    %c0_177 = arith.constant 0 : index
    %c0_178 = arith.constant 0 : index
    %206 = vector.load %arg11[%c0_177, %c0_178] : memref<1x1xf32, #tpu.memory_space<vmem>>, vector<1x1xf32>
    %cst_179 = arith.constant 0.000000e+00 : f32
    %207 = vector.broadcast %cst_179 : f32 to vector<4x128xf32>
    %c0_180 = arith.constant 0 : index
    %c0_181 = arith.constant 0 : index
    %c0_182 = arith.constant 0 : index
    %208 = vector.load %arg17[%c0_180, %c0_181, %c0_182] : memref<5x5x128xf32, #tpu.memory_space<vmem>>, vector<1x4x128xf32>
    %209 = vector.shape_cast %208 : vector<1x4x128xf32> to vector<4x128xf32>
    %210 = arith.truncf %209 : vector<4x128xf32> to vector<4x128xbf16>
    %c0_183 = arith.constant 0 : index
    %c0_184 = arith.constant 0 : index
    %c0_185 = arith.constant 0 : index
    %211 = vector.load %arg8[%c0_183, %c0_184, %c0_185] : memref<8x128x128xbf16, #tpu.memory_space<vmem>>, vector<1x128x128xbf16>
    %212 = vector.shape_cast %211 : vector<1x128x128xbf16> to vector<128x128xbf16>
    %cst_186 = arith.constant dense<0.000000e+00> : vector<4x128xf32>
    %213 = tpu.matmul %210, %212, %cst_186 {dimension_numbers = #tpu.dot_dimension_numbers<[1], [0], [0], [1], [0, 0, 1, 1], [], []>} : vector<4x128xbf16>, vector<128x128xbf16>, vector<4x128xf32> -> vector<4x128xf32>
    %214 = arith.addf %207, %213 : vector<4x128xf32>
    %c0_187 = arith.constant 0 : index
    %c1_188 = arith.constant 1 : index
    %c0_189 = arith.constant 0 : index
    %215 = vector.load %arg17[%c0_187, %c1_188, %c0_189] : memref<5x5x128xf32, #tpu.memory_space<vmem>>, vector<1x4x128xf32>
    %216 = vector.shape_cast %215 : vector<1x4x128xf32> to vector<4x128xf32>
    %217 = arith.truncf %216 : vector<4x128xf32> to vector<4x128xbf16>
    %c1_190 = arith.constant 1 : index
    %c0_191 = arith.constant 0 : index
    %c0_192 = arith.constant 0 : index
    %218 = vector.load %arg8[%c1_190, %c0_191, %c0_192] : memref<8x128x128xbf16, #tpu.memory_space<vmem>>, vector<1x128x128xbf16>
    %219 = vector.shape_cast %218 : vector<1x128x128xbf16> to vector<128x128xbf16>
    %cst_193 = arith.constant dense<0.000000e+00> : vector<4x128xf32>
    %220 = tpu.matmul %217, %219, %cst_193 {dimension_numbers = #tpu.dot_dimension_numbers<[1], [0], [0], [1], [0, 0, 1, 1], [], []>} : vector<4x128xbf16>, vector<128x128xbf16>, vector<4x128xf32> -> vector<4x128xf32>
    %221 = arith.addf %214, %220 : vector<4x128xf32>
    %c0_194 = arith.constant 0 : index
    %c0_195 = arith.constant 0 : index
    %c0_196 = arith.constant 0 : index
    %222 = vector.load %arg18[%c0_194, %c0_195, %c0_196] : memref<5x5x128xf32, #tpu.memory_space<vmem>>, vector<1x4x128xf32>
    %223 = vector.shape_cast %222 : vector<1x4x128xf32> to vector<4x128xf32>
    %224 = arith.truncf %223 : vector<4x128xf32> to vector<4x128xbf16>
    %c2_197 = arith.constant 2 : index
    %c0_198 = arith.constant 0 : index
    %c0_199 = arith.constant 0 : index
    %225 = vector.load %arg8[%c2_197, %c0_198, %c0_199] : memref<8x128x128xbf16, #tpu.memory_space<vmem>>, vector<1x128x128xbf16>
    %226 = vector.shape_cast %225 : vector<1x128x128xbf16> to vector<128x128xbf16>
    %cst_200 = arith.constant dense<0.000000e+00> : vector<4x128xf32>
    %227 = tpu.matmul %224, %226, %cst_200 {dimension_numbers = #tpu.dot_dimension_numbers<[1], [0], [0], [1], [0, 0, 1, 1], [], []>} : vector<4x128xbf16>, vector<128x128xbf16>, vector<4x128xf32> -> vector<4x128xf32>
    %228 = arith.addf %221, %227 : vector<4x128xf32>
    %c0_201 = arith.constant 0 : index
    %c1_202 = arith.constant 1 : index
    %c0_203 = arith.constant 0 : index
    %229 = vector.load %arg18[%c0_201, %c1_202, %c0_203] : memref<5x5x128xf32, #tpu.memory_space<vmem>>, vector<1x4x128xf32>
    %230 = vector.shape_cast %229 : vector<1x4x128xf32> to vector<4x128xf32>
    %231 = arith.truncf %230 : vector<4x128xf32> to vector<4x128xbf16>
    %c3_204 = arith.constant 3 : index
    %c0_205 = arith.constant 0 : index
    %c0_206 = arith.constant 0 : index
    %232 = vector.load %arg8[%c3_204, %c0_205, %c0_206] : memref<8x128x128xbf16, #tpu.memory_space<vmem>>, vector<1x128x128xbf16>
    %233 = vector.shape_cast %232 : vector<1x128x128xbf16> to vector<128x128xbf16>
    %cst_207 = arith.constant dense<0.000000e+00> : vector<4x128xf32>
    %234 = tpu.matmul %231, %233, %cst_207 {dimension_numbers = #tpu.dot_dimension_numbers<[1], [0], [0], [1], [0, 0, 1, 1], [], []>} : vector<4x128xbf16>, vector<128x128xbf16>, vector<4x128xf32> -> vector<4x128xf32>
    %235 = arith.addf %228, %234 : vector<4x128xf32>
    %c1_208 = arith.constant 1 : index
    %c0_209 = arith.constant 0 : index
    %c0_210 = arith.constant 0 : index
    %236 = vector.load %arg17[%c1_208, %c0_209, %c0_210] : memref<5x5x128xf32, #tpu.memory_space<vmem>>, vector<1x4x128xf32>
    %237 = vector.shape_cast %236 : vector<1x4x128xf32> to vector<4x128xf32>
    %238 = arith.truncf %237 : vector<4x128xf32> to vector<4x128xbf16>
    %c4_211 = arith.constant 4 : index
    %c0_212 = arith.constant 0 : index
    %c0_213 = arith.constant 0 : index
    %239 = vector.load %arg8[%c4_211, %c0_212, %c0_213] : memref<8x128x128xbf16, #tpu.memory_space<vmem>>, vector<1x128x128xbf16>
    %240 = vector.shape_cast %239 : vector<1x128x128xbf16> to vector<128x128xbf16>
    %cst_214 = arith.constant dense<0.000000e+00> : vector<4x128xf32>
    %241 = tpu.matmul %238, %240, %cst_214 {dimension_numbers = #tpu.dot_dimension_numbers<[1], [0], [0], [1], [0, 0, 1, 1], [], []>} : vector<4x128xbf16>, vector<128x128xbf16>, vector<4x128xf32> -> vector<4x128xf32>
    %242 = arith.addf %235, %241 : vector<4x128xf32>
    %c1_215 = arith.constant 1 : index
    %c1_216 = arith.constant 1 : index
    %c0_217 = arith.constant 0 : index
    %243 = vector.load %arg17[%c1_215, %c1_216, %c0_217] : memref<5x5x128xf32, #tpu.memory_space<vmem>>, vector<1x4x128xf32>
    %244 = vector.shape_cast %243 : vector<1x4x128xf32> to vector<4x128xf32>
    %245 = arith.truncf %244 : vector<4x128xf32> to vector<4x128xbf16>
    %c5_218 = arith.constant 5 : index
    %c0_219 = arith.constant 0 : index
    %c0_220 = arith.constant 0 : index
    %246 = vector.load %arg8[%c5_218, %c0_219, %c0_220] : memref<8x128x128xbf16, #tpu.memory_space<vmem>>, vector<1x128x128xbf16>
    %247 = vector.shape_cast %246 : vector<1x128x128xbf16> to vector<128x128xbf16>
    %cst_221 = arith.constant dense<0.000000e+00> : vector<4x128xf32>
    %248 = tpu.matmul %245, %247, %cst_221 {dimension_numbers = #tpu.dot_dimension_numbers<[1], [0], [0], [1], [0, 0, 1, 1], [], []>} : vector<4x128xbf16>, vector<128x128xbf16>, vector<4x128xf32> -> vector<4x128xf32>
    %249 = arith.addf %242, %248 : vector<4x128xf32>
    %c1_222 = arith.constant 1 : index
    %c0_223 = arith.constant 0 : index
    %c0_224 = arith.constant 0 : index
    %250 = vector.load %arg18[%c1_222, %c0_223, %c0_224] : memref<5x5x128xf32, #tpu.memory_space<vmem>>, vector<1x4x128xf32>
    %251 = vector.shape_cast %250 : vector<1x4x128xf32> to vector<4x128xf32>
    %252 = arith.truncf %251 : vector<4x128xf32> to vector<4x128xbf16>
    %c6_225 = arith.constant 6 : index
    %c0_226 = arith.constant 0 : index
    %c0_227 = arith.constant 0 : index
    %253 = vector.load %arg8[%c6_225, %c0_226, %c0_227] : memref<8x128x128xbf16, #tpu.memory_space<vmem>>, vector<1x128x128xbf16>
    %254 = vector.shape_cast %253 : vector<1x128x128xbf16> to vector<128x128xbf16>
    %cst_228 = arith.constant dense<0.000000e+00> : vector<4x128xf32>
    %255 = tpu.matmul %252, %254, %cst_228 {dimension_numbers = #tpu.dot_dimension_numbers<[1], [0], [0], [1], [0, 0, 1, 1], [], []>} : vector<4x128xbf16>, vector<128x128xbf16>, vector<4x128xf32> -> vector<4x128xf32>
    %256 = arith.addf %249, %255 : vector<4x128xf32>
    %c1_229 = arith.constant 1 : index
    %c1_230 = arith.constant 1 : index
    %c0_231 = arith.constant 0 : index
    %257 = vector.load %arg18[%c1_229, %c1_230, %c0_231] : memref<5x5x128xf32, #tpu.memory_space<vmem>>, vector<1x4x128xf32>
    %258 = vector.shape_cast %257 : vector<1x4x128xf32> to vector<4x128xf32>
    %259 = arith.truncf %258 : vector<4x128xf32> to vector<4x128xbf16>
    %c7_232 = arith.constant 7 : index
    %c0_233 = arith.constant 0 : index
    %c0_234 = arith.constant 0 : index
    %260 = vector.load %arg8[%c7_232, %c0_233, %c0_234] : memref<8x128x128xbf16, #tpu.memory_space<vmem>>, vector<1x128x128xbf16>
    %261 = vector.shape_cast %260 : vector<1x128x128xbf16> to vector<128x128xbf16>
    %cst_235 = arith.constant dense<0.000000e+00> : vector<4x128xf32>
    %262 = tpu.matmul %259, %261, %cst_235 {dimension_numbers = #tpu.dot_dimension_numbers<[1], [0], [0], [1], [0, 0, 1, 1], [], []>} : vector<4x128xbf16>, vector<128x128xbf16>, vector<4x128xf32> -> vector<4x128xf32>
    %263 = arith.addf %256, %262 : vector<4x128xf32>
    %c0_236 = arith.constant 0 : index
    %c0_237 = arith.constant 0 : index
    %264 = vector.load %arg9[%c0_236, %c0_237] : memref<1x128xf32, #tpu.memory_space<vmem>>, vector<1x128xf32>
    %265 = vector.broadcast %264 : vector<1x128xf32> to vector<4x128xf32>
    %266 = arith.addf %263, %265 : vector<4x128xf32>
    %cst_238 = arith.constant 1.000000e-01 : f32
    %267 = vector.broadcast %cst_238 : f32 to vector<4x128xf32>
    %268 = arith.mulf %267, %266 : vector<4x128xf32>
    %269 = arith.maximumf %266, %268 : vector<4x128xf32>
    %c0_239 = arith.constant 0 : index
    %c0_240 = arith.constant 0 : index
    %c0_241 = arith.constant 0 : index
    %270 = vector.load %arg10[%c0_239, %c0_240, %c0_241] : memref<4x4x128xf32, #tpu.memory_space<vmem>>, vector<1x4x128xf32>
    %271 = vector.shape_cast %270 : vector<1x4x128xf32> to vector<4x128xf32>
    %272 = arith.mulf %269, %271 : vector<4x128xf32>
    %273 = vector.shape_cast %272 : vector<4x128xf32> to vector<1x4x128xf32>
    %cst_242 = arith.constant dense<0.000000e+00> : vector<1xf32>
    %274 = vector.multi_reduction <add>, %273, %cst_242 [1, 2] : vector<1x4x128xf32> to vector<1xf32>
    %275 = vector.shape_cast %274 : vector<1xf32> to vector<1x1x1xf32>
    %276 = vector.extract %275[0, 0, 0] : f32 from vector<1x1x1xf32>
    %277 = vector.broadcast %276 : f32 to vector<1x1xf32>
    %278 = arith.addf %206, %277 : vector<1x1xf32>
    %cst_243 = arith.constant 0.000000e+00 : f32
    %279 = vector.broadcast %cst_243 : f32 to vector<4x128xf32>
    %c1_244 = arith.constant 1 : index
    %c0_245 = arith.constant 0 : index
    %c0_246 = arith.constant 0 : index
    %280 = vector.load %arg17[%c1_244, %c0_245, %c0_246] : memref<5x5x128xf32, #tpu.memory_space<vmem>>, vector<1x4x128xf32>
    %281 = vector.shape_cast %280 : vector<1x4x128xf32> to vector<4x128xf32>
    %282 = arith.truncf %281 : vector<4x128xf32> to vector<4x128xbf16>
    %c0_247 = arith.constant 0 : index
    %c0_248 = arith.constant 0 : index
    %c0_249 = arith.constant 0 : index
    %283 = vector.load %arg8[%c0_247, %c0_248, %c0_249] : memref<8x128x128xbf16, #tpu.memory_space<vmem>>, vector<1x128x128xbf16>
    %284 = vector.shape_cast %283 : vector<1x128x128xbf16> to vector<128x128xbf16>
    %cst_250 = arith.constant dense<0.000000e+00> : vector<4x128xf32>
    %285 = tpu.matmul %282, %284, %cst_250 {dimension_numbers = #tpu.dot_dimension_numbers<[1], [0], [0], [1], [0, 0, 1, 1], [], []>} : vector<4x128xbf16>, vector<128x128xbf16>, vector<4x128xf32> -> vector<4x128xf32>
    %286 = arith.addf %279, %285 : vector<4x128xf32>
    %c1_251 = arith.constant 1 : index
    %c1_252 = arith.constant 1 : index
    %c0_253 = arith.constant 0 : index
    %287 = vector.load %arg17[%c1_251, %c1_252, %c0_253] : memref<5x5x128xf32, #tpu.memory_space<vmem>>, vector<1x4x128xf32>
    %288 = vector.shape_cast %287 : vector<1x4x128xf32> to vector<4x128xf32>
    %289 = arith.truncf %288 : vector<4x128xf32> to vector<4x128xbf16>
    %c1_254 = arith.constant 1 : index
    %c0_255 = arith.constant 0 : index
    %c0_256 = arith.constant 0 : index
    %290 = vector.load %arg8[%c1_254, %c0_255, %c0_256] : memref<8x128x128xbf16, #tpu.memory_space<vmem>>, vector<1x128x128xbf16>
    %291 = vector.shape_cast %290 : vector<1x128x128xbf16> to vector<128x128xbf16>
    %cst_257 = arith.constant dense<0.000000e+00> : vector<4x128xf32>
    %292 = tpu.matmul %289, %291, %cst_257 {dimension_numbers = #tpu.dot_dimension_numbers<[1], [0], [0], [1], [0, 0, 1, 1], [], []>} : vector<4x128xbf16>, vector<128x128xbf16>, vector<4x128xf32> -> vector<4x128xf32>
    %293 = arith.addf %286, %292 : vector<4x128xf32>
    %c1_258 = arith.constant 1 : index
    %c0_259 = arith.constant 0 : index
    %c0_260 = arith.constant 0 : index
    %294 = vector.load %arg18[%c1_258, %c0_259, %c0_260] : memref<5x5x128xf32, #tpu.memory_space<vmem>>, vector<1x4x128xf32>
    %295 = vector.shape_cast %294 : vector<1x4x128xf32> to vector<4x128xf32>
    %296 = arith.truncf %295 : vector<4x128xf32> to vector<4x128xbf16>
    %c2_261 = arith.constant 2 : index
    %c0_262 = arith.constant 0 : index
    %c0_263 = arith.constant 0 : index
    %297 = vector.load %arg8[%c2_261, %c0_262, %c0_263] : memref<8x128x128xbf16, #tpu.memory_space<vmem>>, vector<1x128x128xbf16>
    %298 = vector.shape_cast %297 : vector<1x128x128xbf16> to vector<128x128xbf16>
    %cst_264 = arith.constant dense<0.000000e+00> : vector<4x128xf32>
    %299 = tpu.matmul %296, %298, %cst_264 {dimension_numbers = #tpu.dot_dimension_numbers<[1], [0], [0], [1], [0, 0, 1, 1], [], []>} : vector<4x128xbf16>, vector<128x128xbf16>, vector<4x128xf32> -> vector<4x128xf32>
    %300 = arith.addf %293, %299 : vector<4x128xf32>
    %c1_265 = arith.constant 1 : index
    %c1_266 = arith.constant 1 : index
    %c0_267 = arith.constant 0 : index
    %301 = vector.load %arg18[%c1_265, %c1_266, %c0_267] : memref<5x5x128xf32, #tpu.memory_space<vmem>>, vector<1x4x128xf32>
    %302 = vector.shape_cast %301 : vector<1x4x128xf32> to vector<4x128xf32>
    %303 = arith.truncf %302 : vector<4x128xf32> to vector<4x128xbf16>
    %c3_268 = arith.constant 3 : index
    %c0_269 = arith.constant 0 : index
    %c0_270 = arith.constant 0 : index
    %304 = vector.load %arg8[%c3_268, %c0_269, %c0_270] : memref<8x128x128xbf16, #tpu.memory_space<vmem>>, vector<1x128x128xbf16>
    %305 = vector.shape_cast %304 : vector<1x128x128xbf16> to vector<128x128xbf16>
    %cst_271 = arith.constant dense<0.000000e+00> : vector<4x128xf32>
    %306 = tpu.matmul %303, %305, %cst_271 {dimension_numbers = #tpu.dot_dimension_numbers<[1], [0], [0], [1], [0, 0, 1, 1], [], []>} : vector<4x128xbf16>, vector<128x128xbf16>, vector<4x128xf32> -> vector<4x128xf32>
    %307 = arith.addf %300, %306 : vector<4x128xf32>
    %c2_272 = arith.constant 2 : index
    %c0_273 = arith.constant 0 : index
    %c0_274 = arith.constant 0 : index
    %308 = vector.load %arg17[%c2_272, %c0_273, %c0_274] : memref<5x5x128xf32, #tpu.memory_space<vmem>>, vector<1x4x128xf32>
    %309 = vector.shape_cast %308 : vector<1x4x128xf32> to vector<4x128xf32>
    %310 = arith.truncf %309 : vector<4x128xf32> to vector<4x128xbf16>
    %c4_275 = arith.constant 4 : index
    %c0_276 = arith.constant 0 : index
    %c0_277 = arith.constant 0 : index
    %311 = vector.load %arg8[%c4_275, %c0_276, %c0_277] : memref<8x128x128xbf16, #tpu.memory_space<vmem>>, vector<1x128x128xbf16>
    %312 = vector.shape_cast %311 : vector<1x128x128xbf16> to vector<128x128xbf16>
    %cst_278 = arith.constant dense<0.000000e+00> : vector<4x128xf32>
    %313 = tpu.matmul %310, %312, %cst_278 {dimension_numbers = #tpu.dot_dimension_numbers<[1], [0], [0], [1], [0, 0, 1, 1], [], []>} : vector<4x128xbf16>, vector<128x128xbf16>, vector<4x128xf32> -> vector<4x128xf32>
    %314 = arith.addf %307, %313 : vector<4x128xf32>
    %c2_279 = arith.constant 2 : index
    %c1_280 = arith.constant 1 : index
    %c0_281 = arith.constant 0 : index
    %315 = vector.load %arg17[%c2_279, %c1_280, %c0_281] : memref<5x5x128xf32, #tpu.memory_space<vmem>>, vector<1x4x128xf32>
    %316 = vector.shape_cast %315 : vector<1x4x128xf32> to vector<4x128xf32>
    %317 = arith.truncf %316 : vector<4x128xf32> to vector<4x128xbf16>
    %c5_282 = arith.constant 5 : index
    %c0_283 = arith.constant 0 : index
    %c0_284 = arith.constant 0 : index
    %318 = vector.load %arg8[%c5_282, %c0_283, %c0_284] : memref<8x128x128xbf16, #tpu.memory_space<vmem>>, vector<1x128x128xbf16>
    %319 = vector.shape_cast %318 : vector<1x128x128xbf16> to vector<128x128xbf16>
    %cst_285 = arith.constant dense<0.000000e+00> : vector<4x128xf32>
    %320 = tpu.matmul %317, %319, %cst_285 {dimension_numbers = #tpu.dot_dimension_numbers<[1], [0], [0], [1], [0, 0, 1, 1], [], []>} : vector<4x128xbf16>, vector<128x128xbf16>, vector<4x128xf32> -> vector<4x128xf32>
    %321 = arith.addf %314, %320 : vector<4x128xf32>
    %c2_286 = arith.constant 2 : index
    %c0_287 = arith.constant 0 : index
    %c0_288 = arith.constant 0 : index
    %322 = vector.load %arg18[%c2_286, %c0_287, %c0_288] : memref<5x5x128xf32, #tpu.memory_space<vmem>>, vector<1x4x128xf32>
    %323 = vector.shape_cast %322 : vector<1x4x128xf32> to vector<4x128xf32>
    %324 = arith.truncf %323 : vector<4x128xf32> to vector<4x128xbf16>
    %c6_289 = arith.constant 6 : index
    %c0_290 = arith.constant 0 : index
    %c0_291 = arith.constant 0 : index
    %325 = vector.load %arg8[%c6_289, %c0_290, %c0_291] : memref<8x128x128xbf16, #tpu.memory_space<vmem>>, vector<1x128x128xbf16>
    %326 = vector.shape_cast %325 : vector<1x128x128xbf16> to vector<128x128xbf16>
    %cst_292 = arith.constant dense<0.000000e+00> : vector<4x128xf32>
    %327 = tpu.matmul %324, %326, %cst_292 {dimension_numbers = #tpu.dot_dimension_numbers<[1], [0], [0], [1], [0, 0, 1, 1], [], []>} : vector<4x128xbf16>, vector<128x128xbf16>, vector<4x128xf32> -> vector<4x128xf32>
    %328 = arith.addf %321, %327 : vector<4x128xf32>
    %c2_293 = arith.constant 2 : index
    %c1_294 = arith.constant 1 : index
    %c0_295 = arith.constant 0 : index
    %329 = vector.load %arg18[%c2_293, %c1_294, %c0_295] : memref<5x5x128xf32, #tpu.memory_space<vmem>>, vector<1x4x128xf32>
    %330 = vector.shape_cast %329 : vector<1x4x128xf32> to vector<4x128xf32>
    %331 = arith.truncf %330 : vector<4x128xf32> to vector<4x128xbf16>
    %c7_296 = arith.constant 7 : index
    %c0_297 = arith.constant 0 : index
    %c0_298 = arith.constant 0 : index
    %332 = vector.load %arg8[%c7_296, %c0_297, %c0_298] : memref<8x128x128xbf16, #tpu.memory_space<vmem>>, vector<1x128x128xbf16>
    %333 = vector.shape_cast %332 : vector<1x128x128xbf16> to vector<128x128xbf16>
    %cst_299 = arith.constant dense<0.000000e+00> : vector<4x128xf32>
    %334 = tpu.matmul %331, %333, %cst_299 {dimension_numbers = #tpu.dot_dimension_numbers<[1], [0], [0], [1], [0, 0, 1, 1], [], []>} : vector<4x128xbf16>, vector<128x128xbf16>, vector<4x128xf32> -> vector<4x128xf32>
    %335 = arith.addf %328, %334 : vector<4x128xf32>
    %c0_300 = arith.constant 0 : index
    %c0_301 = arith.constant 0 : index
    %336 = vector.load %arg9[%c0_300, %c0_301] : memref<1x128xf32, #tpu.memory_space<vmem>>, vector<1x128xf32>
    %337 = vector.broadcast %336 : vector<1x128xf32> to vector<4x128xf32>
    %338 = arith.addf %335, %337 : vector<4x128xf32>
    %cst_302 = arith.constant 1.000000e-01 : f32
    %339 = vector.broadcast %cst_302 : f32 to vector<4x128xf32>
    %340 = arith.mulf %339, %338 : vector<4x128xf32>
    %341 = arith.maximumf %338, %340 : vector<4x128xf32>
    %c1_303 = arith.constant 1 : index
    %c0_304 = arith.constant 0 : index
    %c0_305 = arith.constant 0 : index
    %342 = vector.load %arg10[%c1_303, %c0_304, %c0_305] : memref<4x4x128xf32, #tpu.memory_space<vmem>>, vector<1x4x128xf32>
    %343 = vector.shape_cast %342 : vector<1x4x128xf32> to vector<4x128xf32>
    %344 = arith.mulf %341, %343 : vector<4x128xf32>
    %345 = vector.shape_cast %344 : vector<4x128xf32> to vector<1x4x128xf32>
    %cst_306 = arith.constant dense<0.000000e+00> : vector<1xf32>
    %346 = vector.multi_reduction <add>, %345, %cst_306 [1, 2] : vector<1x4x128xf32> to vector<1xf32>
    %347 = vector.shape_cast %346 : vector<1xf32> to vector<1x1x1xf32>
    %348 = vector.extract %347[0, 0, 0] : f32 from vector<1x1x1xf32>
    %349 = vector.broadcast %348 : f32 to vector<1x1xf32>
    %350 = arith.addf %278, %349 : vector<1x1xf32>
    %cst_307 = arith.constant 0.000000e+00 : f32
    %351 = vector.broadcast %cst_307 : f32 to vector<4x128xf32>
    %c2_308 = arith.constant 2 : index
    %c0_309 = arith.constant 0 : index
    %c0_310 = arith.constant 0 : index
    %352 = vector.load %arg17[%c2_308, %c0_309, %c0_310] : memref<5x5x128xf32, #tpu.memory_space<vmem>>, vector<1x4x128xf32>
    %353 = vector.shape_cast %352 : vector<1x4x128xf32> to vector<4x128xf32>
    %354 = arith.truncf %353 : vector<4x128xf32> to vector<4x128xbf16>
    %c0_311 = arith.constant 0 : index
    %c0_312 = arith.constant 0 : index
    %c0_313 = arith.constant 0 : index
    %355 = vector.load %arg8[%c0_311, %c0_312, %c0_313] : memref<8x128x128xbf16, #tpu.memory_space<vmem>>, vector<1x128x128xbf16>
    %356 = vector.shape_cast %355 : vector<1x128x128xbf16> to vector<128x128xbf16>
    %cst_314 = arith.constant dense<0.000000e+00> : vector<4x128xf32>
    %357 = tpu.matmul %354, %356, %cst_314 {dimension_numbers = #tpu.dot_dimension_numbers<[1], [0], [0], [1], [0, 0, 1, 1], [], []>} : vector<4x128xbf16>, vector<128x128xbf16>, vector<4x128xf32> -> vector<4x128xf32>
    %358 = arith.addf %351, %357 : vector<4x128xf32>
    %c2_315 = arith.constant 2 : index
    %c1_316 = arith.constant 1 : index
    %c0_317 = arith.constant 0 : index
    %359 = vector.load %arg17[%c2_315, %c1_316, %c0_317] : memref<5x5x128xf32, #tpu.memory_space<vmem>>, vector<1x4x128xf32>
    %360 = vector.shape_cast %359 : vector<1x4x128xf32> to vector<4x128xf32>
    %361 = arith.truncf %360 : vector<4x128xf32> to vector<4x128xbf16>
    %c1_318 = arith.constant 1 : index
    %c0_319 = arith.constant 0 : index
    %c0_320 = arith.constant 0 : index
    %362 = vector.load %arg8[%c1_318, %c0_319, %c0_320] : memref<8x128x128xbf16, #tpu.memory_space<vmem>>, vector<1x128x128xbf16>
    %363 = vector.shape_cast %362 : vector<1x128x128xbf16> to vector<128x128xbf16>
    %cst_321 = arith.constant dense<0.000000e+00> : vector<4x128xf32>
    %364 = tpu.matmul %361, %363, %cst_321 {dimension_numbers = #tpu.dot_dimension_numbers<[1], [0], [0], [1], [0, 0, 1, 1], [], []>} : vector<4x128xbf16>, vector<128x128xbf16>, vector<4x128xf32> -> vector<4x128xf32>
    %365 = arith.addf %358, %364 : vector<4x128xf32>
    %c2_322 = arith.constant 2 : index
    %c0_323 = arith.constant 0 : index
    %c0_324 = arith.constant 0 : index
    %366 = vector.load %arg18[%c2_322, %c0_323, %c0_324] : memref<5x5x128xf32, #tpu.memory_space<vmem>>, vector<1x4x128xf32>
    %367 = vector.shape_cast %366 : vector<1x4x128xf32> to vector<4x128xf32>
    %368 = arith.truncf %367 : vector<4x128xf32> to vector<4x128xbf16>
    %c2_325 = arith.constant 2 : index
    %c0_326 = arith.constant 0 : index
    %c0_327 = arith.constant 0 : index
    %369 = vector.load %arg8[%c2_325, %c0_326, %c0_327] : memref<8x128x128xbf16, #tpu.memory_space<vmem>>, vector<1x128x128xbf16>
    %370 = vector.shape_cast %369 : vector<1x128x128xbf16> to vector<128x128xbf16>
    %cst_328 = arith.constant dense<0.000000e+00> : vector<4x128xf32>
    %371 = tpu.matmul %368, %370, %cst_328 {dimension_numbers = #tpu.dot_dimension_numbers<[1], [0], [0], [1], [0, 0, 1, 1], [], []>} : vector<4x128xbf16>, vector<128x128xbf16>, vector<4x128xf32> -> vector<4x128xf32>
    %372 = arith.addf %365, %371 : vector<4x128xf32>
    %c2_329 = arith.constant 2 : index
    %c1_330 = arith.constant 1 : index
    %c0_331 = arith.constant 0 : index
    %373 = vector.load %arg18[%c2_329, %c1_330, %c0_331] : memref<5x5x128xf32, #tpu.memory_space<vmem>>, vector<1x4x128xf32>
    %374 = vector.shape_cast %373 : vector<1x4x128xf32> to vector<4x128xf32>
    %375 = arith.truncf %374 : vector<4x128xf32> to vector<4x128xbf16>
    %c3_332 = arith.constant 3 : index
    %c0_333 = arith.constant 0 : index
    %c0_334 = arith.constant 0 : index
    %376 = vector.load %arg8[%c3_332, %c0_333, %c0_334] : memref<8x128x128xbf16, #tpu.memory_space<vmem>>, vector<1x128x128xbf16>
    %377 = vector.shape_cast %376 : vector<1x128x128xbf16> to vector<128x128xbf16>
    %cst_335 = arith.constant dense<0.000000e+00> : vector<4x128xf32>
    %378 = tpu.matmul %375, %377, %cst_335 {dimension_numbers = #tpu.dot_dimension_numbers<[1], [0], [0], [1], [0, 0, 1, 1], [], []>} : vector<4x128xbf16>, vector<128x128xbf16>, vector<4x128xf32> -> vector<4x128xf32>
    %379 = arith.addf %372, %378 : vector<4x128xf32>
    %c3_336 = arith.constant 3 : index
    %c0_337 = arith.constant 0 : index
    %c0_338 = arith.constant 0 : index
    %380 = vector.load %arg17[%c3_336, %c0_337, %c0_338] : memref<5x5x128xf32, #tpu.memory_space<vmem>>, vector<1x4x128xf32>
    %381 = vector.shape_cast %380 : vector<1x4x128xf32> to vector<4x128xf32>
    %382 = arith.truncf %381 : vector<4x128xf32> to vector<4x128xbf16>
    %c4_339 = arith.constant 4 : index
    %c0_340 = arith.constant 0 : index
    %c0_341 = arith.constant 0 : index
    %383 = vector.load %arg8[%c4_339, %c0_340, %c0_341] : memref<8x128x128xbf16, #tpu.memory_space<vmem>>, vector<1x128x128xbf16>
    %384 = vector.shape_cast %383 : vector<1x128x128xbf16> to vector<128x128xbf16>
    %cst_342 = arith.constant dense<0.000000e+00> : vector<4x128xf32>
    %385 = tpu.matmul %382, %384, %cst_342 {dimension_numbers = #tpu.dot_dimension_numbers<[1], [0], [0], [1], [0, 0, 1, 1], [], []>} : vector<4x128xbf16>, vector<128x128xbf16>, vector<4x128xf32> -> vector<4x128xf32>
    %386 = arith.addf %379, %385 : vector<4x128xf32>
    %c3_343 = arith.constant 3 : index
    %c1_344 = arith.constant 1 : index
    %c0_345 = arith.constant 0 : index
    %387 = vector.load %arg17[%c3_343, %c1_344, %c0_345] : memref<5x5x128xf32, #tpu.memory_space<vmem>>, vector<1x4x128xf32>
    %388 = vector.shape_cast %387 : vector<1x4x128xf32> to vector<4x128xf32>
    %389 = arith.truncf %388 : vector<4x128xf32> to vector<4x128xbf16>
    %c5_346 = arith.constant 5 : index
    %c0_347 = arith.constant 0 : index
    %c0_348 = arith.constant 0 : index
    %390 = vector.load %arg8[%c5_346, %c0_347, %c0_348] : memref<8x128x128xbf16, #tpu.memory_space<vmem>>, vector<1x128x128xbf16>
    %391 = vector.shape_cast %390 : vector<1x128x128xbf16> to vector<128x128xbf16>
    %cst_349 = arith.constant dense<0.000000e+00> : vector<4x128xf32>
    %392 = tpu.matmul %389, %391, %cst_349 {dimension_numbers = #tpu.dot_dimension_numbers<[1], [0], [0], [1], [0, 0, 1, 1], [], []>} : vector<4x128xbf16>, vector<128x128xbf16>, vector<4x128xf32> -> vector<4x128xf32>
    %393 = arith.addf %386, %392 : vector<4x128xf32>
    %c3_350 = arith.constant 3 : index
    %c0_351 = arith.constant 0 : index
    %c0_352 = arith.constant 0 : index
    %394 = vector.load %arg18[%c3_350, %c0_351, %c0_352] : memref<5x5x128xf32, #tpu.memory_space<vmem>>, vector<1x4x128xf32>
    %395 = vector.shape_cast %394 : vector<1x4x128xf32> to vector<4x128xf32>
    %396 = arith.truncf %395 : vector<4x128xf32> to vector<4x128xbf16>
    %c6_353 = arith.constant 6 : index
    %c0_354 = arith.constant 0 : index
    %c0_355 = arith.constant 0 : index
    %397 = vector.load %arg8[%c6_353, %c0_354, %c0_355] : memref<8x128x128xbf16, #tpu.memory_space<vmem>>, vector<1x128x128xbf16>
    %398 = vector.shape_cast %397 : vector<1x128x128xbf16> to vector<128x128xbf16>
    %cst_356 = arith.constant dense<0.000000e+00> : vector<4x128xf32>
    %399 = tpu.matmul %396, %398, %cst_356 {dimension_numbers = #tpu.dot_dimension_numbers<[1], [0], [0], [1], [0, 0, 1, 1], [], []>} : vector<4x128xbf16>, vector<128x128xbf16>, vector<4x128xf32> -> vector<4x128xf32>
    %400 = arith.addf %393, %399 : vector<4x128xf32>
    %c3_357 = arith.constant 3 : index
    %c1_358 = arith.constant 1 : index
    %c0_359 = arith.constant 0 : index
    %401 = vector.load %arg18[%c3_357, %c1_358, %c0_359] : memref<5x5x128xf32, #tpu.memory_space<vmem>>, vector<1x4x128xf32>
    %402 = vector.shape_cast %401 : vector<1x4x128xf32> to vector<4x128xf32>
    %403 = arith.truncf %402 : vector<4x128xf32> to vector<4x128xbf16>
    %c7_360 = arith.constant 7 : index
    %c0_361 = arith.constant 0 : index
    %c0_362 = arith.constant 0 : index
    %404 = vector.load %arg8[%c7_360, %c0_361, %c0_362] : memref<8x128x128xbf16, #tpu.memory_space<vmem>>, vector<1x128x128xbf16>
    %405 = vector.shape_cast %404 : vector<1x128x128xbf16> to vector<128x128xbf16>
    %cst_363 = arith.constant dense<0.000000e+00> : vector<4x128xf32>
    %406 = tpu.matmul %403, %405, %cst_363 {dimension_numbers = #tpu.dot_dimension_numbers<[1], [0], [0], [1], [0, 0, 1, 1], [], []>} : vector<4x128xbf16>, vector<128x128xbf16>, vector<4x128xf32> -> vector<4x128xf32>
    %407 = arith.addf %400, %406 : vector<4x128xf32>
    %c0_364 = arith.constant 0 : index
    %c0_365 = arith.constant 0 : index
    %408 = vector.load %arg9[%c0_364, %c0_365] : memref<1x128xf32, #tpu.memory_space<vmem>>, vector<1x128xf32>
    %409 = vector.broadcast %408 : vector<1x128xf32> to vector<4x128xf32>
    %410 = arith.addf %407, %409 : vector<4x128xf32>
    %cst_366 = arith.constant 1.000000e-01 : f32
    %411 = vector.broadcast %cst_366 : f32 to vector<4x128xf32>
    %412 = arith.mulf %411, %410 : vector<4x128xf32>
    %413 = arith.maximumf %410, %412 : vector<4x128xf32>
    %c2_367 = arith.constant 2 : index
    %c0_368 = arith.constant 0 : index
    %c0_369 = arith.constant 0 : index
    %414 = vector.load %arg10[%c2_367, %c0_368, %c0_369] : memref<4x4x128xf32, #tpu.memory_space<vmem>>, vector<1x4x128xf32>
    %415 = vector.shape_cast %414 : vector<1x4x128xf32> to vector<4x128xf32>
    %416 = arith.mulf %413, %415 : vector<4x128xf32>
    %417 = vector.shape_cast %416 : vector<4x128xf32> to vector<1x4x128xf32>
    %cst_370 = arith.constant dense<0.000000e+00> : vector<1xf32>
    %418 = vector.multi_reduction <add>, %417, %cst_370 [1, 2] : vector<1x4x128xf32> to vector<1xf32>
    %419 = vector.shape_cast %418 : vector<1xf32> to vector<1x1x1xf32>
    %420 = vector.extract %419[0, 0, 0] : f32 from vector<1x1x1xf32>
    %421 = vector.broadcast %420 : f32 to vector<1x1xf32>
    %422 = arith.addf %350, %421 : vector<1x1xf32>
    %cst_371 = arith.constant 0.000000e+00 : f32
    %423 = vector.broadcast %cst_371 : f32 to vector<4x128xf32>
    %c3_372 = arith.constant 3 : index
    %c0_373 = arith.constant 0 : index
    %c0_374 = arith.constant 0 : index
    %424 = vector.load %arg17[%c3_372, %c0_373, %c0_374] : memref<5x5x128xf32, #tpu.memory_space<vmem>>, vector<1x4x128xf32>
    %425 = vector.shape_cast %424 : vector<1x4x128xf32> to vector<4x128xf32>
    %426 = arith.truncf %425 : vector<4x128xf32> to vector<4x128xbf16>
    %c0_375 = arith.constant 0 : index
    %c0_376 = arith.constant 0 : index
    %c0_377 = arith.constant 0 : index
    %427 = vector.load %arg8[%c0_375, %c0_376, %c0_377] : memref<8x128x128xbf16, #tpu.memory_space<vmem>>, vector<1x128x128xbf16>
    %428 = vector.shape_cast %427 : vector<1x128x128xbf16> to vector<128x128xbf16>
    %cst_378 = arith.constant dense<0.000000e+00> : vector<4x128xf32>
    %429 = tpu.matmul %426, %428, %cst_378 {dimension_numbers = #tpu.dot_dimension_numbers<[1], [0], [0], [1], [0, 0, 1, 1], [], []>} : vector<4x128xbf16>, vector<128x128xbf16>, vector<4x128xf32> -> vector<4x128xf32>
    %430 = arith.addf %423, %429 : vector<4x128xf32>
    %c3_379 = arith.constant 3 : index
    %c1_380 = arith.constant 1 : index
    %c0_381 = arith.constant 0 : index
    %431 = vector.load %arg17[%c3_379, %c1_380, %c0_381] : memref<5x5x128xf32, #tpu.memory_space<vmem>>, vector<1x4x128xf32>
    %432 = vector.shape_cast %431 : vector<1x4x128xf32> to vector<4x128xf32>
    %433 = arith.truncf %432 : vector<4x128xf32> to vector<4x128xbf16>
    %c1_382 = arith.constant 1 : index
    %c0_383 = arith.constant 0 : index
    %c0_384 = arith.constant 0 : index
    %434 = vector.load %arg8[%c1_382, %c0_383, %c0_384] : memref<8x128x128xbf16, #tpu.memory_space<vmem>>, vector<1x128x128xbf16>
    %435 = vector.shape_cast %434 : vector<1x128x128xbf16> to vector<128x128xbf16>
    %cst_385 = arith.constant dense<0.000000e+00> : vector<4x128xf32>
    %436 = tpu.matmul %433, %435, %cst_385 {dimension_numbers = #tpu.dot_dimension_numbers<[1], [0], [0], [1], [0, 0, 1, 1], [], []>} : vector<4x128xbf16>, vector<128x128xbf16>, vector<4x128xf32> -> vector<4x128xf32>
    %437 = arith.addf %430, %436 : vector<4x128xf32>
    %c3_386 = arith.constant 3 : index
    %c0_387 = arith.constant 0 : index
    %c0_388 = arith.constant 0 : index
    %438 = vector.load %arg18[%c3_386, %c0_387, %c0_388] : memref<5x5x128xf32, #tpu.memory_space<vmem>>, vector<1x4x128xf32>
    %439 = vector.shape_cast %438 : vector<1x4x128xf32> to vector<4x128xf32>
    %440 = arith.truncf %439 : vector<4x128xf32> to vector<4x128xbf16>
    %c2_389 = arith.constant 2 : index
    %c0_390 = arith.constant 0 : index
    %c0_391 = arith.constant 0 : index
    %441 = vector.load %arg8[%c2_389, %c0_390, %c0_391] : memref<8x128x128xbf16, #tpu.memory_space<vmem>>, vector<1x128x128xbf16>
    %442 = vector.shape_cast %441 : vector<1x128x128xbf16> to vector<128x128xbf16>
    %cst_392 = arith.constant dense<0.000000e+00> : vector<4x128xf32>
    %443 = tpu.matmul %440, %442, %cst_392 {dimension_numbers = #tpu.dot_dimension_numbers<[1], [0], [0], [1], [0, 0, 1, 1], [], []>} : vector<4x128xbf16>, vector<128x128xbf16>, vector<4x128xf32> -> vector<4x128xf32>
    %444 = arith.addf %437, %443 : vector<4x128xf32>
    %c3_393 = arith.constant 3 : index
    %c1_394 = arith.constant 1 : index
    %c0_395 = arith.constant 0 : index
    %445 = vector.load %arg18[%c3_393, %c1_394, %c0_395] : memref<5x5x128xf32, #tpu.memory_space<vmem>>, vector<1x4x128xf32>
    %446 = vector.shape_cast %445 : vector<1x4x128xf32> to vector<4x128xf32>
    %447 = arith.truncf %446 : vector<4x128xf32> to vector<4x128xbf16>
    %c3_396 = arith.constant 3 : index
    %c0_397 = arith.constant 0 : index
    %c0_398 = arith.constant 0 : index
    %448 = vector.load %arg8[%c3_396, %c0_397, %c0_398] : memref<8x128x128xbf16, #tpu.memory_space<vmem>>, vector<1x128x128xbf16>
    %449 = vector.shape_cast %448 : vector<1x128x128xbf16> to vector<128x128xbf16>
    %cst_399 = arith.constant dense<0.000000e+00> : vector<4x128xf32>
    %450 = tpu.matmul %447, %449, %cst_399 {dimension_numbers = #tpu.dot_dimension_numbers<[1], [0], [0], [1], [0, 0, 1, 1], [], []>} : vector<4x128xbf16>, vector<128x128xbf16>, vector<4x128xf32> -> vector<4x128xf32>
    %451 = arith.addf %444, %450 : vector<4x128xf32>
    %c4_400 = arith.constant 4 : index
    %c0_401 = arith.constant 0 : index
    %c0_402 = arith.constant 0 : index
    %452 = vector.load %arg17[%c4_400, %c0_401, %c0_402] : memref<5x5x128xf32, #tpu.memory_space<vmem>>, vector<1x4x128xf32>
    %453 = vector.shape_cast %452 : vector<1x4x128xf32> to vector<4x128xf32>
    %454 = arith.truncf %453 : vector<4x128xf32> to vector<4x128xbf16>
    %c4_403 = arith.constant 4 : index
    %c0_404 = arith.constant 0 : index
    %c0_405 = arith.constant 0 : index
    %455 = vector.load %arg8[%c4_403, %c0_404, %c0_405] : memref<8x128x128xbf16, #tpu.memory_space<vmem>>, vector<1x128x128xbf16>
    %456 = vector.shape_cast %455 : vector<1x128x128xbf16> to vector<128x128xbf16>
    %cst_406 = arith.constant dense<0.000000e+00> : vector<4x128xf32>
    %457 = tpu.matmul %454, %456, %cst_406 {dimension_numbers = #tpu.dot_dimension_numbers<[1], [0], [0], [1], [0, 0, 1, 1], [], []>} : vector<4x128xbf16>, vector<128x128xbf16>, vector<4x128xf32> -> vector<4x128xf32>
    %458 = arith.addf %451, %457 : vector<4x128xf32>
    %c4_407 = arith.constant 4 : index
    %c1_408 = arith.constant 1 : index
    %c0_409 = arith.constant 0 : index
    %459 = vector.load %arg17[%c4_407, %c1_408, %c0_409] : memref<5x5x128xf32, #tpu.memory_space<vmem>>, vector<1x4x128xf32>
    %460 = vector.shape_cast %459 : vector<1x4x128xf32> to vector<4x128xf32>
    %461 = arith.truncf %460 : vector<4x128xf32> to vector<4x128xbf16>
    %c5_410 = arith.constant 5 : index
    %c0_411 = arith.constant 0 : index
    %c0_412 = arith.constant 0 : index
    %462 = vector.load %arg8[%c5_410, %c0_411, %c0_412] : memref<8x128x128xbf16, #tpu.memory_space<vmem>>, vector<1x128x128xbf16>
    %463 = vector.shape_cast %462 : vector<1x128x128xbf16> to vector<128x128xbf16>
    %cst_413 = arith.constant dense<0.000000e+00> : vector<4x128xf32>
    %464 = tpu.matmul %461, %463, %cst_413 {dimension_numbers = #tpu.dot_dimension_numbers<[1], [0], [0], [1], [0, 0, 1, 1], [], []>} : vector<4x128xbf16>, vector<128x128xbf16>, vector<4x128xf32> -> vector<4x128xf32>
    %465 = arith.addf %458, %464 : vector<4x128xf32>
    %c4_414 = arith.constant 4 : index
    %c0_415 = arith.constant 0 : index
    %c0_416 = arith.constant 0 : index
    %466 = vector.load %arg18[%c4_414, %c0_415, %c0_416] : memref<5x5x128xf32, #tpu.memory_space<vmem>>, vector<1x4x128xf32>
    %467 = vector.shape_cast %466 : vector<1x4x128xf32> to vector<4x128xf32>
    %468 = arith.truncf %467 : vector<4x128xf32> to vector<4x128xbf16>
    %c6_417 = arith.constant 6 : index
    %c0_418 = arith.constant 0 : index
    %c0_419 = arith.constant 0 : index
    %469 = vector.load %arg8[%c6_417, %c0_418, %c0_419] : memref<8x128x128xbf16, #tpu.memory_space<vmem>>, vector<1x128x128xbf16>
    %470 = vector.shape_cast %469 : vector<1x128x128xbf16> to vector<128x128xbf16>
    %cst_420 = arith.constant dense<0.000000e+00> : vector<4x128xf32>
    %471 = tpu.matmul %468, %470, %cst_420 {dimension_numbers = #tpu.dot_dimension_numbers<[1], [0], [0], [1], [0, 0, 1, 1], [], []>} : vector<4x128xbf16>, vector<128x128xbf16>, vector<4x128xf32> -> vector<4x128xf32>
    %472 = arith.addf %465, %471 : vector<4x128xf32>
    %c4_421 = arith.constant 4 : index
    %c1_422 = arith.constant 1 : index
    %c0_423 = arith.constant 0 : index
    %473 = vector.load %arg18[%c4_421, %c1_422, %c0_423] : memref<5x5x128xf32, #tpu.memory_space<vmem>>, vector<1x4x128xf32>
    %474 = vector.shape_cast %473 : vector<1x4x128xf32> to vector<4x128xf32>
    %475 = arith.truncf %474 : vector<4x128xf32> to vector<4x128xbf16>
    %c7_424 = arith.constant 7 : index
    %c0_425 = arith.constant 0 : index
    %c0_426 = arith.constant 0 : index
    %476 = vector.load %arg8[%c7_424, %c0_425, %c0_426] : memref<8x128x128xbf16, #tpu.memory_space<vmem>>, vector<1x128x128xbf16>
    %477 = vector.shape_cast %476 : vector<1x128x128xbf16> to vector<128x128xbf16>
    %cst_427 = arith.constant dense<0.000000e+00> : vector<4x128xf32>
    %478 = tpu.matmul %475, %477, %cst_427 {dimension_numbers = #tpu.dot_dimension_numbers<[1], [0], [0], [1], [0, 0, 1, 1], [], []>} : vector<4x128xbf16>, vector<128x128xbf16>, vector<4x128xf32> -> vector<4x128xf32>
    %479 = arith.addf %472, %478 : vector<4x128xf32>
    %c0_428 = arith.constant 0 : index
    %c0_429 = arith.constant 0 : index
    %480 = vector.load %arg9[%c0_428, %c0_429] : memref<1x128xf32, #tpu.memory_space<vmem>>, vector<1x128xf32>
    %481 = vector.broadcast %480 : vector<1x128xf32> to vector<4x128xf32>
    %482 = arith.addf %479, %481 : vector<4x128xf32>
    %cst_430 = arith.constant 1.000000e-01 : f32
    %483 = vector.broadcast %cst_430 : f32 to vector<4x128xf32>
    %484 = arith.mulf %483, %482 : vector<4x128xf32>
    %485 = arith.maximumf %482, %484 : vector<4x128xf32>
    %c3_431 = arith.constant 3 : index
    %c0_432 = arith.constant 0 : index
    %c0_433 = arith.constant 0 : index
    %486 = vector.load %arg10[%c3_431, %c0_432, %c0_433] : memref<4x4x128xf32, #tpu.memory_space<vmem>>, vector<1x4x128xf32>
    %487 = vector.shape_cast %486 : vector<1x4x128xf32> to vector<4x128xf32>
    %488 = arith.mulf %485, %487 : vector<4x128xf32>
    %489 = vector.shape_cast %488 : vector<4x128xf32> to vector<1x4x128xf32>
    %cst_434 = arith.constant dense<0.000000e+00> : vector<1xf32>
    %490 = vector.multi_reduction <add>, %489, %cst_434 [1, 2] : vector<1x4x128xf32> to vector<1xf32>
    %491 = vector.shape_cast %490 : vector<1xf32> to vector<1x1x1xf32>
    %492 = vector.extract %491[0, 0, 0] : f32 from vector<1x1x1xf32>
    %493 = vector.broadcast %492 : f32 to vector<1x1xf32>
    %494 = arith.addf %422, %493 : vector<1x1xf32>
    %c0_435 = arith.constant 0 : index
    %c0_436 = arith.constant 0 : index
    %c0_437 = arith.constant 0 : index
    %495 = vector.load %arg12[%c0_435, %c0_436, %c0_437] : memref<1x1x1xf32, #tpu.memory_space<vmem>>, vector<1x1x1xf32>
    %496 = vector.shape_cast %495 : vector<1x1x1xf32> to vector<1x1xf32>
    %497 = vector.shape_cast %494 : vector<1x1xf32> to vector<1x1x1xf32>
    tpu.vector_store %arg12[%c0_435, %c0_436, %c0_437], %497 {strides = array<i32>} : memref<1x1x1xf32, #tpu.memory_space<vmem>>, vector<1x1x1xf32>,
    return
  }
  func.func @transform_0(%arg0: i32) -> (i32, i32, i32) {
    %c0_i32 = arith.constant 0 : i32
    %c0_i32_0 = arith.constant 0 : i32
    %c0_i32_1 = arith.constant 0 : i32
    return %arg0, %c0_i32, %c0_i32_0 : i32, i32, i32
  }
  func.func @transform_1(%arg0: i32) -> (i32, i32) {
    %c0_i32 = arith.constant 0 : i32
    %c0_i32_0 = arith.constant 0 : i32
    %c0_i32_1 = arith.constant 0 : i32
    return %c0_i32, %c0_i32_0 : i32, i32
  }
  func.func @transform_2(%arg0: i32) -> (i32, i32) {
    %c0_i32 = arith.constant 0 : i32
    %c0_i32_0 = arith.constant 0 : i32
    %c0_i32_1 = arith.constant 0 : i32
    return %c0_i32, %c0_i32_0 : i32, i32
  }
  func.func @transform_3(%arg0: i32) -> (i32, i32, i32) {
    %c0_i32 = arith.constant 0 : i32
    %c0_i32_0 = arith.constant 0 : i32
    %c0_i32_1 = arith.constant 0 : i32
    %c0_i32_2 = arith.constant 0 : i32
    return %c0_i32, %c0_i32_0, %c0_i32_1 : i32, i32, i32
  }
  func.func @transform_4(%arg0: i32) -> (i32, i32) {
    %c0_i32 = arith.constant 0 : i32
    %c0_i32_0 = arith.constant 0 : i32
    %c0_i32_1 = arith.constant 0 : i32
    return %c0_i32, %c0_i32_0 : i32, i32
  }
  func.func @transform_5(%arg0: i32) -> (i32, i32, i32) {
    %c0_i32 = arith.constant 0 : i32
    %c0_i32_0 = arith.constant 0 : i32
    %c0_i32_1 = arith.constant 0 : i32
    %c0_i32_2 = arith.constant 0 : i32
    return %c0_i32, %c0_i32_0, %c0_i32_1 : i32, i32, i32
  }
  func.func @transform_6(%arg0: i32) -> (i32, i32) {
    %c0_i32 = arith.constant 0 : i32
    %c0_i32_0 = arith.constant 0 : i32
    %c0_i32_1 = arith.constant 0 : i32
    return %c0_i32, %c0_i32_0 : i32, i32
  }
  func.func @transform_7(%arg0: i32) -> (i32, i32, i32) {
    %c0_i32 = arith.constant 0 : i32
    %c0_i32_0 = arith.constant 0 : i32
    %c0_i32_1 = arith.constant 0 : i32
    %c0_i32_2 = arith.constant 0 : i32
    return %c0_i32, %c0_i32_0, %c0_i32_1 : i32, i32, i32
  }
  func.func @transform_8(%arg0: i32) -> (i32, i32) {
    %c0_i32 = arith.constant 0 : i32
    %c0_i32_0 = arith.constant 0 : i32
    %c0_i32_1 = arith.constant 0 : i32
    return %c0_i32, %c0_i32_0 : i32, i32
  }
  func.func @transform_9(%arg0: i32) -> (i32, i32, i32) {
    %c0_i32 = arith.constant 0 : i32
    %c0_i32_0 = arith.constant 0 : i32
    %c0_i32_1 = arith.constant 0 : i32
    %c0_i32_2 = arith.constant 0 : i32
    return %c0_i32, %c0_i32_0, %c0_i32_1 : i32, i32, i32
  }
  func.func @transform_10(%arg0: i32) -> (i32, i32) {
    %c0_i32 = arith.constant 0 : i32
    %c0_i32_0 = arith.constant 0 : i32
    %c0_i32_1 = arith.constant 0 : i32
    return %c0_i32, %c0_i32_0 : i32, i32
  }
  func.func @transform_11(%arg0: i32) -> (i32, i32, i32) {
    %c0_i32 = arith.constant 0 : i32
    %c0_i32_0 = arith.constant 0 : i32
    %c0_i32_1 = arith.constant 0 : i32
    return %arg0, %c0_i32, %c0_i32_0 : i32, i32, i32
  }
}

</mosaic_0001>

<llo_original>
// kernel: discriminator_forward.1
$region0: #{discriminator_forward.1}
  #allocation0 [shape = 'u32[]', space=smem, size = 0x4, offset = 0x4, fixed_abs, tag = 'smem constant byte address 0x4 - core index']
  #allocation1 [shape = 'u32[72,128]{1,0:T(1,128)}', space=vmem, size = 0x9000, scoped, tag = 'internal scratch']
  #allocation2 [shape = 'f32[17,17,32]{2,1,0:T(8,128)}', space=vmem, size = 0x33000, scoped, tag = 'scratch operand']
  #allocation3 [shape = 'f32[17,17,32]{2,1,0:T(8,128)}', space=vmem, size = 0x33000, scoped, tag = 'scratch operand']
  #allocation4 [shape = 'f32[9,9,64]{2,1,0:T(8,128)}', space=vmem, size = 0x12000, scoped, tag = 'scratch operand']
  #allocation5 [shape = 'f32[9,9,64]{2,1,0:T(8,128)}', space=vmem, size = 0x12000, scoped, tag = 'scratch operand']
  #allocation6 [shape = 'f32[5,5,128]{2,1,0:T(8,128)}', space=vmem, size = 0x5000, scoped, tag = 'scratch operand']
  #allocation7 [shape = 'f32[5,5,128]{2,1,0:T(8,128)}', space=vmem, size = 0x5000, scoped, tag = 'scratch operand']
  #allocation8 [shape = 'f32[1,1]{1,0:T(1,128)S(1)}', space=vmem, size = 0x200, scoped, tag = 'scoped memory for discriminator_forward.1']
  %s0 = inlined_call_operand.vmem [shape: f32[2,1024,16], index: 0, kind: input, shape index: {}]
  %s1 = inlined_call_operand.vmem [shape: bf16[16,16], index: 1, kind: input, shape index: {}]
  %s2 = inlined_call_operand.vmem [shape: f32[1,16], index: 2, kind: input, shape index: {}]
  %s3 = inlined_call_operand.vmem [shape: bf16[8,32,32], index: 3, kind: input, shape index: {}]
  %s4 = inlined_call_operand.vmem [shape: f32[1,32], index: 4, kind: input, shape index: {}]
  %s5 = inlined_call_operand.vmem [shape: bf16[8,64,64], index: 5, kind: input, shape index: {}]
  %s6 = inlined_call_operand.vmem [shape: f32[1,64], index: 6, kind: input, shape index: {}]
  %s7 = inlined_call_operand.vmem [shape: bf16[8,128,128], index: 7, kind: input, shape index: {}]
  %s8 = inlined_call_operand.vmem [shape: f32[1,128], index: 8, kind: input, shape index: {}]
  %s9 = inlined_call_operand.vmem [shape: f32[4,4,128], index: 9, kind: input, shape index: {}]
  %s10 = inlined_call_operand.<no memory space> [shape: f32[1,1], index: 10, kind: input, shape index: {}]
  %s11 = inlined_call_operand.vmem [shape: f32[2,1,1], index: 11, kind: output, shape index: {}]
  %s12 = sld [smem:[#allocation0]]
  $region77: #{discriminator_forward.1} parent=0
    _
  %s14 = ssub.s32 1, %s12
  %s15 = scalar_select 0, %s14, %s12
  %v16 = vstv %s10
  %17 = vst [vmem:[#allocation8] sm:$0x1] %v16
  loop: start=0, step=1, limit=4
  $region2: #{discriminator_forward.1} parent=0 // loop_pre_header
    _
  $region3: #{discriminator_forward.1} parent=0 // loop_header
    %s19 = sphi 0, %s23
    %p20 = scmp.ge.s32.totalorder %s19, 4
    %s29 = sphi 0, %s31
    %s32 = sphi 0, %s29
    %s33 = sphi 0, %s32
    %s49 = sphi 0, %s33
    %s53 = sphi 0, %s53
    %s55 = sphi 0, %s53
    %s56 = sphi 0, %s55
    %s70 = sphi 0, %s56
    %s74 = sphi 0, %s74
    %s76 = sphi 0, %s74
    %s77 = sphi 0, %s76
    %s91 = sphi 0, %s77
    %s95 = sphi 0, %s95
    %s97 = sphi 0, %s95
    %s98 = sphi 0, %s97
    %s112 = sphi 0, %s98
    %s116 = sphi 0, %s116
    %s118 = sphi 0, %s116
    %s119 = sphi 0, %s118
    %s133 = sphi 0, %s119
    %s137 = sphi 0, %s137
    %s139 = sphi 0, %s137
    %s140 = sphi 0, %s139
    %s154 = sphi 0, %s140
    %s158 = sphi 0, %s158
    %s160 = sphi 0, %s158
    %s161 = sphi 0, %s160
    %s175 = sphi 0, %s161
    %s179 = sphi 0, %s179
    %s181 = sphi 0, %s179
    %s182 = sphi 0, %s181
    %s196 = sphi 0, %s182
    %s200 = sphi 0, %s200
    %s202 = sphi 0, %s200
    %s203 = sphi 0, %s202
    %s217 = sphi 0, %s203
    %s221 = sphi 0, %s221
    %s223 = sphi 0, %s221
    %s224 = sphi 0, %s223
    %s238 = sphi 0, %s224
    %s242 = sphi 0, %s242
    %s244 = sphi 0, %s242
    %s245 = sphi 0, %s244
    %s259 = sphi 0, %s245
    %s265 = sphi 0, %s267
    %s268 = sphi 0, %s265
    %s269 = sphi 0, %s268
    %s285 = sphi 0, %s269
  $region4: #{discriminator_forward.1} parent=0 // loop_header_branch
    %22 = sbr.rel (%p20) target = $region8
  $region5: #{discriminator_forward.1} parent=0 // loop_body
    %s24 = ssub.s32 %s19, 1
    %s25 = ssub.s32 %s19, 2
    %s26 = sadd.s32 %s19, 1
    %s27 = ssub.s32 %s19, %s26
    %p28 = scmp.eq.s32.totalorder %s27, 0
    %s30 = sadd.s32 %s29, 1
    %s31 = scalar_select %p28, %s29, %s30
    %p34 = pneg %p28
    %p35 = scmp.eq.s32.totalorder %s19, 1
    %p36 = por %p34, %p35
    %p37 = scmp.ne.s32.totalorder %s29, %s32
    %p38 = scmp.eq.s32.totalorder %s19, 0
    %p39 = por %p37, %p38
    %p40 = scmp.ne.s32.totalorder %s29, %s32
    %p41 = scmp.eq.s32.totalorder %s24, 1
    %p42 = por %p40, %p41
    %p43 = scmp.ne.s32.totalorder %s32, %s33
    %p44 = scmp.eq.s32.totalorder %s24, 0
    %p45 = por %p43, %p44
    %p46 = scmp.ne.s32.totalorder %s32, %s33
    %p47 = scmp.eq.s32.totalorder %s25, 1
    %p48 = por %p46, %p47
    %p50 = scmp.ne.s32.totalorder %s33, %s49
    %p51 = scmp.eq.s32.totalorder %s25, 0
    %p52 = por %p50, %p51
    %s54 = sadd.s32 %s53, 1
    %p57 = scmp.eq.s32.totalorder %s19, 1
    %p58 = scmp.ne.s32.totalorder %s53, %s55
    %p59 = scmp.eq.s32.totalorder %s19, 0
    %p60 = por %p58, %p59
    %p61 = scmp.ne.s32.totalorder %s53, %s55
    %p62 = scmp.eq.s32.totalorder %s24, 1
    %p63 = por %p61, %p62
    %p64 = scmp.ne.s32.totalorder %s55, %s56
    %p65 = scmp.eq.s32.totalorder %s24, 0
    %p66 = por %p64, %p65
    %p67 = scmp.ne.s32.totalorder %s55, %s56
    %p68 = scmp.eq.s32.totalorder %s25, 1
    %p69 = por %p67, %p68
    %p71 = scmp.ne.s32.totalorder %s56, %s70
    %p72 = scmp.eq.s32.totalorder %s25, 0
    %p73 = por %p71, %p72
    %s75 = sadd.s32 %s74, 1
    %p78 = scmp.eq.s32.totalorder %s19, 1
    %p79 = scmp.ne.s32.totalorder %s74, %s76
    %p80 = scmp.eq.s32.totalorder %s19, 0
    %p81 = por %p79, %p80
    %p82 = scmp.ne.s32.totalorder %s74, %s76
    %p83 = scmp.eq.s32.totalorder %s24, 1
    %p84 = por %p82, %p83
    %p85 = scmp.ne.s32.totalorder %s76, %s77
    %p86 = scmp.eq.s32.totalorder %s24, 0
    %p87 = por %p85, %p86
    %p88 = scmp.ne.s32.totalorder %s76, %s77
    %p89 = scmp.eq.s32.totalorder %s25, 1
    %p90 = por %p88, %p89
    %p92 = scmp.ne.s32.totalorder %s77, %s91
    %p93 = scmp.eq.s32.totalorder %s25, 0
    %p94 = por %p92, %p93
    %s96 = sadd.s32 %s95, 1
    %p99 = scmp.eq.s32.totalorder %s19, 1
    %p100 = scmp.ne.s32.totalorder %s95, %s97
    %p101 = scmp.eq.s32.totalorder %s19, 0
    %p102 = por %p100, %p101
    %p103 = scmp.ne.s32.totalorder %s95, %s97
    %p104 = scmp.eq.s32.totalorder %s24, 1
    %p105 = por %p103, %p104
    %p106 = scmp.ne.s32.totalorder %s97, %s98
    %p107 = scmp.eq.s32.totalorder %s24, 0
    %p108 = por %p106, %p107
    %p109 = scmp.ne.s32.totalorder %s97, %s98
    %p110 = scmp.eq.s32.totalorder %s25, 1
    %p111 = por %p109, %p110
    %p113 = scmp.ne.s32.totalorder %s98, %s112
    %p114 = scmp.eq.s32.totalorder %s25, 0
    %p115 = por %p113, %p114
    %s117 = sadd.s32 %s116, 1
    %p120 = scmp.eq.s32.totalorder %s19, 1
    %p121 = scmp.ne.s32.totalorder %s116, %s118
    %p122 = scmp.eq.s32.totalorder %s19, 0
    %p123 = por %p121, %p122
    %p124 = scmp.ne.s32.totalorder %s116, %s118
    %p125 = scmp.eq.s32.totalorder %s24, 1
    %p126 = por %p124, %p125
    %p127 = scmp.ne.s32.totalorder %s118, %s119
    %p128 = scmp.eq.s32.totalorder %s24, 0
    %p129 = por %p127, %p128
    %p130 = scmp.ne.s32.totalorder %s118, %s119
    %p131 = scmp.eq.s32.totalorder %s25, 1
    %p132 = por %p130, %p131
    %p134 = scmp.ne.s32.totalorder %s119, %s133
    %p135 = scmp.eq.s32.totalorder %s25, 0
    %p136 = por %p134, %p135
    %s138 = sadd.s32 %s137, 1
    %p141 = scmp.eq.s32.totalorder %s19, 1
    %p142 = scmp.ne.s32.totalorder %s137, %s139
    %p143 = scmp.eq.s32.totalorder %s19, 0
    %p144 = por %p142, %p143
    %p145 = scmp.ne.s32.totalorder %s137, %s139
    %p146 = scmp.eq.s32.totalorder %s24, 1
    %p147 = por %p145, %p146
    %p148 = scmp.ne.s32.totalorder %s139, %s140
    %p149 = scmp.eq.s32.totalorder %s24, 0
    %p150 = por %p148, %p149
    %p151 = scmp.ne.s32.totalorder %s139, %s140
    %p152 = scmp.eq.s32.totalorder %s25, 1
    %p153 = por %p151, %p152
    %p155 = scmp.ne.s32.totalorder %s140, %s154
    %p156 = scmp.eq.s32.totalorder %s25, 0
    %p157 = por %p155, %p156
    %s159 = sadd.s32 %s158, 1
    %p162 = scmp.eq.s32.totalorder %s19, 1
    %p163 = scmp.ne.s32.totalorder %s158, %s160
    %p164 = scmp.eq.s32.totalorder %s19, 0
    %p165 = por %p163, %p164
    %p166 = scmp.ne.s32.totalorder %s158, %s160
    %p167 = scmp.eq.s32.totalorder %s24, 1
    %p168 = por %p166, %p167
    %p169 = scmp.ne.s32.totalorder %s160, %s161
    %p170 = scmp.eq.s32.totalorder %s24, 0
    %p171 = por %p169, %p170
    %p172 = scmp.ne.s32.totalorder %s160, %s161
    %p173 = scmp.eq.s32.totalorder %s25, 1
    %p174 = por %p172, %p173
    %p176 = scmp.ne.s32.totalorder %s161, %s175
    %p177 = scmp.eq.s32.totalorder %s25, 0
    %p178 = por %p176, %p177
    %s180 = sadd.s32 %s179, 1
    %p183 = scmp.eq.s32.totalorder %s19, 1
    %p184 = scmp.ne.s32.totalorder %s179, %s181
    %p185 = scmp.eq.s32.totalorder %s19, 0
    %p186 = por %p184, %p185
    %p187 = scmp.ne.s32.totalorder %s179, %s181
    %p188 = scmp.eq.s32.totalorder %s24, 1
    %p189 = por %p187, %p188
    %p190 = scmp.ne.s32.totalorder %s181, %s182
    %p191 = scmp.eq.s32.totalorder %s24, 0
    %p192 = por %p190, %p191
    %p193 = scmp.ne.s32.totalorder %s181, %s182
    %p194 = scmp.eq.s32.totalorder %s25, 1
    %p195 = por %p193, %p194
    %p197 = scmp.ne.s32.totalorder %s182, %s196
    %p198 = scmp.eq.s32.totalorder %s25, 0
    %p199 = por %p197, %p198
    %s201 = sadd.s32 %s200, 1
    %p204 = scmp.eq.s32.totalorder %s19, 1
    %p205 = scmp.ne.s32.totalorder %s200, %s202
    %p206 = scmp.eq.s32.totalorder %s19, 0
    %p207 = por %p205, %p206
    %p208 = scmp.ne.s32.totalorder %s200, %s202
    %p209 = scmp.eq.s32.totalorder %s24, 1
    %p210 = por %p208, %p209
    %p211 = scmp.ne.s32.totalorder %s202, %s203
    %p212 = scmp.eq.s32.totalorder %s24, 0
    %p213 = por %p211, %p212
    %p214 = scmp.ne.s32.totalorder %s202, %s203
    %p215 = scmp.eq.s32.totalorder %s25, 1
    %p216 = por %p214, %p215
    %p218 = scmp.ne.s32.totalorder %s203, %s217
    %p219 = scmp.eq.s32.totalorder %s25, 0
    %p220 = por %p218, %p219
    %s222 = sadd.s32 %s221, 1
    %p225 = scmp.eq.s32.totalorder %s19, 1
    %p226 = scmp.ne.s32.totalorder %s221, %s223
    %p227 = scmp.eq.s32.totalorder %s19, 0
    %p228 = por %p226, %p227
    %p229 = scmp.ne.s32.totalorder %s221, %s223
    %p230 = scmp.eq.s32.totalorder %s24, 1
    %p231 = por %p229, %p230
    %p232 = scmp.ne.s32.totalorder %s223, %s224
    %p233 = scmp.eq.s32.totalorder %s24, 0
    %p234 = por %p232, %p233
    %p235 = scmp.ne.s32.totalorder %s223, %s224
    %p236 = scmp.eq.s32.totalorder %s25, 1
    %p237 = por %p235, %p236
    %p239 = scmp.ne.s32.totalorder %s224, %s238
    %p240 = scmp.eq.s32.totalorder %s25, 0
    %p241 = por %p239, %p240
    %s243 = sadd.s32 %s242, 1
    %p246 = scmp.eq.s32.totalorder %s19, 1
    %p247 = scmp.ne.s32.totalorder %s242, %s244
    %p248 = scmp.eq.s32.totalorder %s19, 0
    %p249 = por %p247, %p248
    %p250 = scmp.ne.s32.totalorder %s242, %s244
    %p251 = scmp.eq.s32.totalorder %s24, 1
    %p252 = por %p250, %p251
    %p253 = scmp.ne.s32.totalorder %s244, %s245
    %p254 = scmp.eq.s32.totalorder %s24, 0
    %p255 = por %p253, %p254
    %p256 = scmp.ne.s32.totalorder %s244, %s245
    %p257 = scmp.eq.s32.totalorder %s25, 1
    %p258 = por %p256, %p257
    %p260 = scmp.ne.s32.totalorder %s245, %s259
    %p261 = scmp.eq.s32.totalorder %s25, 0
    %p262 = por %p260, %p261
    %s263 = ssub.s32 %s19, %s26
    %p264 = scmp.eq.s32.totalorder %s263, 0
    %s266 = sadd.s32 %s265, 1
    %s267 = scalar_select %p264, %s265, %s266
    %p270 = pneg %p264
    %p271 = scmp.eq.s32.totalorder %s19, 1
    %p272 = por %p270, %p271
    %p273 = scmp.ne.s32.totalorder %s265, %s268
    %p274 = scmp.eq.s32.totalorder %s19, 0
    %p275 = por %p273, %p274
    %p276 = scmp.ne.s32.totalorder %s265, %s268
    %p277 = scmp.eq.s32.totalorder %s24, 1
    %p278 = por %p276, %p277
    %p279 = scmp.ne.s32.totalorder %s268, %s269
    %p280 = scmp.eq.s32.totalorder %s24, 0
    %p281 = por %p279, %p280
    %p282 = scmp.ne.s32.totalorder %s268, %s269
    %p283 = scmp.eq.s32.totalorder %s25, 1
    %p284 = por %p282, %p283
    %p286 = scmp.ne.s32.totalorder %s269, %s285
    %p287 = scmp.eq.s32.totalorder %s25, 0
    %p288 = por %p286, %p287
    %p289 = scmp.le.s32.totalorder 1, %s19
    %p290 = scmp.lt.s32.totalorder %s19, 3
    %p291 = pnand %p289, %p290
    %p292 = pneg %p291
    // Predicated region
    $region9: #{discriminator_forward.1} parent=5 // pred_check
      _
    $region10: #{discriminator_forward.1} parent=5 // pred_check_branch
      %294 = sbr.rel (%p291) target = $region12
    $region11: #{discriminator_forward.1} parent=5 // pred_region
      %s295 = ssub.s32 %s19, 1
      // Predicated region
      $region13: #{discriminator_forward.1} parent=11 // pred_check
        %p296 = pneg %p66
      $region14: #{discriminator_forward.1} parent=11 // pred_check_branch
        %298 = sbr.rel (%p296) target = $region16
      $region15: #{discriminator_forward.1} parent=11 // pred_region
        _
      $region16: #{discriminator_forward.1} parent=11 // pred_fallthru
        _
      // Predicated region
      $region17: #{discriminator_forward.1} parent=11 // pred_check
        %p299 = pneg %p87
      $region18: #{discriminator_forward.1} parent=11 // pred_check_branch
        %301 = sbr.rel (%p299) target = $region20
      $region19: #{discriminator_forward.1} parent=11 // pred_region
        _
      $region20: #{discriminator_forward.1} parent=11 // pred_fallthru
        _
      // Predicated region
      $region21: #{discriminator_forward.1} parent=11 // pred_check
        %p302 = pneg %p108
      $region22: #{discriminator_forward.1} parent=11 // pred_check_branch
        %304 = sbr.rel (%p302) target = $region24
      $region23: #{discriminator_forward.1} parent=11 // pred_region
        _
      $region24: #{discriminator_forward.1} parent=11 // pred_fallthru
        _
      // Predicated region
      $region25: #{discriminator_forward.1} parent=11 // pred_check
        %p305 = pneg %p129
      $region26: #{discriminator_forward.1} parent=11 // pred_check_branch
        %307 = sbr.rel (%p305) target = $region28
      $region27: #{discriminator_forward.1} parent=11 // pred_region
        _
      $region28: #{discriminator_forward.1} parent=11 // pred_fallthru
        _
      // Predicated region
      $region29: #{discriminator_forward.1} parent=11 // pred_check
        %p308 = pneg %p150
      $region30: #{discriminator_forward.1} parent=11 // pred_check_branch
        %310 = sbr.rel (%p308) target = $region32
      $region31: #{discriminator_forward.1} parent=11 // pred_region
        _
      $region32: #{discriminator_forward.1} parent=11 // pred_fallthru
        _
      // Predicated region
      $region33: #{discriminator_forward.1} parent=11 // pred_check
        %p311 = pneg %p171
      $region34: #{discriminator_forward.1} parent=11 // pred_check_branch
        %313 = sbr.rel (%p311) target = $region36
      $region35: #{discriminator_forward.1} parent=11 // pred_region
        _
      $region36: #{discriminator_forward.1} parent=11 // pred_fallthru
        _
      // Predicated region
      $region37: #{discriminator_forward.1} parent=11 // pred_check
        %p314 = pneg %p192
      $region38: #{discriminator_forward.1} parent=11 // pred_check_branch
        %316 = sbr.rel (%p314) target = $region40
      $region39: #{discriminator_forward.1} parent=11 // pred_region
        _
      $region40: #{discriminator_forward.1} parent=11 // pred_fallthru
        _
      // Predicated region
      $region41: #{discriminator_forward.1} parent=11 // pred_check
        %p317 = pneg %p213
      $region42: #{discriminator_forward.1} parent=11 // pred_check_branch
        %319 = sbr.rel (%p317) target = $region44
      $region43: #{discriminator_forward.1} parent=11 // pred_region
        _
      $region44: #{discriminator_forward.1} parent=11 // pred_fallthru
        _
      // Predicated region
      $region45: #{discriminator_forward.1} parent=11 // pred_check
        %p320 = pneg %p234
      $region46: #{discriminator_forward.1} parent=11 // pred_check_branch
        %322 = sbr.rel (%p320) target = $region48
      $region47: #{discriminator_forward.1} parent=11 // pred_region
        _
      $region48: #{discriminator_forward.1} parent=11 // pred_fallthru
        _
      // Predicated region
      $region49: #{discriminator_forward.1} parent=11 // pred_check
        %p323 = pneg %p255
      $region50: #{discriminator_forward.1} parent=11 // pred_check_branch
        %325 = sbr.rel (%p323) target = $region52
      $region51: #{discriminator_forward.1} parent=11 // pred_region
        _
      $region52: #{discriminator_forward.1} parent=11 // pred_fallthru
        _
    $region12: #{discriminator_forward.1} parent=5 // pred_fallthru
      _
    %p326 = scmp.lt.s32.totalorder %s19, 2
    // Predicated region
    $region53: #{discriminator_forward.1} parent=5 // pred_check
      %p327 = pneg %p326
    $region54: #{discriminator_forward.1} parent=5 // pred_check_branch
      %329 = sbr.rel (%p327) target = $region56
    $region55: #{discriminator_forward.1} parent=5 // pred_region
      // Predicated region
      $region57: #{discriminator_forward.1} parent=55 // pred_check
        %p330 = pneg %p39
      $region58: #{discriminator_forward.1} parent=55 // pred_check_branch
        %332 = sbr.rel (%p330) target = $region60
      $region59: #{discriminator_forward.1} parent=55 // pred_region
        %p333 = scmp.lt.s32.totalorder %s19, 1
        %s334 = scalar_select %p333, %s19, 1
        %s335 = smul.addr %s334, 128
        %s336 = smul.addr %s335, 8
        %s337 = scalar_lea.vmem %s0, %s336
      $region60: #{discriminator_forward.1} parent=55 // pred_fallthru
        _
    $region56: #{discriminator_forward.1} parent=5 // pred_fallthru
      _
    %p338 = scmp.le.s32.totalorder 1, %s19
    %p339 = scmp.lt.s32.totalorder %s19, 3
    %p340 = pnand %p338, %p339
    %p341 = pneg %p340
    // Predicated region
    $region61: #{discriminator_forward.1} parent=5 // pred_check
      _
    $region62: #{discriminator_forward.1} parent=5 // pred_check_branch
      %343 = sbr.rel (%p340) target = $region64
    $region63: #{discriminator_forward.1} parent=5 // pred_region
      %s344 = ssub.s32 %s19, 1
      %p345 = scmp.lt.s32.totalorder %s24, 1
      %s346 = scalar_select %p345, %s24, 1
      %s347 = smul.addr %s346, 128
      %s348 = smul.addr %s347, 8
      %s349 = scalar_lea.vmem %s0, %s348
      %p350 = pneg %p45
      %p351 = pneg %p42
      %p352 = pneg %p66
      %p353 = pneg %p63
      %p354 = pneg %p87
      %p355 = pneg %p84
      %p356 = pneg %p108
      %p357 = pneg %p105
      %p358 = pneg %p129
      %p359 = pneg %p126
      %p360 = pneg %p150
      %p361 = pneg %p147
      %p362 = pneg %p171
      %p363 = pneg %p168
      %p364 = pneg %p192
      %p365 = pneg %p189
      %p366 = pneg %p213
      %p367 = pneg %p210
      %p368 = pneg %p234
      %p369 = pneg %p231
      %p370 = pneg %p255
      %p371 = pneg %p252
      %p372 = pneg %p281
      %p373 = pneg %p278
      %p374 = scmp.lt.s32.totalorder %s24, 1
      %s375 = scalar_select %p374, %s24, 1
      %s376 = scalar_lea.vmem %s11, %s375
      %p377 = scmp.lt.s32.totalorder %s24, 1
      %s378 = scalar_select %p377, %s24, 1
      %s379 = smul.addr %s378, 128
      %s380 = smul.addr %s379, 8
      %s381 = scalar_lea.vmem %s0, %s380
      %p382 = scmp.lt.s32.totalorder %s24, 1
      %s383 = scalar_select %p382, %s24, 1
      %s384 = scalar_lea.vmem %s11, %s383
      %vm386 = vcmask 261120
      %387 = vst.msk [vmem:[#allocation2] sm:$0xff] %vm386, 0.0
      %388 = vst.msk [vmem:[#allocation2 + $0x8] sm:$0xff] %vm386, 0.0
      %vm389 = vcmask 253952
      %390 = vst.msk [vmem:[#allocation2 + $0x10] sm:$0x1] %vm389, 0.0
      %391 = vst.msk [vmem:[#allocation2 + $0x18] sm:$0xff] %vm386, 0.0
      %392 = vst.msk [vmem:[#allocation2 + $0x20] sm:$0xff] %vm386, 0.0
      %393 = vst.msk [vmem:[#allocation2 + $0x28] sm:$0x1] %vm389, 0.0
      %394 = vst.msk [vmem:[#allocation2 + $0x30] sm:$0xff] %vm386, 0.0
      %395 = vst.msk [vmem:[#allocation2 + $0x38] sm:$0xff] %vm386, 0.0
      %396 = vst.msk [vmem:[#allocation2 + $0x40] sm:$0x1] %vm389, 0.0
      %397 = vst.msk [vmem:[#allocation2 + $0x48] sm:$0xff] %vm386, 0.0
      %398 = vst.msk [vmem:[#allocation2 + $0x50] sm:$0xff] %vm386, 0.0
      %399 = vst.msk [vmem:[#allocation2 + $0x58] sm:$0x1] %vm389, 0.0
      %400 = vst.msk [vmem:[#allocation2 + $0x60] sm:$0xff] %vm386, 0.0
      %401 = vst.msk [vmem:[#allocation2 + $0x68] sm:$0xff] %vm386, 0.0
      %402 = vst.msk [vmem:[#allocation2 + $0x70] sm:$0x1] %vm389, 0.0
      %403 = vst.msk [vmem:[#allocation2 + $0x78] sm:$0xff] %vm386, 0.0
      %404 = vst.msk [vmem:[#allocation2 + $0x80] sm:$0xff] %vm386, 0.0
      %405 = vst.msk [vmem:[#allocation2 + $0x88] sm:$0x1] %vm389, 0.0
      %406 = vst.msk [vmem:[#allocation2 + $0x90] sm:$0xff] %vm386, 0.0
      %407 = vst.msk [vmem:[#allocation2 + $0x98] sm:$0xff] %vm386, 0.0
      %408 = vst.msk [vmem:[#allocation2 + $0xa0] sm:$0x1] %vm389, 0.0
      %409 = vst.msk [vmem:[#allocation2 + $0xa8] sm:$0xff] %vm386, 0.0
      %410 = vst.msk [vmem:[#allocation2 + $0xb0] sm:$0xff] %vm386, 0.0
      %411 = vst.msk [vmem:[#allocation2 + $0xb8] sm:$0x1] %vm389, 0.0
      %412 = vst.msk [vmem:[#allocation2 + $0xc0] sm:$0xff] %vm386, 0.0
      %413 = vst.msk [vmem:[#allocation2 + $0xc8] sm:$0xff] %vm386, 0.0
      %414 = vst.msk [vmem:[#allocation2 + $0xd0] sm:$0x1] %vm389, 0.0
      %415 = vst.msk [vmem:[#allocation2 + $0xd8] sm:$0xff] %vm386, 0.0
      %416 = vst.msk [vmem:[#allocation2 + $0xe0] sm:$0xff] %vm386, 0.0
      %417 = vst.msk [vmem:[#allocation2 + $0xe8] sm:$0x1] %vm389, 0.0
      %418 = vst.msk [vmem:[#allocation2 + $0xf0] sm:$0xff] %vm386, 0.0
      %419 = vst.msk [vmem:[#allocation2 + $0xf8] sm:$0xff] %vm386, 0.0
      %420 = vst.msk [vmem:[#allocation2 + $0x100] sm:$0x1] %vm389, 0.0
      %421 = vst.msk [vmem:[#allocation2 + $0x108] sm:$0xff] %vm386, 0.0
      %422 = vst.msk [vmem:[#allocation2 + $0x110] sm:$0xff] %vm386, 0.0
      %423 = vst.msk [vmem:[#allocation2 + $0x118] sm:$0x1] %vm389, 0.0
      %424 = vst.msk [vmem:[#allocation2 + $0x120] sm:$0xff] %vm386, 0.0
      %425 = vst.msk [vmem:[#allocation2 + $0x128] sm:$0xff] %vm386, 0.0
      %426 = vst.msk [vmem:[#allocation2 + $0x130] sm:$0x1] %vm389, 0.0
      %427 = vst.msk [vmem:[#allocation2 + $0x138] sm:$0xff] %vm386, 0.0
      %428 = vst.msk [vmem:[#allocation2 + $0x140] sm:$0xff] %vm386, 0.0
      %429 = vst.msk [vmem:[#allocation2 + $0x148] sm:$0x1] %vm389, 0.0
      %430 = vst.msk [vmem:[#allocation2 + $0x150] sm:$0xff] %vm386, 0.0
      %431 = vst.msk [vmem:[#allocation2 + $0x158] sm:$0xff] %vm386, 0.0
      %432 = vst.msk [vmem:[#allocation2 + $0x160] sm:$0x1] %vm389, 0.0
      %433 = vst.msk [vmem:[#allocation2 + $0x168] sm:$0xff] %vm386, 0.0
      %434 = vst.msk [vmem:[#allocation2 + $0x170] sm:$0xff] %vm386, 0.0
      %435 = vst.msk [vmem:[#allocation2 + $0x178] sm:$0x1] %vm389, 0.0
      %436 = vst.msk [vmem:[#allocation2 + $0x180] sm:$0xff] %vm386, 0.0
      %437 = vst.msk [vmem:[#allocation2 + $0x188] sm:$0xff] %vm386, 0.0
      %438 = vst.msk [vmem:[#allocation2 + $0x190] sm:$0x1] %vm389, 0.0
      %439 = vst.msk [vmem:[#allocation3] sm:$0xff] %vm386, 0.0
      %440 = vst.msk [vmem:[#allocation3 + $0x8] sm:$0xff] %vm386, 0.0
      %441 = vst.msk [vmem:[#allocation3 + $0x10] sm:$0x1] %vm389, 0.0
      %442 = vst.msk [vmem:[#allocation3 + $0x18] sm:$0xff] %vm386, 0.0
      %443 = vst.msk [vmem:[#allocation3 + $0x20] sm:$0xff] %vm386, 0.0
      %444 = vst.msk [vmem:[#allocation3 + $0x28] sm:$0x1] %vm389, 0.0
      %445 = vst.msk [vmem:[#allocation3 + $0x30] sm:$0xff] %vm386, 0.0
      %446 = vst.msk [vmem:[#allocation3 + $0x38] sm:$0xff] %vm386, 0.0
      %447 = vst.msk [vmem:[#allocation3 + $0x40] sm:$0x1] %vm389, 0.0
      %448 = vst.msk [vmem:[#allocation3 + $0x48] sm:$0xff] %vm386, 0.0
      %449 = vst.msk [vmem:[#allocation3 + $0x50] sm:$0xff] %vm386, 0.0
      %450 = vst.msk [vmem:[#allocation3 + $0x58] sm:$0x1] %vm389, 0.0
      %451 = vst.msk [vmem:[#allocation3 + $0x60] sm:$0xff] %vm386, 0.0
      %452 = vst.msk [vmem:[#allocation3 + $0x68] sm:$0xff] %vm386, 0.0
      %453 = vst.msk [vmem:[#allocation3 + $0x70] sm:$0x1] %vm389, 0.0
      %454 = vst.msk [vmem:[#allocation3 + $0x78] sm:$0xff] %vm386, 0.0
      %455 = vst.msk [vmem:[#allocation3 + $0x80] sm:$0xff] %vm386, 0.0
      %456 = vst.msk [vmem:[#allocation3 + $0x88] sm:$0x1] %vm389, 0.0
      %457 = vst.msk [vmem:[#allocation3 + $0x90] sm:$0xff] %vm386, 0.0
      %458 = vst.msk [vmem:[#allocation3 + $0x98] sm:$0xff] %vm386, 0.0
      %459 = vst.msk [vmem:[#allocation3 + $0xa0] sm:$0x1] %vm389, 0.0
      %460 = vst.msk [vmem:[#allocation3 + $0xa8] sm:$0xff] %vm386, 0.0
      %461 = vst.msk [vmem:[#allocation3 + $0xb0] sm:$0xff] %vm386, 0.0
      %462 = vst.msk [vmem:[#allocation3 + $0xb8] sm:$0x1] %vm389, 0.0
      %463 = vst.msk [vmem:[#allocation3 + $0xc0] sm:$0xff] %vm386, 0.0
      %464 = vst.msk [vmem:[#allocation3 + $0xc8] sm:$0xff] %vm386, 0.0
      %465 = vst.msk [vmem:[#allocation3 + $0xd0] sm:$0x1] %vm389, 0.0
      %466 = vst.msk [vmem:[#allocation3 + $0xd8] sm:$0xff] %vm386, 0.0
      %467 = vst.msk [vmem:[#allocation3 + $0xe0] sm:$0xff] %vm386, 0.0
      %468 = vst.msk [vmem:[#allocation3 + $0xe8] sm:$0x1] %vm389, 0.0
      %469 = vst.msk [vmem:[#allocation3 + $0xf0] sm:$0xff] %vm386, 0.0
      %470 = vst.msk [vmem:[#allocation3 + $0xf8] sm:$0xff] %vm386, 0.0
      %471 = vst.msk [vmem:[#allocation3 + $0x100] sm:$0x1] %vm389, 0.0
      %472 = vst.msk [vmem:[#allocation3 + $0x108] sm:$0xff] %vm386, 0.0
      %473 = vst.msk [vmem:[#allocation3 + $0x110] sm:$0xff] %vm386, 0.0
      %474 = vst.msk [vmem:[#allocation3 + $0x118] sm:$0x1] %vm389, 0.0
      %475 = vst.msk [vmem:[#allocation3 + $0x120] sm:$0xff] %vm386, 0.0
      %476 = vst.msk [vmem:[#allocation3 + $0x128] sm:$0xff] %vm386, 0.0
      %477 = vst.msk [vmem:[#allocation3 + $0x130] sm:$0x1] %vm389, 0.0
      %478 = vst.msk [vmem:[#allocation3 + $0x138] sm:$0xff] %vm386, 0.0
      %479 = vst.msk [vmem:[#allocation3 + $0x140] sm:$0xff] %vm386, 0.0
      %480 = vst.msk [vmem:[#allocation3 + $0x148] sm:$0x1] %vm389, 0.0
      %481 = vst.msk [vmem:[#allocation3 + $0x150] sm:$0xff] %vm386, 0.0
      %482 = vst.msk [vmem:[#allocation3 + $0x158] sm:$0xff] %vm386, 0.0
      %483 = vst.msk [vmem:[#allocation3 + $0x160] sm:$0x1] %vm389, 0.0
      %484 = vst.msk [vmem:[#allocation3 + $0x168] sm:$0xff] %vm386, 0.0
      %485 = vst.msk [vmem:[#allocation3 + $0x170] sm:$0xff] %vm386, 0.0
      %486 = vst.msk [vmem:[#allocation3 + $0x178] sm:$0x1] %vm389, 0.0
      %487 = vst.msk [vmem:[#allocation3 + $0x180] sm:$0xff] %vm386, 0.0
      %488 = vst.msk [vmem:[#allocation3 + $0x188] sm:$0xff] %vm386, 0.0
      %489 = vst.msk [vmem:[#allocation3 + $0x190] sm:$0x1] %vm389, 0.0
      %vm490 = vcmask 523264
      %491 = vst.msk [vmem:[#allocation4] sm:$0xff] %vm490, 0.0
      %vm492 = vcmask 516096
      %493 = vst.msk [vmem:[#allocation4 + $0x8] sm:$0x1] %vm492, 0.0
      %494 = vst.msk [vmem:[#allocation4 + $0x10] sm:$0xff] %vm490, 0.0
      %495 = vst.msk [vmem:[#allocation4 + $0x18] sm:$0x1] %vm492, 0.0
      %496 = vst.msk [vmem:[#allocation4 + $0x20] sm:$0xff] %vm490, 0.0
      %497 = vst.msk [vmem:[#allocation4 + $0x28] sm:$0x1] %vm492, 0.0
      %498 = vst.msk [vmem:[#allocation4 + $0x30] sm:$0xff] %vm490, 0.0
      %499 = vst.msk [vmem:[#allocation4 + $0x38] sm:$0x1] %vm492, 0.0
      %500 = vst.msk [vmem:[#allocation4 + $0x40] sm:$0xff] %vm490, 0.0
      %501 = vst.msk [vmem:[#allocation4 + $0x48] sm:$0x1] %vm492, 0.0
      %502 = vst.msk [vmem:[#allocation4 + $0x50] sm:$0xff] %vm490, 0.0
      %503 = vst.msk [vmem:[#allocation4 + $0x58] sm:$0x1] %vm492, 0.0
      %504 = vst.msk [vmem:[#allocation4 + $0x60] sm:$0xff] %vm490, 0.0
      %505 = vst.msk [vmem:[#allocation4 + $0x68] sm:$0x1] %vm492, 0.0
      %506 = vst.msk [vmem:[#allocation4 + $0x70] sm:$0xff] %vm490, 0.0
      %507 = vst.msk [vmem:[#allocation4 + $0x78] sm:$0x1] %vm492, 0.0
      %508 = vst.msk [vmem:[#allocation4 + $0x80] sm:$0xff] %vm490, 0.0
      %509 = vst.msk [vmem:[#allocation4 + $0x88] sm:$0x1] %vm492, 0.0
      %510 = vst.msk [vmem:[#allocation5] sm:$0xff] %vm490, 0.0
      %511 = vst.msk [vmem:[#allocation5 + $0x8] sm:$0x1] %vm492, 0.0
      %512 = vst.msk [vmem:[#allocation5 + $0x10] sm:$0xff] %vm490, 0.0
      %513 = vst.msk [vmem:[#allocation5 + $0x18] sm:$0x1] %vm492, 0.0
      %514 = vst.msk [vmem:[#allocation5 + $0x20] sm:$0xff] %vm490, 0.0
      %515 = vst.msk [vmem:[#allocation5 + $0x28] sm:$0x1] %vm492, 0.0
      %516 = vst.msk [vmem:[#allocation5 + $0x30] sm:$0xff] %vm490, 0.0
      %517 = vst.msk [vmem:[#allocation5 + $0x38] sm:$0x1] %vm492, 0.0
      %518 = vst.msk [vmem:[#allocation5 + $0x40] sm:$0xff] %vm490, 0.0
      %519 = vst.msk [vmem:[#allocation5 + $0x48] sm:$0x1] %vm492, 0.0
      %520 = vst.msk [vmem:[#allocation5 + $0x50] sm:$0xff] %vm490, 0.0
      %521 = vst.msk [vmem:[#allocation5 + $0x58] sm:$0x1] %vm492, 0.0
      %522 = vst.msk [vmem:[#allocation5 + $0x60] sm:$0xff] %vm490, 0.0
      %523 = vst.msk [vmem:[#allocation5 + $0x68] sm:$0x1] %vm492, 0.0
      %524 = vst.msk [vmem:[#allocation5 + $0x70] sm:$0xff] %vm490, 0.0
      %525 = vst.msk [vmem:[#allocation5 + $0x78] sm:$0x1] %vm492, 0.0
      %526 = vst.msk [vmem:[#allocation5 + $0x80] sm:$0xff] %vm490, 0.0
      %527 = vst.msk [vmem:[#allocation5 + $0x88] sm:$0x1] %vm492, 0.0
      %528 = vst [vmem:[#allocation6] sm:$0x1f] 0.0
      %529 = vst [vmem:[#allocation6 + $0x8] sm:$0x1f] 0.0
      %530 = vst [vmem:[#allocation6 + $0x10] sm:$0x1f] 0.0
      %531 = vst [vmem:[#allocation6 + $0x18] sm:$0x1f] 0.0
      %532 = vst [vmem:[#allocation6 + $0x20] sm:$0x1f] 0.0
      %533 = vst [vmem:[#allocation7] sm:$0x1f] 0.0
      %534 = vst [vmem:[#allocation7 + $0x8] sm:$0x1f] 0.0
      %535 = vst [vmem:[#allocation7 + $0x10] sm:$0x1f] 0.0
      %536 = vst [vmem:[#allocation7 + $0x18] sm:$0x1f] 0.0
      %537 = vst [vmem:[#allocation7 + $0x20] sm:$0x1f] 0.0
      %v538 = vld [vmem:[%s381] sm:$0xff]
      %v539 = vld [vmem:[%s381 + $0x8] sm:$0xff]
      %v540 = vld [vmem:[%s381 + $0x10] sm:$0xff]
      %v541 = vld [vmem:[%s381 + $0x18] sm:$0xff]
      %v542 = vld [vmem:[%s381 + $0x20] sm:$0xff]
      %v543 = vld [vmem:[%s381 + $0x28] sm:$0xff]
      %v544 = vld [vmem:[%s381 + $0x30] sm:$0xff]
      %v545 = vld [vmem:[%s381 + $0x38] sm:$0xff]
      %v546 = vld [vmem:[%s381 + $0x40] sm:$0xff]
      %v547 = vld [vmem:[%s381 + $0x48] sm:$0xff]
      %v548 = vld [vmem:[%s381 + $0x50] sm:$0xff]
      %v549 = vld [vmem:[%s381 + $0x58] sm:$0xff]
      %v550 = vld [vmem:[%s381 + $0x60] sm:$0xff]
      %v551 = vld [vmem:[%s381 + $0x68] sm:$0xff]
      %v552 = vld [vmem:[%s381 + $0x70] sm:$0xff]
      %v553 = vld [vmem:[%s381 + $0x78] sm:$0xff]
      %v554 = vld [vmem:[%s381 + $0x80] sm:$0xff]
      %v555 = vld [vmem:[%s381 + $0x88] sm:$0xff]
      %v556 = vld [vmem:[%s381 + $0x90] sm:$0xff]
      %v557 = vld [vmem:[%s381 + $0x98] sm:$0xff]
      %v558 = vld [vmem:[%s381 + $0xa0] sm:$0xff]
      %v559 = vld [vmem:[%s381 + $0xa8] sm:$0xff]
      %v560 = vld [vmem:[%s381 + $0xb0] sm:$0xff]
      %v561 = vld [vmem:[%s381 + $0xb8] sm:$0xff]
      %v562 = vld [vmem:[%s381 + $0xc0] sm:$0xff]
      %v563 = vld [vmem:[%s381 + $0xc8] sm:$0xff]
      %v564 = vld [vmem:[%s381 + $0xd0] sm:$0xff]
      %v565 = vld [vmem:[%s381 + $0xd8] sm:$0xff]
      %v566 = vld [vmem:[%s381 + $0xe0] sm:$0xff]
      %v567 = vld [vmem:[%s381 + $0xe8] sm:$0xff]
      %v568 = vld [vmem:[%s381 + $0xf0] sm:$0xff]
      %v569 = vld [vmem:[%s381 + $0xf8] sm:$0xff]
      %v570 = vld [vmem:[%s381 + $0x100] sm:$0xff]
      %v571 = vld [vmem:[%s381 + $0x108] sm:$0xff]
      %v572 = vld [vmem:[%s381 + $0x110] sm:$0xff]
      %v573 = vld [vmem:[%s381 + $0x118] sm:$0xff]
      %v574 = vld [vmem:[%s381 + $0x120] sm:$0xff]
      %v575 = vld [vmem:[%s381 + $0x128] sm:$0xff]
      %v576 = vld [vmem:[%s381 + $0x130] sm:$0xff]
      %v577 = vld [vmem:[%s381 + $0x138] sm:$0xff]
      %v578 = vld [vmem:[%s381 + $0x140] sm:$0xff]
      %v579 = vld [vmem:[%s381 + $0x148] sm:$0xff]
      %v580 = vld [vmem:[%s381 + $0x150] sm:$0xff]
      %v581 = vld [vmem:[%s381 + $0x158] sm:$0xff]
      %v582 = vld [vmem:[%s381 + $0x160] sm:$0xff]
      %v583 = vld [vmem:[%s381 + $0x168] sm:$0xff]
      %v584 = vld [vmem:[%s381 + $0x170] sm:$0xff]
      %v585 = vld [vmem:[%s381 + $0x178] sm:$0xff]
      %v586 = vld [vmem:[%s381 + $0x180] sm:$0xff]
      %v587 = vld [vmem:[%s381 + $0x188] sm:$0xff]
      %v588 = vld [vmem:[%s381 + $0x190] sm:$0xff]
      %v589 = vld [vmem:[%s381 + $0x198] sm:$0xff]
      %v590 = vld [vmem:[%s381 + $0x1a0] sm:$0xff]
      %v591 = vld [vmem:[%s381 + $0x1a8] sm:$0xff]
      %v592 = vld [vmem:[%s381 + $0x1b0] sm:$0xff]
      %v593 = vld [vmem:[%s381 + $0x1b8] sm:$0xff]
      %v594 = vld [vmem:[%s381 + $0x1c0] sm:$0xff]
      %v595 = vld [vmem:[%s381 + $0x1c8] sm:$0xff]
      %v596 = vld [vmem:[%s381 + $0x1d0] sm:$0xff]
      %v597 = vld [vmem:[%s381 + $0x1d8] sm:$0xff]
      %v598 = vld [vmem:[%s381 + $0x1e0] sm:$0xff]
      %v599 = vld [vmem:[%s381 + $0x1e8] sm:$0xff]
      %v600 = vld [vmem:[%s381 + $0x1f0] sm:$0xff]
      %v601 = vld [vmem:[%s381 + $0x1f8] sm:$0xff]
      %v602 = vld [vmem:[%s381 + $0x200] sm:$0xff]
      %v603 = vld [vmem:[%s381 + $0x208] sm:$0xff]
      %v604 = vld [vmem:[%s381 + $0x210] sm:$0xff]
      %v605 = vld [vmem:[%s381 + $0x218] sm:$0xff]
      %v606 = vld [vmem:[%s381 + $0x220] sm:$0xff]
      %v607 = vld [vmem:[%s381 + $0x228] sm:$0xff]
      %v608 = vld [vmem:[%s381 + $0x230] sm:$0xff]
      %v609 = vld [vmem:[%s381 + $0x238] sm:$0xff]
      %v610 = vld [vmem:[%s381 + $0x240] sm:$0xff]
      %v611 = vld [vmem:[%s381 + $0x248] sm:$0xff]
      %v612 = vld [vmem:[%s381 + $0x250] sm:$0xff]
      %v613 = vld [vmem:[%s381 + $0x258] sm:$0xff]
      %v614 = vld [vmem:[%s381 + $0x260] sm:$0xff]
      %v615 = vld [vmem:[%s381 + $0x268] sm:$0xff]
      %v616 = vld [vmem:[%s381 + $0x270] sm:$0xff]
      %v617 = vld [vmem:[%s381 + $0x278] sm:$0xff]
      %v618 = vld [vmem:[%s381 + $0x280] sm:$0xff]
      %v619 = vld [vmem:[%s381 + $0x288] sm:$0xff]
      %v620 = vld [vmem:[%s381 + $0x290] sm:$0xff]
      %v621 = vld [vmem:[%s381 + $0x298] sm:$0xff]
      %v622 = vld [vmem:[%s381 + $0x2a0] sm:$0xff]
      %v623 = vld [vmem:[%s381 + $0x2a8] sm:$0xff]
      %v624 = vld [vmem:[%s381 + $0x2b0] sm:$0xff]
      %v625 = vld [vmem:[%s381 + $0x2b8] sm:$0xff]
      %v626 = vld [vmem:[%s381 + $0x2c0] sm:$0xff]
      %v627 = vld [vmem:[%s381 + $0x2c8] sm:$0xff]
      %v628 = vld [vmem:[%s381 + $0x2d0] sm:$0xff]
      %v629 = vld [vmem:[%s381 + $0x2d8] sm:$0xff]
      %v630 = vld [vmem:[%s381 + $0x2e0] sm:$0xff]
      %v631 = vld [vmem:[%s381 + $0x2e8] sm:$0xff]
      %v632 = vld [vmem:[%s381 + $0x2f0] sm:$0xff]
      %v633 = vld [vmem:[%s381 + $0x2f8] sm:$0xff]
      %v634 = vld [vmem:[%s381 + $0x300] sm:$0xff]
      %v635 = vld [vmem:[%s381 + $0x308] sm:$0xff]
      %v636 = vld [vmem:[%s381 + $0x310] sm:$0xff]
      %v637 = vld [vmem:[%s381 + $0x318] sm:$0xff]
      %v638 = vld [vmem:[%s381 + $0x320] sm:$0xff]
      %v639 = vld [vmem:[%s381 + $0x328] sm:$0xff]
      %v640 = vld [vmem:[%s381 + $0x330] sm:$0xff]
      %v641 = vld [vmem:[%s381 + $0x338] sm:$0xff]
      %v642 = vld [vmem:[%s381 + $0x340] sm:$0xff]
      %v643 = vld [vmem:[%s381 + $0x348] sm:$0xff]
      %v644 = vld [vmem:[%s381 + $0x350] sm:$0xff]
      %v645 = vld [vmem:[%s381 + $0x358] sm:$0xff]
      %v646 = vld [vmem:[%s381 + $0x360] sm:$0xff]
      %v647 = vld [vmem:[%s381 + $0x368] sm:$0xff]
      %v648 = vld [vmem:[%s381 + $0x370] sm:$0xff]
      %v649 = vld [vmem:[%s381 + $0x378] sm:$0xff]
      %v650 = vld [vmem:[%s381 + $0x380] sm:$0xff]
      %v651 = vld [vmem:[%s381 + $0x388] sm:$0xff]
      %v652 = vld [vmem:[%s381 + $0x390] sm:$0xff]
      %v653 = vld [vmem:[%s381 + $0x398] sm:$0xff]
      %v654 = vld [vmem:[%s381 + $0x3a0] sm:$0xff]
      %v655 = vld [vmem:[%s381 + $0x3a8] sm:$0xff]
      %v656 = vld [vmem:[%s381 + $0x3b0] sm:$0xff]
      %v657 = vld [vmem:[%s381 + $0x3b8] sm:$0xff]
      %v658 = vld [vmem:[%s381 + $0x3c0] sm:$0xff]
      %v659 = vld [vmem:[%s381 + $0x3c8] sm:$0xff]
      %v660 = vld [vmem:[%s381 + $0x3d0] sm:$0xff]
      %v661 = vld [vmem:[%s381 + $0x3d8] sm:$0xff]
      %v662 = vld [vmem:[%s381 + $0x3e0] sm:$0xff]
      %v663 = vld [vmem:[%s381 + $0x3e8] sm:$0xff]
      %v664 = vld [vmem:[%s381 + $0x3f0] sm:$0xff]
      %v665 = vld [vmem:[%s381 + $0x3f8] sm:$0xff]
      %v666 = vpack.c.bf16 %v539, %v538
      %v667 = vpack.c.bf16 %v541, %v540
      %v668 = vpack.c.bf16 %v543, %v542
      %v669 = vpack.c.bf16 %v545, %v544
      %v670 = vpack.c.bf16 %v547, %v546
      %v671 = vpack.c.bf16 %v549, %v548
      %v672 = vpack.c.bf16 %v551, %v550
      %v673 = vpack.c.bf16 %v553, %v552
      %v674 = vpack.c.bf16 %v555, %v554
      %v675 = vpack.c.bf16 %v557, %v556
      %v676 = vpack.c.bf16 %v559, %v558
      %v677 = vpack.c.bf16 %v561, %v560
      %v678 = vpack.c.bf16 %v563, %v562
      %v679 = vpack.c.bf16 %v565, %v564
      %v680 = vpack.c.bf16 %v567, %v566
      %v681 = vpack.c.bf16 %v569, %v568
      %v682 = vpack.c.bf16 %v571, %v570
      %v683 = vpack.c.bf16 %v573, %v572
      %v684 = vpack.c.bf16 %v575, %v574
      %v685 = vpack.c.bf16 %v577, %v576
      %v686 = vpack.c.bf16 %v579, %v578
      %v687 = vpack.c.bf16 %v581, %v580
      %v688 = vpack.c.bf16 %v583, %v582
      %v689 = vpack.c.bf16 %v585, %v584
      %v690 = vpack.c.bf16 %v587, %v586
      %v691 = vpack.c.bf16 %v589, %v588
      %v692 = vpack.c.bf16 %v591, %v590
      %v693 = vpack.c.bf16 %v593, %v592
      %v694 = vpack.c.bf16 %v595, %v594
      %v695 = vpack.c.bf16 %v597, %v596
      %v696 = vpack.c.bf16 %v599, %v598
      %v697 = vpack.c.bf16 %v601, %v600
      %v698 = vpack.c.bf16 %v603, %v602
      %v699 = vpack.c.bf16 %v605, %v604
      %v700 = vpack.c.bf16 %v607, %v606
      %v701 = vpack.c.bf16 %v609, %v608
      %v702 = vpack.c.bf16 %v611, %v610
      %v703 = vpack.c.bf16 %v613, %v612
      %v704 = vpack.c.bf16 %v615, %v614
      %v705 = vpack.c.bf16 %v617, %v616
      %v706 = vpack.c.bf16 %v619, %v618
      %v707 = vpack.c.bf16 %v621, %v620
      %v708 = vpack.c.bf16 %v623, %v622
      %v709 = vpack.c.bf16 %v625, %v624
      %v710 = vpack.c.bf16 %v627, %v626
      %v711 = vpack.c.bf16 %v629, %v628
      %v712 = vpack.c.bf16 %v631, %v630
      %v713 = vpack.c.bf16 %v633, %v632
      %v714 = vpack.c.bf16 %v635, %v634
      %v715 = vpack.c.bf16 %v637, %v636
      %v716 = vpack.c.bf16 %v639, %v638
      %v717 = vpack.c.bf16 %v641, %v640
      %v718 = vpack.c.bf16 %v643, %v642
      %v719 = vpack.c.bf16 %v645, %v644
      %v720 = vpack.c.bf16 %v647, %v646
      %v721 = vpack.c.bf16 %v649, %v648
      %v722 = vpack.c.bf16 %v651, %v650
      %v723 = vpack.c.bf16 %v653, %v652
      %v724 = vpack.c.bf16 %v655, %v654
      %v725 = vpack.c.bf16 %v657, %v656
      %v726 = vpack.c.bf16 %v659, %v658
      %v727 = vpack.c.bf16 %v661, %v660
      %v728 = vpack.c.bf16 %v663, %v662
      %v729 = vpack.c.bf16 %v665, %v664
      %v730 = vld [vmem:[%s1] sm:$0xf]
      %v731 = vld [vmem:[%s1 + $0x4] sm:$0xf]
      %v732 = vld [vmem:[%s2] sm:$0x1]
      %v734 = vperm.slane %v732, 0
      %v738 = vunpack.c.l.b16 %v730
      %v739 = vunpack.c.l.b16 %v731
      %v740 = vpack.c.b16 %v739, %v738
      %vm742 = vcmask 130048
      %v744 = vsel %vm742, %v666, 0
      %v747 = vsel %vm742, %v667, 0
      %v750 = vsel %vm742, %v668, 0
      %v753 = vsel %vm742, %v669, 0
      %v756 = vsel %vm742, %v670, 0
      %v759 = vsel %vm742, %v671, 0
      %v762 = vsel %vm742, %v672, 0
      %v765 = vsel %vm742, %v673, 0
      %v768 = vsel %vm742, %v674, 0
      %v771 = vsel %vm742, %v675, 0
      %v774 = vsel %vm742, %v676, 0
      %v777 = vsel %vm742, %v677, 0
      %v780 = vsel %vm742, %v678, 0
      %v783 = vsel %vm742, %v679, 0
      %v786 = vsel %vm742, %v680, 0
      %v789 = vsel %vm742, %v681, 0
      %v792 = vsel %vm742, %v682, 0
      %v795 = vsel %vm742, %v683, 0
      %v798 = vsel %vm742, %v684, 0
      %v801 = vsel %vm742, %v685, 0
      %v804 = vsel %vm742, %v686, 0
      %v807 = vsel %vm742, %v687, 0
      %v810 = vsel %vm742, %v688, 0
      %v813 = vsel %vm742, %v689, 0
      %v816 = vsel %vm742, %v690, 0
      %v819 = vsel %vm742, %v691, 0
      %v822 = vsel %vm742, %v692, 0
      %v825 = vsel %vm742, %v693, 0
      %v828 = vsel %vm742, %v694, 0
      %v831 = vsel %vm742, %v695, 0
      %v834 = vsel %vm742, %v696, 0
      %v837 = vsel %vm742, %v697, 0
      %v840 = vsel %vm742, %v698, 0
      %v843 = vsel %vm742, %v699, 0
      %v846 = vsel %vm742, %v700, 0
      %v849 = vsel %vm742, %v701, 0
      %v852 = vsel %vm742, %v702, 0
      %v855 = vsel %vm742, %v703, 0
      %v858 = vsel %vm742, %v704, 0
      %v861 = vsel %vm742, %v705, 0
      %v864 = vsel %vm742, %v706, 0
      %v867 = vsel %vm742, %v707, 0
      %v870 = vsel %vm742, %v708, 0
      %v873 = vsel %vm742, %v709, 0
      %v876 = vsel %vm742, %v710, 0
      %v879 = vsel %vm742, %v711, 0
      %v882 = vsel %vm742, %v712, 0
      %v885 = vsel %vm742, %v713, 0
      %v888 = vsel %vm742, %v714, 0
      %v891 = vsel %vm742, %v715, 0
      %v894 = vsel %vm742, %v716, 0
      %v897 = vsel %vm742, %v717, 0
      %v900 = vsel %vm742, %v718, 0
      %v903 = vsel %vm742, %v719, 0
      %v906 = vsel %vm742, %v720, 0
      %v909 = vsel %vm742, %v721, 0
      %v912 = vsel %vm742, %v722, 0
      %v915 = vsel %vm742, %v723, 0
      %v918 = vsel %vm742, %v724, 0
      %v921 = vsel %vm742, %v725, 0
      %v924 = vsel %vm742, %v726, 0
      %v927 = vsel %vm742, %v727, 0
      %v930 = vsel %vm742, %v728, 0
      %v933 = vsel %vm742, %v729, 0
      %935 = vmatpush.bf16.msra.mxu0 0
      %936 = vmatpush.bf16.msra.mxu0 0
      %937 = vmatpush.bf16.msra.mxu0 0
      %938 = vmatpush.bf16.msra.mxu0 0
      %939 = vmatpush.bf16.msra.mxu0 0
      %940 = vmatpush.bf16.msra.mxu0 0
      %941 = vmatpush.bf16.msra.mxu0 0
      %942 = vmatpush.bf16.msra.mxu0 %v740
      %943 = vmatmul.bf16.gmra.mxu0 %v744
      %v944 = vpop.f32.mrf.mxu0
      %v945 = vadd.f32 %v734, %v944
      %v946 = vpop.f32.mrf.mxu0
      %v947 = vadd.f32 %v734, %v946
      %948 = vmatmul.bf16.gmra.mxu0 %v747
      %v949 = vpop.f32.mrf.mxu0
      %v950 = vadd.f32 %v734, %v949
      %v951 = vpop.f32.mrf.mxu0
      %v952 = vadd.f32 %v734, %v951
      %953 = vmatmul.bf16.gmra.mxu0 %v750
      %v954 = vpop.f32.mrf.mxu0
      %v955 = vadd.f32 %v734, %v954
      %v956 = vpop.f32.mrf.mxu0
      %v957 = vadd.f32 %v734, %v956
      %958 = vmatmul.bf16.gmra.mxu0 %v753
      %v959 = vpop.f32.mrf.mxu0
      %v960 = vadd.f32 %v734, %v959
      %v961 = vpop.f32.mrf.mxu0
      %v962 = vadd.f32 %v734, %v961
      %963 = vmatmul.bf16.gmra.mxu0 %v756
      %v964 = vpop.f32.mrf.mxu0
      %v965 = vadd.f32 %v734, %v964
      %v966 = vpop.f32.mrf.mxu0
      %v967 = vadd.f32 %v734, %v966
      %968 = vmatmul.bf16.gmra.mxu0 %v759
      %v969 = vpop.f32.mrf.mxu0
      %v970 = vadd.f32 %v734, %v969
      %v971 = vpop.f32.mrf.mxu0
      %v972 = vadd.f32 %v734, %v971
      %973 = vmatmul.bf16.gmra.mxu0 %v762
      %v974 = vpop.f32.mrf.mxu0
      %v975 = vadd.f32 %v734, %v974
      %v976 = vpop.f32.mrf.mxu0
      %v977 = vadd.f32 %v734, %v976
      %978 = vmatmul.bf16.gmra.mxu0 %v765
      %v979 = vpop.f32.mrf.mxu0
      %v980 = vadd.f32 %v734, %v979
      %v981 = vpop.f32.mrf.mxu0
      %v982 = vadd.f32 %v734, %v981
      %983 = vmatmul.bf16.gmra.mxu0 %v768
      %v984 = vpop.f32.mrf.mxu0
      %v985 = vadd.f32 %v734, %v984
      %v986 = vpop.f32.mrf.mxu0
      %v987 = vadd.f32 %v734, %v986
      %988 = vmatmul.bf16.gmra.mxu0 %v771
      %v989 = vpop.f32.mrf.mxu0
      %v990 = vadd.f32 %v734, %v989
      %v991 = vpop.f32.mrf.mxu0
      %v992 = vadd.f32 %v734, %v991
      %993 = vmatmul.bf16.gmra.mxu0 %v774
      %v994 = vpop.f32.mrf.mxu0
      %v995 = vadd.f32 %v734, %v994
      %v996 = vpop.f32.mrf.mxu0
      %v997 = vadd.f32 %v734, %v996
      %998 = vmatmul.bf16.gmra.mxu0 %v777
      %v999 = vpop.f32.mrf.mxu0
      %v1000 = vadd.f32 %v734, %v999
      %v1001 = vpop.f32.mrf.mxu0
      %v1002 = vadd.f32 %v734, %v1001
      %1003 = vmatmul.bf16.gmra.mxu0 %v780
      %v1004 = vpop.f32.mrf.mxu0
      %v1005 = vadd.f32 %v734, %v1004
      %v1006 = vpop.f32.mrf.mxu0
      %v1007 = vadd.f32 %v734, %v1006
      %1008 = vmatmul.bf16.gmra.mxu0 %v783
      %v1009 = vpop.f32.mrf.mxu0
      %v1010 = vadd.f32 %v734, %v1009
      %v1011 = vpop.f32.mrf.mxu0
      %v1012 = vadd.f32 %v734, %v1011
      %1013 = vmatmul.bf16.gmra.mxu0 %v786
      %v1014 = vpop.f32.mrf.mxu0
      %v1015 = vadd.f32 %v734, %v1014
      %v1016 = vpop.f32.mrf.mxu0
      %v1017 = vadd.f32 %v734, %v1016
      %1018 = vmatmul.bf16.gmra.mxu0 %v789
      %v1019 = vpop.f32.mrf.mxu0
      %v1020 = vadd.f32 %v734, %v1019
      %v1021 = vpop.f32.mrf.mxu0
      %v1022 = vadd.f32 %v734, %v1021
      %1023 = vmatmul.bf16.gmra.mxu0 %v792
      %v1024 = vpop.f32.mrf.mxu0
      %v1025 = vadd.f32 %v734, %v1024
      %v1026 = vpop.f32.mrf.mxu0
      %v1027 = vadd.f32 %v734, %v1026
      %1028 = vmatmul.bf16.gmra.mxu0 %v795
      %v1029 = vpop.f32.mrf.mxu0
      %v1030 = vadd.f32 %v734, %v1029
      %v1031 = vpop.f32.mrf.mxu0
      %v1032 = vadd.f32 %v734, %v1031
      %1033 = vmatmul.bf16.gmra.mxu0 %v798
      %v1034 = vpop.f32.mrf.mxu0
      %v1035 = vadd.f32 %v734, %v1034
      %v1036 = vpop.f32.mrf.mxu0
      %v1037 = vadd.f32 %v734, %v1036
      %1038 = vmatmul.bf16.gmra.mxu0 %v801
      %v1039 = vpop.f32.mrf.mxu0
      %v1040 = vadd.f32 %v734, %v1039
      %v1041 = vpop.f32.mrf.mxu0
      %v1042 = vadd.f32 %v734, %v1041
      %1043 = vmatmul.bf16.gmra.mxu0 %v804
      %v1044 = vpop.f32.mrf.mxu0
      %v1045 = vadd.f32 %v734, %v1044
      %v1046 = vpop.f32.mrf.mxu0
      %v1047 = vadd.f32 %v734, %v1046
      %1048 = vmatmul.bf16.gmra.mxu0 %v807
      %v1049 = vpop.f32.mrf.mxu0
      %v1050 = vadd.f32 %v734, %v1049
      %v1051 = vpop.f32.mrf.mxu0
      %v1052 = vadd.f32 %v734, %v1051
      %1053 = vmatmul.bf16.gmra.mxu0 %v810
      %v1054 = vpop.f32.mrf.mxu0
      %v1055 = vadd.f32 %v734, %v1054
      %v1056 = vpop.f32.mrf.mxu0
      %v1057 = vadd.f32 %v734, %v1056
      %1058 = vmatmul.bf16.gmra.mxu0 %v813
      %v1059 = vpop.f32.mrf.mxu0
      %v1060 = vadd.f32 %v734, %v1059
      %v1061 = vpop.f32.mrf.mxu0
      %v1062 = vadd.f32 %v734, %v1061
      %1063 = vmatmul.bf16.gmra.mxu0 %v816
      %v1064 = vpop.f32.mrf.mxu0
      %v1065 = vadd.f32 %v734, %v1064
      %v1066 = vpop.f32.mrf.mxu0
      %v1067 = vadd.f32 %v734, %v1066
      %1068 = vmatmul.bf16.gmra.mxu0 %v819
      %v1069 = vpop.f32.mrf.mxu0
      %v1070 = vadd.f32 %v734, %v1069
      %v1071 = vpop.f32.mrf.mxu0
      %v1072 = vadd.f32 %v734, %v1071
      %1073 = vmatmul.bf16.gmra.mxu0 %v822
      %v1074 = vpop.f32.mrf.mxu0
      %v1075 = vadd.f32 %v734, %v1074
      %v1076 = vpop.f32.mrf.mxu0
      %v1077 = vadd.f32 %v734, %v1076
      %1078 = vmatmul.bf16.gmra.mxu0 %v825
      %v1079 = vpop.f32.mrf.mxu0
      %v1080 = vadd.f32 %v734, %v1079
      %v1081 = vpop.f32.mrf.mxu0
      %v1082 = vadd.f32 %v734, %v1081
      %1083 = vmatmul.bf16.gmra.mxu0 %v828
      %v1084 = vpop.f32.mrf.mxu0
      %v1085 = vadd.f32 %v734, %v1084
      %v1086 = vpop.f32.mrf.mxu0
      %v1087 = vadd.f32 %v734, %v1086
      %1088 = vmatmul.bf16.gmra.mxu0 %v831
      %v1089 = vpop.f32.mrf.mxu0
      %v1090 = vadd.f32 %v734, %v1089
      %v1091 = vpop.f32.mrf.mxu0
      %v1092 = vadd.f32 %v734, %v1091
      %1093 = vmatmul.bf16.gmra.mxu0 %v834
      %v1094 = vpop.f32.mrf.mxu0
      %v1095 = vadd.f32 %v734, %v1094
      %v1096 = vpop.f32.mrf.mxu0
      %v1097 = vadd.f32 %v734, %v1096
      %1098 = vmatmul.bf16.gmra.mxu0 %v837
      %v1099 = vpop.f32.mrf.mxu0
      %v1100 = vadd.f32 %v734, %v1099
      %v1101 = vpop.f32.mrf.mxu0
      %v1102 = vadd.f32 %v734, %v1101
      %1103 = vmatmul.bf16.gmra.mxu0 %v840
      %v1104 = vpop.f32.mrf.mxu0
      %v1105 = vadd.f32 %v734, %v1104
      %v1106 = vpop.f32.mrf.mxu0
      %v1107 = vadd.f32 %v734, %v1106
      %1108 = vmatmul.bf16.gmra.mxu0 %v843
      %v1109 = vpop.f32.mrf.mxu0
      %v1110 = vadd.f32 %v734, %v1109
      %v1111 = vpop.f32.mrf.mxu0
      %v1112 = vadd.f32 %v734, %v1111
      %1113 = vmatmul.bf16.gmra.mxu0 %v846
      %v1114 = vpop.f32.mrf.mxu0
      %v1115 = vadd.f32 %v734, %v1114
      %v1116 = vpop.f32.mrf.mxu0
      %v1117 = vadd.f32 %v734, %v1116
      %1118 = vmatmul.bf16.gmra.mxu0 %v849
      %v1119 = vpop.f32.mrf.mxu0
      %v1120 = vadd.f32 %v734, %v1119
      %v1121 = vpop.f32.mrf.mxu0
      %v1122 = vadd.f32 %v734, %v1121
      %1123 = vmatmul.bf16.gmra.mxu0 %v852
      %v1124 = vpop.f32.mrf.mxu0
      %v1125 = vadd.f32 %v734, %v1124
      %v1126 = vpop.f32.mrf.mxu0
      %v1127 = vadd.f32 %v734, %v1126
      %1128 = vmatmul.bf16.gmra.mxu0 %v855
      %v1129 = vpop.f32.mrf.mxu0
      %v1130 = vadd.f32 %v734, %v1129
      %v1131 = vpop.f32.mrf.mxu0
      %v1132 = vadd.f32 %v734, %v1131
      %1133 = vmatmul.bf16.gmra.mxu0 %v858
      %v1134 = vpop.f32.mrf.mxu0
      %v1135 = vadd.f32 %v734, %v1134
      %v1136 = vpop.f32.mrf.mxu0
      %v1137 = vadd.f32 %v734, %v1136
      %1138 = vmatmul.bf16.gmra.mxu0 %v861
      %v1139 = vpop.f32.mrf.mxu0
      %v1140 = vadd.f32 %v734, %v1139
      %v1141 = vpop.f32.mrf.mxu0
      %v1142 = vadd.f32 %v734, %v1141
      %1143 = vmatmul.bf16.gmra.mxu0 %v864
      %v1144 = vpop.f32.mrf.mxu0
      %v1145 = vadd.f32 %v734, %v1144
      %v1146 = vpop.f32.mrf.mxu0
      %v1147 = vadd.f32 %v734, %v1146
      %1148 = vmatmul.bf16.gmra.mxu0 %v867
      %v1149 = vpop.f32.mrf.mxu0
      %v1150 = vadd.f32 %v734, %v1149
      %v1151 = vpop.f32.mrf.mxu0
      %v1152 = vadd.f32 %v734, %v1151
      %1153 = vmatmul.bf16.gmra.mxu0 %v870
      %v1154 = vpop.f32.mrf.mxu0
      %v1155 = vadd.f32 %v734, %v1154
      %v1156 = vpop.f32.mrf.mxu0
      %v1157 = vadd.f32 %v734, %v1156
      %1158 = vmatmul.bf16.gmra.mxu0 %v873
      %v1159 = vpop.f32.mrf.mxu0
      %v1160 = vadd.f32 %v734, %v1159
      %v1161 = vpop.f32.mrf.mxu0
      %v1162 = vadd.f32 %v734, %v1161
      %1163 = vmatmul.bf16.gmra.mxu0 %v876
      %v1164 = vpop.f32.mrf.mxu0
      %v1165 = vadd.f32 %v734, %v1164
      %v1166 = vpop.f32.mrf.mxu0
      %v1167 = vadd.f32 %v734, %v1166
      %1168 = vmatmul.bf16.gmra.mxu0 %v879
      %v1169 = vpop.f32.mrf.mxu0
      %v1170 = vadd.f32 %v734, %v1169
      %v1171 = vpop.f32.mrf.mxu0
      %v1172 = vadd.f32 %v734, %v1171
      %1173 = vmatmul.bf16.gmra.mxu0 %v882
      %v1174 = vpop.f32.mrf.mxu0
      %v1175 = vadd.f32 %v734, %v1174
      %v1176 = vpop.f32.mrf.mxu0
      %v1177 = vadd.f32 %v734, %v1176
      %1178 = vmatmul.bf16.gmra.mxu0 %v885
      %v1179 = vpop.f32.mrf.mxu0
      %v1180 = vadd.f32 %v734, %v1179
      %v1181 = vpop.f32.mrf.mxu0
      %v1182 = vadd.f32 %v734, %v1181
      %1183 = vmatmul.bf16.gmra.mxu0 %v888
      %v1184 = vpop.f32.mrf.mxu0
      %v1185 = vadd.f32 %v734, %v1184
      %v1186 = vpop.f32.mrf.mxu0
      %v1187 = vadd.f32 %v734, %v1186
      %1188 = vmatmul.bf16.gmra.mxu0 %v891
      %v1189 = vpop.f32.mrf.mxu0
      %v1190 = vadd.f32 %v734, %v1189
      %v1191 = vpop.f32.mrf.mxu0
      %v1192 = vadd.f32 %v734, %v1191
      %1193 = vmatmul.bf16.gmra.mxu0 %v894
      %v1194 = vpop.f32.mrf.mxu0
      %v1195 = vadd.f32 %v734, %v1194
      %v1196 = vpop.f32.mrf.mxu0
      %v1197 = vadd.f32 %v734, %v1196
      %1198 = vmatmul.bf16.gmra.mxu0 %v897
      %v1199 = vpop.f32.mrf.mxu0
      %v1200 = vadd.f32 %v734, %v1199
      %v1201 = vpop.f32.mrf.mxu0
      %v1202 = vadd.f32 %v734, %v1201
      %1203 = vmatmul.bf16.gmra.mxu0 %v900
      %v1204 = vpop.f32.mrf.mxu0
      %v1205 = vadd.f32 %v734, %v1204
      %v1206 = vpop.f32.mrf.mxu0
      %v1207 = vadd.f32 %v734, %v1206
      %1208 = vmatmul.bf16.gmra.mxu0 %v903
      %v1209 = vpop.f32.mrf.mxu0
      %v1210 = vadd.f32 %v734, %v1209
      %v1211 = vpop.f32.mrf.mxu0
      %v1212 = vadd.f32 %v734, %v1211
      %1213 = vmatmul.bf16.gmra.mxu0 %v906
      %v1214 = vpop.f32.mrf.mxu0
      %v1215 = vadd.f32 %v734, %v1214
      %v1216 = vpop.f32.mrf.mxu0
      %v1217 = vadd.f32 %v734, %v1216
      %1218 = vmatmul.bf16.gmra.mxu0 %v909
      %v1219 = vpop.f32.mrf.mxu0
      %v1220 = vadd.f32 %v734, %v1219
      %v1221 = vpop.f32.mrf.mxu0
      %v1222 = vadd.f32 %v734, %v1221
      %1223 = vmatmul.bf16.gmra.mxu0 %v912
      %v1224 = vpop.f32.mrf.mxu0
      %v1225 = vadd.f32 %v734, %v1224
      %v1226 = vpop.f32.mrf.mxu0
      %v1227 = vadd.f32 %v734, %v1226
      %1228 = vmatmul.bf16.gmra.mxu0 %v915
      %v1229 = vpop.f32.mrf.mxu0
      %v1230 = vadd.f32 %v734, %v1229
      %v1231 = vpop.f32.mrf.mxu0
      %v1232 = vadd.f32 %v734, %v1231
      %1233 = vmatmul.bf16.gmra.mxu0 %v918
      %v1234 = vpop.f32.mrf.mxu0
      %v1235 = vadd.f32 %v734, %v1234
      %v1236 = vpop.f32.mrf.mxu0
      %v1237 = vadd.f32 %v734, %v1236
      %1238 = vmatmul.bf16.gmra.mxu0 %v921
      %v1239 = vpop.f32.mrf.mxu0
      %v1240 = vadd.f32 %v734, %v1239
      %v1241 = vpop.f32.mrf.mxu0
      %v1242 = vadd.f32 %v734, %v1241
      %1243 = vmatmul.bf16.gmra.mxu0 %v924
      %v1244 = vpop.f32.mrf.mxu0
      %v1245 = vadd.f32 %v734, %v1244
      %v1246 = vpop.f32.mrf.mxu0
      %v1247 = vadd.f32 %v734, %v1246
      %1248 = vmatmul.bf16.gmra.mxu0 %v927
      %v1249 = vpop.f32.mrf.mxu0
      %v1250 = vadd.f32 %v734, %v1249
      %v1251 = vpop.f32.mrf.mxu0
      %v1252 = vadd.f32 %v734, %v1251
      %1253 = vmatmul.bf16.gmra.mxu0 %v930
      %v1254 = vpop.f32.mrf.mxu0
      %v1255 = vadd.f32 %v734, %v1254
      %v1256 = vpop.f32.mrf.mxu0
      %v1257 = vadd.f32 %v734, %v1256
      %1258 = vmatmul.bf16.gmra.mxu0 %v933
      %v1259 = vpop.f32.mrf.mxu0
      %v1260 = vadd.f32 %v734, %v1259
      %v1261 = vpop.f32.mrf.mxu0
      %v1262 = vadd.f32 %v734, %v1261
      %1263 = vdwg.mxu0
      %v1264 = vmul.f32 %v945, 0.1
      %v1265 = vmul.f32 %v947, 0.1
      %v1266 = vmul.f32 %v950, 0.1
      %v1267 = vmul.f32 %v952, 0.1
      %v1268 = vmul.f32 %v955, 0.1
      %v1269 = vmul.f32 %v957, 0.1
      %v1270 = vmul.f32 %v960, 0.1
      %v1271 = vmul.f32 %v962, 0.1
      %v1272 = vmul.f32 %v965, 0.1
      %v1273 = vmul.f32 %v967, 0.1
      %v1274 = vmul.f32 %v970, 0.1
      %v1275 = vmul.f32 %v972, 0.1
      %v1276 = vmul.f32 %v975, 0.1
      %v1277 = vmul.f32 %v977, 0.1
      %v1278 = vmul.f32 %v980, 0.1
      %v1279 = vmul.f32 %v982, 0.1
      %v1280 = vmul.f32 %v985, 0.1
      %v1281 = vmul.f32 %v987, 0.1
      %v1282 = vmul.f32 %v990, 0.1
      %v1283 = vmul.f32 %v992, 0.1
      %v1284 = vmul.f32 %v995, 0.1
      %v1285 = vmul.f32 %v997, 0.1
      %v1286 = vmul.f32 %v1000, 0.1
      %v1287 = vmul.f32 %v1002, 0.1
      %v1288 = vmul.f32 %v1005, 0.1
      %v1289 = vmul.f32 %v1007, 0.1
      %v1290 = vmul.f32 %v1010, 0.1
      %v1291 = vmul.f32 %v1012, 0.1
      %v1292 = vmul.f32 %v1015, 0.1
      %v1293 = vmul.f32 %v1017, 0.1
      %v1294 = vmul.f32 %v1020, 0.1
      %v1295 = vmul.f32 %v1022, 0.1
      %v1296 = vmul.f32 %v1025, 0.1
      %v1297 = vmul.f32 %v1027, 0.1
      %v1298 = vmul.f32 %v1030, 0.1
      %v1299 = vmul.f32 %v1032, 0.1
      %v1300 = vmul.f32 %v1035, 0.1
      %v1301 = vmul.f32 %v1037, 0.1
      %v1302 = vmul.f32 %v1040, 0.1
      %v1303 = vmul.f32 %v1042, 0.1
      %v1304 = vmul.f32 %v1045, 0.1
      %v1305 = vmul.f32 %v1047, 0.1
      %v1306 = vmul.f32 %v1050, 0.1
      %v1307 = vmul.f32 %v1052, 0.1
      %v1308 = vmul.f32 %v1055, 0.1
      %v1309 = vmul.f32 %v1057, 0.1
      %v1310 = vmul.f32 %v1060, 0.1
      %v1311 = vmul.f32 %v1062, 0.1
      %v1312 = vmul.f32 %v1065, 0.1
      %v1313 = vmul.f32 %v1067, 0.1
      %v1314 = vmul.f32 %v1070, 0.1
      %v1315 = vmul.f32 %v1072, 0.1
      %v1316 = vmul.f32 %v1075, 0.1
      %v1317 = vmul.f32 %v1077, 0.1
      %v1318 = vmul.f32 %v1080, 0.1
      %v1319 = vmul.f32 %v1082, 0.1
      %v1320 = vmul.f32 %v1085, 0.1
      %v1321 = vmul.f32 %v1087, 0.1
      %v1322 = vmul.f32 %v1090, 0.1
      %v1323 = vmul.f32 %v1092, 0.1
      %v1324 = vmul.f32 %v1095, 0.1
      %v1325 = vmul.f32 %v1097, 0.1
      %v1326 = vmul.f32 %v1100, 0.1
      %v1327 = vmul.f32 %v1102, 0.1
      %v1328 = vmul.f32 %v1105, 0.1
      %v1329 = vmul.f32 %v1107, 0.1
      %v1330 = vmul.f32 %v1110, 0.1
      %v1331 = vmul.f32 %v1112, 0.1
      %v1332 = vmul.f32 %v1115, 0.1
      %v1333 = vmul.f32 %v1117, 0.1
      %v1334 = vmul.f32 %v1120, 0.1
      %v1335 = vmul.f32 %v1122, 0.1
      %v1336 = vmul.f32 %v1125, 0.1
      %v1337 = vmul.f32 %v1127, 0.1
      %v1338 = vmul.f32 %v1130, 0.1
      %v1339 = vmul.f32 %v1132, 0.1
      %v1340 = vmul.f32 %v1135, 0.1
      %v1341 = vmul.f32 %v1137, 0.1
      %v1342 = vmul.f32 %v1140, 0.1
      %v1343 = vmul.f32 %v1142, 0.1
      %v1344 = vmul.f32 %v1145, 0.1
      %v1345 = vmul.f32 %v1147, 0.1
      %v1346 = vmul.f32 %v1150, 0.1
      %v1347 = vmul.f32 %v1152, 0.1
      %v1348 = vmul.f32 %v1155, 0.1
      %v1349 = vmul.f32 %v1157, 0.1
      %v1350 = vmul.f32 %v1160, 0.1
      %v1351 = vmul.f32 %v1162, 0.1
      %v1352 = vmul.f32 %v1165, 0.1
      %v1353 = vmul.f32 %v1167, 0.1
      %v1354 = vmul.f32 %v1170, 0.1
      %v1355 = vmul.f32 %v1172, 0.1
      %v1356 = vmul.f32 %v1175, 0.1
      %v1357 = vmul.f32 %v1177, 0.1
      %v1358 = vmul.f32 %v1180, 0.1
      %v1359 = vmul.f32 %v1182, 0.1
      %v1360 = vmul.f32 %v1185, 0.1
      %v1361 = vmul.f32 %v1187, 0.1
      %v1362 = vmul.f32 %v1190, 0.1
      %v1363 = vmul.f32 %v1192, 0.1
      %v1364 = vmul.f32 %v1195, 0.1
      %v1365 = vmul.f32 %v1197, 0.1
      %v1366 = vmul.f32 %v1200, 0.1
      %v1367 = vmul.f32 %v1202, 0.1
      %v1368 = vmul.f32 %v1205, 0.1
      %v1369 = vmul.f32 %v1207, 0.1
      %v1370 = vmul.f32 %v1210, 0.1
      %v1371 = vmul.f32 %v1212, 0.1
      %v1372 = vmul.f32 %v1215, 0.1
      %v1373 = vmul.f32 %v1217, 0.1
      %v1374 = vmul.f32 %v1220, 0.1
      %v1375 = vmul.f32 %v1222, 0.1
      %v1376 = vmul.f32 %v1225, 0.1
      %v1377 = vmul.f32 %v1227, 0.1
      %v1378 = vmul.f32 %v1230, 0.1
      %v1379 = vmul.f32 %v1232, 0.1
      %v1380 = vmul.f32 %v1235, 0.1
      %v1381 = vmul.f32 %v1237, 0.1
      %v1382 = vmul.f32 %v1240, 0.1
      %v1383 = vmul.f32 %v1242, 0.1
      %v1384 = vmul.f32 %v1245, 0.1
      %v1385 = vmul.f32 %v1247, 0.1
      %v1386 = vmul.f32 %v1250, 0.1
      %v1387 = vmul.f32 %v1252, 0.1
      %v1388 = vmul.f32 %v1255, 0.1
      %v1389 = vmul.f32 %v1257, 0.1
      %v1390 = vmul.f32 %v1260, 0.1
      %v1391 = vmul.f32 %v1262, 0.1
      %v1392 = vmax.f32 %v945, %v1264
      %v1393 = vmax.f32 %v947, %v1265
      %v1394 = vmax.f32 %v950, %v1266
      %v1395 = vmax.f32 %v952, %v1267
      %v1396 = vmax.f32 %v955, %v1268
      %v1397 = vmax.f32 %v957, %v1269
      %v1398 = vmax.f32 %v960, %v1270
      %v1399 = vmax.f32 %v962, %v1271
      %v1400 = vmax.f32 %v965, %v1272
      %v1401 = vmax.f32 %v967, %v1273
      %v1402 = vmax.f32 %v970, %v1274
      %v1403 = vmax.f32 %v972, %v1275
      %v1404 = vmax.f32 %v975, %v1276
      %v1405 = vmax.f32 %v977, %v1277
      %v1406 = vmax.f32 %v980, %v1278
      %v1407 = vmax.f32 %v982, %v1279
      %v1408 = vmax.f32 %v985, %v1280
      %v1409 = vmax.f32 %v987, %v1281
      %v1410 = vmax.f32 %v990, %v1282
      %v1411 = vmax.f32 %v992, %v1283
      %v1412 = vmax.f32 %v995, %v1284
      %v1413 = vmax.f32 %v997, %v1285
      %v1414 = vmax.f32 %v1000, %v1286
      %v1415 = vmax.f32 %v1002, %v1287
      %v1416 = vmax.f32 %v1005, %v1288
      %v1417 = vmax.f32 %v1007, %v1289
      %v1418 = vmax.f32 %v1010, %v1290
      %v1419 = vmax.f32 %v1012, %v1291
      %v1420 = vmax.f32 %v1015, %v1292
      %v1421 = vmax.f32 %v1017, %v1293
      %v1422 = vmax.f32 %v1020, %v1294
      %v1423 = vmax.f32 %v1022, %v1295
      %v1424 = vmax.f32 %v1025, %v1296
      %v1425 = vmax.f32 %v1027, %v1297
      %v1426 = vmax.f32 %v1030, %v1298
      %v1427 = vmax.f32 %v1032, %v1299
      %v1428 = vmax.f32 %v1035, %v1300
      %v1429 = vmax.f32 %v1037, %v1301
      %v1430 = vmax.f32 %v1040, %v1302
      %v1431 = vmax.f32 %v1042, %v1303
      %v1432 = vmax.f32 %v1045, %v1304
      %v1433 = vmax.f32 %v1047, %v1305
      %v1434 = vmax.f32 %v1050, %v1306
      %v1435 = vmax.f32 %v1052, %v1307
      %v1436 = vmax.f32 %v1055, %v1308
      %v1437 = vmax.f32 %v1057, %v1309
      %v1438 = vmax.f32 %v1060, %v1310
      %v1439 = vmax.f32 %v1062, %v1311
      %v1440 = vmax.f32 %v1065, %v1312
      %v1441 = vmax.f32 %v1067, %v1313
      %v1442 = vmax.f32 %v1070, %v1314
      %v1443 = vmax.f32 %v1072, %v1315
      %v1444 = vmax.f32 %v1075, %v1316
      %v1445 = vmax.f32 %v1077, %v1317
      %v1446 = vmax.f32 %v1080, %v1318
      %v1447 = vmax.f32 %v1082, %v1319
      %v1448 = vmax.f32 %v1085, %v1320
      %v1449 = vmax.f32 %v1087, %v1321
      %v1450 = vmax.f32 %v1090, %v1322
      %v1451 = vmax.f32 %v1092, %v1323
      %v1452 = vmax.f32 %v1095, %v1324
      %v1453 = vmax.f32 %v1097, %v1325
      %v1454 = vmax.f32 %v1100, %v1326
      %v1455 = vmax.f32 %v1102, %v1327
      %v1456 = vmax.f32 %v1105, %v1328
      %v1457 = vmax.f32 %v1107, %v1329
      %v1458 = vmax.f32 %v1110, %v1330
      %v1459 = vmax.f32 %v1112, %v1331
      %v1460 = vmax.f32 %v1115, %v1332
      %v1461 = vmax.f32 %v1117, %v1333
      %v1462 = vmax.f32 %v1120, %v1334
      %v1463 = vmax.f32 %v1122, %v1335
      %v1464 = vmax.f32 %v1125, %v1336
      %v1465 = vmax.f32 %v1127, %v1337
      %v1466 = vmax.f32 %v1130, %v1338
      %v1467 = vmax.f32 %v1132, %v1339
      %v1468 = vmax.f32 %v1135, %v1340
      %v1469 = vmax.f32 %v1137, %v1341
      %v1470 = vmax.f32 %v1140, %v1342
      %v1471 = vmax.f32 %v1142, %v1343
      %v1472 = vmax.f32 %v1145, %v1344
      %v1473 = vmax.f32 %v1147, %v1345
      %v1474 = vmax.f32 %v1150, %v1346
      %v1475 = vmax.f32 %v1152, %v1347
      %v1476 = vmax.f32 %v1155, %v1348
      %v1477 = vmax.f32 %v1157, %v1349
      %v1478 = vmax.f32 %v1160, %v1350
      %v1479 = vmax.f32 %v1162, %v1351
      %v1480 = vmax.f32 %v1165, %v1352
      %v1481 = vmax.f32 %v1167, %v1353
      %v1482 = vmax.f32 %v1170, %v1354
      %v1483 = vmax.f32 %v1172, %v1355
      %v1484 = vmax.f32 %v1175, %v1356
      %v1485 = vmax.f32 %v1177, %v1357
      %v1486 = vmax.f32 %v1180, %v1358
      %v1487 = vmax.f32 %v1182, %v1359
      %v1488 = vmax.f32 %v1185, %v1360
      %v1489 = vmax.f32 %v1187, %v1361
      %v1490 = vmax.f32 %v1190, %v1362
      %v1491 = vmax.f32 %v1192, %v1363
      %v1492 = vmax.f32 %v1195, %v1364
      %v1493 = vmax.f32 %v1197, %v1365
      %v1494 = vmax.f32 %v1200, %v1366
      %v1495 = vmax.f32 %v1202, %v1367
      %v1496 = vmax.f32 %v1205, %v1368
      %v1497 = vmax.f32 %v1207, %v1369
      %v1498 = vmax.f32 %v1210, %v1370
      %v1499 = vmax.f32 %v1212, %v1371
      %v1500 = vmax.f32 %v1215, %v1372
      %v1501 = vmax.f32 %v1217, %v1373
      %v1502 = vmax.f32 %v1220, %v1374
      %v1503 = vmax.f32 %v1222, %v1375
      %v1504 = vmax.f32 %v1225, %v1376
      %v1505 = vmax.f32 %v1227, %v1377
      %v1506 = vmax.f32 %v1230, %v1378
      %v1507 = vmax.f32 %v1232, %v1379
      %v1508 = vmax.f32 %v1235, %v1380
      %v1509 = vmax.f32 %v1237, %v1381
      %v1510 = vmax.f32 %v1240, %v1382
      %v1511 = vmax.f32 %v1242, %v1383
      %v1512 = vmax.f32 %v1245, %v1384
      %v1513 = vmax.f32 %v1247, %v1385
      %v1514 = vmax.f32 %v1250, %v1386
      %v1515 = vmax.f32 %v1252, %v1387
      %v1516 = vmax.f32 %v1255, %v1388
      %v1517 = vmax.f32 %v1257, %v1389
      %v1518 = vmax.f32 %v1260, %v1390
      %v1519 = vmax.f32 %v1262, %v1391
      %v1648 = vrot.slane %v1392, 2
      %v1649 = vrot.slane %v1392, 4
      %v1650 = vrot.slane %v1392, 6
      %v1651 = vrot.slane %v1393, 2
      %v1652 = vrot.slane %v1393, 4
      %v1653 = vrot.slane %v1393, 6
      %v1654 = vrot.slane %v1394, 2
      %v1655 = vrot.slane %v1394, 4
      %v1656 = vrot.slane %v1394, 6
      %v1657 = vrot.slane %v1395, 2
      %v1658 = vrot.slane %v1395, 4
      %v1659 = vrot.slane %v1395, 6
      %v1660 = vrot.slane %v1396, 2
      %v1661 = vrot.slane %v1396, 4
      %v1662 = vrot.slane %v1396, 6
      %v1663 = vrot.slane %v1397, 2
      %v1664 = vrot.slane %v1397, 4
      %v1665 = vrot.slane %v1397, 6
      %v1666 = vrot.slane %v1398, 2
      %v1667 = vrot.slane %v1398, 4
      %v1668 = vrot.slane %v1398, 6
      %v1669 = vrot.slane %v1399, 2
      %v1670 = vrot.slane %v1399, 4
      %v1671 = vrot.slane %v1399, 6
      %v1672 = vrot.slane %v1400, 2
      %v1673 = vrot.slane %v1400, 4
      %v1674 = vrot.slane %v1400, 6
      %v1675 = vrot.slane %v1401, 2
      %v1676 = vrot.slane %v1401, 4
      %v1677 = vrot.slane %v1401, 6
      %v1678 = vrot.slane %v1402, 2
      %v1679 = vrot.slane %v1402, 4
      %v1680 = vrot.slane %v1402, 6
      %v1681 = vrot.slane %v1403, 2
      %v1682 = vrot.slane %v1403, 4
      %v1683 = vrot.slane %v1403, 6
      %v1684 = vrot.slane %v1404, 2
      %v1685 = vrot.slane %v1404, 4
      %v1686 = vrot.slane %v1404, 6
      %v1687 = vrot.slane %v1405, 2
      %v1688 = vrot.slane %v1405, 4
      %v1689 = vrot.slane %v1405, 6
      %v1690 = vrot.slane %v1406, 2
      %v1691 = vrot.slane %v1406, 4
      %v1692 = vrot.slane %v1406, 6
      %v1693 = vrot.slane %v1407, 2
      %v1694 = vrot.slane %v1407, 4
      %v1695 = vrot.slane %v1407, 6
      %v1696 = vrot.slane %v1408, 2
      %v1697 = vrot.slane %v1408, 4
      %v1698 = vrot.slane %v1408, 6
      %v1699 = vrot.slane %v1409, 2
      %v1700 = vrot.slane %v1409, 4
      %v1701 = vrot.slane %v1409, 6
      %v1702 = vrot.slane %v1410, 2
      %v1703 = vrot.slane %v1410, 4
      %v1704 = vrot.slane %v1410, 6
      %v1705 = vrot.slane %v1411, 2
      %v1706 = vrot.slane %v1411, 4
      %v1707 = vrot.slane %v1411, 6
      %v1708 = vrot.slane %v1412, 2
      %v1709 = vrot.slane %v1412, 4
      %v1710 = vrot.slane %v1412, 6
      %v1711 = vrot.slane %v1413, 2
      %v1712 = vrot.slane %v1413, 4
      %v1713 = vrot.slane %v1413, 6
      %v1714 = vrot.slane %v1414, 2
      %v1715 = vrot.slane %v1414, 4
      %v1716 = vrot.slane %v1414, 6
      %v1717 = vrot.slane %v1415, 2
      %v1718 = vrot.slane %v1415, 4
      %v1719 = vrot.slane %v1415, 6
      %v1720 = vrot.slane %v1416, 2
      %v1721 = vrot.slane %v1416, 4
      %v1722 = vrot.slane %v1416, 6
      %v1723 = vrot.slane %v1417, 2
      %v1724 = vrot.slane %v1417, 4
      %v1725 = vrot.slane %v1417, 6
      %v1726 = vrot.slane %v1418, 2
      %v1727 = vrot.slane %v1418, 4
      %v1728 = vrot.slane %v1418, 6
      %v1729 = vrot.slane %v1419, 2
      %v1730 = vrot.slane %v1419, 4
      %v1731 = vrot.slane %v1419, 6
      %v1732 = vrot.slane %v1420, 2
      %v1733 = vrot.slane %v1420, 4
      %v1734 = vrot.slane %v1420, 6
      %v1735 = vrot.slane %v1421, 2
      %v1736 = vrot.slane %v1421, 4
      %v1737 = vrot.slane %v1421, 6
      %v1738 = vrot.slane %v1422, 2
      %v1739 = vrot.slane %v1422, 4
      %v1740 = vrot.slane %v1422, 6
      %v1741 = vrot.slane %v1423, 2
      %v1742 = vrot.slane %v1423, 4
      %v1743 = vrot.slane %v1423, 6
      %v1744 = vrot.slane %v1424, 2
      %v1745 = vrot.slane %v1424, 4
      %v1746 = vrot.slane %v1424, 6
      %v1747 = vrot.slane %v1425, 2
      %v1748 = vrot.slane %v1425, 4
      %v1749 = vrot.slane %v1425, 6
      %v1750 = vrot.slane %v1426, 2
      %v1751 = vrot.slane %v1426, 4
      %v1752 = vrot.slane %v1426, 6
      %v1753 = vrot.slane %v1427, 2
      %v1754 = vrot.slane %v1427, 4
      %v1755 = vrot.slane %v1427, 6
      %v1756 = vrot.slane %v1428, 2
      %v1757 = vrot.slane %v1428, 4
      %v1758 = vrot.slane %v1428, 6
      %v1759 = vrot.slane %v1429, 2
      %v1760 = vrot.slane %v1429, 4
      %v1761 = vrot.slane %v1429, 6
      %v1762 = vrot.slane %v1430, 2
      %v1763 = vrot.slane %v1430, 4
      %v1764 = vrot.slane %v1430, 6
      %v1765 = vrot.slane %v1431, 2
      %v1766 = vrot.slane %v1431, 4
      %v1767 = vrot.slane %v1431, 6
      %v1768 = vrot.slane %v1432, 2
      %v1769 = vrot.slane %v1432, 4
      %v1770 = vrot.slane %v1432, 6
      %v1771 = vrot.slane %v1433, 2
      %v1772 = vrot.slane %v1433, 4
      %v1773 = vrot.slane %v1433, 6
      %v1774 = vrot.slane %v1434, 2
      %v1775 = vrot.slane %v1434, 4
      %v1776 = vrot.slane %v1434, 6
      %v1777 = vrot.slane %v1435, 2
      %v1778 = vrot.slane %v1435, 4
      %v1779 = vrot.slane %v1435, 6
      %v1780 = vrot.slane %v1436, 2
      %v1781 = vrot.slane %v1436, 4
      %v1782 = vrot.slane %v1436, 6
      %v1783 = vrot.slane %v1437, 2
      %v1784 = vrot.slane %v1437, 4
      %v1785 = vrot.slane %v1437, 6
      %v1786 = vrot.slane %v1438, 2
      %v1787 = vrot.slane %v1438, 4
      %v1788 = vrot.slane %v1438, 6
      %v1789 = vrot.slane %v1439, 2
      %v1790 = vrot.slane %v1439, 4
      %v1791 = vrot.slane %v1439, 6
      %v1792 = vrot.slane %v1440, 2
      %v1793 = vrot.slane %v1440, 4
      %v1794 = vrot.slane %v1440, 6
      %v1795 = vrot.slane %v1441, 2
      %v1796 = vrot.slane %v1441, 4
      %v1797 = vrot.slane %v1441, 6
      %v1798 = vrot.slane %v1442, 2
      %v1799 = vrot.slane %v1442, 4
      %v1800 = vrot.slane %v1442, 6
      %v1801 = vrot.slane %v1443, 2
      %v1802 = vrot.slane %v1443, 4
      %v1803 = vrot.slane %v1443, 6
      %v1804 = vrot.slane %v1444, 2
      %v1805 = vrot.slane %v1444, 4
      %v1806 = vrot.slane %v1444, 6
      %v1807 = vrot.slane %v1445, 2
      %v1808 = vrot.slane %v1445, 4
      %v1809 = vrot.slane %v1445, 6
      %v1810 = vrot.slane %v1446, 2
      %v1811 = vrot.slane %v1446, 4
      %v1812 = vrot.slane %v1446, 6
      %v1813 = vrot.slane %v1447, 2
      %v1814 = vrot.slane %v1447, 4
      %v1815 = vrot.slane %v1447, 6
      %v1816 = vrot.slane %v1448, 2
      %v1817 = vrot.slane %v1448, 4
      %v1818 = vrot.slane %v1448, 6
      %v1819 = vrot.slane %v1449, 2
      %v1820 = vrot.slane %v1449, 4
      %v1821 = vrot.slane %v1449, 6
      %v1822 = vrot.slane %v1450, 2
      %v1823 = vrot.slane %v1450, 4
      %v1824 = vrot.slane %v1450, 6
      %v1825 = vrot.slane %v1451, 2
      %v1826 = vrot.slane %v1451, 4
      %v1827 = vrot.slane %v1451, 6
      %v1828 = vrot.slane %v1452, 2
      %v1829 = vrot.slane %v1452, 4
      %v1830 = vrot.slane %v1452, 6
      %v1831 = vrot.slane %v1453, 2
      %v1832 = vrot.slane %v1453, 4
      %v1833 = vrot.slane %v1453, 6
      %v1834 = vrot.slane %v1454, 2
      %v1835 = vrot.slane %v1454, 4
      %v1836 = vrot.slane %v1454, 6
      %v1837 = vrot.slane %v1455, 2
      %v1838 = vrot.slane %v1455, 4
      %v1839 = vrot.slane %v1455, 6
      %v1840 = vrot.slane %v1456, 2
      %v1841 = vrot.slane %v1456, 4
      %v1842 = vrot.slane %v1456, 6
      %v1843 = vrot.slane %v1457, 2
      %v1844 = vrot.slane %v1457, 4
      %v1845 = vrot.slane %v1457, 6
      %v1846 = vrot.slane %v1458, 2
      %v1847 = vrot.slane %v1458, 4
      %v1848 = vrot.slane %v1458, 6
      %v1849 = vrot.slane %v1459, 2
      %v1850 = vrot.slane %v1459, 4
      %v1851 = vrot.slane %v1459, 6
      %v1852 = vrot.slane %v1460, 2
      %v1853 = vrot.slane %v1460, 4
      %v1854 = vrot.slane %v1460, 6
      %v1855 = vrot.slane %v1461, 2
      %v1856 = vrot.slane %v1461, 4
      %v1857 = vrot.slane %v1461, 6
      %v1858 = vrot.slane %v1462, 2
      %v1859 = vrot.slane %v1462, 4
      %v1860 = vrot.slane %v1462, 6
      %v1861 = vrot.slane %v1463, 2
      %v1862 = vrot.slane %v1463, 4
      %v1863 = vrot.slane %v1463, 6
      %v1864 = vrot.slane %v1464, 2
      %v1865 = vrot.slane %v1464, 4
      %v1866 = vrot.slane %v1464, 6
      %v1867 = vrot.slane %v1465, 2
      %v1868 = vrot.slane %v1465, 4
      %v1869 = vrot.slane %v1465, 6
      %v1870 = vrot.slane %v1466, 2
      %v1871 = vrot.slane %v1466, 4
      %v1872 = vrot.slane %v1466, 6
      %v1873 = vrot.slane %v1467, 2
      %v1874 = vrot.slane %v1467, 4
      %v1875 = vrot.slane %v1467, 6
      %v1876 = vrot.slane %v1468, 2
      %v1877 = vrot.slane %v1468, 4
      %v1878 = vrot.slane %v1468, 6
      %v1879 = vrot.slane %v1469, 2
      %v1880 = vrot.slane %v1469, 4
      %v1881 = vrot.slane %v1469, 6
      %v1882 = vrot.slane %v1470, 2
      %v1883 = vrot.slane %v1470, 4
      %v1884 = vrot.slane %v1470, 6
      %v1885 = vrot.slane %v1471, 2
      %v1886 = vrot.slane %v1471, 4
      %v1887 = vrot.slane %v1471, 6
      %v1888 = vrot.slane %v1472, 2
      %v1889 = vrot.slane %v1472, 4
      %v1890 = vrot.slane %v1472, 6
      %v1891 = vrot.slane %v1473, 2
      %v1892 = vrot.slane %v1473, 4
      %v1893 = vrot.slane %v1473, 6
      %v1894 = vrot.slane %v1474, 2
      %v1895 = vrot.slane %v1474, 4
      %v1896 = vrot.slane %v1474, 6
      %v1897 = vrot.slane %v1475, 2
      %v1898 = vrot.slane %v1475, 4
      %v1899 = vrot.slane %v1475, 6
      %v1900 = vrot.slane %v1476, 2
      %v1901 = vrot.slane %v1476, 4
      %v1902 = vrot.slane %v1476, 6
      %v1903 = vrot.slane %v1477, 2
      %v1904 = vrot.slane %v1477, 4
      %v1905 = vrot.slane %v1477, 6
      %v1906 = vrot.slane %v1478, 2
      %v1907 = vrot.slane %v1478, 4
      %v1908 = vrot.slane %v1478, 6
      %v1909 = vrot.slane %v1479, 2
      %v1910 = vrot.slane %v1479, 4
      %v1911 = vrot.slane %v1479, 6
      %v1912 = vrot.slane %v1480, 2
      %v1913 = vrot.slane %v1480, 4
      %v1914 = vrot.slane %v1480, 6
      %v1915 = vrot.slane %v1481, 2
      %v1916 = vrot.slane %v1481, 4
      %v1917 = vrot.slane %v1481, 6
      %v1918 = vrot.slane %v1482, 2
      %v1919 = vrot.slane %v1482, 4
      %v1920 = vrot.slane %v1482, 6
      %v1921 = vrot.slane %v1483, 2
      %v1922 = vrot.slane %v1483, 4
      %v1923 = vrot.slane %v1483, 6
      %v1924 = vrot.slane %v1484, 2
      %v1925 = vrot.slane %v1484, 4
      %v1926 = vrot.slane %v1484, 6
      %v1927 = vrot.slane %v1485, 2
      %v1928 = vrot.slane %v1485, 4
      %v1929 = vrot.slane %v1485, 6
      %v1930 = vrot.slane %v1486, 2
      %v1931 = vrot.slane %v1486, 4
      %v1932 = vrot.slane %v1486, 6
      %v1933 = vrot.slane %v1487, 2
      %v1934 = vrot.slane %v1487, 4
      %v1935 = vrot.slane %v1487, 6
      %v1936 = vrot.slane %v1488, 2
      %v1937 = vrot.slane %v1488, 4
      %v1938 = vrot.slane %v1488, 6
      %v1939 = vrot.slane %v1489, 2
      %v1940 = vrot.slane %v1489, 4
      %v1941 = vrot.slane %v1489, 6
      %v1942 = vrot.slane %v1490, 2
      %v1943 = vrot.slane %v1490, 4
      %v1944 = vrot.slane %v1490, 6
      %v1945 = vrot.slane %v1491, 2
      %v1946 = vrot.slane %v1491, 4
      %v1947 = vrot.slane %v1491, 6
      %v1948 = vrot.slane %v1492, 2
      %v1949 = vrot.slane %v1492, 4
      %v1950 = vrot.slane %v1492, 6
      %v1951 = vrot.slane %v1493, 2
      %v1952 = vrot.slane %v1493, 4
      %v1953 = vrot.slane %v1493, 6
      %v1954 = vrot.slane %v1494, 2
      %v1955 = vrot.slane %v1494, 4
      %v1956 = vrot.slane %v1494, 6
      %v1957 = vrot.slane %v1495, 2
      %v1958 = vrot.slane %v1495, 4
      %v1959 = vrot.slane %v1495, 6
      %v1960 = vrot.slane %v1496, 2
      %v1961 = vrot.slane %v1496, 4
      %v1962 = vrot.slane %v1496, 6
      %v1963 = vrot.slane %v1497, 2
      %v1964 = vrot.slane %v1497, 4
      %v1965 = vrot.slane %v1497, 6
      %v1966 = vrot.slane %v1498, 2
      %v1967 = vrot.slane %v1498, 4
      %v1968 = vrot.slane %v1498, 6
      %v1969 = vrot.slane %v1499, 2
      %v1970 = vrot.slane %v1499, 4
      %v1971 = vrot.slane %v1499, 6
      %v1972 = vrot.slane %v1500, 2
      %v1973 = vrot.slane %v1500, 4
      %v1974 = vrot.slane %v1500, 6
      %v1975 = vrot.slane %v1501, 2
      %v1976 = vrot.slane %v1501, 4
      %v1977 = vrot.slane %v1501, 6
      %v1978 = vrot.slane %v1502, 2
      %v1979 = vrot.slane %v1502, 4
      %v1980 = vrot.slane %v1502, 6
      %v1981 = vrot.slane %v1503, 2
      %v1982 = vrot.slane %v1503, 4
      %v1983 = vrot.slane %v1503, 6
      %v1984 = vrot.slane %v1504, 2
      %v1985 = vrot.slane %v1504, 4
      %v1986 = vrot.slane %v1504, 6
      %v1987 = vrot.slane %v1505, 2
      %v1988 = vrot.slane %v1505, 4
      %v1989 = vrot.slane %v1505, 6
      %v1990 = vrot.slane %v1506, 2
      %v1991 = vrot.slane %v1506, 4
      %v1992 = vrot.slane %v1506, 6
      %v1993 = vrot.slane %v1507, 2
      %v1994 = vrot.slane %v1507, 4
      %v1995 = vrot.slane %v1507, 6
      %v1996 = vrot.slane %v1508, 2
      %v1997 = vrot.slane %v1508, 4
      %v1998 = vrot.slane %v1508, 6
      %v1999 = vrot.slane %v1509, 2
      %v2000 = vrot.slane %v1509, 4
      %v2001 = vrot.slane %v1509, 6
      %v2002 = vrot.slane %v1510, 2
      %v2003 = vrot.slane %v1510, 4
      %v2004 = vrot.slane %v1510, 6
      %v2005 = vrot.slane %v1511, 2
      %v2006 = vrot.slane %v1511, 4
      %v2007 = vrot.slane %v1511, 6
      %v2008 = vrot.slane %v1512, 2
      %v2009 = vrot.slane %v1512, 4
      %v2010 = vrot.slane %v1512, 6
      %v2011 = vrot.slane %v1513, 2
      %v2012 = vrot.slane %v1513, 4
      %v2013 = vrot.slane %v1513, 6
      %v2014 = vrot.slane %v1514, 2
      %v2015 = vrot.slane %v1514, 4
      %v2016 = vrot.slane %v1514, 6
      %v2017 = vrot.slane %v1515, 2
      %v2018 = vrot.slane %v1515, 4
      %v2019 = vrot.slane %v1515, 6
      %v2020 = vrot.slane %v1516, 2
      %v2021 = vrot.slane %v1516, 4
      %v2022 = vrot.slane %v1516, 6
      %v2023 = vrot.slane %v1517, 2
      %v2024 = vrot.slane %v1517, 4
      %v2025 = vrot.slane %v1517, 6
      %v2026 = vrot.slane %v1518, 2
      %v2027 = vrot.slane %v1518, 4
      %v2028 = vrot.slane %v1518, 6
      %v2029 = vrot.slane %v1519, 2
      %v2030 = vrot.slane %v1519, 4
      %v2031 = vrot.slane %v1519, 6
      %v2032 = vperm.slane %v1392, 0
      %v2033 = vperm.slane %v1648, 0
      %v2034 = vperm.slane %v1649, 0
      %v2035 = vperm.slane %v1650, 0
      %v2036 = vperm.slane %v1393, 0
      %v2037 = vperm.slane %v1651, 0
      %v2038 = vperm.slane %v1652, 0
      %v2039 = vperm.slane %v1653, 0
      %v2040 = vperm.slane %v1394, 0
      %v2041 = vperm.slane %v1654, 0
      %v2042 = vperm.slane %v1655, 0
      %v2043 = vperm.slane %v1656, 0
      %v2044 = vperm.slane %v1395, 0
      %v2045 = vperm.slane %v1657, 0
      %v2046 = vperm.slane %v1658, 0
      %v2047 = vperm.slane %v1659, 0
      %v2048 = vperm.slane %v1400, 0
      %v2049 = vperm.slane %v1672, 0
      %v2050 = vperm.slane %v1673, 0
      %v2051 = vperm.slane %v1674, 0
      %v2052 = vperm.slane %v1401, 0
      %v2053 = vperm.slane %v1675, 0
      %v2054 = vperm.slane %v1676, 0
      %v2055 = vperm.slane %v1677, 0
      %v2056 = vperm.slane %v1402, 0
      %v2057 = vperm.slane %v1678, 0
      %v2058 = vperm.slane %v1679, 0
      %v2059 = vperm.slane %v1680, 0
      %v2060 = vperm.slane %v1403, 0
      %v2061 = vperm.slane %v1681, 0
      %v2062 = vperm.slane %v1682, 0
      %v2063 = vperm.slane %v1683, 0
      %v2064 = vperm.slane %v1408, 0
      %v2065 = vperm.slane %v1696, 0
      %v2066 = vperm.slane %v1697, 0
      %v2067 = vperm.slane %v1698, 0
      %v2068 = vperm.slane %v1409, 0
      %v2069 = vperm.slane %v1699, 0
      %v2070 = vperm.slane %v1700, 0
      %v2071 = vperm.slane %v1701, 0
      %v2072 = vperm.slane %v1410, 0
      %v2073 = vperm.slane %v1702, 0
      %v2074 = vperm.slane %v1703, 0
      %v2075 = vperm.slane %v1704, 0
      %v2076 = vperm.slane %v1411, 0
      %v2077 = vperm.slane %v1705, 0
      %v2078 = vperm.slane %v1706, 0
      %v2079 = vperm.slane %v1707, 0
      %v2080 = vperm.slane %v1416, 0
      %v2081 = vperm.slane %v1720, 0
      %v2082 = vperm.slane %v1721, 0
      %v2083 = vperm.slane %v1722, 0
      %v2084 = vperm.slane %v1417, 0
      %v2085 = vperm.slane %v1723, 0
      %v2086 = vperm.slane %v1724, 0
      %v2087 = vperm.slane %v1725, 0
      %v2088 = vperm.slane %v1418, 0
      %v2089 = vperm.slane %v1726, 0
      %v2090 = vperm.slane %v1727, 0
      %v2091 = vperm.slane %v1728, 0
      %v2092 = vperm.slane %v1419, 0
      %v2093 = vperm.slane %v1729, 0
      %v2094 = vperm.slane %v1730, 0
      %v2095 = vperm.slane %v1731, 0
      %v2096 = vperm.slane %v1424, 0
      %v2097 = vperm.slane %v1744, 0
      %v2098 = vperm.slane %v1745, 0
      %v2099 = vperm.slane %v1746, 0
      %v2100 = vperm.slane %v1425, 0
      %v2101 = vperm.slane %v1747, 0
      %v2102 = vperm.slane %v1748, 0
      %v2103 = vperm.slane %v1749, 0
      %v2104 = vperm.slane %v1426, 0
      %v2105 = vperm.slane %v1750, 0
      %v2106 = vperm.slane %v1751, 0
      %v2107 = vperm.slane %v1752, 0
      %v2108 = vperm.slane %v1427, 0
      %v2109 = vperm.slane %v1753, 0
      %v2110 = vperm.slane %v1754, 0
      %v2111 = vperm.slane %v1755, 0
      %v2112 = vperm.slane %v1432, 0
      %v2113 = vperm.slane %v1768, 0
      %v2114 = vperm.slane %v1769, 0
      %v2115 = vperm.slane %v1770, 0
      %v2116 = vperm.slane %v1433, 0
      %v2117 = vperm.slane %v1771, 0
      %v2118 = vperm.slane %v1772, 0
      %v2119 = vperm.slane %v1773, 0
      %v2120 = vperm.slane %v1434, 0
      %v2121 = vperm.slane %v1774, 0
      %v2122 = vperm.slane %v1775, 0
      %v2123 = vperm.slane %v1776, 0
      %v2124 = vperm.slane %v1435, 0
      %v2125 = vperm.slane %v1777, 0
      %v2126 = vperm.slane %v1778, 0
      %v2127 = vperm.slane %v1779, 0
      %v2128 = vperm.slane %v1440, 0
      %v2129 = vperm.slane %v1792, 0
      %v2130 = vperm.slane %v1793, 0
      %v2131 = vperm.slane %v1794, 0
      %v2132 = vperm.slane %v1441, 0
      %v2133 = vperm.slane %v1795, 0
      %v2134 = vperm.slane %v1796, 0
      %v2135 = vperm.slane %v1797, 0
      %v2136 = vperm.slane %v1442, 0
      %v2137 = vperm.slane %v1798, 0
      %v2138 = vperm.slane %v1799, 0
      %v2139 = vperm.slane %v1800, 0
      %v2140 = vperm.slane %v1443, 0
      %v2141 = vperm.slane %v1801, 0
      %v2142 = vperm.slane %v1802, 0
      %v2143 = vperm.slane %v1803, 0
      %v2144 = vperm.slane %v1448, 0
      %v2145 = vperm.slane %v1816, 0
      %v2146 = vperm.slane %v1817, 0
      %v2147 = vperm.slane %v1818, 0
      %v2148 = vperm.slane %v1449, 0
      %v2149 = vperm.slane %v1819, 0
      %v2150 = vperm.slane %v1820, 0
      %v2151 = vperm.slane %v1821, 0
      %v2152 = vperm.slane %v1450, 0
      %v2153 = vperm.slane %v1822, 0
      %v2154 = vperm.slane %v1823, 0
      %v2155 = vperm.slane %v1824, 0
      %v2156 = vperm.slane %v1451, 0
      %v2157 = vperm.slane %v1825, 0
      %v2158 = vperm.slane %v1826, 0
      %v2159 = vperm.slane %v1827, 0
      %v2160 = vperm.slane %v1456, 0
      %v2161 = vperm.slane %v1840, 0
      %v2162 = vperm.slane %v1841, 0
      %v2163 = vperm.slane %v1842, 0
      %v2164 = vperm.slane %v1457, 0
      %v2165 = vperm.slane %v1843, 0
      %v2166 = vperm.slane %v1844, 0
      %v2167 = vperm.slane %v1845, 0
      %v2168 = vperm.slane %v1458, 0
      %v2169 = vperm.slane %v1846, 0
      %v2170 = vperm.slane %v1847, 0
      %v2171 = vperm.slane %v1848, 0
      %v2172 = vperm.slane %v1459, 0
      %v2173 = vperm.slane %v1849, 0
      %v2174 = vperm.slane %v1850, 0
      %v2175 = vperm.slane %v1851, 0
      %v2176 = vperm.slane %v1464, 0
      %v2177 = vperm.slane %v1864, 0
      %v2178 = vperm.slane %v1865, 0
      %v2179 = vperm.slane %v1866, 0
      %v2180 = vperm.slane %v1465, 0
      %v2181 = vperm.slane %v1867, 0
      %v2182 = vperm.slane %v1868, 0
      %v2183 = vperm.slane %v1869, 0
      %v2184 = vperm.slane %v1466, 0
      %v2185 = vperm.slane %v1870, 0
      %v2186 = vperm.slane %v1871, 0
      %v2187 = vperm.slane %v1872, 0
      %v2188 = vperm.slane %v1467, 0
      %v2189 = vperm.slane %v1873, 0
      %v2190 = vperm.slane %v1874, 0
      %v2191 = vperm.slane %v1875, 0
      %v2192 = vperm.slane %v1472, 0
      %v2193 = vperm.slane %v1888, 0
      %v2194 = vperm.slane %v1889, 0
      %v2195 = vperm.slane %v1890, 0
      %v2196 = vperm.slane %v1473, 0
      %v2197 = vperm.slane %v1891, 0
      %v2198 = vperm.slane %v1892, 0
      %v2199 = vperm.slane %v1893, 0
      %v2200 = vperm.slane %v1474, 0
      %v2201 = vperm.slane %v1894, 0
      %v2202 = vperm.slane %v1895, 0
      %v2203 = vperm.slane %v1896, 0
      %v2204 = vperm.slane %v1475, 0
      %v2205 = vperm.slane %v1897, 0
      %v2206 = vperm.slane %v1898, 0
      %v2207 = vperm.slane %v1899, 0
      %v2208 = vperm.slane %v1480, 0
      %v2209 = vperm.slane %v1912, 0
      %v2210 = vperm.slane %v1913, 0
      %v2211 = vperm.slane %v1914, 0
      %v2212 = vperm.slane %v1481, 0
      %v2213 = vperm.slane %v1915, 0
      %v2214 = vperm.slane %v1916, 0
      %v2215 = vperm.slane %v1917, 0
      %v2216 = vperm.slane %v1482, 0
      %v2217 = vperm.slane %v1918, 0
      %v2218 = vperm.slane %v1919, 0
      %v2219 = vperm.slane %v1920, 0
      %v2220 = vperm.slane %v1483, 0
      %v2221 = vperm.slane %v1921, 0
      %v2222 = vperm.slane %v1922, 0
      %v2223 = vperm.slane %v1923, 0
      %v2224 = vperm.slane %v1488, 0
      %v2225 = vperm.slane %v1936, 0
      %v2226 = vperm.slane %v1937, 0
      %v2227 = vperm.slane %v1938, 0
      %v2228 = vperm.slane %v1489, 0
      %v2229 = vperm.slane %v1939, 0
      %v2230 = vperm.slane %v1940, 0
      %v2231 = vperm.slane %v1941, 0
      %v2232 = vperm.slane %v1490, 0
      %v2233 = vperm.slane %v1942, 0
      %v2234 = vperm.slane %v1943, 0
      %v2235 = vperm.slane %v1944, 0
      %v2236 = vperm.slane %v1491, 0
      %v2237 = vperm.slane %v1945, 0
      %v2238 = vperm.slane %v1946, 0
      %v2239 = vperm.slane %v1947, 0
      %v2240 = vperm.slane %v1496, 0
      %v2241 = vperm.slane %v1960, 0
      %v2242 = vperm.slane %v1961, 0
      %v2243 = vperm.slane %v1962, 0
      %v2244 = vperm.slane %v1497, 0
      %v2245 = vperm.slane %v1963, 0
      %v2246 = vperm.slane %v1964, 0
      %v2247 = vperm.slane %v1965, 0
      %v2248 = vperm.slane %v1498, 0
      %v2249 = vperm.slane %v1966, 0
      %v2250 = vperm.slane %v1967, 0
      %v2251 = vperm.slane %v1968, 0
      %v2252 = vperm.slane %v1499, 0
      %v2253 = vperm.slane %v1969, 0
      %v2254 = vperm.slane %v1970, 0
      %v2255 = vperm.slane %v1971, 0
      %v2256 = vperm.slane %v1504, 0
      %v2257 = vperm.slane %v1984, 0
      %v2258 = vperm.slane %v1985, 0
      %v2259 = vperm.slane %v1986, 0
      %v2260 = vperm.slane %v1505, 0
      %v2261 = vperm.slane %v1987, 0
      %v2262 = vperm.slane %v1988, 0
      %v2263 = vperm.slane %v1989, 0
      %v2264 = vperm.slane %v1506, 0
      %v2265 = vperm.slane %v1990, 0
      %v2266 = vperm.slane %v1991, 0
      %v2267 = vperm.slane %v1992, 0
      %v2268 = vperm.slane %v1507, 0
      %v2269 = vperm.slane %v1993, 0
      %v2270 = vperm.slane %v1994, 0
      %v2271 = vperm.slane %v1995, 0
      %v2272 = vperm.slane %v1512, 0
      %v2273 = vperm.slane %v2008, 0
      %v2274 = vperm.slane %v2009, 0
      %v2275 = vperm.slane %v2010, 0
      %v2276 = vperm.slane %v1513, 0
      %v2277 = vperm.slane %v2011, 0
      %v2278 = vperm.slane %v2012, 0
      %v2279 = vperm.slane %v2013, 0
      %v2280 = vperm.slane %v1514, 0
      %v2281 = vperm.slane %v2014, 0
      %v2282 = vperm.slane %v2015, 0
      %v2283 = vperm.slane %v2016, 0
      %v2284 = vperm.slane %v1515, 0
      %v2285 = vperm.slane %v2017, 0
      %v2286 = vperm.slane %v2018, 0
      %v2287 = vperm.slane %v2019, 0
      %vm2288 = vcmask 1041409
      %v2289 = vsel %vm2288, %v2033, %v2032
      %vm2290 = vcmask 1042434
      %v2291 = vsel %vm2290, %v2034, %v2289
      %vm2292 = vcmask 1043459
      %v2293 = vsel %vm2292, %v2035, %v2291
      %vm2294 = vcmask 1044484
      %v2295 = vsel %vm2294, %v2036, %v2293
      %vm2296 = vcmask 1045509
      %v2297 = vsel %vm2296, %v2037, %v2295
      %vm2298 = vcmask 1046534
      %v2299 = vsel %vm2298, %v2038, %v2297
      %vm2300 = vcmask 1047559
      %v2301 = vsel %vm2300, %v2039, %v2299
      %v2302 = vsel %vm2288, %v2041, %v2040
      %v2303 = vsel %vm2290, %v2042, %v2302
      %v2304 = vsel %vm2292, %v2043, %v2303
      %v2305 = vsel %vm2294, %v2044, %v2304
      %v2306 = vsel %vm2296, %v2045, %v2305
      %v2307 = vsel %vm2298, %v2046, %v2306
      %v2308 = vsel %vm2300, %v2047, %v2307
      %v2309 = vsel %vm2288, %v2049, %v2048
      %v2310 = vsel %vm2290, %v2050, %v2309
      %v2311 = vsel %vm2292, %v2051, %v2310
      %v2312 = vsel %vm2294, %v2052, %v2311
      %v2313 = vsel %vm2296, %v2053, %v2312
      %v2314 = vsel %vm2298, %v2054, %v2313
      %v2315 = vsel %vm2300, %v2055, %v2314
      %v2316 = vsel %vm2288, %v2057, %v2056
      %v2317 = vsel %vm2290, %v2058, %v2316
      %v2318 = vsel %vm2292, %v2059, %v2317
      %v2319 = vsel %vm2294, %v2060, %v2318
      %v2320 = vsel %vm2296, %v2061, %v2319
      %v2321 = vsel %vm2298, %v2062, %v2320
      %v2322 = vsel %vm2300, %v2063, %v2321
      %v2323 = vsel %vm2288, %v2065, %v2064
      %v2324 = vsel %vm2290, %v2066, %v2323
      %v2325 = vsel %vm2292, %v2067, %v2324
      %v2326 = vsel %vm2294, %v2068, %v2325
      %v2327 = vsel %vm2296, %v2069, %v2326
      %v2328 = vsel %vm2298, %v2070, %v2327
      %v2329 = vsel %vm2300, %v2071, %v2328
      %v2330 = vsel %vm2288, %v2073, %v2072
      %v2331 = vsel %vm2290, %v2074, %v2330
      %v2332 = vsel %vm2292, %v2075, %v2331
      %v2333 = vsel %vm2294, %v2076, %v2332
      %v2334 = vsel %vm2296, %v2077, %v2333
      %v2335 = vsel %vm2298, %v2078, %v2334
      %v2336 = vsel %vm2300, %v2079, %v2335
      %v2337 = vsel %vm2288, %v2081, %v2080
      %v2338 = vsel %vm2290, %v2082, %v2337
      %v2339 = vsel %vm2292, %v2083, %v2338
      %v2340 = vsel %vm2294, %v2084, %v2339
      %v2341 = vsel %vm2296, %v2085, %v2340
      %v2342 = vsel %vm2298, %v2086, %v2341
      %v2343 = vsel %vm2300, %v2087, %v2342
      %v2344 = vsel %vm2288, %v2089, %v2088
      %v2345 = vsel %vm2290, %v2090, %v2344
      %v2346 = vsel %vm2292, %v2091, %v2345
      %v2347 = vsel %vm2294, %v2092, %v2346
      %v2348 = vsel %vm2296, %v2093, %v2347
      %v2349 = vsel %vm2298, %v2094, %v2348
      %v2350 = vsel %vm2300, %v2095, %v2349
      %v2351 = vsel %vm2288, %v2097, %v2096
      %v2352 = vsel %vm2290, %v2098, %v2351
      %v2353 = vsel %vm2292, %v2099, %v2352
      %v2354 = vsel %vm2294, %v2100, %v2353
      %v2355 = vsel %vm2296, %v2101, %v2354
      %v2356 = vsel %vm2298, %v2102, %v2355
      %v2357 = vsel %vm2300, %v2103, %v2356
      %v2358 = vsel %vm2288, %v2105, %v2104
      %v2359 = vsel %vm2290, %v2106, %v2358
      %v2360 = vsel %vm2292, %v2107, %v2359
      %v2361 = vsel %vm2294, %v2108, %v2360
      %v2362 = vsel %vm2296, %v2109, %v2361
      %v2363 = vsel %vm2298, %v2110, %v2362
      %v2364 = vsel %vm2300, %v2111, %v2363
      %v2365 = vsel %vm2288, %v2113, %v2112
      %v2366 = vsel %vm2290, %v2114, %v2365
      %v2367 = vsel %vm2292, %v2115, %v2366
      %v2368 = vsel %vm2294, %v2116, %v2367
      %v2369 = vsel %vm2296, %v2117, %v2368
      %v2370 = vsel %vm2298, %v2118, %v2369
      %v2371 = vsel %vm2300, %v2119, %v2370
      %v2372 = vsel %vm2288, %v2121, %v2120
      %v2373 = vsel %vm2290, %v2122, %v2372
      %v2374 = vsel %vm2292, %v2123, %v2373
      %v2375 = vsel %vm2294, %v2124, %v2374
      %v2376 = vsel %vm2296, %v2125, %v2375
      %v2377 = vsel %vm2298, %v2126, %v2376
      %v2378 = vsel %vm2300, %v2127, %v2377
      %v2379 = vsel %vm2288, %v2129, %v2128
      %v2380 = vsel %vm2290, %v2130, %v2379
      %v2381 = vsel %vm2292, %v2131, %v2380
      %v2382 = vsel %vm2294, %v2132, %v2381
      %v2383 = vsel %vm2296, %v2133, %v2382
      %v2384 = vsel %vm2298, %v2134, %v2383
      %v2385 = vsel %vm2300, %v2135, %v2384
      %v2386 = vsel %vm2288, %v2137, %v2136
      %v2387 = vsel %vm2290, %v2138, %v2386
      %v2388 = vsel %vm2292, %v2139, %v2387
      %v2389 = vsel %vm2294, %v2140, %v2388
      %v2390 = vsel %vm2296, %v2141, %v2389
      %v2391 = vsel %vm2298, %v2142, %v2390
      %v2392 = vsel %vm2300, %v2143, %v2391
      %v2393 = vsel %vm2288, %v2145, %v2144
      %v2394 = vsel %vm2290, %v2146, %v2393
      %v2395 = vsel %vm2292, %v2147, %v2394
      %v2396 = vsel %vm2294, %v2148, %v2395
      %v2397 = vsel %vm2296, %v2149, %v2396
      %v2398 = vsel %vm2298, %v2150, %v2397
      %v2399 = vsel %vm2300, %v2151, %v2398
      %v2400 = vsel %vm2288, %v2153, %v2152
      %v2401 = vsel %vm2290, %v2154, %v2400
      %v2402 = vsel %vm2292, %v2155, %v2401
      %v2403 = vsel %vm2294, %v2156, %v2402
      %v2404 = vsel %vm2296, %v2157, %v2403
      %v2405 = vsel %vm2298, %v2158, %v2404
      %v2406 = vsel %vm2300, %v2159, %v2405
      %v2407 = vsel %vm2288, %v2161, %v2160
      %v2408 = vsel %vm2290, %v2162, %v2407
      %v2409 = vsel %vm2292, %v2163, %v2408
      %v2410 = vsel %vm2294, %v2164, %v2409
      %v2411 = vsel %vm2296, %v2165, %v2410
      %v2412 = vsel %vm2298, %v2166, %v2411
      %v2413 = vsel %vm2300, %v2167, %v2412
      %v2414 = vsel %vm2288, %v2169, %v2168
      %v2415 = vsel %vm2290, %v2170, %v2414
      %v2416 = vsel %vm2292, %v2171, %v2415
      %v2417 = vsel %vm2294, %v2172, %v2416
      %v2418 = vsel %vm2296, %v2173, %v2417
      %v2419 = vsel %vm2298, %v2174, %v2418
      %v2420 = vsel %vm2300, %v2175, %v2419
      %v2421 = vsel %vm2288, %v2177, %v2176
      %v2422 = vsel %vm2290, %v2178, %v2421
      %v2423 = vsel %vm2292, %v2179, %v2422
      %v2424 = vsel %vm2294, %v2180, %v2423
      %v2425 = vsel %vm2296, %v2181, %v2424
      %v2426 = vsel %vm2298, %v2182, %v2425
      %v2427 = vsel %vm2300, %v2183, %v2426
      %v2428 = vsel %vm2288, %v2185, %v2184
      %v2429 = vsel %vm2290, %v2186, %v2428
      %v2430 = vsel %vm2292, %v2187, %v2429
      %v2431 = vsel %vm2294, %v2188, %v2430
      %v2432 = vsel %vm2296, %v2189, %v2431
      %v2433 = vsel %vm2298, %v2190, %v2432
      %v2434 = vsel %vm2300, %v2191, %v2433
      %v2435 = vsel %vm2288, %v2193, %v2192
      %v2436 = vsel %vm2290, %v2194, %v2435
      %v2437 = vsel %vm2292, %v2195, %v2436
      %v2438 = vsel %vm2294, %v2196, %v2437
      %v2439 = vsel %vm2296, %v2197, %v2438
      %v2440 = vsel %vm2298, %v2198, %v2439
      %v2441 = vsel %vm2300, %v2199, %v2440
      %v2442 = vsel %vm2288, %v2201, %v2200
      %v2443 = vsel %vm2290, %v2202, %v2442
      %v2444 = vsel %vm2292, %v2203, %v2443
      %v2445 = vsel %vm2294, %v2204, %v2444
      %v2446 = vsel %vm2296, %v2205, %v2445
      %v2447 = vsel %vm2298, %v2206, %v2446
      %v2448 = vsel %vm2300, %v2207, %v2447
      %v2449 = vsel %vm2288, %v2209, %v2208
      %v2450 = vsel %vm2290, %v2210, %v2449
      %v2451 = vsel %vm2292, %v2211, %v2450
      %v2452 = vsel %vm2294, %v2212, %v2451
      %v2453 = vsel %vm2296, %v2213, %v2452
      %v2454 = vsel %vm2298, %v2214, %v2453
      %v2455 = vsel %vm2300, %v2215, %v2454
      %v2456 = vsel %vm2288, %v2217, %v2216
      %v2457 = vsel %vm2290, %v2218, %v2456
      %v2458 = vsel %vm2292, %v2219, %v2457
      %v2459 = vsel %vm2294, %v2220, %v2458
      %v2460 = vsel %vm2296, %v2221, %v2459
      %v2461 = vsel %vm2298, %v2222, %v2460
      %v2462 = vsel %vm2300, %v2223, %v2461
      %v2463 = vsel %vm2288, %v2225, %v2224
      %v2464 = vsel %vm2290, %v2226, %v2463
      %v2465 = vsel %vm2292, %v2227, %v2464
      %v2466 = vsel %vm2294, %v2228, %v2465
      %v2467 = vsel %vm2296, %v2229, %v2466
      %v2468 = vsel %vm2298, %v2230, %v2467
      %v2469 = vsel %vm2300, %v2231, %v2468
      %v2470 = vsel %vm2288, %v2233, %v2232
      %v2471 = vsel %vm2290, %v2234, %v2470
      %v2472 = vsel %vm2292, %v2235, %v2471
      %v2473 = vsel %vm2294, %v2236, %v2472
      %v2474 = vsel %vm2296, %v2237, %v2473
      %v2475 = vsel %vm2298, %v2238, %v2474
      %v2476 = vsel %vm2300, %v2239, %v2475
      %v2477 = vsel %vm2288, %v2241, %v2240
      %v2478 = vsel %vm2290, %v2242, %v2477
      %v2479 = vsel %vm2292, %v2243, %v2478
      %v2480 = vsel %vm2294, %v2244, %v2479
      %v2481 = vsel %vm2296, %v2245, %v2480
      %v2482 = vsel %vm2298, %v2246, %v2481
      %v2483 = vsel %vm2300, %v2247, %v2482
      %v2484 = vsel %vm2288, %v2249, %v2248
      %v2485 = vsel %vm2290, %v2250, %v2484
      %v2486 = vsel %vm2292, %v2251, %v2485
      %v2487 = vsel %vm2294, %v2252, %v2486
      %v2488 = vsel %vm2296, %v2253, %v2487
      %v2489 = vsel %vm2298, %v2254, %v2488
      %v2490 = vsel %vm2300, %v2255, %v2489
      %v2491 = vsel %vm2288, %v2257, %v2256
      %v2492 = vsel %vm2290, %v2258, %v2491
      %v2493 = vsel %vm2292, %v2259, %v2492
      %v2494 = vsel %vm2294, %v2260, %v2493
      %v2495 = vsel %vm2296, %v2261, %v2494
      %v2496 = vsel %vm2298, %v2262, %v2495
      %v2497 = vsel %vm2300, %v2263, %v2496
      %v2498 = vsel %vm2288, %v2265, %v2264
      %v2499 = vsel %vm2290, %v2266, %v2498
      %v2500 = vsel %vm2292, %v2267, %v2499
      %v2501 = vsel %vm2294, %v2268, %v2500
      %v2502 = vsel %vm2296, %v2269, %v2501
      %v2503 = vsel %vm2298, %v2270, %v2502
      %v2504 = vsel %vm2300, %v2271, %v2503
      %v2505 = vsel %vm2288, %v2273, %v2272
      %v2506 = vsel %vm2290, %v2274, %v2505
      %v2507 = vsel %vm2292, %v2275, %v2506
      %v2508 = vsel %vm2294, %v2276, %v2507
      %v2509 = vsel %vm2296, %v2277, %v2508
      %v2510 = vsel %vm2298, %v2278, %v2509
      %v2511 = vsel %vm2300, %v2279, %v2510
      %v2512 = vsel %vm2288, %v2281, %v2280
      %v2513 = vsel %vm2290, %v2282, %v2512
      %v2514 = vsel %vm2292, %v2283, %v2513
      %v2515 = vsel %vm2294, %v2284, %v2514
      %v2516 = vsel %vm2296, %v2285, %v2515
      %v2517 = vsel %vm2298, %v2286, %v2516
      %v2518 = vsel %vm2300, %v2287, %v2517
      %2519 = vrot.lane.b32.xlu0 %v2301, 16
      %v2520 = vpop.permute.xlu0 %2519
      %2521 = vrot.lane.b32.xlu0 %v2308, 16
      %v2522 = vpop.permute.xlu0 %2521
      %2523 = vrot.lane.b32.xlu0 %v2315, 16
      %v2524 = vpop.permute.xlu0 %2523
      %2525 = vrot.lane.b32.xlu0 %v2322, 16
      %v2526 = vpop.permute.xlu0 %2525
      %2527 = vrot.lane.b32.xlu0 %v2329, 16
      %v2528 = vpop.permute.xlu0 %2527
      %2529 = vrot.lane.b32.xlu0 %v2336, 16
      %v2530 = vpop.permute.xlu0 %2529
      %2531 = vrot.lane.b32.xlu0 %v2343, 16
      %v2532 = vpop.permute.xlu0 %2531
      %2533 = vrot.lane.b32.xlu0 %v2350, 16
      %v2534 = vpop.permute.xlu0 %2533
      %2535 = vrot.lane.b32.xlu0 %v2357, 16
      %v2536 = vpop.permute.xlu0 %2535
      %2537 = vrot.lane.b32.xlu0 %v2364, 16
      %v2538 = vpop.permute.xlu0 %2537
      %2539 = vrot.lane.b32.xlu0 %v2371, 16
      %v2540 = vpop.permute.xlu0 %2539
      %2541 = vrot.lane.b32.xlu0 %v2378, 16
      %v2542 = vpop.permute.xlu0 %2541
      %2543 = vrot.lane.b32.xlu0 %v2385, 16
      %v2544 = vpop.permute.xlu0 %2543
      %2545 = vrot.lane.b32.xlu0 %v2392, 16
      %v2546 = vpop.permute.xlu0 %2545
      %2547 = vrot.lane.b32.xlu0 %v2399, 16
      %v2548 = vpop.permute.xlu0 %2547
      %2549 = vrot.lane.b32.xlu0 %v2406, 16
      %v2550 = vpop.permute.xlu0 %2549
      %2551 = vrot.lane.b32.xlu0 %v2413, 16
      %v2552 = vpop.permute.xlu0 %2551
      %2553 = vrot.lane.b32.xlu0 %v2420, 16
      %v2554 = vpop.permute.xlu0 %2553
      %2555 = vrot.lane.b32.xlu0 %v2427, 16
      %v2556 = vpop.permute.xlu0 %2555
      %2557 = vrot.lane.b32.xlu0 %v2434, 16
      %v2558 = vpop.permute.xlu0 %2557
      %2559 = vrot.lane.b32.xlu0 %v2441, 16
      %v2560 = vpop.permute.xlu0 %2559
      %2561 = vrot.lane.b32.xlu0 %v2448, 16
      %v2562 = vpop.permute.xlu0 %2561
      %2563 = vrot.lane.b32.xlu0 %v2455, 16
      %v2564 = vpop.permute.xlu0 %2563
      %2565 = vrot.lane.b32.xlu0 %v2462, 16
      %v2566 = vpop.permute.xlu0 %2565
      %2567 = vrot.lane.b32.xlu0 %v2469, 16
      %v2568 = vpop.permute.xlu0 %2567
      %2569 = vrot.lane.b32.xlu0 %v2476, 16
      %v2570 = vpop.permute.xlu0 %2569
      %2571 = vrot.lane.b32.xlu0 %v2483, 16
      %v2572 = vpop.permute.xlu0 %2571
      %2573 = vrot.lane.b32.xlu0 %v2490, 16
      %v2574 = vpop.permute.xlu0 %2573
      %2575 = vrot.lane.b32.xlu0 %v2497, 16
      %v2576 = vpop.permute.xlu0 %2575
      %2577 = vrot.lane.b32.xlu0 %v2504, 16
      %v2578 = vpop.permute.xlu0 %2577
      %2579 = vrot.lane.b32.xlu0 %v2511, 16
      %v2580 = vpop.permute.xlu0 %2579
      %2581 = vrot.lane.b32.xlu0 %v2518, 16
      %v2582 = vpop.permute.xlu0 %2581
      %vm2615 = vcmask 261248
      %2616 = vst.msk [vmem:[#allocation3] sm:$0xff] %vm2615, %v2520
      %2617 = vst.msk [vmem:[#allocation3 + $0x8] sm:$0xff] %vm2615, %v2522
      %2618 = vst.msk [vmem:[#allocation3 + $0x18] sm:$0xff] %vm2615, %v2524
      %2619 = vst.msk [vmem:[#allocation3 + $0x20] sm:$0xff] %vm2615, %v2526
      %2620 = vst.msk [vmem:[#allocation3 + $0x30] sm:$0xff] %vm2615, %v2528
      %2621 = vst.msk [vmem:[#allocation3 + $0x38] sm:$0xff] %vm2615, %v2530
      %2622 = vst.msk [vmem:[#allocation3 + $0x48] sm:$0xff] %vm2615, %v2532
      %2623 = vst.msk [vmem:[#allocation3 + $0x50] sm:$0xff] %vm2615, %v2534
      %2624 = vst.msk [vmem:[#allocation3 + $0x60] sm:$0xff] %vm2615, %v2536
      %2625 = vst.msk [vmem:[#allocation3 + $0x68] sm:$0xff] %vm2615, %v2538
      %2626 = vst.msk [vmem:[#allocation3 + $0x78] sm:$0xff] %vm2615, %v2540
      %2627 = vst.msk [vmem:[#allocation3 + $0x80] sm:$0xff] %vm2615, %v2542
      %2628 = vst.msk [vmem:[#allocation3 + $0x90] sm:$0xff] %vm2615, %v2544
      %2629 = vst.msk [vmem:[#allocation3 + $0x98] sm:$0xff] %vm2615, %v2546
      %2630 = vst.msk [vmem:[#allocation3 + $0xa8] sm:$0xff] %vm2615, %v2548
      %2631 = vst.msk [vmem:[#allocation3 + $0xb0] sm:$0xff] %vm2615, %v2550
      %2632 = vst.msk [vmem:[#allocation3 + $0xc0] sm:$0xff] %vm2615, %v2552
      %2633 = vst.msk [vmem:[#allocation3 + $0xc8] sm:$0xff] %vm2615, %v2554
      %2634 = vst.msk [vmem:[#allocation3 + $0xd8] sm:$0xff] %vm2615, %v2556
      %2635 = vst.msk [vmem:[#allocation3 + $0xe0] sm:$0xff] %vm2615, %v2558
      %2636 = vst.msk [vmem:[#allocation3 + $0xf0] sm:$0xff] %vm2615, %v2560
      %2637 = vst.msk [vmem:[#allocation3 + $0xf8] sm:$0xff] %vm2615, %v2562
      %2638 = vst.msk [vmem:[#allocation3 + $0x108] sm:$0xff] %vm2615, %v2564
      %2639 = vst.msk [vmem:[#allocation3 + $0x110] sm:$0xff] %vm2615, %v2566
      %2640 = vst.msk [vmem:[#allocation3 + $0x120] sm:$0xff] %vm2615, %v2568
      %2641 = vst.msk [vmem:[#allocation3 + $0x128] sm:$0xff] %vm2615, %v2570
      %2642 = vst.msk [vmem:[#allocation3 + $0x138] sm:$0xff] %vm2615, %v2572
      %2643 = vst.msk [vmem:[#allocation3 + $0x140] sm:$0xff] %vm2615, %v2574
      %2644 = vst.msk [vmem:[#allocation3 + $0x150] sm:$0xff] %vm2615, %v2576
      %2645 = vst.msk [vmem:[#allocation3 + $0x158] sm:$0xff] %vm2615, %v2578
      %2646 = vst.msk [vmem:[#allocation3 + $0x168] sm:$0xff] %vm2615, %v2580
      %2647 = vst.msk [vmem:[#allocation3 + $0x170] sm:$0xff] %vm2615, %v2582
      %v2648 = vperm.slane %v1396, 0
      %v2649 = vperm.slane %v1660, 0
      %v2650 = vperm.slane %v1661, 0
      %v2651 = vperm.slane %v1662, 0
      %v2652 = vperm.slane %v1397, 0
      %v2653 = vperm.slane %v1663, 0
      %v2654 = vperm.slane %v1664, 0
      %v2655 = vperm.slane %v1665, 0
      %v2656 = vperm.slane %v1398, 0
      %v2657 = vperm.slane %v1666, 0
      %v2658 = vperm.slane %v1667, 0
      %v2659 = vperm.slane %v1668, 0
      %v2660 = vperm.slane %v1399, 0
      %v2661 = vperm.slane %v1669, 0
      %v2662 = vperm.slane %v1670, 0
      %v2663 = vperm.slane %v1671, 0
      %v2664 = vperm.slane %v1404, 0
      %v2665 = vperm.slane %v1684, 0
      %v2666 = vperm.slane %v1685, 0
      %v2667 = vperm.slane %v1686, 0
      %v2668 = vperm.slane %v1405, 0
      %v2669 = vperm.slane %v1687, 0
      %v2670 = vperm.slane %v1688, 0
      %v2671 = vperm.slane %v1689, 0
      %v2672 = vperm.slane %v1406, 0
      %v2673 = vperm.slane %v1690, 0
      %v2674 = vperm.slane %v1691, 0
      %v2675 = vperm.slane %v1692, 0
      %v2676 = vperm.slane %v1407, 0
      %v2677 = vperm.slane %v1693, 0
      %v2678 = vperm.slane %v1694, 0
      %v2679 = vperm.slane %v1695, 0
      %v2680 = vperm.slane %v1412, 0
      %v2681 = vperm.slane %v1708, 0
      %v2682 = vperm.slane %v1709, 0
      %v2683 = vperm.slane %v1710, 0
      %v2684 = vperm.slane %v1413, 0
      %v2685 = vperm.slane %v1711, 0
      %v2686 = vperm.slane %v1712, 0
      %v2687 = vperm.slane %v1713, 0
      %v2688 = vperm.slane %v1414, 0
      %v2689 = vperm.slane %v1714, 0
      %v2690 = vperm.slane %v1715, 0
      %v2691 = vperm.slane %v1716, 0
      %v2692 = vperm.slane %v1415, 0
      %v2693 = vperm.slane %v1717, 0
      %v2694 = vperm.slane %v1718, 0
      %v2695 = vperm.slane %v1719, 0
      %v2696 = vperm.slane %v1420, 0
      %v2697 = vperm.slane %v1732, 0
      %v2698 = vperm.slane %v1733, 0
      %v2699 = vperm.slane %v1734, 0
      %v2700 = vperm.slane %v1421, 0
      %v2701 = vperm.slane %v1735, 0
      %v2702 = vperm.slane %v1736, 0
      %v2703 = vperm.slane %v1737, 0
      %v2704 = vperm.slane %v1422, 0
      %v2705 = vperm.slane %v1738, 0
      %v2706 = vperm.slane %v1739, 0
      %v2707 = vperm.slane %v1740, 0
      %v2708 = vperm.slane %v1423, 0
      %v2709 = vperm.slane %v1741, 0
      %v2710 = vperm.slane %v1742, 0
      %v2711 = vperm.slane %v1743, 0
      %v2712 = vperm.slane %v1428, 0
      %v2713 = vperm.slane %v1756, 0
      %v2714 = vperm.slane %v1757, 0
      %v2715 = vperm.slane %v1758, 0
      %v2716 = vperm.slane %v1429, 0
      %v2717 = vperm.slane %v1759, 0
      %v2718 = vperm.slane %v1760, 0
      %v2719 = vperm.slane %v1761, 0
      %v2720 = vperm.slane %v1430, 0
      %v2721 = vperm.slane %v1762, 0
      %v2722 = vperm.slane %v1763, 0
      %v2723 = vperm.slane %v1764, 0
      %v2724 = vperm.slane %v1431, 0
      %v2725 = vperm.slane %v1765, 0
      %v2726 = vperm.slane %v1766, 0
      %v2727 = vperm.slane %v1767, 0
      %v2728 = vperm.slane %v1436, 0
      %v2729 = vperm.slane %v1780, 0
      %v2730 = vperm.slane %v1781, 0
      %v2731 = vperm.slane %v1782, 0
      %v2732 = vperm.slane %v1437, 0
      %v2733 = vperm.slane %v1783, 0
      %v2734 = vperm.slane %v1784, 0
      %v2735 = vperm.slane %v1785, 0
      %v2736 = vperm.slane %v1438, 0
      %v2737 = vperm.slane %v1786, 0
      %v2738 = vperm.slane %v1787, 0
      %v2739 = vperm.slane %v1788, 0
      %v2740 = vperm.slane %v1439, 0
      %v2741 = vperm.slane %v1789, 0
      %v2742 = vperm.slane %v1790, 0
      %v2743 = vperm.slane %v1791, 0
      %v2744 = vperm.slane %v1444, 0
      %v2745 = vperm.slane %v1804, 0
      %v2746 = vperm.slane %v1805, 0
      %v2747 = vperm.slane %v1806, 0
      %v2748 = vperm.slane %v1445, 0
      %v2749 = vperm.slane %v1807, 0
      %v2750 = vperm.slane %v1808, 0
      %v2751 = vperm.slane %v1809, 0
      %v2752 = vperm.slane %v1446, 0
      %v2753 = vperm.slane %v1810, 0
      %v2754 = vperm.slane %v1811, 0
      %v2755 = vperm.slane %v1812, 0
      %v2756 = vperm.slane %v1447, 0
      %v2757 = vperm.slane %v1813, 0
      %v2758 = vperm.slane %v1814, 0
      %v2759 = vperm.slane %v1815, 0
      %v2760 = vperm.slane %v1452, 0
      %v2761 = vperm.slane %v1828, 0
      %v2762 = vperm.slane %v1829, 0
      %v2763 = vperm.slane %v1830, 0
      %v2764 = vperm.slane %v1453, 0
      %v2765 = vperm.slane %v1831, 0
      %v2766 = vperm.slane %v1832, 0
      %v2767 = vperm.slane %v1833, 0
      %v2768 = vperm.slane %v1454, 0
      %v2769 = vperm.slane %v1834, 0
      %v2770 = vperm.slane %v1835, 0
      %v2771 = vperm.slane %v1836, 0
      %v2772 = vperm.slane %v1455, 0
      %v2773 = vperm.slane %v1837, 0
      %v2774 = vperm.slane %v1838, 0
      %v2775 = vperm.slane %v1839, 0
      %v2776 = vperm.slane %v1460, 0
      %v2777 = vperm.slane %v1852, 0
      %v2778 = vperm.slane %v1853, 0
      %v2779 = vperm.slane %v1854, 0
      %v2780 = vperm.slane %v1461, 0
      %v2781 = vperm.slane %v1855, 0
      %v2782 = vperm.slane %v1856, 0
      %v2783 = vperm.slane %v1857, 0
      %v2784 = vperm.slane %v1462, 0
      %v2785 = vperm.slane %v1858, 0
      %v2786 = vperm.slane %v1859, 0
      %v2787 = vperm.slane %v1860, 0
      %v2788 = vperm.slane %v1463, 0
      %v2789 = vperm.slane %v1861, 0
      %v2790 = vperm.slane %v1862, 0
      %v2791 = vperm.slane %v1863, 0
      %v2792 = vperm.slane %v1468, 0
      %v2793 = vperm.slane %v1876, 0
      %v2794 = vperm.slane %v1877, 0
      %v2795 = vperm.slane %v1878, 0
      %v2796 = vperm.slane %v1469, 0
      %v2797 = vperm.slane %v1879, 0
      %v2798 = vperm.slane %v1880, 0
      %v2799 = vperm.slane %v1881, 0
      %v2800 = vperm.slane %v1470, 0
      %v2801 = vperm.slane %v1882, 0
      %v2802 = vperm.slane %v1883, 0
      %v2803 = vperm.slane %v1884, 0
      %v2804 = vperm.slane %v1471, 0
      %v2805 = vperm.slane %v1885, 0
      %v2806 = vperm.slane %v1886, 0
      %v2807 = vperm.slane %v1887, 0
      %v2808 = vperm.slane %v1476, 0
      %v2809 = vperm.slane %v1900, 0
      %v2810 = vperm.slane %v1901, 0
      %v2811 = vperm.slane %v1902, 0
      %v2812 = vperm.slane %v1477, 0
      %v2813 = vperm.slane %v1903, 0
      %v2814 = vperm.slane %v1904, 0
      %v2815 = vperm.slane %v1905, 0
      %v2816 = vperm.slane %v1478, 0
      %v2817 = vperm.slane %v1906, 0
      %v2818 = vperm.slane %v1907, 0
      %v2819 = vperm.slane %v1908, 0
      %v2820 = vperm.slane %v1479, 0
      %v2821 = vperm.slane %v1909, 0
      %v2822 = vperm.slane %v1910, 0
      %v2823 = vperm.slane %v1911, 0
      %v2824 = vperm.slane %v1484, 0
      %v2825 = vperm.slane %v1924, 0
      %v2826 = vperm.slane %v1925, 0
      %v2827 = vperm.slane %v1926, 0
      %v2828 = vperm.slane %v1485, 0
      %v2829 = vperm.slane %v1927, 0
      %v2830 = vperm.slane %v1928, 0
      %v2831 = vperm.slane %v1929, 0
      %v2832 = vperm.slane %v1486, 0
      %v2833 = vperm.slane %v1930, 0
      %v2834 = vperm.slane %v1931, 0
      %v2835 = vperm.slane %v1932, 0
      %v2836 = vperm.slane %v1487, 0
      %v2837 = vperm.slane %v1933, 0
      %v2838 = vperm.slane %v1934, 0
      %v2839 = vperm.slane %v1935, 0
      %v2840 = vperm.slane %v1492, 0
      %v2841 = vperm.slane %v1948, 0
      %v2842 = vperm.slane %v1949, 0
      %v2843 = vperm.slane %v1950, 0
      %v2844 = vperm.slane %v1493, 0
      %v2845 = vperm.slane %v1951, 0
      %v2846 = vperm.slane %v1952, 0
      %v2847 = vperm.slane %v1953, 0
      %v2848 = vperm.slane %v1494, 0
      %v2849 = vperm.slane %v1954, 0
      %v2850 = vperm.slane %v1955, 0
      %v2851 = vperm.slane %v1956, 0
      %v2852 = vperm.slane %v1495, 0
      %v2853 = vperm.slane %v1957, 0
      %v2854 = vperm.slane %v1958, 0
      %v2855 = vperm.slane %v1959, 0
      %v2856 = vperm.slane %v1500, 0
      %v2857 = vperm.slane %v1972, 0
      %v2858 = vperm.slane %v1973, 0
      %v2859 = vperm.slane %v1974, 0
      %v2860 = vperm.slane %v1501, 0
      %v2861 = vperm.slane %v1975, 0
      %v2862 = vperm.slane %v1976, 0
      %v2863 = vperm.slane %v1977, 0
      %v2864 = vperm.slane %v1502, 0
      %v2865 = vperm.slane %v1978, 0
      %v2866 = vperm.slane %v1979, 0
      %v2867 = vperm.slane %v1980, 0
      %v2868 = vperm.slane %v1503, 0
      %v2869 = vperm.slane %v1981, 0
      %v2870 = vperm.slane %v1982, 0
      %v2871 = vperm.slane %v1983, 0
      %v2872 = vperm.slane %v1508, 0
      %v2873 = vperm.slane %v1996, 0
      %v2874 = vperm.slane %v1997, 0
      %v2875 = vperm.slane %v1998, 0
      %v2876 = vperm.slane %v1509, 0
      %v2877 = vperm.slane %v1999, 0
      %v2878 = vperm.slane %v2000, 0
      %v2879 = vperm.slane %v2001, 0
      %v2880 = vperm.slane %v1510, 0
      %v2881 = vperm.slane %v2002, 0
      %v2882 = vperm.slane %v2003, 0
      %v2883 = vperm.slane %v2004, 0
      %v2884 = vperm.slane %v1511, 0
      %v2885 = vperm.slane %v2005, 0
      %v2886 = vperm.slane %v2006, 0
      %v2887 = vperm.slane %v2007, 0
      %v2888 = vperm.slane %v1516, 0
      %v2889 = vperm.slane %v2020, 0
      %v2890 = vperm.slane %v2021, 0
      %v2891 = vperm.slane %v2022, 0
      %v2892 = vperm.slane %v1517, 0
      %v2893 = vperm.slane %v2023, 0
      %v2894 = vperm.slane %v2024, 0
      %v2895 = vperm.slane %v2025, 0
      %v2896 = vperm.slane %v1518, 0
      %v2897 = vperm.slane %v2026, 0
      %v2898 = vperm.slane %v2027, 0
      %v2899 = vperm.slane %v2028, 0
      %v2900 = vperm.slane %v1519, 0
      %v2901 = vperm.slane %v2029, 0
      %v2902 = vperm.slane %v2030, 0
      %v2903 = vperm.slane %v2031, 0
      %v2904 = vsel %vm2288, %v2649, %v2648
      %v2905 = vsel %vm2290, %v2650, %v2904
      %v2906 = vsel %vm2292, %v2651, %v2905
      %v2907 = vsel %vm2294, %v2652, %v2906
      %v2908 = vsel %vm2296, %v2653, %v2907
      %v2909 = vsel %vm2298, %v2654, %v2908
      %v2910 = vsel %vm2300, %v2655, %v2909
      %v2911 = vsel %vm2288, %v2657, %v2656
      %v2912 = vsel %vm2290, %v2658, %v2911
      %v2913 = vsel %vm2292, %v2659, %v2912
      %v2914 = vsel %vm2294, %v2660, %v2913
      %v2915 = vsel %vm2296, %v2661, %v2914
      %v2916 = vsel %vm2298, %v2662, %v2915
      %v2917 = vsel %vm2300, %v2663, %v2916
      %v2918 = vsel %vm2288, %v2665, %v2664
      %v2919 = vsel %vm2290, %v2666, %v2918
      %v2920 = vsel %vm2292, %v2667, %v2919
      %v2921 = vsel %vm2294, %v2668, %v2920
      %v2922 = vsel %vm2296, %v2669, %v2921
      %v2923 = vsel %vm2298, %v2670, %v2922
      %v2924 = vsel %vm2300, %v2671, %v2923
      %v2925 = vsel %vm2288, %v2673, %v2672
      %v2926 = vsel %vm2290, %v2674, %v2925
      %v2927 = vsel %vm2292, %v2675, %v2926
      %v2928 = vsel %vm2294, %v2676, %v2927
      %v2929 = vsel %vm2296, %v2677, %v2928
      %v2930 = vsel %vm2298, %v2678, %v2929
      %v2931 = vsel %vm2300, %v2679, %v2930
      %v2932 = vsel %vm2288, %v2681, %v2680
      %v2933 = vsel %vm2290, %v2682, %v2932
      %v2934 = vsel %vm2292, %v2683, %v2933
      %v2935 = vsel %vm2294, %v2684, %v2934
      %v2936 = vsel %vm2296, %v2685, %v2935
      %v2937 = vsel %vm2298, %v2686, %v2936
      %v2938 = vsel %vm2300, %v2687, %v2937
      %v2939 = vsel %vm2288, %v2689, %v2688
      %v2940 = vsel %vm2290, %v2690, %v2939
      %v2941 = vsel %vm2292, %v2691, %v2940
      %v2942 = vsel %vm2294, %v2692, %v2941
      %v2943 = vsel %vm2296, %v2693, %v2942
      %v2944 = vsel %vm2298, %v2694, %v2943
      %v2945 = vsel %vm2300, %v2695, %v2944
      %v2946 = vsel %vm2288, %v2697, %v2696
      %v2947 = vsel %vm2290, %v2698, %v2946
      %v2948 = vsel %vm2292, %v2699, %v2947
      %v2949 = vsel %vm2294, %v2700, %v2948
      %v2950 = vsel %vm2296, %v2701, %v2949
      %v2951 = vsel %vm2298, %v2702, %v2950
      %v2952 = vsel %vm2300, %v2703, %v2951
      %v2953 = vsel %vm2288, %v2705, %v2704
      %v2954 = vsel %vm2290, %v2706, %v2953
      %v2955 = vsel %vm2292, %v2707, %v2954
      %v2956 = vsel %vm2294, %v2708, %v2955
      %v2957 = vsel %vm2296, %v2709, %v2956
      %v2958 = vsel %vm2298, %v2710, %v2957
      %v2959 = vsel %vm2300, %v2711, %v2958
      %v2960 = vsel %vm2288, %v2713, %v2712
      %v2961 = vsel %vm2290, %v2714, %v2960
      %v2962 = vsel %vm2292, %v2715, %v2961
      %v2963 = vsel %vm2294, %v2716, %v2962
      %v2964 = vsel %vm2296, %v2717, %v2963
      %v2965 = vsel %vm2298, %v2718, %v2964
      %v2966 = vsel %vm2300, %v2719, %v2965
      %v2967 = vsel %vm2288, %v2721, %v2720
      %v2968 = vsel %vm2290, %v2722, %v2967
      %v2969 = vsel %vm2292, %v2723, %v2968
      %v2970 = vsel %vm2294, %v2724, %v2969
      %v2971 = vsel %vm2296, %v2725, %v2970
      %v2972 = vsel %vm2298, %v2726, %v2971
      %v2973 = vsel %vm2300, %v2727, %v2972
      %v2974 = vsel %vm2288, %v2729, %v2728
      %v2975 = vsel %vm2290, %v2730, %v2974
      %v2976 = vsel %vm2292, %v2731, %v2975
      %v2977 = vsel %vm2294, %v2732, %v2976
      %v2978 = vsel %vm2296, %v2733, %v2977
      %v2979 = vsel %vm2298, %v2734, %v2978
      %v2980 = vsel %vm2300, %v2735, %v2979
      %v2981 = vsel %vm2288, %v2737, %v2736
      %v2982 = vsel %vm2290, %v2738, %v2981
      %v2983 = vsel %vm2292, %v2739, %v2982
      %v2984 = vsel %vm2294, %v2740, %v2983
      %v2985 = vsel %vm2296, %v2741, %v2984
      %v2986 = vsel %vm2298, %v2742, %v2985
      %v2987 = vsel %vm2300, %v2743, %v2986
      %v2988 = vsel %vm2288, %v2745, %v2744
      %v2989 = vsel %vm2290, %v2746, %v2988
      %v2990 = vsel %vm2292, %v2747, %v2989
      %v2991 = vsel %vm2294, %v2748, %v2990
      %v2992 = vsel %vm2296, %v2749, %v2991
      %v2993 = vsel %vm2298, %v2750, %v2992
      %v2994 = vsel %vm2300, %v2751, %v2993
      %v2995 = vsel %vm2288, %v2753, %v2752
      %v2996 = vsel %vm2290, %v2754, %v2995
      %v2997 = vsel %vm2292, %v2755, %v2996
      %v2998 = vsel %vm2294, %v2756, %v2997
      %v2999 = vsel %vm2296, %v2757, %v2998
      %v3000 = vsel %vm2298, %v2758, %v2999
      %v3001 = vsel %vm2300, %v2759, %v3000
      %v3002 = vsel %vm2288, %v2761, %v2760
      %v3003 = vsel %vm2290, %v2762, %v3002
      %v3004 = vsel %vm2292, %v2763, %v3003
      %v3005 = vsel %vm2294, %v2764, %v3004
      %v3006 = vsel %vm2296, %v2765, %v3005
      %v3007 = vsel %vm2298, %v2766, %v3006
      %v3008 = vsel %vm2300, %v2767, %v3007
      %v3009 = vsel %vm2288, %v2769, %v2768
      %v3010 = vsel %vm2290, %v2770, %v3009
      %v3011 = vsel %vm2292, %v2771, %v3010
      %v3012 = vsel %vm2294, %v2772, %v3011
      %v3013 = vsel %vm2296, %v2773, %v3012
      %v3014 = vsel %vm2298, %v2774, %v3013
      %v3015 = vsel %vm2300, %v2775, %v3014
      %v3016 = vsel %vm2288, %v2777, %v2776
      %v3017 = vsel %vm2290, %v2778, %v3016
      %v3018 = vsel %vm2292, %v2779, %v3017
      %v3019 = vsel %vm2294, %v2780, %v3018
      %v3020 = vsel %vm2296, %v2781, %v3019
      %v3021 = vsel %vm2298, %v2782, %v3020
      %v3022 = vsel %vm2300, %v2783, %v3021
      %v3023 = vsel %vm2288, %v2785, %v2784
      %v3024 = vsel %vm2290, %v2786, %v3023
      %v3025 = vsel %vm2292, %v2787, %v3024
      %v3026 = vsel %vm2294, %v2788, %v3025
      %v3027 = vsel %vm2296, %v2789, %v3026
      %v3028 = vsel %vm2298, %v2790, %v3027
      %v3029 = vsel %vm2300, %v2791, %v3028
      %v3030 = vsel %vm2288, %v2793, %v2792
      %v3031 = vsel %vm2290, %v2794, %v3030
      %v3032 = vsel %vm2292, %v2795, %v3031
      %v3033 = vsel %vm2294, %v2796, %v3032
      %v3034 = vsel %vm2296, %v2797, %v3033
      %v3035 = vsel %vm2298, %v2798, %v3034
      %v3036 = vsel %vm2300, %v2799, %v3035
      %v3037 = vsel %vm2288, %v2801, %v2800
      %v3038 = vsel %vm2290, %v2802, %v3037
      %v3039 = vsel %vm2292, %v2803, %v3038
      %v3040 = vsel %vm2294, %v2804, %v3039
      %v3041 = vsel %vm2296, %v2805, %v3040
      %v3042 = vsel %vm2298, %v2806, %v3041
      %v3043 = vsel %vm2300, %v2807, %v3042
      %v3044 = vsel %vm2288, %v2809, %v2808
      %v3045 = vsel %vm2290, %v2810, %v3044
      %v3046 = vsel %vm2292, %v2811, %v3045
      %v3047 = vsel %vm2294, %v2812, %v3046
      %v3048 = vsel %vm2296, %v2813, %v3047
      %v3049 = vsel %vm2298, %v2814, %v3048
      %v3050 = vsel %vm2300, %v2815, %v3049
      %v3051 = vsel %vm2288, %v2817, %v2816
      %v3052 = vsel %vm2290, %v2818, %v3051
      %v3053 = vsel %vm2292, %v2819, %v3052
      %v3054 = vsel %vm2294, %v2820, %v3053
      %v3055 = vsel %vm2296, %v2821, %v3054
      %v3056 = vsel %vm2298, %v2822, %v3055
      %v3057 = vsel %vm2300, %v2823, %v3056
      %v3058 = vsel %vm2288, %v2825, %v2824
      %v3059 = vsel %vm2290, %v2826, %v3058
      %v3060 = vsel %vm2292, %v2827, %v3059
      %v3061 = vsel %vm2294, %v2828, %v3060
      %v3062 = vsel %vm2296, %v2829, %v3061
      %v3063 = vsel %vm2298, %v2830, %v3062
      %v3064 = vsel %vm2300, %v2831, %v3063
      %v3065 = vsel %vm2288, %v2833, %v2832
      %v3066 = vsel %vm2290, %v2834, %v3065
      %v3067 = vsel %vm2292, %v2835, %v3066
      %v3068 = vsel %vm2294, %v2836, %v3067
      %v3069 = vsel %vm2296, %v2837, %v3068
      %v3070 = vsel %vm2298, %v2838, %v3069
      %v3071 = vsel %vm2300, %v2839, %v3070
      %v3072 = vsel %vm2288, %v2841, %v2840
      %v3073 = vsel %vm2290, %v2842, %v3072
      %v3074 = vsel %vm2292, %v2843, %v3073
      %v3075 = vsel %vm2294, %v2844, %v3074
      %v3076 = vsel %vm2296, %v2845, %v3075
      %v3077 = vsel %vm2298, %v2846, %v3076
      %v3078 = vsel %vm2300, %v2847, %v3077
      %v3079 = vsel %vm2288, %v2849, %v2848
      %v3080 = vsel %vm2290, %v2850, %v3079
      %v3081 = vsel %vm2292, %v2851, %v3080
      %v3082 = vsel %vm2294, %v2852, %v3081
      %v3083 = vsel %vm2296, %v2853, %v3082
      %v3084 = vsel %vm2298, %v2854, %v3083
      %v3085 = vsel %vm2300, %v2855, %v3084
      %v3086 = vsel %vm2288, %v2857, %v2856
      %v3087 = vsel %vm2290, %v2858, %v3086
      %v3088 = vsel %vm2292, %v2859, %v3087
      %v3089 = vsel %vm2294, %v2860, %v3088
      %v3090 = vsel %vm2296, %v2861, %v3089
      %v3091 = vsel %vm2298, %v2862, %v3090
      %v3092 = vsel %vm2300, %v2863, %v3091
      %v3093 = vsel %vm2288, %v2865, %v2864
      %v3094 = vsel %vm2290, %v2866, %v3093
      %v3095 = vsel %vm2292, %v2867, %v3094
      %v3096 = vsel %vm2294, %v2868, %v3095
      %v3097 = vsel %vm2296, %v2869, %v3096
      %v3098 = vsel %vm2298, %v2870, %v3097
      %v3099 = vsel %vm2300, %v2871, %v3098
      %v3100 = vsel %vm2288, %v2873, %v2872
      %v3101 = vsel %vm2290, %v2874, %v3100
      %v3102 = vsel %vm2292, %v2875, %v3101
      %v3103 = vsel %vm2294, %v2876, %v3102
      %v3104 = vsel %vm2296, %v2877, %v3103
      %v3105 = vsel %vm2298, %v2878, %v3104
      %v3106 = vsel %vm2300, %v2879, %v3105
      %v3107 = vsel %vm2288, %v2881, %v2880
      %v3108 = vsel %vm2290, %v2882, %v3107
      %v3109 = vsel %vm2292, %v2883, %v3108
      %v3110 = vsel %vm2294, %v2884, %v3109
      %v3111 = vsel %vm2296, %v2885, %v3110
      %v3112 = vsel %vm2298, %v2886, %v3111
      %v3113 = vsel %vm2300, %v2887, %v3112
      %v3114 = vsel %vm2288, %v2889, %v2888
      %v3115 = vsel %vm2290, %v2890, %v3114
      %v3116 = vsel %vm2292, %v2891, %v3115
      %v3117 = vsel %vm2294, %v2892, %v3116
      %v3118 = vsel %vm2296, %v2893, %v3117
      %v3119 = vsel %vm2298, %v2894, %v3118
      %v3120 = vsel %vm2300, %v2895, %v3119
      %v3121 = vsel %vm2288, %v2897, %v2896
      %v3122 = vsel %vm2290, %v2898, %v3121
      %v3123 = vsel %vm2292, %v2899, %v3122
      %v3124 = vsel %vm2294, %v2900, %v3123
      %v3125 = vsel %vm2296, %v2901, %v3124
      %v3126 = vsel %vm2298, %v2902, %v3125
      %v3127 = vsel %vm2300, %v2903, %v3126
      %3128 = vrot.lane.b32.xlu0 %v2910, 16
      %v3129 = vpop.permute.xlu0 %3128
      %3130 = vrot.lane.b32.xlu0 %v2917, 16
      %v3131 = vpop.permute.xlu0 %3130
      %3132 = vrot.lane.b32.xlu0 %v2924, 16
      %v3133 = vpop.permute.xlu0 %3132
      %3134 = vrot.lane.b32.xlu0 %v2931, 16
      %v3135 = vpop.permute.xlu0 %3134
      %3136 = vrot.lane.b32.xlu0 %v2938, 16
      %v3137 = vpop.permute.xlu0 %3136
      %3138 = vrot.lane.b32.xlu0 %v2945, 16
      %v3139 = vpop.permute.xlu0 %3138
      %3140 = vrot.lane.b32.xlu0 %v2952, 16
      %v3141 = vpop.permute.xlu0 %3140
      %3142 = vrot.lane.b32.xlu0 %v2959, 16
      %v3143 = vpop.permute.xlu0 %3142
      %3144 = vrot.lane.b32.xlu0 %v2966, 16
      %v3145 = vpop.permute.xlu0 %3144
      %3146 = vrot.lane.b32.xlu0 %v2973, 16
      %v3147 = vpop.permute.xlu0 %3146
      %3148 = vrot.lane.b32.xlu0 %v2980, 16
      %v3149 = vpop.permute.xlu0 %3148
      %3150 = vrot.lane.b32.xlu0 %v2987, 16
      %v3151 = vpop.permute.xlu0 %3150
      %3152 = vrot.lane.b32.xlu0 %v2994, 16
      %v3153 = vpop.permute.xlu0 %3152
      %3154 = vrot.lane.b32.xlu0 %v3001, 16
      %v3155 = vpop.permute.xlu0 %3154
      %3156 = vrot.lane.b32.xlu0 %v3008, 16
      %v3157 = vpop.permute.xlu0 %3156
      %3158 = vrot.lane.b32.xlu0 %v3015, 16
      %v3159 = vpop.permute.xlu0 %3158
      %3160 = vrot.lane.b32.xlu0 %v3022, 16
      %v3161 = vpop.permute.xlu0 %3160
      %3162 = vrot.lane.b32.xlu0 %v3029, 16
      %v3163 = vpop.permute.xlu0 %3162
      %3164 = vrot.lane.b32.xlu0 %v3036, 16
      %v3165 = vpop.permute.xlu0 %3164
      %3166 = vrot.lane.b32.xlu0 %v3043, 16
      %v3167 = vpop.permute.xlu0 %3166
      %3168 = vrot.lane.b32.xlu0 %v3050, 16
      %v3169 = vpop.permute.xlu0 %3168
      %3170 = vrot.lane.b32.xlu0 %v3057, 16
      %v3171 = vpop.permute.xlu0 %3170
      %3172 = vrot.lane.b32.xlu0 %v3064, 16
      %v3173 = vpop.permute.xlu0 %3172
      %3174 = vrot.lane.b32.xlu0 %v3071, 16
      %v3175 = vpop.permute.xlu0 %3174
      %3176 = vrot.lane.b32.xlu0 %v3078, 16
      %v3177 = vpop.permute.xlu0 %3176
      %3178 = vrot.lane.b32.xlu0 %v3085, 16
      %v3179 = vpop.permute.xlu0 %3178
      %3180 = vrot.lane.b32.xlu0 %v3092, 16
      %v3181 = vpop.permute.xlu0 %3180
      %3182 = vrot.lane.b32.xlu0 %v3099, 16
      %v3183 = vpop.permute.xlu0 %3182
      %3184 = vrot.lane.b32.xlu0 %v3106, 16
      %v3185 = vpop.permute.xlu0 %3184
      %3186 = vrot.lane.b32.xlu0 %v3113, 16
      %v3187 = vpop.permute.xlu0 %3186
      %3188 = vrot.lane.b32.xlu0 %v3120, 16
      %v3189 = vpop.permute.xlu0 %3188
      %3190 = vrot.lane.b32.xlu0 %v3127, 16
      %v3191 = vpop.permute.xlu0 %3190
      %s3224 = scalar_lea.vmem [#allocation2], 24
      %3225 = vst.msk [vmem:[%s3224] sm:$0xff] %vm2615, %v3129
      %3226 = vst.msk [vmem:[%s3224 + $0x8] sm:$0xff] %vm2615, %v3131
      %3227 = vst.msk [vmem:[%s3224 + $0x18] sm:$0xff] %vm2615, %v3133
      %3228 = vst.msk [vmem:[%s3224 + $0x20] sm:$0xff] %vm2615, %v3135
      %3229 = vst.msk [vmem:[%s3224 + $0x30] sm:$0xff] %vm2615, %v3137
      %3230 = vst.msk [vmem:[%s3224 + $0x38] sm:$0xff] %vm2615, %v3139
      %3231 = vst.msk [vmem:[%s3224 + $0x48] sm:$0xff] %vm2615, %v3141
      %3232 = vst.msk [vmem:[%s3224 + $0x50] sm:$0xff] %vm2615, %v3143
      %3233 = vst.msk [vmem:[%s3224 + $0x60] sm:$0xff] %vm2615, %v3145
      %3234 = vst.msk [vmem:[%s3224 + $0x68] sm:$0xff] %vm2615, %v3147
      %3235 = vst.msk [vmem:[%s3224 + $0x78] sm:$0xff] %vm2615, %v3149
      %3236 = vst.msk [vmem:[%s3224 + $0x80] sm:$0xff] %vm2615, %v3151
      %3237 = vst.msk [vmem:[%s3224 + $0x90] sm:$0xff] %vm2615, %v3153
      %3238 = vst.msk [vmem:[%s3224 + $0x98] sm:$0xff] %vm2615, %v3155
      %3239 = vst.msk [vmem:[%s3224 + $0xa8] sm:$0xff] %vm2615, %v3157
      %3240 = vst.msk [vmem:[%s3224 + $0xb0] sm:$0xff] %vm2615, %v3159
      %3241 = vst.msk [vmem:[%s3224 + $0xc0] sm:$0xff] %vm2615, %v3161
      %3242 = vst.msk [vmem:[%s3224 + $0xc8] sm:$0xff] %vm2615, %v3163
      %3243 = vst.msk [vmem:[%s3224 + $0xd8] sm:$0xff] %vm2615, %v3165
      %3244 = vst.msk [vmem:[%s3224 + $0xe0] sm:$0xff] %vm2615, %v3167
      %3245 = vst.msk [vmem:[%s3224 + $0xf0] sm:$0xff] %vm2615, %v3169
      %3246 = vst.msk [vmem:[%s3224 + $0xf8] sm:$0xff] %vm2615, %v3171
      %3247 = vst.msk [vmem:[%s3224 + $0x108] sm:$0xff] %vm2615, %v3173
      %3248 = vst.msk [vmem:[%s3224 + $0x110] sm:$0xff] %vm2615, %v3175
      %3249 = vst.msk [vmem:[%s3224 + $0x120] sm:$0xff] %vm2615, %v3177
      %3250 = vst.msk [vmem:[%s3224 + $0x128] sm:$0xff] %vm2615, %v3179
      %3251 = vst.msk [vmem:[%s3224 + $0x138] sm:$0xff] %vm2615, %v3181
      %3252 = vst.msk [vmem:[%s3224 + $0x140] sm:$0xff] %vm2615, %v3183
      %3253 = vst.msk [vmem:[%s3224 + $0x150] sm:$0xff] %vm2615, %v3185
      %3254 = vst.msk [vmem:[%s3224 + $0x158] sm:$0xff] %vm2615, %v3187
      %3255 = vst.msk [vmem:[%s3224 + $0x168] sm:$0xff] %vm2615, %v3189
      %3256 = vst.msk [vmem:[%s3224 + $0x170] sm:$0xff] %vm2615, %v3191
      %v3257 = vperm.slane %v1392, 1
      %v3258 = vperm.slane %v1648, 1
      %v3259 = vperm.slane %v1649, 1
      %v3260 = vperm.slane %v1650, 1
      %v3261 = vperm.slane %v1393, 1
      %v3262 = vperm.slane %v1651, 1
      %v3263 = vperm.slane %v1652, 1
      %v3264 = vperm.slane %v1653, 1
      %v3265 = vperm.slane %v1394, 1
      %v3266 = vperm.slane %v1654, 1
      %v3267 = vperm.slane %v1655, 1
      %v3268 = vperm.slane %v1656, 1
      %v3269 = vperm.slane %v1395, 1
      %v3270 = vperm.slane %v1657, 1
      %v3271 = vperm.slane %v1658, 1
      %v3272 = vperm.slane %v1659, 1
      %v3273 = vperm.slane %v1400, 1
      %v3274 = vperm.slane %v1672, 1
      %v3275 = vperm.slane %v1673, 1
      %v3276 = vperm.slane %v1674, 1
      %v3277 = vperm.slane %v1401, 1
      %v3278 = vperm.slane %v1675, 1
      %v3279 = vperm.slane %v1676, 1
      %v3280 = vperm.slane %v1677, 1
      %v3281 = vperm.slane %v1402, 1
      %v3282 = vperm.slane %v1678, 1
      %v3283 = vperm.slane %v1679, 1
      %v3284 = vperm.slane %v1680, 1
      %v3285 = vperm.slane %v1403, 1
      %v3286 = vperm.slane %v1681, 1
      %v3287 = vperm.slane %v1682, 1
      %v3288 = vperm.slane %v1683, 1
      %v3289 = vperm.slane %v1408, 1
      %v3290 = vperm.slane %v1696, 1
      %v3291 = vperm.slane %v1697, 1
      %v3292 = vperm.slane %v1698, 1
      %v3293 = vperm.slane %v1409, 1
      %v3294 = vperm.slane %v1699, 1
      %v3295 = vperm.slane %v1700, 1
      %v3296 = vperm.slane %v1701, 1
      %v3297 = vperm.slane %v1410, 1
      %v3298 = vperm.slane %v1702, 1
      %v3299 = vperm.slane %v1703, 1
      %v3300 = vperm.slane %v1704, 1
      %v3301 = vperm.slane %v1411, 1
      %v3302 = vperm.slane %v1705, 1
      %v3303 = vperm.slane %v1706, 1
      %v3304 = vperm.slane %v1707, 1
      %v3305 = vperm.slane %v1416, 1
      %v3306 = vperm.slane %v1720, 1
      %v3307 = vperm.slane %v1721, 1
      %v3308 = vperm.slane %v1722, 1
      %v3309 = vperm.slane %v1417, 1
      %v3310 = vperm.slane %v1723, 1
      %v3311 = vperm.slane %v1724, 1
      %v3312 = vperm.slane %v1725, 1
      %v3313 = vperm.slane %v1418, 1
      %v3314 = vperm.slane %v1726, 1
      %v3315 = vperm.slane %v1727, 1
      %v3316 = vperm.slane %v1728, 1
      %v3317 = vperm.slane %v1419, 1
      %v3318 = vperm.slane %v1729, 1
      %v3319 = vperm.slane %v1730, 1
      %v3320 = vperm.slane %v1731, 1
      %v3321 = vperm.slane %v1424, 1
      %v3322 = vperm.slane %v1744, 1
      %v3323 = vperm.slane %v1745, 1
      %v3324 = vperm.slane %v1746, 1
      %v3325 = vperm.slane %v1425, 1
      %v3326 = vperm.slane %v1747, 1
      %v3327 = vperm.slane %v1748, 1
      %v3328 = vperm.slane %v1749, 1
      %v3329 = vperm.slane %v1426, 1
      %v3330 = vperm.slane %v1750, 1
      %v3331 = vperm.slane %v1751, 1
      %v3332 = vperm.slane %v1752, 1
      %v3333 = vperm.slane %v1427, 1
      %v3334 = vperm.slane %v1753, 1
      %v3335 = vperm.slane %v1754, 1
      %v3336 = vperm.slane %v1755, 1
      %v3337 = vperm.slane %v1432, 1
      %v3338 = vperm.slane %v1768, 1
      %v3339 = vperm.slane %v1769, 1
      %v3340 = vperm.slane %v1770, 1
      %v3341 = vperm.slane %v1433, 1
      %v3342 = vperm.slane %v1771, 1
      %v3343 = vperm.slane %v1772, 1
      %v3344 = vperm.slane %v1773, 1
      %v3345 = vperm.slane %v1434, 1
      %v3346 = vperm.slane %v1774, 1
      %v3347 = vperm.slane %v1775, 1
      %v3348 = vperm.slane %v1776, 1
      %v3349 = vperm.slane %v1435, 1
      %v3350 = vperm.slane %v1777, 1
      %v3351 = vperm.slane %v1778, 1
      %v3352 = vperm.slane %v1779, 1
      %v3353 = vperm.slane %v1440, 1
      %v3354 = vperm.slane %v1792, 1
      %v3355 = vperm.slane %v1793, 1
      %v3356 = vperm.slane %v1794, 1
      %v3357 = vperm.slane %v1441, 1
      %v3358 = vperm.slane %v1795, 1
      %v3359 = vperm.slane %v1796, 1
      %v3360 = vperm.slane %v1797, 1
      %v3361 = vperm.slane %v1442, 1
      %v3362 = vperm.slane %v1798, 1
      %v3363 = vperm.slane %v1799, 1
      %v3364 = vperm.slane %v1800, 1
      %v3365 = vperm.slane %v1443, 1
      %v3366 = vperm.slane %v1801, 1
      %v3367 = vperm.slane %v1802, 1
      %v3368 = vperm.slane %v1803, 1
      %v3369 = vperm.slane %v1448, 1
      %v3370 = vperm.slane %v1816, 1
      %v3371 = vperm.slane %v1817, 1
      %v3372 = vperm.slane %v1818, 1
      %v3373 = vperm.slane %v1449, 1
      %v3374 = vperm.slane %v1819, 1
      %v3375 = vperm.slane %v1820, 1
      %v3376 = vperm.slane %v1821, 1
      %v3377 = vperm.slane %v1450, 1
      %v3378 = vperm.slane %v1822, 1
      %v3379 = vperm.slane %v1823, 1
      %v3380 = vperm.slane %v1824, 1
      %v3381 = vperm.slane %v1451, 1
      %v3382 = vperm.slane %v1825, 1
      %v3383 = vperm.slane %v1826, 1
      %v3384 = vperm.slane %v1827, 1
      %v3385 = vperm.slane %v1456, 1
      %v3386 = vperm.slane %v1840, 1
      %v3387 = vperm.slane %v1841, 1
      %v3388 = vperm.slane %v1842, 1
      %v3389 = vperm.slane %v1457, 1
      %v3390 = vperm.slane %v1843, 1
      %v3391 = vperm.slane %v1844, 1
      %v3392 = vperm.slane %v1845, 1
      %v3393 = vperm.slane %v1458, 1
      %v3394 = vperm.slane %v1846, 1
      %v3395 = vperm.slane %v1847, 1
      %v3396 = vperm.slane %v1848, 1
      %v3397 = vperm.slane %v1459, 1
      %v3398 = vperm.slane %v1849, 1
      %v3399 = vperm.slane %v1850, 1
      %v3400 = vperm.slane %v1851, 1
      %v3401 = vperm.slane %v1464, 1
      %v3402 = vperm.slane %v1864, 1
      %v3403 = vperm.slane %v1865, 1
      %v3404 = vperm.slane %v1866, 1
      %v3405 = vperm.slane %v1465, 1
      %v3406 = vperm.slane %v1867, 1
      %v3407 = vperm.slane %v1868, 1
      %v3408 = vperm.slane %v1869, 1
      %v3409 = vperm.slane %v1466, 1
      %v3410 = vperm.slane %v1870, 1
      %v3411 = vperm.slane %v1871, 1
      %v3412 = vperm.slane %v1872, 1
      %v3413 = vperm.slane %v1467, 1
      %v3414 = vperm.slane %v1873, 1
      %v3415 = vperm.slane %v1874, 1
      %v3416 = vperm.slane %v1875, 1
      %v3417 = vperm.slane %v1472, 1
      %v3418 = vperm.slane %v1888, 1
      %v3419 = vperm.slane %v1889, 1
      %v3420 = vperm.slane %v1890, 1
      %v3421 = vperm.slane %v1473, 1
      %v3422 = vperm.slane %v1891, 1
      %v3423 = vperm.slane %v1892, 1
      %v3424 = vperm.slane %v1893, 1
      %v3425 = vperm.slane %v1474, 1
      %v3426 = vperm.slane %v1894, 1
      %v3427 = vperm.slane %v1895, 1
      %v3428 = vperm.slane %v1896, 1
      %v3429 = vperm.slane %v1475, 1
      %v3430 = vperm.slane %v1897, 1
      %v3431 = vperm.slane %v1898, 1
      %v3432 = vperm.slane %v1899, 1
      %v3433 = vperm.slane %v1480, 1
      %v3434 = vperm.slane %v1912, 1
      %v3435 = vperm.slane %v1913, 1
      %v3436 = vperm.slane %v1914, 1
      %v3437 = vperm.slane %v1481, 1
      %v3438 = vperm.slane %v1915, 1
      %v3439 = vperm.slane %v1916, 1
      %v3440 = vperm.slane %v1917, 1
      %v3441 = vperm.slane %v1482, 1
      %v3442 = vperm.slane %v1918, 1
      %v3443 = vperm.slane %v1919, 1
      %v3444 = vperm.slane %v1920, 1
      %v3445 = vperm.slane %v1483, 1
      %v3446 = vperm.slane %v1921, 1
      %v3447 = vperm.slane %v1922, 1
      %v3448 = vperm.slane %v1923, 1
      %v3449 = vperm.slane %v1488, 1
      %v3450 = vperm.slane %v1936, 1
      %v3451 = vperm.slane %v1937, 1
      %v3452 = vperm.slane %v1938, 1
      %v3453 = vperm.slane %v1489, 1
      %v3454 = vperm.slane %v1939, 1
      %v3455 = vperm.slane %v1940, 1
      %v3456 = vperm.slane %v1941, 1
      %v3457 = vperm.slane %v1490, 1
      %v3458 = vperm.slane %v1942, 1
      %v3459 = vperm.slane %v1943, 1
      %v3460 = vperm.slane %v1944, 1
      %v3461 = vperm.slane %v1491, 1
      %v3462 = vperm.slane %v1945, 1
      %v3463 = vperm.slane %v1946, 1
      %v3464 = vperm.slane %v1947, 1
      %v3465 = vperm.slane %v1496, 1
      %v3466 = vperm.slane %v1960, 1
      %v3467 = vperm.slane %v1961, 1
      %v3468 = vperm.slane %v1962, 1
      %v3469 = vperm.slane %v1497, 1
      %v3470 = vperm.slane %v1963, 1
      %v3471 = vperm.slane %v1964, 1
      %v3472 = vperm.slane %v1965, 1
      %v3473 = vperm.slane %v1498, 1
      %v3474 = vperm.slane %v1966, 1
      %v3475 = vperm.slane %v1967, 1
      %v3476 = vperm.slane %v1968, 1
      %v3477 = vperm.slane %v1499, 1
      %v3478 = vperm.slane %v1969, 1
      %v3479 = vperm.slane %v1970, 1
      %v3480 = vperm.slane %v1971, 1
      %v3481 = vperm.slane %v1504, 1
      %v3482 = vperm.slane %v1984, 1
      %v3483 = vperm.slane %v1985, 1
      %v3484 = vperm.slane %v1986, 1
      %v3485 = vperm.slane %v1505, 1
      %v3486 = vperm.slane %v1987, 1
      %v3487 = vperm.slane %v1988, 1
      %v3488 = vperm.slane %v1989, 1
      %v3489 = vperm.slane %v1506, 1
      %v3490 = vperm.slane %v1990, 1
      %v3491 = vperm.slane %v1991, 1
      %v3492 = vperm.slane %v1992, 1
      %v3493 = vperm.slane %v1507, 1
      %v3494 = vperm.slane %v1993, 1
      %v3495 = vperm.slane %v1994, 1
      %v3496 = vperm.slane %v1995, 1
      %v3497 = vperm.slane %v1512, 1
      %v3498 = vperm.slane %v2008, 1
      %v3499 = vperm.slane %v2009, 1
      %v3500 = vperm.slane %v2010, 1
      %v3501 = vperm.slane %v1513, 1
      %v3502 = vperm.slane %v2011, 1
      %v3503 = vperm.slane %v2012, 1
      %v3504 = vperm.slane %v2013, 1
      %v3505 = vperm.slane %v1514, 1
      %v3506 = vperm.slane %v2014, 1
      %v3507 = vperm.slane %v2015, 1
      %v3508 = vperm.slane %v2016, 1
      %v3509 = vperm.slane %v1515, 1
      %v3510 = vperm.slane %v2017, 1
      %v3511 = vperm.slane %v2018, 1
      %v3512 = vperm.slane %v2019, 1
      %v3513 = vsel %vm2290, %v3258, %v3257
      %v3514 = vsel %vm2292, %v3259, %v3513
      %v3515 = vsel %vm2294, %v3260, %v3514
      %v3516 = vsel %vm2296, %v3261, %v3515
      %v3517 = vsel %vm2298, %v3262, %v3516
      %v3518 = vsel %vm2300, %v3263, %v3517
      %v3519 = vsel %vm2288, %v3265, %v3264
      %v3520 = vsel %vm2290, %v3266, %v3519
      %v3521 = vsel %vm2292, %v3267, %v3520
      %v3522 = vsel %vm2294, %v3268, %v3521
      %v3523 = vsel %vm2296, %v3269, %v3522
      %v3524 = vsel %vm2298, %v3270, %v3523
      %v3525 = vsel %vm2300, %v3271, %v3524
      %v3526 = vsel %vm2290, %v3274, %v3273
      %v3527 = vsel %vm2292, %v3275, %v3526
      %v3528 = vsel %vm2294, %v3276, %v3527
      %v3529 = vsel %vm2296, %v3277, %v3528
      %v3530 = vsel %vm2298, %v3278, %v3529
      %v3531 = vsel %vm2300, %v3279, %v3530
      %v3532 = vsel %vm2288, %v3281, %v3280
      %v3533 = vsel %vm2290, %v3282, %v3532
      %v3534 = vsel %vm2292, %v3283, %v3533
      %v3535 = vsel %vm2294, %v3284, %v3534
      %v3536 = vsel %vm2296, %v3285, %v3535
      %v3537 = vsel %vm2298, %v3286, %v3536
      %v3538 = vsel %vm2300, %v3287, %v3537
      %v3539 = vsel %vm2290, %v3290, %v3289
      %v3540 = vsel %vm2292, %v3291, %v3539
      %v3541 = vsel %vm2294, %v3292, %v3540
      %v3542 = vsel %vm2296, %v3293, %v3541
      %v3543 = vsel %vm2298, %v3294, %v3542
      %v3544 = vsel %vm2300, %v3295, %v3543
      %v3545 = vsel %vm2288, %v3297, %v3296
      %v3546 = vsel %vm2290, %v3298, %v3545
      %v3547 = vsel %vm2292, %v3299, %v3546
      %v3548 = vsel %vm2294, %v3300, %v3547
      %v3549 = vsel %vm2296, %v3301, %v3548
      %v3550 = vsel %vm2298, %v3302, %v3549
      %v3551 = vsel %vm2300, %v3303, %v3550
      %v3552 = vsel %vm2290, %v3306, %v3305
      %v3553 = vsel %vm2292, %v3307, %v3552
      %v3554 = vsel %vm2294, %v3308, %v3553
      %v3555 = vsel %vm2296, %v3309, %v3554
      %v3556 = vsel %vm2298, %v3310, %v3555
      %v3557 = vsel %vm2300, %v3311, %v3556
      %v3558 = vsel %vm2288, %v3313, %v3312
      %v3559 = vsel %vm2290, %v3314, %v3558
      %v3560 = vsel %vm2292, %v3315, %v3559
      %v3561 = vsel %vm2294, %v3316, %v3560
      %v3562 = vsel %vm2296, %v3317, %v3561
      %v3563 = vsel %vm2298, %v3318, %v3562
      %v3564 = vsel %vm2300, %v3319, %v3563
      %v3565 = vsel %vm2290, %v3322, %v3321
      %v3566 = vsel %vm2292, %v3323, %v3565
      %v3567 = vsel %vm2294, %v3324, %v3566
      %v3568 = vsel %vm2296, %v3325, %v3567
      %v3569 = vsel %vm2298, %v3326, %v3568
      %v3570 = vsel %vm2300, %v3327, %v3569
      %v3571 = vsel %vm2288, %v3329, %v3328
      %v3572 = vsel %vm2290, %v3330, %v3571
      %v3573 = vsel %vm2292, %v3331, %v3572
      %v3574 = vsel %vm2294, %v3332, %v3573
      %v3575 = vsel %vm2296, %v3333, %v3574
      %v3576 = vsel %vm2298, %v3334, %v3575
      %v3577 = vsel %vm2300, %v3335, %v3576
      %v3578 = vsel %vm2290, %v3338, %v3337
      %v3579 = vsel %vm2292, %v3339, %v3578
      %v3580 = vsel %vm2294, %v3340, %v3579
      %v3581 = vsel %vm2296, %v3341, %v3580
      %v3582 = vsel %vm2298, %v3342, %v3581
      %v3583 = vsel %vm2300, %v3343, %v3582
      %v3584 = vsel %vm2288, %v3345, %v3344
      %v3585 = vsel %vm2290, %v3346, %v3584
      %v3586 = vsel %vm2292, %v3347, %v3585
      %v3587 = vsel %vm2294, %v3348, %v3586
      %v3588 = vsel %vm2296, %v3349, %v3587
      %v3589 = vsel %vm2298, %v3350, %v3588
      %v3590 = vsel %vm2300, %v3351, %v3589
      %v3591 = vsel %vm2290, %v3354, %v3353
      %v3592 = vsel %vm2292, %v3355, %v3591
      %v3593 = vsel %vm2294, %v3356, %v3592
      %v3594 = vsel %vm2296, %v3357, %v3593
      %v3595 = vsel %vm2298, %v3358, %v3594
      %v3596 = vsel %vm2300, %v3359, %v3595
      %v3597 = vsel %vm2288, %v3361, %v3360
      %v3598 = vsel %vm2290, %v3362, %v3597
      %v3599 = vsel %vm2292, %v3363, %v3598
      %v3600 = vsel %vm2294, %v3364, %v3599
      %v3601 = vsel %vm2296, %v3365, %v3600
      %v3602 = vsel %vm2298, %v3366, %v3601
      %v3603 = vsel %vm2300, %v3367, %v3602
      %v3604 = vsel %vm2290, %v3370, %v3369
      %v3605 = vsel %vm2292, %v3371, %v3604
      %v3606 = vsel %vm2294, %v3372, %v3605
      %v3607 = vsel %vm2296, %v3373, %v3606
      %v3608 = vsel %vm2298, %v3374, %v3607
      %v3609 = vsel %vm2300, %v3375, %v3608
      %v3610 = vsel %vm2288, %v3377, %v3376
      %v3611 = vsel %vm2290, %v3378, %v3610
      %v3612 = vsel %vm2292, %v3379, %v3611
      %v3613 = vsel %vm2294, %v3380, %v3612
      %v3614 = vsel %vm2296, %v3381, %v3613
      %v3615 = vsel %vm2298, %v3382, %v3614
      %v3616 = vsel %vm2300, %v3383, %v3615
      %v3617 = vsel %vm2290, %v3386, %v3385
      %v3618 = vsel %vm2292, %v3387, %v3617
      %v3619 = vsel %vm2294, %v3388, %v3618
      %v3620 = vsel %vm2296, %v3389, %v3619
      %v3621 = vsel %vm2298, %v3390, %v3620
      %v3622 = vsel %vm2300, %v3391, %v3621
      %v3623 = vsel %vm2288, %v3393, %v3392
      %v3624 = vsel %vm2290, %v3394, %v3623
      %v3625 = vsel %vm2292, %v3395, %v3624
      %v3626 = vsel %vm2294, %v3396, %v3625
      %v3627 = vsel %vm2296, %v3397, %v3626
      %v3628 = vsel %vm2298, %v3398, %v3627
      %v3629 = vsel %vm2300, %v3399, %v3628
      %v3630 = vsel %vm2290, %v3402, %v3401
      %v3631 = vsel %vm2292, %v3403, %v3630
      %v3632 = vsel %vm2294, %v3404, %v3631
      %v3633 = vsel %vm2296, %v3405, %v3632
      %v3634 = vsel %vm2298, %v3406, %v3633
      %v3635 = vsel %vm2300, %v3407, %v3634
      %v3636 = vsel %vm2288, %v3409, %v3408
      %v3637 = vsel %vm2290, %v3410, %v3636
      %v3638 = vsel %vm2292, %v3411, %v3637
      %v3639 = vsel %vm2294, %v3412, %v3638
      %v3640 = vsel %vm2296, %v3413, %v3639
      %v3641 = vsel %vm2298, %v3414, %v3640
      %v3642 = vsel %vm2300, %v3415, %v3641
      %v3643 = vsel %vm2290, %v3418, %v3417
      %v3644 = vsel %vm2292, %v3419, %v3643
      %v3645 = vsel %vm2294, %v3420, %v3644
      %v3646 = vsel %vm2296, %v3421, %v3645
      %v3647 = vsel %vm2298, %v3422, %v3646
      %v3648 = vsel %vm2300, %v3423, %v3647
      %v3649 = vsel %vm2288, %v3425, %v3424
      %v3650 = vsel %vm2290, %v3426, %v3649
      %v3651 = vsel %vm2292, %v3427, %v3650
      %v3652 = vsel %vm2294, %v3428, %v3651
      %v3653 = vsel %vm2296, %v3429, %v3652
      %v3654 = vsel %vm2298, %v3430, %v3653
      %v3655 = vsel %vm2300, %v3431, %v3654
      %v3656 = vsel %vm2290, %v3434, %v3433
      %v3657 = vsel %vm2292, %v3435, %v3656
      %v3658 = vsel %vm2294, %v3436, %v3657
      %v3659 = vsel %vm2296, %v3437, %v3658
      %v3660 = vsel %vm2298, %v3438, %v3659
      %v3661 = vsel %vm2300, %v3439, %v3660
      %v3662 = vsel %vm2288, %v3441, %v3440
      %v3663 = vsel %vm2290, %v3442, %v3662
      %v3664 = vsel %vm2292, %v3443, %v3663
      %v3665 = vsel %vm2294, %v3444, %v3664
      %v3666 = vsel %vm2296, %v3445, %v3665
      %v3667 = vsel %vm2298, %v3446, %v3666
      %v3668 = vsel %vm2300, %v3447, %v3667
      %v3669 = vsel %vm2290, %v3450, %v3449
      %v3670 = vsel %vm2292, %v3451, %v3669
      %v3671 = vsel %vm2294, %v3452, %v3670
      %v3672 = vsel %vm2296, %v3453, %v3671
      %v3673 = vsel %vm2298, %v3454, %v3672
      %v3674 = vsel %vm2300, %v3455, %v3673
      %v3675 = vsel %vm2288, %v3457, %v3456
      %v3676 = vsel %vm2290, %v3458, %v3675
      %v3677 = vsel %vm2292, %v3459, %v3676
      %v3678 = vsel %vm2294, %v3460, %v3677
      %v3679 = vsel %vm2296, %v3461, %v3678
      %v3680 = vsel %vm2298, %v3462, %v3679
      %v3681 = vsel %vm2300, %v3463, %v3680
      %v3682 = vsel %vm2290, %v3466, %v3465
      %v3683 = vsel %vm2292, %v3467, %v3682
      %v3684 = vsel %vm2294, %v3468, %v3683
      %v3685 = vsel %vm2296, %v3469, %v3684
      %v3686 = vsel %vm2298, %v3470, %v3685
      %v3687 = vsel %vm2300, %v3471, %v3686
      %v3688 = vsel %vm2288, %v3473, %v3472
      %v3689 = vsel %vm2290, %v3474, %v3688
      %v3690 = vsel %vm2292, %v3475, %v3689
      %v3691 = vsel %vm2294, %v3476, %v3690
      %v3692 = vsel %vm2296, %v3477, %v3691
      %v3693 = vsel %vm2298, %v3478, %v3692
      %v3694 = vsel %vm2300, %v3479, %v3693
      %v3695 = vsel %vm2290, %v3482, %v3481
      %v3696 = vsel %vm2292, %v3483, %v3695
      %v3697 = vsel %vm2294, %v3484, %v3696
      %v3698 = vsel %vm2296, %v3485, %v3697
      %v3699 = vsel %vm2298, %v3486, %v3698
      %v3700 = vsel %vm2300, %v3487, %v3699
      %v3701 = vsel %vm2288, %v3489, %v3488
      %v3702 = vsel %vm2290, %v3490, %v3701
      %v3703 = vsel %vm2292, %v3491, %v3702
      %v3704 = vsel %vm2294, %v3492, %v3703
      %v3705 = vsel %vm2296, %v3493, %v3704
      %v3706 = vsel %vm2298, %v3494, %v3705
      %v3707 = vsel %vm2300, %v3495, %v3706
      %v3708 = vsel %vm2290, %v3498, %v3497
      %v3709 = vsel %vm2292, %v3499, %v3708
      %v3710 = vsel %vm2294, %v3500, %v3709
      %v3711 = vsel %vm2296, %v3501, %v3710
      %v3712 = vsel %vm2298, %v3502, %v3711
      %v3713 = vsel %vm2300, %v3503, %v3712
      %v3714 = vsel %vm2288, %v3505, %v3504
      %v3715 = vsel %vm2290, %v3506, %v3714
      %v3716 = vsel %vm2292, %v3507, %v3715
      %v3717 = vsel %vm2294, %v3508, %v3716
      %v3718 = vsel %vm2296, %v3509, %v3717
      %v3719 = vsel %vm2298, %v3510, %v3718
      %v3720 = vsel %vm2300, %v3511, %v3719
      %vm3769 = vcmask 130049
      %3770 = vst.msk [vmem:[#allocation3] sm:$0xfe] %vm3769, %v3518
      %3771 = vst.msk [vmem:[#allocation3 + $0x8] sm:$0xff] %vm742, %v3525
      %vm3772 = vcmask 122880
      %3773 = vst.msk [vmem:[#allocation3 + $0x10] sm:$0x1] %vm3772, %v3272
      %3774 = vst.msk [vmem:[#allocation3 + $0x18] sm:$0xfe] %vm3769, %v3531
      %3775 = vst.msk [vmem:[#allocation3 + $0x20] sm:$0xff] %vm742, %v3538
      %3776 = vst.msk [vmem:[#allocation3 + $0x28] sm:$0x1] %vm3772, %v3288
      %3777 = vst.msk [vmem:[#allocation3 + $0x30] sm:$0xfe] %vm3769, %v3544
      %3778 = vst.msk [vmem:[#allocation3 + $0x38] sm:$0xff] %vm742, %v3551
      %3779 = vst.msk [vmem:[#allocation3 + $0x40] sm:$0x1] %vm3772, %v3304
      %3780 = vst.msk [vmem:[#allocation3 + $0x48] sm:$0xfe] %vm3769, %v3557
      %3781 = vst.msk [vmem:[#allocation3 + $0x50] sm:$0xff] %vm742, %v3564
      %3782 = vst.msk [vmem:[#allocation3 + $0x58] sm:$0x1] %vm3772, %v3320
      %3783 = vst.msk [vmem:[#allocation3 + $0x60] sm:$0xfe] %vm3769, %v3570
      %3784 = vst.msk [vmem:[#allocation3 + $0x68] sm:$0xff] %vm742, %v3577
      %3785 = vst.msk [vmem:[#allocation3 + $0x70] sm:$0x1] %vm3772, %v3336
      %3786 = vst.msk [vmem:[#allocation3 + $0x78] sm:$0xfe] %vm3769, %v3583
      %3787 = vst.msk [vmem:[#allocation3 + $0x80] sm:$0xff] %vm742, %v3590
      %3788 = vst.msk [vmem:[#allocation3 + $0x88] sm:$0x1] %vm3772, %v3352
      %3789 = vst.msk [vmem:[#allocation3 + $0x90] sm:$0xfe] %vm3769, %v3596
      %3790 = vst.msk [vmem:[#allocation3 + $0x98] sm:$0xff] %vm742, %v3603
      %3791 = vst.msk [vmem:[#allocation3 + $0xa0] sm:$0x1] %vm3772, %v3368
      %3792 = vst.msk [vmem:[#allocation3 + $0xa8] sm:$0xfe] %vm3769, %v3609
      %3793 = vst.msk [vmem:[#allocation3 + $0xb0] sm:$0xff] %vm742, %v3616
      %3794 = vst.msk [vmem:[#allocation3 + $0xb8] sm:$0x1] %vm3772, %v3384
      %3795 = vst.msk [vmem:[#allocation3 + $0xc0] sm:$0xfe] %vm3769, %v3622
      %3796 = vst.msk [vmem:[#allocation3 + $0xc8] sm:$0xff] %vm742, %v3629
      %3797 = vst.msk [vmem:[#allocation3 + $0xd0] sm:$0x1] %vm3772, %v3400
      %3798 = vst.msk [vmem:[#allocation3 + $0xd8] sm:$0xfe] %vm3769, %v3635
      %3799 = vst.msk [vmem:[#allocation3 + $0xe0] sm:$0xff] %vm742, %v3642
      %3800 = vst.msk [vmem:[#allocation3 + $0xe8] sm:$0x1] %vm3772, %v3416
      %3801 = vst.msk [vmem:[#allocation3 + $0xf0] sm:$0xfe] %vm3769, %v3648
      %3802 = vst.msk [vmem:[#allocation3 + $0xf8] sm:$0xff] %vm742, %v3655
      %3803 = vst.msk [vmem:[#allocation3 + $0x100] sm:$0x1] %vm3772, %v3432
      %3804 = vst.msk [vmem:[#allocation3 + $0x108] sm:$0xfe] %vm3769, %v3661
      %3805 = vst.msk [vmem:[#allocation3 + $0x110] sm:$0xff] %vm742, %v3668
      %3806 = vst.msk [vmem:[#allocation3 + $0x118] sm:$0x1] %vm3772, %v3448
      %3807 = vst.msk [vmem:[#allocation3 + $0x120] sm:$0xfe] %vm3769, %v3674
      %3808 = vst.msk [vmem:[#allocation3 + $0x128] sm:$0xff] %vm742, %v3681
      %3809 = vst.msk [vmem:[#allocation3 + $0x130] sm:$0x1] %vm3772, %v3464
      %3810 = vst.msk [vmem:[#allocation3 + $0x138] sm:$0xfe] %vm3769, %v3687
      %3811 = vst.msk [vmem:[#allocation3 + $0x140] sm:$0xff] %vm742, %v3694
      %3812 = vst.msk [vmem:[#allocation3 + $0x148] sm:$0x1] %vm3772, %v3480
      %3813 = vst.msk [vmem:[#allocation3 + $0x150] sm:$0xfe] %vm3769, %v3700
      %3814 = vst.msk [vmem:[#allocation3 + $0x158] sm:$0xff] %vm742, %v3707
      %3815 = vst.msk [vmem:[#allocation3 + $0x160] sm:$0x1] %vm3772, %v3496
      %3816 = vst.msk [vmem:[#allocation3 + $0x168] sm:$0xfe] %vm3769, %v3713
      %3817 = vst.msk [vmem:[#allocation3 + $0x170] sm:$0xff] %vm742, %v3720
      %3818 = vst.msk [vmem:[#allocation3 + $0x178] sm:$0x1] %vm3772, %v3512
      %v3819 = vperm.slane %v1396, 1
      %v3820 = vperm.slane %v1660, 1
      %v3821 = vperm.slane %v1661, 1
      %v3822 = vperm.slane %v1662, 1
      %v3823 = vperm.slane %v1397, 1
      %v3824 = vperm.slane %v1663, 1
      %v3825 = vperm.slane %v1664, 1
      %v3826 = vperm.slane %v1665, 1
      %v3827 = vperm.slane %v1398, 1
      %v3828 = vperm.slane %v1666, 1
      %v3829 = vperm.slane %v1667, 1
      %v3830 = vperm.slane %v1668, 1
      %v3831 = vperm.slane %v1399, 1
      %v3832 = vperm.slane %v1669, 1
      %v3833 = vperm.slane %v1670, 1
      %v3834 = vperm.slane %v1671, 1
      %v3835 = vperm.slane %v1404, 1
      %v3836 = vperm.slane %v1684, 1
      %v3837 = vperm.slane %v1685, 1
      %v3838 = vperm.slane %v1686, 1
      %v3839 = vperm.slane %v1405, 1
      %v3840 = vperm.slane %v1687, 1
      %v3841 = vperm.slane %v1688, 1
      %v3842 = vperm.slane %v1689, 1
      %v3843 = vperm.slane %v1406, 1
      %v3844 = vperm.slane %v1690, 1
      %v3845 = vperm.slane %v1691, 1
      %v3846 = vperm.slane %v1692, 1
      %v3847 = vperm.slane %v1407, 1
      %v3848 = vperm.slane %v1693, 1
      %v3849 = vperm.slane %v1694, 1
      %v3850 = vperm.slane %v1695, 1
      %v3851 = vperm.slane %v1412, 1
      %v3852 = vperm.slane %v1708, 1
      %v3853 = vperm.slane %v1709, 1
      %v3854 = vperm.slane %v1710, 1
      %v3855 = vperm.slane %v1413, 1
      %v3856 = vperm.slane %v1711, 1
      %v3857 = vperm.slane %v1712, 1
      %v3858 = vperm.slane %v1713, 1
      %v3859 = vperm.slane %v1414, 1
      %v3860 = vperm.slane %v1714, 1
      %v3861 = vperm.slane %v1715, 1
      %v3862 = vperm.slane %v1716, 1
      %v3863 = vperm.slane %v1415, 1
      %v3864 = vperm.slane %v1717, 1
      %v3865 = vperm.slane %v1718, 1
      %v3866 = vperm.slane %v1719, 1
      %v3867 = vperm.slane %v1420, 1
      %v3868 = vperm.slane %v1732, 1
      %v3869 = vperm.slane %v1733, 1
      %v3870 = vperm.slane %v1734, 1
      %v3871 = vperm.slane %v1421, 1
      %v3872 = vperm.slane %v1735, 1
      %v3873 = vperm.slane %v1736, 1
      %v3874 = vperm.slane %v1737, 1
      %v3875 = vperm.slane %v1422, 1
      %v3876 = vperm.slane %v1738, 1
      %v3877 = vperm.slane %v1739, 1
      %v3878 = vperm.slane %v1740, 1
      %v3879 = vperm.slane %v1423, 1
      %v3880 = vperm.slane %v1741, 1
      %v3881 = vperm.slane %v1742, 1
      %v3882 = vperm.slane %v1743, 1
      %v3883 = vperm.slane %v1428, 1
      %v3884 = vperm.slane %v1756, 1
      %v3885 = vperm.slane %v1757, 1
      %v3886 = vperm.slane %v1758, 1
      %v3887 = vperm.slane %v1429, 1
      %v3888 = vperm.slane %v1759, 1
      %v3889 = vperm.slane %v1760, 1
      %v3890 = vperm.slane %v1761, 1
      %v3891 = vperm.slane %v1430, 1
      %v3892 = vperm.slane %v1762, 1
      %v3893 = vperm.slane %v1763, 1
      %v3894 = vperm.slane %v1764, 1
      %v3895 = vperm.slane %v1431, 1
      %v3896 = vperm.slane %v1765, 1
      %v3897 = vperm.slane %v1766, 1
      %v3898 = vperm.slane %v1767, 1
      %v3899 = vperm.slane %v1436, 1
      %v3900 = vperm.slane %v1780, 1
      %v3901 = vperm.slane %v1781, 1
      %v3902 = vperm.slane %v1782, 1
      %v3903 = vperm.slane %v1437, 1
      %v3904 = vperm.slane %v1783, 1
      %v3905 = vperm.slane %v1784, 1
      %v3906 = vperm.slane %v1785, 1
      %v3907 = vperm.slane %v1438, 1
      %v3908 = vperm.slane %v1786, 1
      %v3909 = vperm.slane %v1787, 1
      %v3910 = vperm.slane %v1788, 1
      %v3911 = vperm.slane %v1439, 1
      %v3912 = vperm.slane %v1789, 1
      %v3913 = vperm.slane %v1790, 1
      %v3914 = vperm.slane %v1791, 1
      %v3915 = vperm.slane %v1444, 1
      %v3916 = vperm.slane %v1804, 1
      %v3917 = vperm.slane %v1805, 1
      %v3918 = vperm.slane %v1806, 1
      %v3919 = vperm.slane %v1445, 1
      %v3920 = vperm.slane %v1807, 1
      %v3921 = vperm.slane %v1808, 1
      %v3922 = vperm.slane %v1809, 1
      %v3923 = vperm.slane %v1446, 1
      %v3924 = vperm.slane %v1810, 1
      %v3925 = vperm.slane %v1811, 1
      %v3926 = vperm.slane %v1812, 1
      %v3927 = vperm.slane %v1447, 1
      %v3928 = vperm.slane %v1813, 1
      %v3929 = vperm.slane %v1814, 1
      %v3930 = vperm.slane %v1815, 1
      %v3931 = vperm.slane %v1452, 1
      %v3932 = vperm.slane %v1828, 1
      %v3933 = vperm.slane %v1829, 1
      %v3934 = vperm.slane %v1830, 1
      %v3935 = vperm.slane %v1453, 1
      %v3936 = vperm.slane %v1831, 1
      %v3937 = vperm.slane %v1832, 1
      %v3938 = vperm.slane %v1833, 1
      %v3939 = vperm.slane %v1454, 1
      %v3940 = vperm.slane %v1834, 1
      %v3941 = vperm.slane %v1835, 1
      %v3942 = vperm.slane %v1836, 1
      %v3943 = vperm.slane %v1455, 1
      %v3944 = vperm.slane %v1837, 1
      %v3945 = vperm.slane %v1838, 1
      %v3946 = vperm.slane %v1839, 1
      %v3947 = vperm.slane %v1460, 1
      %v3948 = vperm.slane %v1852, 1
      %v3949 = vperm.slane %v1853, 1
      %v3950 = vperm.slane %v1854, 1
      %v3951 = vperm.slane %v1461, 1
      %v3952 = vperm.slane %v1855, 1
      %v3953 = vperm.slane %v1856, 1
      %v3954 = vperm.slane %v1857, 1
      %v3955 = vperm.slane %v1462, 1
      %v3956 = vperm.slane %v1858, 1
      %v3957 = vperm.slane %v1859, 1
      %v3958 = vperm.slane %v1860, 1
      %v3959 = vperm.slane %v1463, 1
      %v3960 = vperm.slane %v1861, 1
      %v3961 = vperm.slane %v1862, 1
      %v3962 = vperm.slane %v1863, 1
      %v3963 = vperm.slane %v1468, 1
      %v3964 = vperm.slane %v1876, 1
      %v3965 = vperm.slane %v1877, 1
      %v3966 = vperm.slane %v1878, 1
      %v3967 = vperm.slane %v1469, 1
      %v3968 = vperm.slane %v1879, 1
      %v3969 = vperm.slane %v1880, 1
      %v3970 = vperm.slane %v1881, 1
      %v3971 = vperm.slane %v1470, 1
      %v3972 = vperm.slane %v1882, 1
      %v3973 = vperm.slane %v1883, 1
      %v3974 = vperm.slane %v1884, 1
      %v3975 = vperm.slane %v1471, 1
      %v3976 = vperm.slane %v1885, 1
      %v3977 = vperm.slane %v1886, 1
      %v3978 = vperm.slane %v1887, 1
      %v3979 = vperm.slane %v1476, 1
      %v3980 = vperm.slane %v1900, 1
      %v3981 = vperm.slane %v1901, 1
      %v3982 = vperm.slane %v1902, 1
      %v3983 = vperm.slane %v1477, 1
      %v3984 = vperm.slane %v1903, 1
      %v3985 = vperm.slane %v1904, 1
      %v3986 = vperm.slane %v1905, 1
      %v3987 = vperm.slane %v1478, 1
      %v3988 = vperm.slane %v1906, 1
      %v3989 = vperm.slane %v1907, 1
      %v3990 = vperm.slane %v1908, 1
      %v3991 = vperm.slane %v1479, 1
      %v3992 = vperm.slane %v1909, 1
      %v3993 = vperm.slane %v1910, 1
      %v3994 = vperm.slane %v1911, 1
      %v3995 = vperm.slane %v1484, 1
      %v3996 = vperm.slane %v1924, 1
      %v3997 = vperm.slane %v1925, 1
      %v3998 = vperm.slane %v1926, 1
      %v3999 = vperm.slane %v1485, 1
      %v4000 = vperm.slane %v1927, 1
      %v4001 = vperm.slane %v1928, 1
      %v4002 = vperm.slane %v1929, 1
      %v4003 = vperm.slane %v1486, 1
      %v4004 = vperm.slane %v1930, 1
      %v4005 = vperm.slane %v1931, 1
      %v4006 = vperm.slane %v1932, 1
      %v4007 = vperm.slane %v1487, 1
      %v4008 = vperm.slane %v1933, 1
      %v4009 = vperm.slane %v1934, 1
      %v4010 = vperm.slane %v1935, 1
      %v4011 = vperm.slane %v1492, 1
      %v4012 = vperm.slane %v1948, 1
      %v4013 = vperm.slane %v1949, 1
      %v4014 = vperm.slane %v1950, 1
      %v4015 = vperm.slane %v1493, 1
      %v4016 = vperm.slane %v1951, 1
      %v4017 = vperm.slane %v1952, 1
      %v4018 = vperm.slane %v1953, 1
      %v4019 = vperm.slane %v1494, 1
      %v4020 = vperm.slane %v1954, 1
      %v4021 = vperm.slane %v1955, 1
      %v4022 = vperm.slane %v1956, 1
      %v4023 = vperm.slane %v1495, 1
      %v4024 = vperm.slane %v1957, 1
      %v4025 = vperm.slane %v1958, 1
      %v4026 = vperm.slane %v1959, 1
      %v4027 = vperm.slane %v1500, 1
      %v4028 = vperm.slane %v1972, 1
      %v4029 = vperm.slane %v1973, 1
      %v4030 = vperm.slane %v1974, 1
      %v4031 = vperm.slane %v1501, 1
      %v4032 = vperm.slane %v1975, 1
      %v4033 = vperm.slane %v1976, 1
      %v4034 = vperm.slane %v1977, 1
      %v4035 = vperm.slane %v1502, 1
      %v4036 = vperm.slane %v1978, 1
      %v4037 = vperm.slane %v1979, 1
      %v4038 = vperm.slane %v1980, 1
      %v4039 = vperm.slane %v1503, 1
      %v4040 = vperm.slane %v1981, 1
      %v4041 = vperm.slane %v1982, 1
      %v4042 = vperm.slane %v1983, 1
      %v4043 = vperm.slane %v1508, 1
      %v4044 = vperm.slane %v1996, 1
      %v4045 = vperm.slane %v1997, 1
      %v4046 = vperm.slane %v1998, 1
      %v4047 = vperm.slane %v1509, 1
      %v4048 = vperm.slane %v1999, 1
      %v4049 = vperm.slane %v2000, 1
      %v4050 = vperm.slane %v2001, 1
      %v4051 = vperm.slane %v1510, 1
      %v4052 = vperm.slane %v2002, 1
      %v4053 = vperm.slane %v2003, 1
      %v4054 = vperm.slane %v2004, 1
      %v4055 = vperm.slane %v1511, 1
      %v4056 = vperm.slane %v2005, 1
      %v4057 = vperm.slane %v2006, 1
      %v4058 = vperm.slane %v2007, 1
      %v4059 = vperm.slane %v1516, 1
      %v4060 = vperm.slane %v2020, 1
      %v4061 = vperm.slane %v2021, 1
      %v4062 = vperm.slane %v2022, 1
      %v4063 = vperm.slane %v1517, 1
      %v4064 = vperm.slane %v2023, 1
      %v4065 = vperm.slane %v2024, 1
      %v4066 = vperm.slane %v2025, 1
      %v4067 = vperm.slane %v1518, 1
      %v4068 = vperm.slane %v2026, 1
      %v4069 = vperm.slane %v2027, 1
      %v4070 = vperm.slane %v2028, 1
      %v4071 = vperm.slane %v1519, 1
      %v4072 = vperm.slane %v2029, 1
      %v4073 = vperm.slane %v2030, 1
      %v4074 = vperm.slane %v2031, 1
      %v4075 = vsel %vm2290, %v3820, %v3819
      %v4076 = vsel %vm2292, %v3821, %v4075
      %v4077 = vsel %vm2294, %v3822, %v4076
      %v4078 = vsel %vm2296, %v3823, %v4077
      %v4079 = vsel %vm2298, %v3824, %v4078
      %v4080 = vsel %vm2300, %v3825, %v4079
      %v4081 = vsel %vm2288, %v3827, %v3826
      %v4082 = vsel %vm2290, %v3828, %v4081
      %v4083 = vsel %vm2292, %v3829, %v4082
      %v4084 = vsel %vm2294, %v3830, %v4083
      %v4085 = vsel %vm2296, %v3831, %v4084
      %v4086 = vsel %vm2298, %v3832, %v4085
      %v4087 = vsel %vm2300, %v3833, %v4086
      %v4088 = vsel %vm2290, %v3836, %v3835
      %v4089 = vsel %vm2292, %v3837, %v4088
      %v4090 = vsel %vm2294, %v3838, %v4089
      %v4091 = vsel %vm2296, %v3839, %v4090
      %v4092 = vsel %vm2298, %v3840, %v4091
      %v4093 = vsel %vm2300, %v3841, %v4092
      %v4094 = vsel %vm2288, %v3843, %v3842
      %v4095 = vsel %vm2290, %v3844, %v4094
      %v4096 = vsel %vm2292, %v3845, %v4095
      %v4097 = vsel %vm2294, %v3846, %v4096
      %v4098 = vsel %vm2296, %v3847, %v4097
      %v4099 = vsel %vm2298, %v3848, %v4098
      %v4100 = vsel %vm2300, %v3849, %v4099
      %v4101 = vsel %vm2290, %v3852, %v3851
      %v4102 = vsel %vm2292, %v3853, %v4101
      %v4103 = vsel %vm2294, %v3854, %v4102
      %v4104 = vsel %vm2296, %v3855, %v4103
      %v4105 = vsel %vm2298, %v3856, %v4104
      %v4106 = vsel %vm2300, %v3857, %v4105
      %v4107 = vsel %vm2288, %v3859, %v3858
      %v4108 = vsel %vm2290, %v3860, %v4107
      %v4109 = vsel %vm2292, %v3861, %v4108
      %v4110 = vsel %vm2294, %v3862, %v4109
      %v4111 = vsel %vm2296, %v3863, %v4110
      %v4112 = vsel %vm2298, %v3864, %v4111
      %v4113 = vsel %vm2300, %v3865, %v4112
      %v4114 = vsel %vm2290, %v3868, %v3867
      %v4115 = vsel %vm2292, %v3869, %v4114
      %v4116 = vsel %vm2294, %v3870, %v4115
      %v4117 = vsel %vm2296, %v3871, %v4116
      %v4118 = vsel %vm2298, %v3872, %v4117
      %v4119 = vsel %vm2300, %v3873, %v4118
      %v4120 = vsel %vm2288, %v3875, %v3874
      %v4121 = vsel %vm2290, %v3876, %v4120
      %v4122 = vsel %vm2292, %v3877, %v4121
      %v4123 = vsel %vm2294, %v3878, %v4122
      %v4124 = vsel %vm2296, %v3879, %v4123
      %v4125 = vsel %vm2298, %v3880, %v4124
      %v4126 = vsel %vm2300, %v3881, %v4125
      %v4127 = vsel %vm2290, %v3884, %v3883
      %v4128 = vsel %vm2292, %v3885, %v4127
      %v4129 = vsel %vm2294, %v3886, %v4128
      %v4130 = vsel %vm2296, %v3887, %v4129
      %v4131 = vsel %vm2298, %v3888, %v4130
      %v4132 = vsel %vm2300, %v3889, %v4131
      %v4133 = vsel %vm2288, %v3891, %v3890
      %v4134 = vsel %vm2290, %v3892, %v4133
      %v4135 = vsel %vm2292, %v3893, %v4134
      %v4136 = vsel %vm2294, %v3894, %v4135
      %v4137 = vsel %vm2296, %v3895, %v4136
      %v4138 = vsel %vm2298, %v3896, %v4137
      %v4139 = vsel %vm2300, %v3897, %v4138
      %v4140 = vsel %vm2290, %v3900, %v3899
      %v4141 = vsel %vm2292, %v3901, %v4140
      %v4142 = vsel %vm2294, %v3902, %v4141
      %v4143 = vsel %vm2296, %v3903, %v4142
      %v4144 = vsel %vm2298, %v3904, %v4143
      %v4145 = vsel %vm2300, %v3905, %v4144
      %v4146 = vsel %vm2288, %v3907, %v3906
      %v4147 = vsel %vm2290, %v3908, %v4146
      %v4148 = vsel %vm2292, %v3909, %v4147
      %v4149 = vsel %vm2294, %v3910, %v4148
      %v4150 = vsel %vm2296, %v3911, %v4149
      %v4151 = vsel %vm2298, %v3912, %v4150
      %v4152 = vsel %vm2300, %v3913, %v4151
      %v4153 = vsel %vm2290, %v3916, %v3915
      %v4154 = vsel %vm2292, %v3917, %v4153
      %v4155 = vsel %vm2294, %v3918, %v4154
      %v4156 = vsel %vm2296, %v3919, %v4155
      %v4157 = vsel %vm2298, %v3920, %v4156
      %v4158 = vsel %vm2300, %v3921, %v4157
      %v4159 = vsel %vm2288, %v3923, %v3922
      %v4160 = vsel %vm2290, %v3924, %v4159
      %v4161 = vsel %vm2292, %v3925, %v4160
      %v4162 = vsel %vm2294, %v3926, %v4161
      %v4163 = vsel %vm2296, %v3927, %v4162
      %v4164 = vsel %vm2298, %v3928, %v4163
      %v4165 = vsel %vm2300, %v3929, %v4164
      %v4166 = vsel %vm2290, %v3932, %v3931
      %v4167 = vsel %vm2292, %v3933, %v4166
      %v4168 = vsel %vm2294, %v3934, %v4167
      %v4169 = vsel %vm2296, %v3935, %v4168
      %v4170 = vsel %vm2298, %v3936, %v4169
      %v4171 = vsel %vm2300, %v3937, %v4170
      %v4172 = vsel %vm2288, %v3939, %v3938
      %v4173 = vsel %vm2290, %v3940, %v4172
      %v4174 = vsel %vm2292, %v3941, %v4173
      %v4175 = vsel %vm2294, %v3942, %v4174
      %v4176 = vsel %vm2296, %v3943, %v4175
      %v4177 = vsel %vm2298, %v3944, %v4176
      %v4178 = vsel %vm2300, %v3945, %v4177
      %v4179 = vsel %vm2290, %v3948, %v3947
      %v4180 = vsel %vm2292, %v3949, %v4179
      %v4181 = vsel %vm2294, %v3950, %v4180
      %v4182 = vsel %vm2296, %v3951, %v4181
      %v4183 = vsel %vm2298, %v3952, %v4182
      %v4184 = vsel %vm2300, %v3953, %v4183
      %v4185 = vsel %vm2288, %v3955, %v3954
      %v4186 = vsel %vm2290, %v3956, %v4185
      %v4187 = vsel %vm2292, %v3957, %v4186
      %v4188 = vsel %vm2294, %v3958, %v4187
      %v4189 = vsel %vm2296, %v3959, %v4188
      %v4190 = vsel %vm2298, %v3960, %v4189
      %v4191 = vsel %vm2300, %v3961, %v4190
      %v4192 = vsel %vm2290, %v3964, %v3963
      %v4193 = vsel %vm2292, %v3965, %v4192
      %v4194 = vsel %vm2294, %v3966, %v4193
      %v4195 = vsel %vm2296, %v3967, %v4194
      %v4196 = vsel %vm2298, %v3968, %v4195
      %v4197 = vsel %vm2300, %v3969, %v4196
      %v4198 = vsel %vm2288, %v3971, %v3970
      %v4199 = vsel %vm2290, %v3972, %v4198
      %v4200 = vsel %vm2292, %v3973, %v4199
      %v4201 = vsel %vm2294, %v3974, %v4200
      %v4202 = vsel %vm2296, %v3975, %v4201
      %v4203 = vsel %vm2298, %v3976, %v4202
      %v4204 = vsel %vm2300, %v3977, %v4203
      %v4205 = vsel %vm2290, %v3980, %v3979
      %v4206 = vsel %vm2292, %v3981, %v4205
      %v4207 = vsel %vm2294, %v3982, %v4206
      %v4208 = vsel %vm2296, %v3983, %v4207
      %v4209 = vsel %vm2298, %v3984, %v4208
      %v4210 = vsel %vm2300, %v3985, %v4209
      %v4211 = vsel %vm2288, %v3987, %v3986
      %v4212 = vsel %vm2290, %v3988, %v4211
      %v4213 = vsel %vm2292, %v3989, %v4212
      %v4214 = vsel %vm2294, %v3990, %v4213
      %v4215 = vsel %vm2296, %v3991, %v4214
      %v4216 = vsel %vm2298, %v3992, %v4215
      %v4217 = vsel %vm2300, %v3993, %v4216
      %v4218 = vsel %vm2290, %v3996, %v3995
      %v4219 = vsel %vm2292, %v3997, %v4218
      %v4220 = vsel %vm2294, %v3998, %v4219
      %v4221 = vsel %vm2296, %v3999, %v4220
      %v4222 = vsel %vm2298, %v4000, %v4221
      %v4223 = vsel %vm2300, %v4001, %v4222
      %v4224 = vsel %vm2288, %v4003, %v4002
      %v4225 = vsel %vm2290, %v4004, %v4224
      %v4226 = vsel %vm2292, %v4005, %v4225
      %v4227 = vsel %vm2294, %v4006, %v4226
      %v4228 = vsel %vm2296, %v4007, %v4227
      %v4229 = vsel %vm2298, %v4008, %v4228
      %v4230 = vsel %vm2300, %v4009, %v4229
      %v4231 = vsel %vm2290, %v4012, %v4011
      %v4232 = vsel %vm2292, %v4013, %v4231
      %v4233 = vsel %vm2294, %v4014, %v4232
      %v4234 = vsel %vm2296, %v4015, %v4233
      %v4235 = vsel %vm2298, %v4016, %v4234
      %v4236 = vsel %vm2300, %v4017, %v4235
      %v4237 = vsel %vm2288, %v4019, %v4018
      %v4238 = vsel %vm2290, %v4020, %v4237
      %v4239 = vsel %vm2292, %v4021, %v4238
      %v4240 = vsel %vm2294, %v4022, %v4239
      %v4241 = vsel %vm2296, %v4023, %v4240
      %v4242 = vsel %vm2298, %v4024, %v4241
      %v4243 = vsel %vm2300, %v4025, %v4242
      %v4244 = vsel %vm2290, %v4028, %v4027
      %v4245 = vsel %vm2292, %v4029, %v4244
      %v4246 = vsel %vm2294, %v4030, %v4245
      %v4247 = vsel %vm2296, %v4031, %v4246
      %v4248 = vsel %vm2298, %v4032, %v4247
      %v4249 = vsel %vm2300, %v4033, %v4248
      %v4250 = vsel %vm2288, %v4035, %v4034
      %v4251 = vsel %vm2290, %v4036, %v4250
      %v4252 = vsel %vm2292, %v4037, %v4251
      %v4253 = vsel %vm2294, %v4038, %v4252
      %v4254 = vsel %vm2296, %v4039, %v4253
      %v4255 = vsel %vm2298, %v4040, %v4254
      %v4256 = vsel %vm2300, %v4041, %v4255
      %v4257 = vsel %vm2290, %v4044, %v4043
      %v4258 = vsel %vm2292, %v4045, %v4257
      %v4259 = vsel %vm2294, %v4046, %v4258
      %v4260 = vsel %vm2296, %v4047, %v4259
      %v4261 = vsel %vm2298, %v4048, %v4260
      %v4262 = vsel %vm2300, %v4049, %v4261
      %v4263 = vsel %vm2288, %v4051, %v4050
      %v4264 = vsel %vm2290, %v4052, %v4263
      %v4265 = vsel %vm2292, %v4053, %v4264
      %v4266 = vsel %vm2294, %v4054, %v4265
      %v4267 = vsel %vm2296, %v4055, %v4266
      %v4268 = vsel %vm2298, %v4056, %v4267
      %v4269 = vsel %vm2300, %v4057, %v4268
      %v4270 = vsel %vm2290, %v4060, %v4059
      %v4271 = vsel %vm2292, %v4061, %v4270
      %v4272 = vsel %vm2294, %v4062, %v4271
      %v4273 = vsel %vm2296, %v4063, %v4272
      %v4274 = vsel %vm2298, %v4064, %v4273
      %v4275 = vsel %vm2300, %v4065, %v4274
      %v4276 = vsel %vm2288, %v4067, %v4066
      %v4277 = vsel %vm2290, %v4068, %v4276
      %v4278 = vsel %vm2292, %v4069, %v4277
      %v4279 = vsel %vm2294, %v4070, %v4278
      %v4280 = vsel %vm2296, %v4071, %v4279
      %v4281 = vsel %vm2298, %v4072, %v4280
      %v4282 = vsel %vm2300, %v4073, %v4281
      %4331 = vst.msk [vmem:[%s3224] sm:$0xfe] %vm3769, %v4080
      %4332 = vst.msk [vmem:[%s3224 + $0x8] sm:$0xff] %vm742, %v4087
      %4333 = vst.msk [vmem:[%s3224 + $0x10] sm:$0x1] %vm3772, %v3834
      %4334 = vst.msk [vmem:[%s3224 + $0x18] sm:$0xfe] %vm3769, %v4093
      %4335 = vst.msk [vmem:[%s3224 + $0x20] sm:$0xff] %vm742, %v4100
      %4336 = vst.msk [vmem:[%s3224 + $0x28] sm:$0x1] %vm3772, %v3850
      %4337 = vst.msk [vmem:[%s3224 + $0x30] sm:$0xfe] %vm3769, %v4106
      %4338 = vst.msk [vmem:[%s3224 + $0x38] sm:$0xff] %vm742, %v4113
      %4339 = vst.msk [vmem:[%s3224 + $0x40] sm:$0x1] %vm3772, %v3866
      %4340 = vst.msk [vmem:[%s3224 + $0x48] sm:$0xfe] %vm3769, %v4119
      %4341 = vst.msk [vmem:[%s3224 + $0x50] sm:$0xff] %vm742, %v4126
      %4342 = vst.msk [vmem:[%s3224 + $0x58] sm:$0x1] %vm3772, %v3882
      %4343 = vst.msk [vmem:[%s3224 + $0x60] sm:$0xfe] %vm3769, %v4132
      %4344 = vst.msk [vmem:[%s3224 + $0x68] sm:$0xff] %vm742, %v4139
      %4345 = vst.msk [vmem:[%s3224 + $0x70] sm:$0x1] %vm3772, %v3898
      %4346 = vst.msk [vmem:[%s3224 + $0x78] sm:$0xfe] %vm3769, %v4145
      %4347 = vst.msk [vmem:[%s3224 + $0x80] sm:$0xff] %vm742, %v4152
      %4348 = vst.msk [vmem:[%s3224 + $0x88] sm:$0x1] %vm3772, %v3914
      %4349 = vst.msk [vmem:[%s3224 + $0x90] sm:$0xfe] %vm3769, %v4158
      %4350 = vst.msk [vmem:[%s3224 + $0x98] sm:$0xff] %vm742, %v4165
      %4351 = vst.msk [vmem:[%s3224 + $0xa0] sm:$0x1] %vm3772, %v3930
      %4352 = vst.msk [vmem:[%s3224 + $0xa8] sm:$0xfe] %vm3769, %v4171
      %4353 = vst.msk [vmem:[%s3224 + $0xb0] sm:$0xff] %vm742, %v4178
      %4354 = vst.msk [vmem:[%s3224 + $0xb8] sm:$0x1] %vm3772, %v3946
      %4355 = vst.msk [vmem:[%s3224 + $0xc0] sm:$0xfe] %vm3769, %v4184
      %4356 = vst.msk [vmem:[%s3224 + $0xc8] sm:$0xff] %vm742, %v4191
      %4357 = vst.msk [vmem:[%s3224 + $0xd0] sm:$0x1] %vm3772, %v3962
      %4358 = vst.msk [vmem:[%s3224 + $0xd8] sm:$0xfe] %vm3769, %v4197
      %4359 = vst.msk [vmem:[%s3224 + $0xe0] sm:$0xff] %vm742, %v4204
      %4360 = vst.msk [vmem:[%s3224 + $0xe8] sm:$0x1] %vm3772, %v3978
      %4361 = vst.msk [vmem:[%s3224 + $0xf0] sm:$0xfe] %vm3769, %v4210
      %4362 = vst.msk [vmem:[%s3224 + $0xf8] sm:$0xff] %vm742, %v4217
      %4363 = vst.msk [vmem:[%s3224 + $0x100] sm:$0x1] %vm3772, %v3994
      %4364 = vst.msk [vmem:[%s3224 + $0x108] sm:$0xfe] %vm3769, %v4223
      %4365 = vst.msk [vmem:[%s3224 + $0x110] sm:$0xff] %vm742, %v4230
      %4366 = vst.msk [vmem:[%s3224 + $0x118] sm:$0x1] %vm3772, %v4010
      %4367 = vst.msk [vmem:[%s3224 + $0x120] sm:$0xfe] %vm3769, %v4236
      %4368 = vst.msk [vmem:[%s3224 + $0x128] sm:$0xff] %vm742, %v4243
      %4369 = vst.msk [vmem:[%s3224 + $0x130] sm:$0x1] %vm3772, %v4026
      %4370 = vst.msk [vmem:[%s3224 + $0x138] sm:$0xfe] %vm3769, %v4249
      %4371 = vst.msk [vmem:[%s3224 + $0x140] sm:$0xff] %vm742, %v4256
      %4372 = vst.msk [vmem:[%s3224 + $0x148] sm:$0x1] %vm3772, %v4042
      %4373 = vst.msk [vmem:[%s3224 + $0x150] sm:$0xfe] %vm3769, %v4262
      %4374 = vst.msk [vmem:[%s3224 + $0x158] sm:$0xff] %vm742, %v4269
      %4375 = vst.msk [vmem:[%s3224 + $0x160] sm:$0x1] %vm3772, %v4058
      %4376 = vst.msk [vmem:[%s3224 + $0x168] sm:$0xfe] %vm3769, %v4275
      %4377 = vst.msk [vmem:[%s3224 + $0x170] sm:$0xff] %vm742, %v4282
      %4378 = vst.msk [vmem:[%s3224 + $0x178] sm:$0x1] %vm3772, %v4074
      %v4379 = vld [vmem:[#allocation2] sm:$0xff]
      %v4380 = vld [vmem:[#allocation2 + $0x8] sm:$0xff]
      %v4381 = vld [vmem:[#allocation2 + $0x18] sm:$0xff]
      %v4382 = vld [vmem:[#allocation2 + $0x20] sm:$0xff]
      %v4383 = vld [vmem:[#allocation2 + $0x30] sm:$0xff]
      %v4384 = vld [vmem:[#allocation2 + $0x38] sm:$0xff]
      %v4385 = vld [vmem:[#allocation2 + $0x48] sm:$0xff]
      %v4386 = vld [vmem:[#allocation2 + $0x50] sm:$0xff]
      %v4387 = vld [vmem:[#allocation2 + $0x60] sm:$0xff]
      %v4388 = vld [vmem:[#allocation2 + $0x68] sm:$0xff]
      %v4389 = vld [vmem:[#allocation2 + $0x78] sm:$0xff]
      %v4390 = vld [vmem:[#allocation2 + $0x80] sm:$0xff]
      %v4391 = vld [vmem:[#allocation2 + $0x90] sm:$0xff]
      %v4392 = vld [vmem:[#allocation2 + $0x98] sm:$0xff]
      %v4393 = vld [vmem:[#allocation2 + $0xa8] sm:$0xff]
      %v4394 = vld [vmem:[#allocation2 + $0xb0] sm:$0xff]
      %v4395 = vld [vmem:[#allocation2 + $0xc0] sm:$0xff]
      %v4396 = vld [vmem:[#allocation2 + $0xc8] sm:$0xff]
      %v4397 = vld [vmem:[#allocation2 + $0xd8] sm:$0xff]
      %v4398 = vld [vmem:[#allocation2 + $0xe0] sm:$0xff]
      %v4399 = vld [vmem:[#allocation2 + $0xf0] sm:$0xff]
      %v4400 = vld [vmem:[#allocation2 + $0xf8] sm:$0xff]
      %v4401 = vld [vmem:[#allocation2 + $0x108] sm:$0xff]
      %v4402 = vld [vmem:[#allocation2 + $0x110] sm:$0xff]
      %v4403 = vld [vmem:[#allocation2 + $0x120] sm:$0xff]
      %v4404 = vld [vmem:[#allocation2 + $0x128] sm:$0xff]
      %v4405 = vld [vmem:[#allocation2 + $0x138] sm:$0xff]
      %v4406 = vld [vmem:[#allocation2 + $0x140] sm:$0xff]
      %v4407 = vld [vmem:[#allocation2 + $0x150] sm:$0xff]
      %v4408 = vld [vmem:[#allocation2 + $0x158] sm:$0xff]
      %v4409 = vld [vmem:[#allocation2 + $0x168] sm:$0xff]
      %v4410 = vld [vmem:[#allocation2 + $0x170] sm:$0xff]
      %v4411 = vpack.c.bf16 %v4380, %v4379
      %v4412 = vpack.c.bf16 %v4382, %v4381
      %v4413 = vpack.c.bf16 %v4384, %v4383
      %v4414 = vpack.c.bf16 %v4386, %v4385
      %v4415 = vpack.c.bf16 %v4388, %v4387
      %v4416 = vpack.c.bf16 %v4390, %v4389
      %v4417 = vpack.c.bf16 %v4392, %v4391
      %v4418 = vpack.c.bf16 %v4394, %v4393
      %v4419 = vpack.c.bf16 %v4396, %v4395
      %v4420 = vpack.c.bf16 %v4398, %v4397
      %v4421 = vpack.c.bf16 %v4400, %v4399
      %v4422 = vpack.c.bf16 %v4402, %v4401
      %v4423 = vpack.c.bf16 %v4404, %v4403
      %v4424 = vpack.c.bf16 %v4406, %v4405
      %v4425 = vpack.c.bf16 %v4408, %v4407
      %v4426 = vpack.c.bf16 %v4410, %v4409
      %v4427 = vld [vmem:[%s3] sm:$0xf]
      %v4428 = vld [vmem:[%s3 + $0x4] sm:$0xf]
      %v4429 = vld [vmem:[%s3 + $0x8] sm:$0xf]
      %v4430 = vld [vmem:[%s3 + $0xc] sm:$0xf]
      %v4431 = vld [vmem:[#allocation2 + $0x1] sm:$0xff]
      %v4432 = vld [vmem:[#allocation2 + $0x9] sm:$0xff]
      %v4433 = vld [vmem:[#allocation2 + $0x19] sm:$0xff]
      %v4434 = vld [vmem:[#allocation2 + $0x21] sm:$0xff]
      %v4435 = vld [vmem:[#allocation2 + $0x31] sm:$0xff]
      %v4436 = vld [vmem:[#allocation2 + $0x39] sm:$0xff]
      %v4437 = vld [vmem:[#allocation2 + $0x49] sm:$0xff]
      %v4438 = vld [vmem:[#allocation2 + $0x51] sm:$0xff]
      %v4439 = vld [vmem:[#allocation2 + $0x61] sm:$0xff]
      %v4440 = vld [vmem:[#allocation2 + $0x69] sm:$0xff]
      %v4441 = vld [vmem:[#allocation2 + $0x79] sm:$0xff]
      %v4442 = vld [vmem:[#allocation2 + $0x81] sm:$0xff]
      %v4443 = vld [vmem:[#allocation2 + $0x91] sm:$0xff]
      %v4444 = vld [vmem:[#allocation2 + $0x99] sm:$0xff]
      %v4445 = vld [vmem:[#allocation2 + $0xa9] sm:$0xff]
      %v4446 = vld [vmem:[#allocation2 + $0xb1] sm:$0xff]
      %v4447 = vld [vmem:[#allocation2 + $0xc1] sm:$0xff]
      %v4448 = vld [vmem:[#allocation2 + $0xc9] sm:$0xff]
      %v4449 = vld [vmem:[#allocation2 + $0xd9] sm:$0xff]
      %v4450 = vld [vmem:[#allocation2 + $0xe1] sm:$0xff]
      %v4451 = vld [vmem:[#allocation2 + $0xf1] sm:$0xff]
      %v4452 = vld [vmem:[#allocation2 + $0xf9] sm:$0xff]
      %v4453 = vld [vmem:[#allocation2 + $0x109] sm:$0xff]
      %v4454 = vld [vmem:[#allocation2 + $0x111] sm:$0xff]
      %v4455 = vld [vmem:[#allocation2 + $0x121] sm:$0xff]
      %v4456 = vld [vmem:[#allocation2 + $0x129] sm:$0xff]
      %v4457 = vld [vmem:[#allocation2 + $0x139] sm:$0xff]
      %v4458 = vld [vmem:[#allocation2 + $0x141] sm:$0xff]
      %v4459 = vld [vmem:[#allocation2 + $0x151] sm:$0xff]
      %v4460 = vld [vmem:[#allocation2 + $0x159] sm:$0xff]
      %v4461 = vld [vmem:[#allocation2 + $0x169] sm:$0xff]
      %v4462 = vld [vmem:[#allocation2 + $0x171] sm:$0xff]
      %v4463 = vpack.c.bf16 %v4432, %v4431
      %v4464 = vpack.c.bf16 %v4434, %v4433
      %v4465 = vpack.c.bf16 %v4436, %v4435
      %v4466 = vpack.c.bf16 %v4438, %v4437
      %v4467 = vpack.c.bf16 %v4440, %v4439
      %v4468 = vpack.c.bf16 %v4442, %v4441
      %v4469 = vpack.c.bf16 %v4444, %v4443
      %v4470 = vpack.c.bf16 %v4446, %v4445
      %v4471 = vpack.c.bf16 %v4448, %v4447
      %v4472 = vpack.c.bf16 %v4450, %v4449
      %v4473 = vpack.c.bf16 %v4452, %v4451
      %v4474 = vpack.c.bf16 %v4454, %v4453
      %v4475 = vpack.c.bf16 %v4456, %v4455
      %v4476 = vpack.c.bf16 %v4458, %v4457
      %v4477 = vpack.c.bf16 %v4460, %v4459
      %v4478 = vpack.c.bf16 %v4462, %v4461
      %s4479 = scalar_lea.vmem %s3, 16
      %v4480 = vld [vmem:[%s4479] sm:$0xf]
      %v4481 = vld [vmem:[%s4479 + $0x4] sm:$0xf]
      %v4482 = vld [vmem:[%s4479 + $0x8] sm:$0xf]
      %v4483 = vld [vmem:[%s4479 + $0xc] sm:$0xf]
      %v4488 = vunpack.c.l.b16 %v4480
      %v4489 = vunpack.c.l.b16 %v4481
      %v4490 = vunpack.c.l.b16 %v4482
      %v4491 = vunpack.c.l.b16 %v4483
      %v4492 = vpack.c.b16 %v4489, %v4488
      %v4493 = vpack.c.b16 %v4491, %v4490
      %v4497 = vsel %vm386, %v4463, 0
      %v4500 = vsel %vm386, %v4464, 0
      %v4503 = vsel %vm386, %v4465, 0
      %v4506 = vsel %vm386, %v4466, 0
      %v4509 = vsel %vm386, %v4467, 0
      %v4512 = vsel %vm386, %v4468, 0
      %v4515 = vsel %vm386, %v4469, 0
      %v4518 = vsel %vm386, %v4470, 0
      %v4521 = vsel %vm386, %v4471, 0
      %v4524 = vsel %vm386, %v4472, 0
      %v4527 = vsel %vm386, %v4473, 0
      %v4530 = vsel %vm386, %v4474, 0
      %v4533 = vsel %vm386, %v4475, 0
      %v4536 = vsel %vm386, %v4476, 0
      %v4539 = vsel %vm386, %v4477, 0
      %v4542 = vsel %vm386, %v4478, 0
      %4544 = vmatpush.bf16.msra.mxu0 0
      %4545 = vmatpush.bf16.msra.mxu0 0
      %4546 = vmatpush.bf16.msra.mxu0 0
      %4547 = vmatpush.bf16.msra.mxu0 0
      %4548 = vmatpush.bf16.msra.mxu0 0
      %4549 = vmatpush.bf16.msra.mxu0 0
      %4550 = vmatpush.bf16.msra.mxu0 %v4493
      %4551 = vmatpush.bf16.msra.mxu0 %v4492
      %4552 = vmatmul.bf16.gmra.mxu0 %v4497
      %v4553 = vpop.f32.mrf.mxu0
      %v4554 = vadd.f32 0.0, %v4553
      %v4555 = vpop.f32.mrf.mxu0
      %v4556 = vadd.f32 0.0, %v4555
      %4557 = vmatmul.bf16.gmra.mxu0 %v4500
      %v4558 = vpop.f32.mrf.mxu0
      %v4559 = vadd.f32 0.0, %v4558
      %v4560 = vpop.f32.mrf.mxu0
      %v4561 = vadd.f32 0.0, %v4560
      %4562 = vmatmul.bf16.gmra.mxu0 %v4503
      %v4563 = vpop.f32.mrf.mxu0
      %v4564 = vadd.f32 0.0, %v4563
      %v4565 = vpop.f32.mrf.mxu0
      %v4566 = vadd.f32 0.0, %v4565
      %4567 = vmatmul.bf16.gmra.mxu0 %v4506
      %v4568 = vpop.f32.mrf.mxu0
      %v4569 = vadd.f32 0.0, %v4568
      %v4570 = vpop.f32.mrf.mxu0
      %v4571 = vadd.f32 0.0, %v4570
      %4572 = vmatmul.bf16.gmra.mxu0 %v4509
      %v4573 = vpop.f32.mrf.mxu0
      %v4574 = vadd.f32 0.0, %v4573
      %v4575 = vpop.f32.mrf.mxu0
      %v4576 = vadd.f32 0.0, %v4575
      %4577 = vmatmul.bf16.gmra.mxu0 %v4512
      %v4578 = vpop.f32.mrf.mxu0
      %v4579 = vadd.f32 0.0, %v4578
      %v4580 = vpop.f32.mrf.mxu0
      %v4581 = vadd.f32 0.0, %v4580
      %4582 = vmatmul.bf16.gmra.mxu0 %v4515
      %v4583 = vpop.f32.mrf.mxu0
      %v4584 = vadd.f32 0.0, %v4583
      %v4585 = vpop.f32.mrf.mxu0
      %v4586 = vadd.f32 0.0, %v4585
      %4587 = vmatmul.bf16.gmra.mxu0 %v4518
      %v4588 = vpop.f32.mrf.mxu0
      %v4589 = vadd.f32 0.0, %v4588
      %v4590 = vpop.f32.mrf.mxu0
      %v4591 = vadd.f32 0.0, %v4590
      %4592 = vmatmul.bf16.gmra.mxu0 %v4521
      %v4593 = vpop.f32.mrf.mxu0
      %v4594 = vadd.f32 0.0, %v4593
      %v4595 = vpop.f32.mrf.mxu0
      %v4596 = vadd.f32 0.0, %v4595
      %4597 = vmatmul.bf16.gmra.mxu0 %v4524
      %v4598 = vpop.f32.mrf.mxu0
      %v4599 = vadd.f32 0.0, %v4598
      %v4600 = vpop.f32.mrf.mxu0
      %v4601 = vadd.f32 0.0, %v4600
      %4602 = vmatmul.bf16.gmra.mxu0 %v4527
      %v4603 = vpop.f32.mrf.mxu0
      %v4604 = vadd.f32 0.0, %v4603
      %v4605 = vpop.f32.mrf.mxu0
      %v4606 = vadd.f32 0.0, %v4605
      %4607 = vmatmul.bf16.gmra.mxu0 %v4530
      %v4608 = vpop.f32.mrf.mxu0
      %v4609 = vadd.f32 0.0, %v4608
      %v4610 = vpop.f32.mrf.mxu0
      %v4611 = vadd.f32 0.0, %v4610
      %4612 = vmatmul.bf16.gmra.mxu0 %v4533
      %v4613 = vpop.f32.mrf.mxu0
      %v4614 = vadd.f32 0.0, %v4613
      %v4615 = vpop.f32.mrf.mxu0
      %v4616 = vadd.f32 0.0, %v4615
      %4617 = vmatmul.bf16.gmra.mxu0 %v4536
      %v4618 = vpop.f32.mrf.mxu0
      %v4619 = vadd.f32 0.0, %v4618
      %v4620 = vpop.f32.mrf.mxu0
      %v4621 = vadd.f32 0.0, %v4620
      %4622 = vmatmul.bf16.gmra.mxu0 %v4539
      %v4623 = vpop.f32.mrf.mxu0
      %v4624 = vadd.f32 0.0, %v4623
      %v4625 = vpop.f32.mrf.mxu0
      %v4626 = vadd.f32 0.0, %v4625
      %4627 = vmatmul.bf16.gmra.mxu0 %v4542
      %v4628 = vpop.f32.mrf.mxu0
      %v4629 = vadd.f32 0.0, %v4628
      %v4630 = vpop.f32.mrf.mxu0
      %v4631 = vadd.f32 0.0, %v4630
      %4632 = vdwg.mxu0
      %v4637 = vunpack.c.l.b16 %v4427
      %v4638 = vunpack.c.l.b16 %v4428
      %v4639 = vunpack.c.l.b16 %v4429
      %v4640 = vunpack.c.l.b16 %v4430
      %v4641 = vpack.c.b16 %v4638, %v4637
      %v4642 = vpack.c.b16 %v4640, %v4639
      %v4646 = vsel %vm386, %v4411, 0
      %v4649 = vsel %vm386, %v4412, 0
      %v4652 = vsel %vm386, %v4413, 0
      %v4655 = vsel %vm386, %v4414, 0
      %v4658 = vsel %vm386, %v4415, 0
      %v4661 = vsel %vm386, %v4416, 0
      %v4664 = vsel %vm386, %v4417, 0
      %v4667 = vsel %vm386, %v4418, 0
      %v4670 = vsel %vm386, %v4419, 0
      %v4673 = vsel %vm386, %v4420, 0
      %v4676 = vsel %vm386, %v4421, 0
      %v4679 = vsel %vm386, %v4422, 0
      %v4682 = vsel %vm386, %v4423, 0
      %v4685 = vsel %vm386, %v4424, 0
      %v4688 = vsel %vm386, %v4425, 0
      %v4691 = vsel %vm386, %v4426, 0
      %4693 = vmatpush.bf16.msra.mxu0 0
      %4694 = vmatpush.bf16.msra.mxu0 0
      %4695 = vmatpush.bf16.msra.mxu0 0
      %4696 = vmatpush.bf16.msra.mxu0 0
      %4697 = vmatpush.bf16.msra.mxu0 0
      %4698 = vmatpush.bf16.msra.mxu0 0
      %4699 = vmatpush.bf16.msra.mxu0 %v4642
      %4700 = vmatpush.bf16.msra.mxu0 %v4641
      %4701 = vmatmul.bf16.gmra.mxu0 %v4646
      %v4702 = vpop.f32.mrf.mxu0
      %v4703 = vadd.f32 %v4554, %v4702
      %v4704 = vpop.f32.mrf.mxu0
      %v4705 = vadd.f32 %v4556, %v4704
      %4706 = vmatmul.bf16.gmra.mxu0 %v4649
      %v4707 = vpop.f32.mrf.mxu0
      %v4708 = vadd.f32 %v4559, %v4707
      %v4709 = vpop.f32.mrf.mxu0
      %v4710 = vadd.f32 %v4561, %v4709
      %4711 = vmatmul.bf16.gmra.mxu0 %v4652
      %v4712 = vpop.f32.mrf.mxu0
      %v4713 = vadd.f32 %v4564, %v4712
      %v4714 = vpop.f32.mrf.mxu0
      %v4715 = vadd.f32 %v4566, %v4714
      %4716 = vmatmul.bf16.gmra.mxu0 %v4655
      %v4717 = vpop.f32.mrf.mxu0
      %v4718 = vadd.f32 %v4569, %v4717
      %v4719 = vpop.f32.mrf.mxu0
      %v4720 = vadd.f32 %v4571, %v4719
      %4721 = vmatmul.bf16.gmra.mxu0 %v4658
      %v4722 = vpop.f32.mrf.mxu0
      %v4723 = vadd.f32 %v4574, %v4722
      %v4724 = vpop.f32.mrf.mxu0
      %v4725 = vadd.f32 %v4576, %v4724
      %4726 = vmatmul.bf16.gmra.mxu0 %v4661
      %v4727 = vpop.f32.mrf.mxu0
      %v4728 = vadd.f32 %v4579, %v4727
      %v4729 = vpop.f32.mrf.mxu0
      %v4730 = vadd.f32 %v4581, %v4729
      %4731 = vmatmul.bf16.gmra.mxu0 %v4664
      %v4732 = vpop.f32.mrf.mxu0
      %v4733 = vadd.f32 %v4584, %v4732
      %v4734 = vpop.f32.mrf.mxu0
      %v4735 = vadd.f32 %v4586, %v4734
      %4736 = vmatmul.bf16.gmra.mxu0 %v4667
      %v4737 = vpop.f32.mrf.mxu0
      %v4738 = vadd.f32 %v4589, %v4737
      %v4739 = vpop.f32.mrf.mxu0
      %v4740 = vadd.f32 %v4591, %v4739
      %4741 = vmatmul.bf16.gmra.mxu0 %v4670
      %v4742 = vpop.f32.mrf.mxu0
      %v4743 = vadd.f32 %v4594, %v4742
      %v4744 = vpop.f32.mrf.mxu0
      %v4745 = vadd.f32 %v4596, %v4744
      %4746 = vmatmul.bf16.gmra.mxu0 %v4673
      %v4747 = vpop.f32.mrf.mxu0
      %v4748 = vadd.f32 %v4599, %v4747
      %v4749 = vpop.f32.mrf.mxu0
      %v4750 = vadd.f32 %v4601, %v4749
      %4751 = vmatmul.bf16.gmra.mxu0 %v4676
      %v4752 = vpop.f32.mrf.mxu0
      %v4753 = vadd.f32 %v4604, %v4752
      %v4754 = vpop.f32.mrf.mxu0
      %v4755 = vadd.f32 %v4606, %v4754
      %4756 = vmatmul.bf16.gmra.mxu0 %v4679
      %v4757 = vpop.f32.mrf.mxu0
      %v4758 = vadd.f32 %v4609, %v4757
      %v4759 = vpop.f32.mrf.mxu0
      %v4760 = vadd.f32 %v4611, %v4759
      %4761 = vmatmul.bf16.gmra.mxu0 %v4682
      %v4762 = vpop.f32.mrf.mxu0
      %v4763 = vadd.f32 %v4614, %v4762
      %v4764 = vpop.f32.mrf.mxu0
      %v4765 = vadd.f32 %v4616, %v4764
      %4766 = vmatmul.bf16.gmra.mxu0 %v4685
      %v4767 = vpop.f32.mrf.mxu0
      %v4768 = vadd.f32 %v4619, %v4767
      %v4769 = vpop.f32.mrf.mxu0
      %v4770 = vadd.f32 %v4621, %v4769
      %4771 = vmatmul.bf16.gmra.mxu0 %v4688
      %v4772 = vpop.f32.mrf.mxu0
      %v4773 = vadd.f32 %v4624, %v4772
      %v4774 = vpop.f32.mrf.mxu0
      %v4775 = vadd.f32 %v4626, %v4774
      %4776 = vmatmul.bf16.gmra.mxu0 %v4691
      %v4777 = vpop.f32.mrf.mxu0
      %v4778 = vadd.f32 %v4629, %v4777
      %v4779 = vpop.f32.mrf.mxu0
      %v4780 = vadd.f32 %v4631, %v4779
      %4781 = vdwg.mxu0
      %v4782 = vld [vmem:[#allocation3] sm:$0xff]
      %v4783 = vld [vmem:[#allocation3 + $0x8] sm:$0xff]
      %v4784 = vld [vmem:[#allocation3 + $0x18] sm:$0xff]
      %v4785 = vld [vmem:[#allocation3 + $0x20] sm:$0xff]
      %v4786 = vld [vmem:[#allocation3 + $0x30] sm:$0xff]
      %v4787 = vld [vmem:[#allocation3 + $0x38] sm:$0xff]
      %v4788 = vld [vmem:[#allocation3 + $0x48] sm:$0xff]
      %v4789 = vld [vmem:[#allocation3 + $0x50] sm:$0xff]
      %v4790 = vld [vmem:[#allocation3 + $0x60] sm:$0xff]
      %v4791 = vld [vmem:[#allocation3 + $0x68] sm:$0xff]
      %v4792 = vld [vmem:[#allocation3 + $0x78] sm:$0xff]
      %v4793 = vld [vmem:[#allocation3 + $0x80] sm:$0xff]
      %v4794 = vld [vmem:[#allocation3 + $0x90] sm:$0xff]
      %v4795 = vld [vmem:[#allocation3 + $0x98] sm:$0xff]
      %v4796 = vld [vmem:[#allocation3 + $0xa8] sm:$0xff]
      %v4797 = vld [vmem:[#allocation3 + $0xb0] sm:$0xff]
      %v4798 = vld [vmem:[#allocation3 + $0xc0] sm:$0xff]
      %v4799 = vld [vmem:[#allocation3 + $0xc8] sm:$0xff]
      %v4800 = vld [vmem:[#allocation3 + $0xd8] sm:$0xff]
      %v4801 = vld [vmem:[#allocation3 + $0xe0] sm:$0xff]
      %v4802 = vld [vmem:[#allocation3 + $0xf0] sm:$0xff]
      %v4803 = vld [vmem:[#allocation3 + $0xf8] sm:$0xff]
      %v4804 = vld [vmem:[#allocation3 + $0x108] sm:$0xff]
      %v4805 = vld [vmem:[#allocation3 + $0x110] sm:$0xff]
      %v4806 = vld [vmem:[#allocation3 + $0x120] sm:$0xff]
      %v4807 = vld [vmem:[#allocation3 + $0x128] sm:$0xff]
      %v4808 = vld [vmem:[#allocation3 + $0x138] sm:$0xff]
      %v4809 = vld [vmem:[#allocation3 + $0x140] sm:$0xff]
      %v4810 = vld [vmem:[#allocation3 + $0x150] sm:$0xff]
      %v4811 = vld [vmem:[#allocation3 + $0x158] sm:$0xff]
      %v4812 = vld [vmem:[#allocation3 + $0x168] sm:$0xff]
      %v4813 = vld [vmem:[#allocation3 + $0x170] sm:$0xff]
      %v4814 = vpack.c.bf16 %v4783, %v4782
      %v4815 = vpack.c.bf16 %v4785, %v4784
      %v4816 = vpack.c.bf16 %v4787, %v4786
      %v4817 = vpack.c.bf16 %v4789, %v4788
      %v4818 = vpack.c.bf16 %v4791, %v4790
      %v4819 = vpack.c.bf16 %v4793, %v4792
      %v4820 = vpack.c.bf16 %v4795, %v4794
      %v4821 = vpack.c.bf16 %v4797, %v4796
      %v4822 = vpack.c.bf16 %v4799, %v4798
      %v4823 = vpack.c.bf16 %v4801, %v4800
      %v4824 = vpack.c.bf16 %v4803, %v4802
      %v4825 = vpack.c.bf16 %v4805, %v4804
      %v4826 = vpack.c.bf16 %v4807, %v4806
      %v4827 = vpack.c.bf16 %v4809, %v4808
      %v4828 = vpack.c.bf16 %v4811, %v4810
      %v4829 = vpack.c.bf16 %v4813, %v4812
      %s4830 = scalar_lea.vmem %s3, 32
      %v4831 = vld [vmem:[%s4830] sm:$0xf]
      %v4832 = vld [vmem:[%s4830 + $0x4] sm:$0xf]
      %v4833 = vld [vmem:[%s4830 + $0x8] sm:$0xf]
      %v4834 = vld [vmem:[%s4830 + $0xc] sm:$0xf]
      %v4839 = vunpack.c.l.b16 %v4831
      %v4840 = vunpack.c.l.b16 %v4832
      %v4841 = vunpack.c.l.b16 %v4833
      %v4842 = vunpack.c.l.b16 %v4834
      %v4843 = vpack.c.b16 %v4840, %v4839
      %v4844 = vpack.c.b16 %v4842, %v4841
      %v4848 = vsel %vm386, %v4814, 0
      %v4851 = vsel %vm386, %v4815, 0
      %v4854 = vsel %vm386, %v4816, 0
      %v4857 = vsel %vm386, %v4817, 0
      %v4860 = vsel %vm386, %v4818, 0
      %v4863 = vsel %vm386, %v4819, 0
      %v4866 = vsel %vm386, %v4820, 0
      %v4869 = vsel %vm386, %v4821, 0
      %v4872 = vsel %vm386, %v4822, 0
      %v4875 = vsel %vm386, %v4823, 0
      %v4878 = vsel %vm386, %v4824, 0
      %v4881 = vsel %vm386, %v4825, 0
      %v4884 = vsel %vm386, %v4826, 0
      %v4887 = vsel %vm386, %v4827, 0
      %v4890 = vsel %vm386, %v4828, 0
      %v4893 = vsel %vm386, %v4829, 0
      %4895 = vmatpush.bf16.msra.mxu0 0
      %4896 = vmatpush.bf16.msra.mxu0 0
      %4897 = vmatpush.bf16.msra.mxu0 0
      %4898 = vmatpush.bf16.msra.mxu0 0
      %4899 = vmatpush.bf16.msra.mxu0 0
      %4900 = vmatpush.bf16.msra.mxu0 0
      %4901 = vmatpush.bf16.msra.mxu0 %v4844
      %4902 = vmatpush.bf16.msra.mxu0 %v4843
      %4903 = vmatmul.bf16.gmra.mxu0 %v4848
      %v4904 = vpop.f32.mrf.mxu0
      %v4905 = vadd.f32 0.0, %v4904
      %v4906 = vpop.f32.mrf.mxu0
      %v4907 = vadd.f32 0.0, %v4906
      %4908 = vmatmul.bf16.gmra.mxu0 %v4851
      %v4909 = vpop.f32.mrf.mxu0
      %v4910 = vadd.f32 0.0, %v4909
      %v4911 = vpop.f32.mrf.mxu0
      %v4912 = vadd.f32 0.0, %v4911
      %4913 = vmatmul.bf16.gmra.mxu0 %v4854
      %v4914 = vpop.f32.mrf.mxu0
      %v4915 = vadd.f32 0.0, %v4914
      %v4916 = vpop.f32.mrf.mxu0
      %v4917 = vadd.f32 0.0, %v4916
      %4918 = vmatmul.bf16.gmra.mxu0 %v4857
      %v4919 = vpop.f32.mrf.mxu0
      %v4920 = vadd.f32 0.0, %v4919
      %v4921 = vpop.f32.mrf.mxu0
      %v4922 = vadd.f32 0.0, %v4921
      %4923 = vmatmul.bf16.gmra.mxu0 %v4860
      %v4924 = vpop.f32.mrf.mxu0
      %v4925 = vadd.f32 0.0, %v4924
      %v4926 = vpop.f32.mrf.mxu0
      %v4927 = vadd.f32 0.0, %v4926
      %4928 = vmatmul.bf16.gmra.mxu0 %v4863
      %v4929 = vpop.f32.mrf.mxu0
      %v4930 = vadd.f32 0.0, %v4929
      %v4931 = vpop.f32.mrf.mxu0
      %v4932 = vadd.f32 0.0, %v4931
      %4933 = vmatmul.bf16.gmra.mxu0 %v4866
      %v4934 = vpop.f32.mrf.mxu0
      %v4935 = vadd.f32 0.0, %v4934
      %v4936 = vpop.f32.mrf.mxu0
      %v4937 = vadd.f32 0.0, %v4936
      %4938 = vmatmul.bf16.gmra.mxu0 %v4869
      %v4939 = vpop.f32.mrf.mxu0
      %v4940 = vadd.f32 0.0, %v4939
      %v4941 = vpop.f32.mrf.mxu0
      %v4942 = vadd.f32 0.0, %v4941
      %4943 = vmatmul.bf16.gmra.mxu0 %v4872
      %v4944 = vpop.f32.mrf.mxu0
      %v4945 = vadd.f32 0.0, %v4944
      %v4946 = vpop.f32.mrf.mxu0
      %v4947 = vadd.f32 0.0, %v4946
      %4948 = vmatmul.bf16.gmra.mxu0 %v4875
      %v4949 = vpop.f32.mrf.mxu0
      %v4950 = vadd.f32 0.0, %v4949
      %v4951 = vpop.f32.mrf.mxu0
      %v4952 = vadd.f32 0.0, %v4951
      %4953 = vmatmul.bf16.gmra.mxu0 %v4878
      %v4954 = vpop.f32.mrf.mxu0
      %v4955 = vadd.f32 0.0, %v4954
      %v4956 = vpop.f32.mrf.mxu0
      %v4957 = vadd.f32 0.0, %v4956
      %4958 = vmatmul.bf16.gmra.mxu0 %v4881
      %v4959 = vpop.f32.mrf.mxu0
      %v4960 = vadd.f32 0.0, %v4959
      %v4961 = vpop.f32.mrf.mxu0
      %v4962 = vadd.f32 0.0, %v4961
      %4963 = vmatmul.bf16.gmra.mxu0 %v4884
      %v4964 = vpop.f32.mrf.mxu0
      %v4965 = vadd.f32 0.0, %v4964
      %v4966 = vpop.f32.mrf.mxu0
      %v4967 = vadd.f32 0.0, %v4966
      %4968 = vmatmul.bf16.gmra.mxu0 %v4887
      %v4969 = vpop.f32.mrf.mxu0
      %v4970 = vadd.f32 0.0, %v4969
      %v4971 = vpop.f32.mrf.mxu0
      %v4972 = vadd.f32 0.0, %v4971
      %4973 = vmatmul.bf16.gmra.mxu0 %v4890
      %v4974 = vpop.f32.mrf.mxu0
      %v4975 = vadd.f32 0.0, %v4974
      %v4976 = vpop.f32.mrf.mxu0
      %v4977 = vadd.f32 0.0, %v4976
      %4978 = vmatmul.bf16.gmra.mxu0 %v4893
      %v4979 = vpop.f32.mrf.mxu0
      %v4980 = vadd.f32 0.0, %v4979
      %v4981 = vpop.f32.mrf.mxu0
      %v4982 = vadd.f32 0.0, %v4981
      %4983 = vdwg.mxu0
      %v4984 = vadd.f32 %v4703, %v4905
      %v4985 = vadd.f32 %v4705, %v4907
      %v4986 = vadd.f32 %v4708, %v4910
      %v4987 = vadd.f32 %v4710, %v4912
      %v4988 = vadd.f32 %v4713, %v4915
      %v4989 = vadd.f32 %v4715, %v4917
      %v4990 = vadd.f32 %v4718, %v4920
      %v4991 = vadd.f32 %v4720, %v4922
      %v4992 = vadd.f32 %v4723, %v4925
      %v4993 = vadd.f32 %v4725, %v4927
      %v4994 = vadd.f32 %v4728, %v4930
      %v4995 = vadd.f32 %v4730, %v4932
      %v4996 = vadd.f32 %v4733, %v4935
      %v4997 = vadd.f32 %v4735, %v4937
      %v4998 = vadd.f32 %v4738, %v4940
      %v4999 = vadd.f32 %v4740, %v4942
      %v5000 = vadd.f32 %v4743, %v4945
      %v5001 = vadd.f32 %v4745, %v4947
      %v5002 = vadd.f32 %v4748, %v4950
      %v5003 = vadd.f32 %v4750, %v4952
      %v5004 = vadd.f32 %v4753, %v4955
      %v5005 = vadd.f32 %v4755, %v4957
      %v5006 = vadd.f32 %v4758, %v4960
      %v5007 = vadd.f32 %v4760, %v4962
      %v5008 = vadd.f32 %v4763, %v4965
      %v5009 = vadd.f32 %v4765, %v4967
      %v5010 = vadd.f32 %v4768, %v4970
      %v5011 = vadd.f32 %v4770, %v4972
      %v5012 = vadd.f32 %v4773, %v4975
      %v5013 = vadd.f32 %v4775, %v4977
      %v5014 = vadd.f32 %v4778, %v4980
      %v5015 = vadd.f32 %v4780, %v4982
      %v5016 = vld [vmem:[#allocation3 + $0x1] sm:$0xff]
      %v5017 = vld [vmem:[#allocation3 + $0x9] sm:$0xff]
      %v5018 = vld [vmem:[#allocation3 + $0x19] sm:$0xff]
      %v5019 = vld [vmem:[#allocation3 + $0x21] sm:$0xff]
      %v5020 = vld [vmem:[#allocation3 + $0x31] sm:$0xff]
      %v5021 = vld [vmem:[#allocation3 + $0x39] sm:$0xff]
      %v5022 = vld [vmem:[#allocation3 + $0x49] sm:$0xff]
      %v5023 = vld [vmem:[#allocation3 + $0x51] sm:$0xff]
      %v5024 = vld [vmem:[#allocation3 + $0x61] sm:$0xff]
      %v5025 = vld [vmem:[#allocation3 + $0x69] sm:$0xff]
      %v5026 = vld [vmem:[#allocation3 + $0x79] sm:$0xff]
      %v5027 = vld [vmem:[#allocation3 + $0x81] sm:$0xff]
      %v5028 = vld [vmem:[#allocation3 + $0x91] sm:$0xff]
      %v5029 = vld [vmem:[#allocation3 + $0x99] sm:$0xff]
      %v5030 = vld [vmem:[#allocation3 + $0xa9] sm:$0xff]
      %v5031 = vld [vmem:[#allocation3 + $0xb1] sm:$0xff]
      %v5032 = vld [vmem:[#allocation3 + $0xc1] sm:$0xff]
      %v5033 = vld [vmem:[#allocation3 + $0xc9] sm:$0xff]
      %v5034 = vld [vmem:[#allocation3 + $0xd9] sm:$0xff]
      %v5035 = vld [vmem:[#allocation3 + $0xe1] sm:$0xff]
      %v5036 = vld [vmem:[#allocation3 + $0xf1] sm:$0xff]
      %v5037 = vld [vmem:[#allocation3 + $0xf9] sm:$0xff]
      %v5038 = vld [vmem:[#allocation3 + $0x109] sm:$0xff]
      %v5039 = vld [vmem:[#allocation3 + $0x111] sm:$0xff]
      %v5040 = vld [vmem:[#allocation3 + $0x121] sm:$0xff]
      %v5041 = vld [vmem:[#allocation3 + $0x129] sm:$0xff]
      %v5042 = vld [vmem:[#allocation3 + $0x139] sm:$0xff]
      %v5043 = vld [vmem:[#allocation3 + $0x141] sm:$0xff]
      %v5044 = vld [vmem:[#allocation3 + $0x151] sm:$0xff]
      %v5045 = vld [vmem:[#allocation3 + $0x159] sm:$0xff]
      %v5046 = vld [vmem:[#allocation3 + $0x169] sm:$0xff]
      %v5047 = vld [vmem:[#allocation3 + $0x171] sm:$0xff]
      %v5048 = vpack.c.bf16 %v5017, %v5016
      %v5049 = vpack.c.bf16 %v5019, %v5018
      %v5050 = vpack.c.bf16 %v5021, %v5020
      %v5051 = vpack.c.bf16 %v5023, %v5022
      %v5052 = vpack.c.bf16 %v5025, %v5024
      %v5053 = vpack.c.bf16 %v5027, %v5026
      %v5054 = vpack.c.bf16 %v5029, %v5028
      %v5055 = vpack.c.bf16 %v5031, %v5030
      %v5056 = vpack.c.bf16 %v5033, %v5032
      %v5057 = vpack.c.bf16 %v5035, %v5034
      %v5058 = vpack.c.bf16 %v5037, %v5036
      %v5059 = vpack.c.bf16 %v5039, %v5038
      %v5060 = vpack.c.bf16 %v5041, %v5040
      %v5061 = vpack.c.bf16 %v5043, %v5042
      %v5062 = vpack.c.bf16 %v5045, %v5044
      %v5063 = vpack.c.bf16 %v5047, %v5046
      %s5064 = scalar_lea.vmem %s3, 48
      %v5065 = vld [vmem:[%s5064] sm:$0xf]
      %v5066 = vld [vmem:[%s5064 + $0x4] sm:$0xf]
      %v5067 = vld [vmem:[%s5064 + $0x8] sm:$0xf]
      %v5068 = vld [vmem:[%s5064 + $0xc] sm:$0xf]
      %v5073 = vunpack.c.l.b16 %v5065
      %v5074 = vunpack.c.l.b16 %v5066
      %v5075 = vunpack.c.l.b16 %v5067
      %v5076 = vunpack.c.l.b16 %v5068
      %v5077 = vpack.c.b16 %v5074, %v5073
      %v5078 = vpack.c.b16 %v5076, %v5075
      %v5082 = vsel %vm386, %v5048, 0
      %v5085 = vsel %vm386, %v5049, 0
      %v5088 = vsel %vm386, %v5050, 0
      %v5091 = vsel %vm386, %v5051, 0
      %v5094 = vsel %vm386, %v5052, 0
      %v5097 = vsel %vm386, %v5053, 0
      %v5100 = vsel %vm386, %v5054, 0
      %v5103 = vsel %vm386, %v5055, 0
      %v5106 = vsel %vm386, %v5056, 0
      %v5109 = vsel %vm386, %v5057, 0
      %v5112 = vsel %vm386, %v5058, 0
      %v5115 = vsel %vm386, %v5059, 0
      %v5118 = vsel %vm386, %v5060, 0
      %v5121 = vsel %vm386, %v5061, 0
      %v5124 = vsel %vm386, %v5062, 0
      %v5127 = vsel %vm386, %v5063, 0
      %5129 = vmatpush.bf16.msra.mxu0 0
      %5130 = vmatpush.bf16.msra.mxu0 0
      %5131 = vmatpush.bf16.msra.mxu0 0
      %5132 = vmatpush.bf16.msra.mxu0 0
      %5133 = vmatpush.bf16.msra.mxu0 0
      %5134 = vmatpush.bf16.msra.mxu0 0
      %5135 = vmatpush.bf16.msra.mxu0 %v5078
      %5136 = vmatpush.bf16.msra.mxu0 %v5077
      %5137 = vmatmul.bf16.gmra.mxu0 %v5082
      %v5138 = vpop.f32.mrf.mxu0
      %v5139 = vadd.f32 0.0, %v5138
      %v5140 = vpop.f32.mrf.mxu0
      %v5141 = vadd.f32 0.0, %v5140
      %5142 = vmatmul.bf16.gmra.mxu0 %v5085
      %v5143 = vpop.f32.mrf.mxu0
      %v5144 = vadd.f32 0.0, %v5143
      %v5145 = vpop.f32.mrf.mxu0
      %v5146 = vadd.f32 0.0, %v5145
      %5147 = vmatmul.bf16.gmra.mxu0 %v5088
      %v5148 = vpop.f32.mrf.mxu0
      %v5149 = vadd.f32 0.0, %v5148
      %v5150 = vpop.f32.mrf.mxu0
      %v5151 = vadd.f32 0.0, %v5150
      %5152 = vmatmul.bf16.gmra.mxu0 %v5091
      %v5153 = vpop.f32.mrf.mxu0
      %v5154 = vadd.f32 0.0, %v5153
      %v5155 = vpop.f32.mrf.mxu0
      %v5156 = vadd.f32 0.0, %v5155
      %5157 = vmatmul.bf16.gmra.mxu0 %v5094
      %v5158 = vpop.f32.mrf.mxu0
      %v5159 = vadd.f32 0.0, %v5158
      %v5160 = vpop.f32.mrf.mxu0
      %v5161 = vadd.f32 0.0, %v5160
      %5162 = vmatmul.bf16.gmra.mxu0 %v5097
      %v5163 = vpop.f32.mrf.mxu0
      %v5164 = vadd.f32 0.0, %v5163
      %v5165 = vpop.f32.mrf.mxu0
      %v5166 = vadd.f32 0.0, %v5165
      %5167 = vmatmul.bf16.gmra.mxu0 %v5100
      %v5168 = vpop.f32.mrf.mxu0
      %v5169 = vadd.f32 0.0, %v5168
      %v5170 = vpop.f32.mrf.mxu0
      %v5171 = vadd.f32 0.0, %v5170
      %5172 = vmatmul.bf16.gmra.mxu0 %v5103
      %v5173 = vpop.f32.mrf.mxu0
      %v5174 = vadd.f32 0.0, %v5173
      %v5175 = vpop.f32.mrf.mxu0
      %v5176 = vadd.f32 0.0, %v5175
      %5177 = vmatmul.bf16.gmra.mxu0 %v5106
      %v5178 = vpop.f32.mrf.mxu0
      %v5179 = vadd.f32 0.0, %v5178
      %v5180 = vpop.f32.mrf.mxu0
      %v5181 = vadd.f32 0.0, %v5180
      %5182 = vmatmul.bf16.gmra.mxu0 %v5109
      %v5183 = vpop.f32.mrf.mxu0
      %v5184 = vadd.f32 0.0, %v5183
      %v5185 = vpop.f32.mrf.mxu0
      %v5186 = vadd.f32 0.0, %v5185
      %5187 = vmatmul.bf16.gmra.mxu0 %v5112
      %v5188 = vpop.f32.mrf.mxu0
      %v5189 = vadd.f32 0.0, %v5188
      %v5190 = vpop.f32.mrf.mxu0
      %v5191 = vadd.f32 0.0, %v5190
      %5192 = vmatmul.bf16.gmra.mxu0 %v5115
      %v5193 = vpop.f32.mrf.mxu0
      %v5194 = vadd.f32 0.0, %v5193
      %v5195 = vpop.f32.mrf.mxu0
      %v5196 = vadd.f32 0.0, %v5195
      %5197 = vmatmul.bf16.gmra.mxu0 %v5118
      %v5198 = vpop.f32.mrf.mxu0
      %v5199 = vadd.f32 0.0, %v5198
      %v5200 = vpop.f32.mrf.mxu0
      %v5201 = vadd.f32 0.0, %v5200
      %5202 = vmatmul.bf16.gmra.mxu0 %v5121
      %v5203 = vpop.f32.mrf.mxu0
      %v5204 = vadd.f32 0.0, %v5203
      %v5205 = vpop.f32.mrf.mxu0
      %v5206 = vadd.f32 0.0, %v5205
      %5207 = vmatmul.bf16.gmra.mxu0 %v5124
      %v5208 = vpop.f32.mrf.mxu0
      %v5209 = vadd.f32 0.0, %v5208
      %v5210 = vpop.f32.mrf.mxu0
      %v5211 = vadd.f32 0.0, %v5210
      %5212 = vmatmul.bf16.gmra.mxu0 %v5127
      %v5213 = vpop.f32.mrf.mxu0
      %v5214 = vadd.f32 0.0, %v5213
      %v5215 = vpop.f32.mrf.mxu0
      %v5216 = vadd.f32 0.0, %v5215
      %5217 = vdwg.mxu0
      %v5218 = vadd.f32 %v4984, %v5139
      %v5219 = vadd.f32 %v4985, %v5141
      %v5220 = vadd.f32 %v4986, %v5144
      %v5221 = vadd.f32 %v4987, %v5146
      %v5222 = vadd.f32 %v4988, %v5149
      %v5223 = vadd.f32 %v4989, %v5151
      %v5224 = vadd.f32 %v4990, %v5154
      %v5225 = vadd.f32 %v4991, %v5156
      %v5226 = vadd.f32 %v4992, %v5159
      %v5227 = vadd.f32 %v4993, %v5161
      %v5228 = vadd.f32 %v4994, %v5164
      %v5229 = vadd.f32 %v4995, %v5166
      %v5230 = vadd.f32 %v4996, %v5169
      %v5231 = vadd.f32 %v4997, %v5171
      %v5232 = vadd.f32 %v4998, %v5174
      %v5233 = vadd.f32 %v4999, %v5176
      %v5234 = vadd.f32 %v5000, %v5179
      %v5235 = vadd.f32 %v5001, %v5181
      %v5236 = vadd.f32 %v5002, %v5184
      %v5237 = vadd.f32 %v5003, %v5186
      %v5238 = vadd.f32 %v5004, %v5189
      %v5239 = vadd.f32 %v5005, %v5191
      %v5240 = vadd.f32 %v5006, %v5194
      %v5241 = vadd.f32 %v5007, %v5196
      %v5242 = vadd.f32 %v5008, %v5199
      %v5243 = vadd.f32 %v5009, %v5201
      %v5244 = vadd.f32 %v5010, %v5204
      %v5245 = vadd.f32 %v5011, %v5206
      %v5246 = vadd.f32 %v5012, %v5209
      %v5247 = vadd.f32 %v5013, %v5211
      %v5248 = vadd.f32 %v5014, %v5214
      %v5249 = vadd.f32 %v5015, %v5216
      %v5250 = vld [vmem:[%s3224] sm:$0xff]
      %v5251 = vld [vmem:[%s3224 + $0x8] sm:$0xff]
      %v5252 = vld [vmem:[%s3224 + $0x18] sm:$0xff]
      %v5253 = vld [vmem:[%s3224 + $0x20] sm:$0xff]
      %v5254 = vld [vmem:[%s3224 + $0x30] sm:$0xff]
      %v5255 = vld [vmem:[%s3224 + $0x38] sm:$0xff]
      %v5256 = vld [vmem:[%s3224 + $0x48] sm:$0xff]
      %v5257 = vld [vmem:[%s3224 + $0x50] sm:$0xff]
      %v5258 = vld [vmem:[%s3224 + $0x60] sm:$0xff]
      %v5259 = vld [vmem:[%s3224 + $0x68] sm:$0xff]
      %v5260 = vld [vmem:[%s3224 + $0x78] sm:$0xff]
      %v5261 = vld [vmem:[%s3224 + $0x80] sm:$0xff]
      %v5262 = vld [vmem:[%s3224 + $0x90] sm:$0xff]
      %v5263 = vld [vmem:[%s3224 + $0x98] sm:$0xff]
      %v5264 = vld [vmem:[%s3224 + $0xa8] sm:$0xff]
      %v5265 = vld [vmem:[%s3224 + $0xb0] sm:$0xff]
      %v5266 = vld [vmem:[%s3224 + $0xc0] sm:$0xff]
      %v5267 = vld [vmem:[%s3224 + $0xc8] sm:$0xff]
      %v5268 = vld [vmem:[%s3224 + $0xd8] sm:$0xff]
      %v5269 = vld [vmem:[%s3224 + $0xe0] sm:$0xff]
      %v5270 = vld [vmem:[%s3224 + $0xf0] sm:$0xff]
      %v5271 = vld [vmem:[%s3224 + $0xf8] sm:$0xff]
      %v5272 = vld [vmem:[%s3224 + $0x108] sm:$0xff]
      %v5273 = vld [vmem:[%s3224 + $0x110] sm:$0xff]
      %v5274 = vld [vmem:[%s3224 + $0x120] sm:$0xff]
      %v5275 = vld [vmem:[%s3224 + $0x128] sm:$0xff]
      %v5276 = vld [vmem:[%s3224 + $0x138] sm:$0xff]
      %v5277 = vld [vmem:[%s3224 + $0x140] sm:$0xff]
      %v5278 = vld [vmem:[%s3224 + $0x150] sm:$0xff]
      %v5279 = vld [vmem:[%s3224 + $0x158] sm:$0xff]
      %v5280 = vld [vmem:[%s3224 + $0x168] sm:$0xff]
      %v5281 = vld [vmem:[%s3224 + $0x170] sm:$0xff]
      %v5282 = vpack.c.bf16 %v5251, %v5250
      %v5283 = vpack.c.bf16 %v5253, %v5252
      %v5284 = vpack.c.bf16 %v5255, %v5254
      %v5285 = vpack.c.bf16 %v5257, %v5256
      %v5286 = vpack.c.bf16 %v5259, %v5258
      %v5287 = vpack.c.bf16 %v5261, %v5260
      %v5288 = vpack.c.bf16 %v5263, %v5262
      %v5289 = vpack.c.bf16 %v5265, %v5264
      %v5290 = vpack.c.bf16 %v5267, %v5266
      %v5291 = vpack.c.bf16 %v5269, %v5268
      %v5292 = vpack.c.bf16 %v5271, %v5270
      %v5293 = vpack.c.bf16 %v5273, %v5272
      %v5294 = vpack.c.bf16 %v5275, %v5274
      %v5295 = vpack.c.bf16 %v5277, %v5276
      %v5296 = vpack.c.bf16 %v5279, %v5278
      %v5297 = vpack.c.bf16 %v5281, %v5280
      %s5298 = scalar_lea.vmem %s3, 64
      %v5299 = vld [vmem:[%s5298] sm:$0xf]
      %v5300 = vld [vmem:[%s5298 + $0x4] sm:$0xf]
      %v5301 = vld [vmem:[%s5298 + $0x8] sm:$0xf]
      %v5302 = vld [vmem:[%s5298 + $0xc] sm:$0xf]
      %v5307 = vunpack.c.l.b16 %v5299
      %v5308 = vunpack.c.l.b16 %v5300
      %v5309 = vunpack.c.l.b16 %v5301
      %v5310 = vunpack.c.l.b16 %v5302
      %v5311 = vpack.c.b16 %v5308, %v5307
      %v5312 = vpack.c.b16 %v5310, %v5309
      %v5316 = vsel %vm386, %v5282, 0
      %v5319 = vsel %vm386, %v5283, 0
      %v5322 = vsel %vm386, %v5284, 0
      %v5325 = vsel %vm386, %v5285, 0
      %v5328 = vsel %vm386, %v5286, 0
      %v5331 = vsel %vm386, %v5287, 0
      %v5334 = vsel %vm386, %v5288, 0
      %v5337 = vsel %vm386, %v5289, 0
      %v5340 = vsel %vm386, %v5290, 0
      %v5343 = vsel %vm386, %v5291, 0
      %v5346 = vsel %vm386, %v5292, 0
      %v5349 = vsel %vm386, %v5293, 0
      %v5352 = vsel %vm386, %v5294, 0
      %v5355 = vsel %vm386, %v5295, 0
      %v5358 = vsel %vm386, %v5296, 0
      %v5361 = vsel %vm386, %v5297, 0
      %5363 = vmatpush.bf16.msra.mxu0 0
      %5364 = vmatpush.bf16.msra.mxu0 0
      %5365 = vmatpush.bf16.msra.mxu0 0
      %5366 = vmatpush.bf16.msra.mxu0 0
      %5367 = vmatpush.bf16.msra.mxu0 0
      %5368 = vmatpush.bf16.msra.mxu0 0
      %5369 = vmatpush.bf16.msra.mxu0 %v5312
      %5370 = vmatpush.bf16.msra.mxu0 %v5311
      %5371 = vmatmul.bf16.gmra.mxu0 %v5316
      %v5372 = vpop.f32.mrf.mxu0
      %v5373 = vadd.f32 0.0, %v5372
      %v5374 = vpop.f32.mrf.mxu0
      %v5375 = vadd.f32 0.0, %v5374
      %5376 = vmatmul.bf16.gmra.mxu0 %v5319
      %v5377 = vpop.f32.mrf.mxu0
      %v5378 = vadd.f32 0.0, %v5377
      %v5379 = vpop.f32.mrf.mxu0
      %v5380 = vadd.f32 0.0, %v5379
      %5381 = vmatmul.bf16.gmra.mxu0 %v5322
      %v5382 = vpop.f32.mrf.mxu0
      %v5383 = vadd.f32 0.0, %v5382
      %v5384 = vpop.f32.mrf.mxu0
      %v5385 = vadd.f32 0.0, %v5384
      %5386 = vmatmul.bf16.gmra.mxu0 %v5325
      %v5387 = vpop.f32.mrf.mxu0
      %v5388 = vadd.f32 0.0, %v5387
      %v5389 = vpop.f32.mrf.mxu0
      %v5390 = vadd.f32 0.0, %v5389
      %5391 = vmatmul.bf16.gmra.mxu0 %v5328
      %v5392 = vpop.f32.mrf.mxu0
      %v5393 = vadd.f32 0.0, %v5392
      %v5394 = vpop.f32.mrf.mxu0
      %v5395 = vadd.f32 0.0, %v5394
      %5396 = vmatmul.bf16.gmra.mxu0 %v5331
      %v5397 = vpop.f32.mrf.mxu0
      %v5398 = vadd.f32 0.0, %v5397
      %v5399 = vpop.f32.mrf.mxu0
      %v5400 = vadd.f32 0.0, %v5399
      %5401 = vmatmul.bf16.gmra.mxu0 %v5334
      %v5402 = vpop.f32.mrf.mxu0
      %v5403 = vadd.f32 0.0, %v5402
      %v5404 = vpop.f32.mrf.mxu0
      %v5405 = vadd.f32 0.0, %v5404
      %5406 = vmatmul.bf16.gmra.mxu0 %v5337
      %v5407 = vpop.f32.mrf.mxu0
      %v5408 = vadd.f32 0.0, %v5407
      %v5409 = vpop.f32.mrf.mxu0
      %v5410 = vadd.f32 0.0, %v5409
      %5411 = vmatmul.bf16.gmra.mxu0 %v5340
      %v5412 = vpop.f32.mrf.mxu0
      %v5413 = vadd.f32 0.0, %v5412
      %v5414 = vpop.f32.mrf.mxu0
      %v5415 = vadd.f32 0.0, %v5414
      %5416 = vmatmul.bf16.gmra.mxu0 %v5343
      %v5417 = vpop.f32.mrf.mxu0
      %v5418 = vadd.f32 0.0, %v5417
      %v5419 = vpop.f32.mrf.mxu0
      %v5420 = vadd.f32 0.0, %v5419
      %5421 = vmatmul.bf16.gmra.mxu0 %v5346
      %v5422 = vpop.f32.mrf.mxu0
      %v5423 = vadd.f32 0.0, %v5422
      %v5424 = vpop.f32.mrf.mxu0
      %v5425 = vadd.f32 0.0, %v5424
      %5426 = vmatmul.bf16.gmra.mxu0 %v5349
      %v5427 = vpop.f32.mrf.mxu0
      %v5428 = vadd.f32 0.0, %v5427
      %v5429 = vpop.f32.mrf.mxu0
      %v5430 = vadd.f32 0.0, %v5429
      %5431 = vmatmul.bf16.gmra.mxu0 %v5352
      %v5432 = vpop.f32.mrf.mxu0
      %v5433 = vadd.f32 0.0, %v5432
      %v5434 = vpop.f32.mrf.mxu0
      %v5435 = vadd.f32 0.0, %v5434
      %5436 = vmatmul.bf16.gmra.mxu0 %v5355
      %v5437 = vpop.f32.mrf.mxu0
      %v5438 = vadd.f32 0.0, %v5437
      %v5439 = vpop.f32.mrf.mxu0
      %v5440 = vadd.f32 0.0, %v5439
      %5441 = vmatmul.bf16.gmra.mxu0 %v5358
      %v5442 = vpop.f32.mrf.mxu0
      %v5443 = vadd.f32 0.0, %v5442
      %v5444 = vpop.f32.mrf.mxu0
      %v5445 = vadd.f32 0.0, %v5444
      %5446 = vmatmul.bf16.gmra.mxu0 %v5361
      %v5447 = vpop.f32.mrf.mxu0
      %v5448 = vadd.f32 0.0, %v5447
      %v5449 = vpop.f32.mrf.mxu0
      %v5450 = vadd.f32 0.0, %v5449
      %5451 = vdwg.mxu0
      %v5452 = vadd.f32 %v5218, %v5373
      %v5453 = vadd.f32 %v5219, %v5375
      %v5454 = vadd.f32 %v5220, %v5378
      %v5455 = vadd.f32 %v5221, %v5380
      %v5456 = vadd.f32 %v5222, %v5383
      %v5457 = vadd.f32 %v5223, %v5385
      %v5458 = vadd.f32 %v5224, %v5388
      %v5459 = vadd.f32 %v5225, %v5390
      %v5460 = vadd.f32 %v5226, %v5393
      %v5461 = vadd.f32 %v5227, %v5395
      %v5462 = vadd.f32 %v5228, %v5398
      %v5463 = vadd.f32 %v5229, %v5400
      %v5464 = vadd.f32 %v5230, %v5403
      %v5465 = vadd.f32 %v5231, %v5405
      %v5466 = vadd.f32 %v5232, %v5408
      %v5467 = vadd.f32 %v5233, %v5410
      %v5468 = vadd.f32 %v5234, %v5413
      %v5469 = vadd.f32 %v5235, %v5415
      %v5470 = vadd.f32 %v5236, %v5418
      %v5471 = vadd.f32 %v5237, %v5420
      %v5472 = vadd.f32 %v5238, %v5423
      %v5473 = vadd.f32 %v5239, %v5425
      %v5474 = vadd.f32 %v5240, %v5428
      %v5475 = vadd.f32 %v5241, %v5430
      %v5476 = vadd.f32 %v5242, %v5433
      %v5477 = vadd.f32 %v5243, %v5435
      %v5478 = vadd.f32 %v5244, %v5438
      %v5479 = vadd.f32 %v5245, %v5440
      %v5480 = vadd.f32 %v5246, %v5443
      %v5481 = vadd.f32 %v5247, %v5445
      %v5482 = vadd.f32 %v5248, %v5448
      %v5483 = vadd.f32 %v5249, %v5450
      %v5484 = vld [vmem:[%s3224 + $0x1] sm:$0xff]
      %v5485 = vld [vmem:[%s3224 + $0x9] sm:$0xff]
      %v5486 = vld [vmem:[%s3224 + $0x19] sm:$0xff]
      %v5487 = vld [vmem:[%s3224 + $0x21] sm:$0xff]
      %v5488 = vld [vmem:[%s3224 + $0x31] sm:$0xff]
      %v5489 = vld [vmem:[%s3224 + $0x39] sm:$0xff]
      %v5490 = vld [vmem:[%s3224 + $0x49] sm:$0xff]
      %v5491 = vld [vmem:[%s3224 + $0x51] sm:$0xff]
      %v5492 = vld [vmem:[%s3224 + $0x61] sm:$0xff]
      %v5493 = vld [vmem:[%s3224 + $0x69] sm:$0xff]
      %v5494 = vld [vmem:[%s3224 + $0x79] sm:$0xff]
      %v5495 = vld [vmem:[%s3224 + $0x81] sm:$0xff]
      %v5496 = vld [vmem:[%s3224 + $0x91] sm:$0xff]
      %v5497 = vld [vmem:[%s3224 + $0x99] sm:$0xff]
      %v5498 = vld [vmem:[%s3224 + $0xa9] sm:$0xff]
      %v5499 = vld [vmem:[%s3224 + $0xb1] sm:$0xff]
      %v5500 = vld [vmem:[%s3224 + $0xc1] sm:$0xff]
      %v5501 = vld [vmem:[%s3224 + $0xc9] sm:$0xff]
      %v5502 = vld [vmem:[%s3224 + $0xd9] sm:$0xff]
      %v5503 = vld [vmem:[%s3224 + $0xe1] sm:$0xff]
      %v5504 = vld [vmem:[%s3224 + $0xf1] sm:$0xff]
      %v5505 = vld [vmem:[%s3224 + $0xf9] sm:$0xff]
      %v5506 = vld [vmem:[%s3224 + $0x109] sm:$0xff]
      %v5507 = vld [vmem:[%s3224 + $0x111] sm:$0xff]
      %v5508 = vld [vmem:[%s3224 + $0x121] sm:$0xff]
      %v5509 = vld [vmem:[%s3224 + $0x129] sm:$0xff]
      %v5510 = vld [vmem:[%s3224 + $0x139] sm:$0xff]
      %v5511 = vld [vmem:[%s3224 + $0x141] sm:$0xff]
      %v5512 = vld [vmem:[%s3224 + $0x151] sm:$0xff]
      %v5513 = vld [vmem:[%s3224 + $0x159] sm:$0xff]
      %v5514 = vld [vmem:[%s3224 + $0x169] sm:$0xff]
      %v5515 = vld [vmem:[%s3224 + $0x171] sm:$0xff]
      %v5516 = vpack.c.bf16 %v5485, %v5484
      %v5517 = vpack.c.bf16 %v5487, %v5486
      %v5518 = vpack.c.bf16 %v5489, %v5488
      %v5519 = vpack.c.bf16 %v5491, %v5490
      %v5520 = vpack.c.bf16 %v5493, %v5492
      %v5521 = vpack.c.bf16 %v5495, %v5494
      %v5522 = vpack.c.bf16 %v5497, %v5496
      %v5523 = vpack.c.bf16 %v5499, %v5498
      %v5524 = vpack.c.bf16 %v5501, %v5500
      %v5525 = vpack.c.bf16 %v5503, %v5502
      %v5526 = vpack.c.bf16 %v5505, %v5504
      %v5527 = vpack.c.bf16 %v5507, %v5506
      %v5528 = vpack.c.bf16 %v5509, %v5508
      %v5529 = vpack.c.bf16 %v5511, %v5510
      %v5530 = vpack.c.bf16 %v5513, %v5512
      %v5531 = vpack.c.bf16 %v5515, %v5514
      %s5532 = scalar_lea.vmem %s3, 80
      %v5533 = vld [vmem:[%s5532] sm:$0xf]
      %v5534 = vld [vmem:[%s5532 + $0x4] sm:$0xf]
      %v5535 = vld [vmem:[%s5532 + $0x8] sm:$0xf]
      %v5536 = vld [vmem:[%s5532 + $0xc] sm:$0xf]
      %v5541 = vunpack.c.l.b16 %v5533
      %v5542 = vunpack.c.l.b16 %v5534
      %v5543 = vunpack.c.l.b16 %v5535
      %v5544 = vunpack.c.l.b16 %v5536
      %v5545 = vpack.c.b16 %v5542, %v5541
      %v5546 = vpack.c.b16 %v5544, %v5543
      %v5550 = vsel %vm386, %v5516, 0
      %v5553 = vsel %vm386, %v5517, 0
      %v5556 = vsel %vm386, %v5518, 0
      %v5559 = vsel %vm386, %v5519, 0
      %v5562 = vsel %vm386, %v5520, 0
      %v5565 = vsel %vm386, %v5521, 0
      %v5568 = vsel %vm386, %v5522, 0
      %v5571 = vsel %vm386, %v5523, 0
      %v5574 = vsel %vm386, %v5524, 0
      %v5577 = vsel %vm386, %v5525, 0
      %v5580 = vsel %vm386, %v5526, 0
      %v5583 = vsel %vm386, %v5527, 0
      %v5586 = vsel %vm386, %v5528, 0
      %v5589 = vsel %vm386, %v5529, 0
      %v5592 = vsel %vm386, %v5530, 0
      %v5595 = vsel %vm386, %v5531, 0
      %5597 = vmatpush.bf16.msra.mxu0 0
      %5598 = vmatpush.bf16.msra.mxu0 0
      %5599 = vmatpush.bf16.msra.mxu0 0
      %5600 = vmatpush.bf16.msra.mxu0 0
      %5601 = vmatpush.bf16.msra.mxu0 0
      %5602 = vmatpush.bf16.msra.mxu0 0
      %5603 = vmatpush.bf16.msra.mxu0 %v5546
      %5604 = vmatpush.bf16.msra.mxu0 %v5545
      %5605 = vmatmul.bf16.gmra.mxu0 %v5550
      %v5606 = vpop.f32.mrf.mxu0
      %v5607 = vadd.f32 0.0, %v5606
      %v5608 = vpop.f32.mrf.mxu0
      %v5609 = vadd.f32 0.0, %v5608
      %5610 = vmatmul.bf16.gmra.mxu0 %v5553
      %v5611 = vpop.f32.mrf.mxu0
      %v5612 = vadd.f32 0.0, %v5611
      %v5613 = vpop.f32.mrf.mxu0
      %v5614 = vadd.f32 0.0, %v5613
      %5615 = vmatmul.bf16.gmra.mxu0 %v5556
      %v5616 = vpop.f32.mrf.mxu0
      %v5617 = vadd.f32 0.0, %v5616
      %v5618 = vpop.f32.mrf.mxu0
      %v5619 = vadd.f32 0.0, %v5618
      %5620 = vmatmul.bf16.gmra.mxu0 %v5559
      %v5621 = vpop.f32.mrf.mxu0
      %v5622 = vadd.f32 0.0, %v5621
      %v5623 = vpop.f32.mrf.mxu0
      %v5624 = vadd.f32 0.0, %v5623
      %5625 = vmatmul.bf16.gmra.mxu0 %v5562
      %v5626 = vpop.f32.mrf.mxu0
      %v5627 = vadd.f32 0.0, %v5626
      %v5628 = vpop.f32.mrf.mxu0
      %v5629 = vadd.f32 0.0, %v5628
      %5630 = vmatmul.bf16.gmra.mxu0 %v5565
      %v5631 = vpop.f32.mrf.mxu0
      %v5632 = vadd.f32 0.0, %v5631
      %v5633 = vpop.f32.mrf.mxu0
      %v5634 = vadd.f32 0.0, %v5633
      %5635 = vmatmul.bf16.gmra.mxu0 %v5568
      %v5636 = vpop.f32.mrf.mxu0
      %v5637 = vadd.f32 0.0, %v5636
      %v5638 = vpop.f32.mrf.mxu0
      %v5639 = vadd.f32 0.0, %v5638
      %5640 = vmatmul.bf16.gmra.mxu0 %v5571
      %v5641 = vpop.f32.mrf.mxu0
      %v5642 = vadd.f32 0.0, %v5641
      %v5643 = vpop.f32.mrf.mxu0
      %v5644 = vadd.f32 0.0, %v5643
      %5645 = vmatmul.bf16.gmra.mxu0 %v5574
      %v5646 = vpop.f32.mrf.mxu0
      %v5647 = vadd.f32 0.0, %v5646
      %v5648 = vpop.f32.mrf.mxu0
      %v5649 = vadd.f32 0.0, %v5648
      %5650 = vmatmul.bf16.gmra.mxu0 %v5577
      %v5651 = vpop.f32.mrf.mxu0
      %v5652 = vadd.f32 0.0, %v5651
      %v5653 = vpop.f32.mrf.mxu0
      %v5654 = vadd.f32 0.0, %v5653
      %5655 = vmatmul.bf16.gmra.mxu0 %v5580
      %v5656 = vpop.f32.mrf.mxu0
      %v5657 = vadd.f32 0.0, %v5656
      %v5658 = vpop.f32.mrf.mxu0
      %v5659 = vadd.f32 0.0, %v5658
      %5660 = vmatmul.bf16.gmra.mxu0 %v5583
      %v5661 = vpop.f32.mrf.mxu0
      %v5662 = vadd.f32 0.0, %v5661
      %v5663 = vpop.f32.mrf.mxu0
      %v5664 = vadd.f32 0.0, %v5663
      %5665 = vmatmul.bf16.gmra.mxu0 %v5586
      %v5666 = vpop.f32.mrf.mxu0
      %v5667 = vadd.f32 0.0, %v5666
      %v5668 = vpop.f32.mrf.mxu0
      %v5669 = vadd.f32 0.0, %v5668
      %5670 = vmatmul.bf16.gmra.mxu0 %v5589
      %v5671 = vpop.f32.mrf.mxu0
      %v5672 = vadd.f32 0.0, %v5671
      %v5673 = vpop.f32.mrf.mxu0
      %v5674 = vadd.f32 0.0, %v5673
      %5675 = vmatmul.bf16.gmra.mxu0 %v5592
      %v5676 = vpop.f32.mrf.mxu0
      %v5677 = vadd.f32 0.0, %v5676
      %v5678 = vpop.f32.mrf.mxu0
      %v5679 = vadd.f32 0.0, %v5678
      %5680 = vmatmul.bf16.gmra.mxu0 %v5595
      %v5681 = vpop.f32.mrf.mxu0
      %v5682 = vadd.f32 0.0, %v5681
      %v5683 = vpop.f32.mrf.mxu0
      %v5684 = vadd.f32 0.0, %v5683
      %5685 = vdwg.mxu0
      %v5686 = vadd.f32 %v5452, %v5607
      %v5687 = vadd.f32 %v5453, %v5609
      %v5688 = vadd.f32 %v5454, %v5612
      %v5689 = vadd.f32 %v5455, %v5614
      %v5690 = vadd.f32 %v5456, %v5617
      %v5691 = vadd.f32 %v5457, %v5619
      %v5692 = vadd.f32 %v5458, %v5622
      %v5693 = vadd.f32 %v5459, %v5624
      %v5694 = vadd.f32 %v5460, %v5627
      %v5695 = vadd.f32 %v5461, %v5629
      %v5696 = vadd.f32 %v5462, %v5632
      %v5697 = vadd.f32 %v5463, %v5634
      %v5698 = vadd.f32 %v5464, %v5637
      %v5699 = vadd.f32 %v5465, %v5639
      %v5700 = vadd.f32 %v5466, %v5642
      %v5701 = vadd.f32 %v5467, %v5644
      %v5702 = vadd.f32 %v5468, %v5647
      %v5703 = vadd.f32 %v5469, %v5649
      %v5704 = vadd.f32 %v5470, %v5652
      %v5705 = vadd.f32 %v5471, %v5654
      %v5706 = vadd.f32 %v5472, %v5657
      %v5707 = vadd.f32 %v5473, %v5659
      %v5708 = vadd.f32 %v5474, %v5662
      %v5709 = vadd.f32 %v5475, %v5664
      %v5710 = vadd.f32 %v5476, %v5667
      %v5711 = vadd.f32 %v5477, %v5669
      %v5712 = vadd.f32 %v5478, %v5672
      %v5713 = vadd.f32 %v5479, %v5674
      %v5714 = vadd.f32 %v5480, %v5677
      %v5715 = vadd.f32 %v5481, %v5679
      %v5716 = vadd.f32 %v5482, %v5682
      %v5717 = vadd.f32 %v5483, %v5684
      %s5718 = scalar_lea.vmem [#allocation3], 24
      %v5719 = vld [vmem:[%s5718] sm:$0xff]
      %v5720 = vld [vmem:[%s5718 + $0x8] sm:$0xff]
      %v5721 = vld [vmem:[%s5718 + $0x18] sm:$0xff]
      %v5722 = vld [vmem:[%s5718 + $0x20] sm:$0xff]
      %v5723 = vld [vmem:[%s5718 + $0x30] sm:$0xff]
      %v5724 = vld [vmem:[%s5718 + $0x38] sm:$0xff]
      %v5725 = vld [vmem:[%s5718 + $0x48] sm:$0xff]
      %v5726 = vld [vmem:[%s5718 + $0x50] sm:$0xff]
      %v5727 = vld [vmem:[%s5718 + $0x60] sm:$0xff]
      %v5728 = vld [vmem:[%s5718 + $0x68] sm:$0xff]
      %v5729 = vld [vmem:[%s5718 + $0x78] sm:$0xff]
      %v5730 = vld [vmem:[%s5718 + $0x80] sm:$0xff]
      %v5731 = vld [vmem:[%s5718 + $0x90] sm:$0xff]
      %v5732 = vld [vmem:[%s5718 + $0x98] sm:$0xff]
      %v5733 = vld [vmem:[%s5718 + $0xa8] sm:$0xff]
      %v5734 = vld [vmem:[%s5718 + $0xb0] sm:$0xff]
      %v5735 = vld [vmem:[%s5718 + $0xc0] sm:$0xff]
      %v5736 = vld [vmem:[%s5718 + $0xc8] sm:$0xff]
      %v5737 = vld [vmem:[%s5718 + $0xd8] sm:$0xff]
      %v5738 = vld [vmem:[%s5718 + $0xe0] sm:$0xff]
      %v5739 = vld [vmem:[%s5718 + $0xf0] sm:$0xff]
      %v5740 = vld [vmem:[%s5718 + $0xf8] sm:$0xff]
      %v5741 = vld [vmem:[%s5718 + $0x108] sm:$0xff]
      %v5742 = vld [vmem:[%s5718 + $0x110] sm:$0xff]
      %v5743 = vld [vmem:[%s5718 + $0x120] sm:$0xff]
      %v5744 = vld [vmem:[%s5718 + $0x128] sm:$0xff]
      %v5745 = vld [vmem:[%s5718 + $0x138] sm:$0xff]
      %v5746 = vld [vmem:[%s5718 + $0x140] sm:$0xff]
      %v5747 = vld [vmem:[%s5718 + $0x150] sm:$0xff]
      %v5748 = vld [vmem:[%s5718 + $0x158] sm:$0xff]
      %v5749 = vld [vmem:[%s5718 + $0x168] sm:$0xff]
      %v5750 = vld [vmem:[%s5718 + $0x170] sm:$0xff]
      %v5751 = vpack.c.bf16 %v5720, %v5719
      %v5752 = vpack.c.bf16 %v5722, %v5721
      %v5753 = vpack.c.bf16 %v5724, %v5723
      %v5754 = vpack.c.bf16 %v5726, %v5725
      %v5755 = vpack.c.bf16 %v5728, %v5727
      %v5756 = vpack.c.bf16 %v5730, %v5729
      %v5757 = vpack.c.bf16 %v5732, %v5731
      %v5758 = vpack.c.bf16 %v5734, %v5733
      %v5759 = vpack.c.bf16 %v5736, %v5735
      %v5760 = vpack.c.bf16 %v5738, %v5737
      %v5761 = vpack.c.bf16 %v5740, %v5739
      %v5762 = vpack.c.bf16 %v5742, %v5741
      %v5763 = vpack.c.bf16 %v5744, %v5743
      %v5764 = vpack.c.bf16 %v5746, %v5745
      %v5765 = vpack.c.bf16 %v5748, %v5747
      %v5766 = vpack.c.bf16 %v5750, %v5749
      %s5767 = scalar_lea.vmem %s3, 96
      %v5768 = vld [vmem:[%s5767] sm:$0xf]
      %v5769 = vld [vmem:[%s5767 + $0x4] sm:$0xf]
      %v5770 = vld [vmem:[%s5767 + $0x8] sm:$0xf]
      %v5771 = vld [vmem:[%s5767 + $0xc] sm:$0xf]
      %v5776 = vunpack.c.l.b16 %v5768
      %v5777 = vunpack.c.l.b16 %v5769
      %v5778 = vunpack.c.l.b16 %v5770
      %v5779 = vunpack.c.l.b16 %v5771
      %v5780 = vpack.c.b16 %v5777, %v5776
      %v5781 = vpack.c.b16 %v5779, %v5778
      %v5785 = vsel %vm386, %v5751, 0
      %v5788 = vsel %vm386, %v5752, 0
      %v5791 = vsel %vm386, %v5753, 0
      %v5794 = vsel %vm386, %v5754, 0
      %v5797 = vsel %vm386, %v5755, 0
      %v5800 = vsel %vm386, %v5756, 0
      %v5803 = vsel %vm386, %v5757, 0
      %v5806 = vsel %vm386, %v5758, 0
      %v5809 = vsel %vm386, %v5759, 0
      %v5812 = vsel %vm386, %v5760, 0
      %v5815 = vsel %vm386, %v5761, 0
      %v5818 = vsel %vm386, %v5762, 0
      %v5821 = vsel %vm386, %v5763, 0
      %v5824 = vsel %vm386, %v5764, 0
      %v5827 = vsel %vm386, %v5765, 0
      %v5830 = vsel %vm386, %v5766, 0
      %5832 = vmatpush.bf16.msra.mxu0 0
      %5833 = vmatpush.bf16.msra.mxu0 0
      %5834 = vmatpush.bf16.msra.mxu0 0
      %5835 = vmatpush.bf16.msra.mxu0 0
      %5836 = vmatpush.bf16.msra.mxu0 0
      %5837 = vmatpush.bf16.msra.mxu0 0
      %5838 = vmatpush.bf16.msra.mxu0 %v5781
      %5839 = vmatpush.bf16.msra.mxu0 %v5780
      %5840 = vmatmul.bf16.gmra.mxu0 %v5785
      %v5841 = vpop.f32.mrf.mxu0
      %v5842 = vadd.f32 0.0, %v5841
      %v5843 = vpop.f32.mrf.mxu0
      %v5844 = vadd.f32 0.0, %v5843
      %5845 = vmatmul.bf16.gmra.mxu0 %v5788
      %v5846 = vpop.f32.mrf.mxu0
      %v5847 = vadd.f32 0.0, %v5846
      %v5848 = vpop.f32.mrf.mxu0
      %v5849 = vadd.f32 0.0, %v5848
      %5850 = vmatmul.bf16.gmra.mxu0 %v5791
      %v5851 = vpop.f32.mrf.mxu0
      %v5852 = vadd.f32 0.0, %v5851
      %v5853 = vpop.f32.mrf.mxu0
      %v5854 = vadd.f32 0.0, %v5853
      %5855 = vmatmul.bf16.gmra.mxu0 %v5794
      %v5856 = vpop.f32.mrf.mxu0
      %v5857 = vadd.f32 0.0, %v5856
      %v5858 = vpop.f32.mrf.mxu0
      %v5859 = vadd.f32 0.0, %v5858
      %5860 = vmatmul.bf16.gmra.mxu0 %v5797
      %v5861 = vpop.f32.mrf.mxu0
      %v5862 = vadd.f32 0.0, %v5861
      %v5863 = vpop.f32.mrf.mxu0
      %v5864 = vadd.f32 0.0, %v5863
      %5865 = vmatmul.bf16.gmra.mxu0 %v5800
      %v5866 = vpop.f32.mrf.mxu0
      %v5867 = vadd.f32 0.0, %v5866
      %v5868 = vpop.f32.mrf.mxu0
      %v5869 = vadd.f32 0.0, %v5868
      %5870 = vmatmul.bf16.gmra.mxu0 %v5803
      %v5871 = vpop.f32.mrf.mxu0
      %v5872 = vadd.f32 0.0, %v5871
      %v5873 = vpop.f32.mrf.mxu0
      %v5874 = vadd.f32 0.0, %v5873
      %5875 = vmatmul.bf16.gmra.mxu0 %v5806
      %v5876 = vpop.f32.mrf.mxu0
      %v5877 = vadd.f32 0.0, %v5876
      %v5878 = vpop.f32.mrf.mxu0
      %v5879 = vadd.f32 0.0, %v5878
      %5880 = vmatmul.bf16.gmra.mxu0 %v5809
      %v5881 = vpop.f32.mrf.mxu0
      %v5882 = vadd.f32 0.0, %v5881
      %v5883 = vpop.f32.mrf.mxu0
      %v5884 = vadd.f32 0.0, %v5883
      %5885 = vmatmul.bf16.gmra.mxu0 %v5812
      %v5886 = vpop.f32.mrf.mxu0
      %v5887 = vadd.f32 0.0, %v5886
      %v5888 = vpop.f32.mrf.mxu0
      %v5889 = vadd.f32 0.0, %v5888
      %5890 = vmatmul.bf16.gmra.mxu0 %v5815
      %v5891 = vpop.f32.mrf.mxu0
      %v5892 = vadd.f32 0.0, %v5891
      %v5893 = vpop.f32.mrf.mxu0
      %v5894 = vadd.f32 0.0, %v5893
      %5895 = vmatmul.bf16.gmra.mxu0 %v5818
      %v5896 = vpop.f32.mrf.mxu0
      %v5897 = vadd.f32 0.0, %v5896
      %v5898 = vpop.f32.mrf.mxu0
      %v5899 = vadd.f32 0.0, %v5898
      %5900 = vmatmul.bf16.gmra.mxu0 %v5821
      %v5901 = vpop.f32.mrf.mxu0
      %v5902 = vadd.f32 0.0, %v5901
      %v5903 = vpop.f32.mrf.mxu0
      %v5904 = vadd.f32 0.0, %v5903
      %5905 = vmatmul.bf16.gmra.mxu0 %v5824
      %v5906 = vpop.f32.mrf.mxu0
      %v5907 = vadd.f32 0.0, %v5906
      %v5908 = vpop.f32.mrf.mxu0
      %v5909 = vadd.f32 0.0, %v5908
      %5910 = vmatmul.bf16.gmra.mxu0 %v5827
      %v5911 = vpop.f32.mrf.mxu0
      %v5912 = vadd.f32 0.0, %v5911
      %v5913 = vpop.f32.mrf.mxu0
      %v5914 = vadd.f32 0.0, %v5913
      %5915 = vmatmul.bf16.gmra.mxu0 %v5830
      %v5916 = vpop.f32.mrf.mxu0
      %v5917 = vadd.f32 0.0, %v5916
      %v5918 = vpop.f32.mrf.mxu0
      %v5919 = vadd.f32 0.0, %v5918
      %5920 = vdwg.mxu0
      %v5921 = vadd.f32 %v5686, %v5842
      %v5922 = vadd.f32 %v5687, %v5844
      %v5923 = vadd.f32 %v5688, %v5847
      %v5924 = vadd.f32 %v5689, %v5849
      %v5925 = vadd.f32 %v5690, %v5852
      %v5926 = vadd.f32 %v5691, %v5854
      %v5927 = vadd.f32 %v5692, %v5857
      %v5928 = vadd.f32 %v5693, %v5859
      %v5929 = vadd.f32 %v5694, %v5862
      %v5930 = vadd.f32 %v5695, %v5864
      %v5931 = vadd.f32 %v5696, %v5867
      %v5932 = vadd.f32 %v5697, %v5869
      %v5933 = vadd.f32 %v5698, %v5872
      %v5934 = vadd.f32 %v5699, %v5874
      %v5935 = vadd.f32 %v5700, %v5877
      %v5936 = vadd.f32 %v5701, %v5879
      %v5937 = vadd.f32 %v5702, %v5882
      %v5938 = vadd.f32 %v5703, %v5884
      %v5939 = vadd.f32 %v5704, %v5887
      %v5940 = vadd.f32 %v5705, %v5889
      %v5941 = vadd.f32 %v5706, %v5892
      %v5942 = vadd.f32 %v5707, %v5894
      %v5943 = vadd.f32 %v5708, %v5897
      %v5944 = vadd.f32 %v5709, %v5899
      %v5945 = vadd.f32 %v5710, %v5902
      %v5946 = vadd.f32 %v5711, %v5904
      %v5947 = vadd.f32 %v5712, %v5907
      %v5948 = vadd.f32 %v5713, %v5909
      %v5949 = vadd.f32 %v5714, %v5912
      %v5950 = vadd.f32 %v5715, %v5914
      %v5951 = vadd.f32 %v5716, %v5917
      %v5952 = vadd.f32 %v5717, %v5919
      %v5953 = vld [vmem:[%s5718 + $0x1] sm:$0xff]
      %v5954 = vld [vmem:[%s5718 + $0x9] sm:$0xff]
      %v5955 = vld [vmem:[%s5718 + $0x19] sm:$0xff]
      %v5956 = vld [vmem:[%s5718 + $0x21] sm:$0xff]
      %v5957 = vld [vmem:[%s5718 + $0x31] sm:$0xff]
      %v5958 = vld [vmem:[%s5718 + $0x39] sm:$0xff]
      %v5959 = vld [vmem:[%s5718 + $0x49] sm:$0xff]
      %v5960 = vld [vmem:[%s5718 + $0x51] sm:$0xff]
      %v5961 = vld [vmem:[%s5718 + $0x61] sm:$0xff]
      %v5962 = vld [vmem:[%s5718 + $0x69] sm:$0xff]
      %v5963 = vld [vmem:[%s5718 + $0x79] sm:$0xff]
      %v5964 = vld [vmem:[%s5718 + $0x81] sm:$0xff]
      %v5965 = vld [vmem:[%s5718 + $0x91] sm:$0xff]
      %v5966 = vld [vmem:[%s5718 + $0x99] sm:$0xff]
      %v5967 = vld [vmem:[%s5718 + $0xa9] sm:$0xff]
      %v5968 = vld [vmem:[%s5718 + $0xb1] sm:$0xff]
      %v5969 = vld [vmem:[%s5718 + $0xc1] sm:$0xff]
      %v5970 = vld [vmem:[%s5718 + $0xc9] sm:$0xff]
      %v5971 = vld [vmem:[%s5718 + $0xd9] sm:$0xff]
      %v5972 = vld [vmem:[%s5718 + $0xe1] sm:$0xff]
      %v5973 = vld [vmem:[%s5718 + $0xf1] sm:$0xff]
      %v5974 = vld [vmem:[%s5718 + $0xf9] sm:$0xff]
      %v5975 = vld [vmem:[%s5718 + $0x109] sm:$0xff]
      %v5976 = vld [vmem:[%s5718 + $0x111] sm:$0xff]
      %v5977 = vld [vmem:[%s5718 + $0x121] sm:$0xff]
      %v5978 = vld [vmem:[%s5718 + $0x129] sm:$0xff]
      %v5979 = vld [vmem:[%s5718 + $0x139] sm:$0xff]
      %v5980 = vld [vmem:[%s5718 + $0x141] sm:$0xff]
      %v5981 = vld [vmem:[%s5718 + $0x151] sm:$0xff]
      %v5982 = vld [vmem:[%s5718 + $0x159] sm:$0xff]
      %v5983 = vld [vmem:[%s5718 + $0x169] sm:$0xff]
      %v5984 = vld [vmem:[%s5718 + $0x171] sm:$0xff]
      %v5985 = vpack.c.bf16 %v5954, %v5953
      %v5986 = vpack.c.bf16 %v5956, %v5955
      %v5987 = vpack.c.bf16 %v5958, %v5957
      %v5988 = vpack.c.bf16 %v5960, %v5959
      %v5989 = vpack.c.bf16 %v5962, %v5961
      %v5990 = vpack.c.bf16 %v5964, %v5963
      %v5991 = vpack.c.bf16 %v5966, %v5965
      %v5992 = vpack.c.bf16 %v5968, %v5967
      %v5993 = vpack.c.bf16 %v5970, %v5969
      %v5994 = vpack.c.bf16 %v5972, %v5971
      %v5995 = vpack.c.bf16 %v5974, %v5973
      %v5996 = vpack.c.bf16 %v5976, %v5975
      %v5997 = vpack.c.bf16 %v5978, %v5977
      %v5998 = vpack.c.bf16 %v5980, %v5979
      %v5999 = vpack.c.bf16 %v5982, %v5981
      %v6000 = vpack.c.bf16 %v5984, %v5983
      %s6001 = scalar_lea.vmem %s3, 112
      %v6002 = vld [vmem:[%s6001] sm:$0xf]
      %v6003 = vld [vmem:[%s6001 + $0x4] sm:$0xf]
      %v6004 = vld [vmem:[%s6001 + $0x8] sm:$0xf]
      %v6005 = vld [vmem:[%s6001 + $0xc] sm:$0xf]
      %v6010 = vunpack.c.l.b16 %v6002
      %v6011 = vunpack.c.l.b16 %v6003
      %v6012 = vunpack.c.l.b16 %v6004
      %v6013 = vunpack.c.l.b16 %v6005
      %v6014 = vpack.c.b16 %v6011, %v6010
      %v6015 = vpack.c.b16 %v6013, %v6012
      %v6019 = vsel %vm386, %v5985, 0
      %v6022 = vsel %vm386, %v5986, 0
      %v6025 = vsel %vm386, %v5987, 0
      %v6028 = vsel %vm386, %v5988, 0
      %v6031 = vsel %vm386, %v5989, 0
      %v6034 = vsel %vm386, %v5990, 0
      %v6037 = vsel %vm386, %v5991, 0
      %v6040 = vsel %vm386, %v5992, 0
      %v6043 = vsel %vm386, %v5993, 0
      %v6046 = vsel %vm386, %v5994, 0
      %v6049 = vsel %vm386, %v5995, 0
      %v6052 = vsel %vm386, %v5996, 0
      %v6055 = vsel %vm386, %v5997, 0
      %v6058 = vsel %vm386, %v5998, 0
      %v6061 = vsel %vm386, %v5999, 0
      %v6064 = vsel %vm386, %v6000, 0
      %6066 = vmatpush.bf16.msra.mxu0 0
      %6067 = vmatpush.bf16.msra.mxu0 0
      %6068 = vmatpush.bf16.msra.mxu0 0
      %6069 = vmatpush.bf16.msra.mxu0 0
      %6070 = vmatpush.bf16.msra.mxu0 0
      %6071 = vmatpush.bf16.msra.mxu0 0
      %6072 = vmatpush.bf16.msra.mxu0 %v6015
      %6073 = vmatpush.bf16.msra.mxu0 %v6014
      %6074 = vmatmul.bf16.gmra.mxu0 %v6019
      %v6075 = vpop.f32.mrf.mxu0
      %v6076 = vadd.f32 0.0, %v6075
      %v6077 = vpop.f32.mrf.mxu0
      %v6078 = vadd.f32 0.0, %v6077
      %6079 = vmatmul.bf16.gmra.mxu0 %v6022
      %v6080 = vpop.f32.mrf.mxu0
      %v6081 = vadd.f32 0.0, %v6080
      %v6082 = vpop.f32.mrf.mxu0
      %v6083 = vadd.f32 0.0, %v6082
      %6084 = vmatmul.bf16.gmra.mxu0 %v6025
      %v6085 = vpop.f32.mrf.mxu0
      %v6086 = vadd.f32 0.0, %v6085
      %v6087 = vpop.f32.mrf.mxu0
      %v6088 = vadd.f32 0.0, %v6087
      %6089 = vmatmul.bf16.gmra.mxu0 %v6028
      %v6090 = vpop.f32.mrf.mxu0
      %v6091 = vadd.f32 0.0, %v6090
      %v6092 = vpop.f32.mrf.mxu0
      %v6093 = vadd.f32 0.0, %v6092
      %6094 = vmatmul.bf16.gmra.mxu0 %v6031
      %v6095 = vpop.f32.mrf.mxu0
      %v6096 = vadd.f32 0.0, %v6095
      %v6097 = vpop.f32.mrf.mxu0
      %v6098 = vadd.f32 0.0, %v6097
      %6099 = vmatmul.bf16.gmra.mxu0 %v6034
      %v6100 = vpop.f32.mrf.mxu0
      %v6101 = vadd.f32 0.0, %v6100
      %v6102 = vpop.f32.mrf.mxu0
      %v6103 = vadd.f32 0.0, %v6102
      %6104 = vmatmul.bf16.gmra.mxu0 %v6037
      %v6105 = vpop.f32.mrf.mxu0
      %v6106 = vadd.f32 0.0, %v6105
      %v6107 = vpop.f32.mrf.mxu0
      %v6108 = vadd.f32 0.0, %v6107
      %6109 = vmatmul.bf16.gmra.mxu0 %v6040
      %v6110 = vpop.f32.mrf.mxu0
      %v6111 = vadd.f32 0.0, %v6110
      %v6112 = vpop.f32.mrf.mxu0
      %v6113 = vadd.f32 0.0, %v6112
      %6114 = vmatmul.bf16.gmra.mxu0 %v6043
      %v6115 = vpop.f32.mrf.mxu0
      %v6116 = vadd.f32 0.0, %v6115
      %v6117 = vpop.f32.mrf.mxu0
      %v6118 = vadd.f32 0.0, %v6117
      %6119 = vmatmul.bf16.gmra.mxu0 %v6046
      %v6120 = vpop.f32.mrf.mxu0
      %v6121 = vadd.f32 0.0, %v6120
      %v6122 = vpop.f32.mrf.mxu0
      %v6123 = vadd.f32 0.0, %v6122
      %6124 = vmatmul.bf16.gmra.mxu0 %v6049
      %v6125 = vpop.f32.mrf.mxu0
      %v6126 = vadd.f32 0.0, %v6125
      %v6127 = vpop.f32.mrf.mxu0
      %v6128 = vadd.f32 0.0, %v6127
      %6129 = vmatmul.bf16.gmra.mxu0 %v6052
      %v6130 = vpop.f32.mrf.mxu0
      %v6131 = vadd.f32 0.0, %v6130
      %v6132 = vpop.f32.mrf.mxu0
      %v6133 = vadd.f32 0.0, %v6132
      %6134 = vmatmul.bf16.gmra.mxu0 %v6055
      %v6135 = vpop.f32.mrf.mxu0
      %v6136 = vadd.f32 0.0, %v6135
      %v6137 = vpop.f32.mrf.mxu0
      %v6138 = vadd.f32 0.0, %v6137
      %6139 = vmatmul.bf16.gmra.mxu0 %v6058
      %v6140 = vpop.f32.mrf.mxu0
      %v6141 = vadd.f32 0.0, %v6140
      %v6142 = vpop.f32.mrf.mxu0
      %v6143 = vadd.f32 0.0, %v6142
      %6144 = vmatmul.bf16.gmra.mxu0 %v6061
      %v6145 = vpop.f32.mrf.mxu0
      %v6146 = vadd.f32 0.0, %v6145
      %v6147 = vpop.f32.mrf.mxu0
      %v6148 = vadd.f32 0.0, %v6147
      %6149 = vmatmul.bf16.gmra.mxu0 %v6064
      %v6150 = vpop.f32.mrf.mxu0
      %v6151 = vadd.f32 0.0, %v6150
      %v6152 = vpop.f32.mrf.mxu0
      %v6153 = vadd.f32 0.0, %v6152
      %6154 = vdwg.mxu0
      %v6155 = vadd.f32 %v5921, %v6076
      %v6156 = vadd.f32 %v5922, %v6078
      %v6157 = vadd.f32 %v5923, %v6081
      %v6158 = vadd.f32 %v5924, %v6083
      %v6159 = vadd.f32 %v5925, %v6086
      %v6160 = vadd.f32 %v5926, %v6088
      %v6161 = vadd.f32 %v5927, %v6091
      %v6162 = vadd.f32 %v5928, %v6093
      %v6163 = vadd.f32 %v5929, %v6096
      %v6164 = vadd.f32 %v5930, %v6098
      %v6165 = vadd.f32 %v5931, %v6101
      %v6166 = vadd.f32 %v5932, %v6103
      %v6167 = vadd.f32 %v5933, %v6106
      %v6168 = vadd.f32 %v5934, %v6108
      %v6169 = vadd.f32 %v5935, %v6111
      %v6170 = vadd.f32 %v5936, %v6113
      %v6171 = vadd.f32 %v5937, %v6116
      %v6172 = vadd.f32 %v5938, %v6118
      %v6173 = vadd.f32 %v5939, %v6121
      %v6174 = vadd.f32 %v5940, %v6123
      %v6175 = vadd.f32 %v5941, %v6126
      %v6176 = vadd.f32 %v5942, %v6128
      %v6177 = vadd.f32 %v5943, %v6131
      %v6178 = vadd.f32 %v5944, %v6133
      %v6179 = vadd.f32 %v5945, %v6136
      %v6180 = vadd.f32 %v5946, %v6138
      %v6181 = vadd.f32 %v5947, %v6141
      %v6182 = vadd.f32 %v5948, %v6143
      %v6183 = vadd.f32 %v5949, %v6146
      %v6184 = vadd.f32 %v5950, %v6148
      %v6185 = vadd.f32 %v5951, %v6151
      %v6186 = vadd.f32 %v5952, %v6153
      %v6187 = vld [vmem:[%s4] sm:$0x1]
      %v6189 = vperm.slane %v6187, 0
      %v6191 = vadd.f32 %v6155, %v6189
      %v6192 = vadd.f32 %v6156, %v6189
      %v6193 = vadd.f32 %v6157, %v6189
      %v6194 = vadd.f32 %v6158, %v6189
      %v6195 = vadd.f32 %v6159, %v6189
      %v6196 = vadd.f32 %v6160, %v6189
      %v6197 = vadd.f32 %v6161, %v6189
      %v6198 = vadd.f32 %v6162, %v6189
      %v6199 = vadd.f32 %v6163, %v6189
      %v6200 = vadd.f32 %v6164, %v6189
      %v6201 = vadd.f32 %v6165, %v6189
      %v6202 = vadd.f32 %v6166, %v6189
      %v6203 = vadd.f32 %v6167, %v6189
      %v6204 = vadd.f32 %v6168, %v6189
      %v6205 = vadd.f32 %v6169, %v6189
      %v6206 = vadd.f32 %v6170, %v6189
      %v6207 = vadd.f32 %v6171, %v6189
      %v6208 = vadd.f32 %v6172, %v6189
      %v6209 = vadd.f32 %v6173, %v6189
      %v6210 = vadd.f32 %v6174, %v6189
      %v6211 = vadd.f32 %v6175, %v6189
      %v6212 = vadd.f32 %v6176, %v6189
      %v6213 = vadd.f32 %v6177, %v6189
      %v6214 = vadd.f32 %v6178, %v6189
      %v6215 = vadd.f32 %v6179, %v6189
      %v6216 = vadd.f32 %v6180, %v6189
      %v6217 = vadd.f32 %v6181, %v6189
      %v6218 = vadd.f32 %v6182, %v6189
      %v6219 = vadd.f32 %v6183, %v6189
      %v6220 = vadd.f32 %v6184, %v6189
      %v6221 = vadd.f32 %v6185, %v6189
      %v6222 = vadd.f32 %v6186, %v6189
      %v6223 = vmul.f32 %v6191, 0.1
      %v6224 = vmul.f32 %v6192, 0.1
      %v6225 = vmul.f32 %v6193, 0.1
      %v6226 = vmul.f32 %v6194, 0.1
      %v6227 = vmul.f32 %v6195, 0.1
      %v6228 = vmul.f32 %v6196, 0.1
      %v6229 = vmul.f32 %v6197, 0.1
      %v6230 = vmul.f32 %v6198, 0.1
      %v6231 = vmul.f32 %v6199, 0.1
      %v6232 = vmul.f32 %v6200, 0.1
      %v6233 = vmul.f32 %v6201, 0.1
      %v6234 = vmul.f32 %v6202, 0.1
      %v6235 = vmul.f32 %v6203, 0.1
      %v6236 = vmul.f32 %v6204, 0.1
      %v6237 = vmul.f32 %v6205, 0.1
      %v6238 = vmul.f32 %v6206, 0.1
      %v6239 = vmul.f32 %v6207, 0.1
      %v6240 = vmul.f32 %v6208, 0.1
      %v6241 = vmul.f32 %v6209, 0.1
      %v6242 = vmul.f32 %v6210, 0.1
      %v6243 = vmul.f32 %v6211, 0.1
      %v6244 = vmul.f32 %v6212, 0.1
      %v6245 = vmul.f32 %v6213, 0.1
      %v6246 = vmul.f32 %v6214, 0.1
      %v6247 = vmul.f32 %v6215, 0.1
      %v6248 = vmul.f32 %v6216, 0.1
      %v6249 = vmul.f32 %v6217, 0.1
      %v6250 = vmul.f32 %v6218, 0.1
      %v6251 = vmul.f32 %v6219, 0.1
      %v6252 = vmul.f32 %v6220, 0.1
      %v6253 = vmul.f32 %v6221, 0.1
      %v6254 = vmul.f32 %v6222, 0.1
      %v6255 = vmax.f32 %v6191, %v6223
      %v6256 = vmax.f32 %v6192, %v6224
      %v6257 = vmax.f32 %v6193, %v6225
      %v6258 = vmax.f32 %v6194, %v6226
      %v6259 = vmax.f32 %v6195, %v6227
      %v6260 = vmax.f32 %v6196, %v6228
      %v6261 = vmax.f32 %v6197, %v6229
      %v6262 = vmax.f32 %v6198, %v6230
      %v6263 = vmax.f32 %v6199, %v6231
      %v6264 = vmax.f32 %v6200, %v6232
      %v6265 = vmax.f32 %v6201, %v6233
      %v6266 = vmax.f32 %v6202, %v6234
      %v6267 = vmax.f32 %v6203, %v6235
      %v6268 = vmax.f32 %v6204, %v6236
      %v6269 = vmax.f32 %v6205, %v6237
      %v6270 = vmax.f32 %v6206, %v6238
      %v6271 = vmax.f32 %v6207, %v6239
      %v6272 = vmax.f32 %v6208, %v6240
      %v6273 = vmax.f32 %v6209, %v6241
      %v6274 = vmax.f32 %v6210, %v6242
      %v6275 = vmax.f32 %v6211, %v6243
      %v6276 = vmax.f32 %v6212, %v6244
      %v6277 = vmax.f32 %v6213, %v6245
      %v6278 = vmax.f32 %v6214, %v6246
      %v6279 = vmax.f32 %v6215, %v6247
      %v6280 = vmax.f32 %v6216, %v6248
      %v6281 = vmax.f32 %v6217, %v6249
      %v6282 = vmax.f32 %v6218, %v6250
      %v6283 = vmax.f32 %v6219, %v6251
      %v6284 = vmax.f32 %v6220, %v6252
      %v6285 = vmax.f32 %v6221, %v6253
      %v6286 = vmax.f32 %v6222, %v6254
      %v6319 = vrot.slane %v6255, 2
      %v6320 = vrot.slane %v6255, 4
      %v6321 = vrot.slane %v6255, 6
      %v6322 = vrot.slane %v6256, 2
      %v6323 = vrot.slane %v6256, 4
      %v6324 = vrot.slane %v6256, 6
      %v6325 = vrot.slane %v6257, 2
      %v6326 = vrot.slane %v6257, 4
      %v6327 = vrot.slane %v6257, 6
      %v6328 = vrot.slane %v6258, 2
      %v6329 = vrot.slane %v6258, 4
      %v6330 = vrot.slane %v6258, 6
      %v6331 = vrot.slane %v6259, 2
      %v6332 = vrot.slane %v6259, 4
      %v6333 = vrot.slane %v6259, 6
      %v6334 = vrot.slane %v6260, 2
      %v6335 = vrot.slane %v6260, 4
      %v6336 = vrot.slane %v6260, 6
      %v6337 = vrot.slane %v6261, 2
      %v6338 = vrot.slane %v6261, 4
      %v6339 = vrot.slane %v6261, 6
      %v6340 = vrot.slane %v6262, 2
      %v6341 = vrot.slane %v6262, 4
      %v6342 = vrot.slane %v6262, 6
      %v6343 = vrot.slane %v6263, 2
      %v6344 = vrot.slane %v6263, 4
      %v6345 = vrot.slane %v6263, 6
      %v6346 = vrot.slane %v6264, 2
      %v6347 = vrot.slane %v6264, 4
      %v6348 = vrot.slane %v6264, 6
      %v6349 = vrot.slane %v6265, 2
      %v6350 = vrot.slane %v6265, 4
      %v6351 = vrot.slane %v6265, 6
      %v6352 = vrot.slane %v6266, 2
      %v6353 = vrot.slane %v6266, 4
      %v6354 = vrot.slane %v6266, 6
      %v6355 = vrot.slane %v6267, 2
      %v6356 = vrot.slane %v6267, 4
      %v6357 = vrot.slane %v6267, 6
      %v6358 = vrot.slane %v6268, 2
      %v6359 = vrot.slane %v6268, 4
      %v6360 = vrot.slane %v6268, 6
      %v6361 = vrot.slane %v6269, 2
      %v6362 = vrot.slane %v6269, 4
      %v6363 = vrot.slane %v6269, 6
      %v6364 = vrot.slane %v6270, 2
      %v6365 = vrot.slane %v6270, 4
      %v6366 = vrot.slane %v6270, 6
      %v6367 = vrot.slane %v6271, 2
      %v6368 = vrot.slane %v6271, 4
      %v6369 = vrot.slane %v6271, 6
      %v6370 = vrot.slane %v6272, 2
      %v6371 = vrot.slane %v6272, 4
      %v6372 = vrot.slane %v6272, 6
      %v6373 = vrot.slane %v6273, 2
      %v6374 = vrot.slane %v6273, 4
      %v6375 = vrot.slane %v6273, 6
      %v6376 = vrot.slane %v6274, 2
      %v6377 = vrot.slane %v6274, 4
      %v6378 = vrot.slane %v6274, 6
      %v6379 = vrot.slane %v6275, 2
      %v6380 = vrot.slane %v6275, 4
      %v6381 = vrot.slane %v6275, 6
      %v6382 = vrot.slane %v6276, 2
      %v6383 = vrot.slane %v6276, 4
      %v6384 = vrot.slane %v6276, 6
      %v6385 = vrot.slane %v6277, 2
      %v6386 = vrot.slane %v6277, 4
      %v6387 = vrot.slane %v6277, 6
      %v6388 = vrot.slane %v6278, 2
      %v6389 = vrot.slane %v6278, 4
      %v6390 = vrot.slane %v6278, 6
      %v6391 = vrot.slane %v6279, 2
      %v6392 = vrot.slane %v6279, 4
      %v6393 = vrot.slane %v6279, 6
      %v6394 = vrot.slane %v6280, 2
      %v6395 = vrot.slane %v6280, 4
      %v6396 = vrot.slane %v6280, 6
      %v6397 = vrot.slane %v6281, 2
      %v6398 = vrot.slane %v6281, 4
      %v6399 = vrot.slane %v6281, 6
      %v6400 = vrot.slane %v6282, 2
      %v6401 = vrot.slane %v6282, 4
      %v6402 = vrot.slane %v6282, 6
      %v6403 = vrot.slane %v6283, 2
      %v6404 = vrot.slane %v6283, 4
      %v6405 = vrot.slane %v6283, 6
      %v6406 = vrot.slane %v6284, 2
      %v6407 = vrot.slane %v6284, 4
      %v6408 = vrot.slane %v6284, 6
      %v6409 = vrot.slane %v6285, 2
      %v6410 = vrot.slane %v6285, 4
      %v6411 = vrot.slane %v6285, 6
      %v6412 = vrot.slane %v6286, 2
      %v6413 = vrot.slane %v6286, 4
      %v6414 = vrot.slane %v6286, 6
      %v6415 = vperm.slane %v6255, 0
      %v6416 = vperm.slane %v6319, 0
      %v6417 = vperm.slane %v6320, 0
      %v6418 = vperm.slane %v6321, 0
      %v6419 = vperm.slane %v6256, 0
      %v6420 = vperm.slane %v6322, 0
      %v6421 = vperm.slane %v6323, 0
      %v6422 = vperm.slane %v6324, 0
      %v6423 = vperm.slane %v6259, 0
      %v6424 = vperm.slane %v6331, 0
      %v6425 = vperm.slane %v6332, 0
      %v6426 = vperm.slane %v6333, 0
      %v6427 = vperm.slane %v6260, 0
      %v6428 = vperm.slane %v6334, 0
      %v6429 = vperm.slane %v6335, 0
      %v6430 = vperm.slane %v6336, 0
      %v6431 = vperm.slane %v6263, 0
      %v6432 = vperm.slane %v6343, 0
      %v6433 = vperm.slane %v6344, 0
      %v6434 = vperm.slane %v6345, 0
      %v6435 = vperm.slane %v6264, 0
      %v6436 = vperm.slane %v6346, 0
      %v6437 = vperm.slane %v6347, 0
      %v6438 = vperm.slane %v6348, 0
      %v6439 = vperm.slane %v6267, 0
      %v6440 = vperm.slane %v6355, 0
      %v6441 = vperm.slane %v6356, 0
      %v6442 = vperm.slane %v6357, 0
      %v6443 = vperm.slane %v6268, 0
      %v6444 = vperm.slane %v6358, 0
      %v6445 = vperm.slane %v6359, 0
      %v6446 = vperm.slane %v6360, 0
      %v6447 = vperm.slane %v6271, 0
      %v6448 = vperm.slane %v6367, 0
      %v6449 = vperm.slane %v6368, 0
      %v6450 = vperm.slane %v6369, 0
      %v6451 = vperm.slane %v6272, 0
      %v6452 = vperm.slane %v6370, 0
      %v6453 = vperm.slane %v6371, 0
      %v6454 = vperm.slane %v6372, 0
      %v6455 = vperm.slane %v6275, 0
      %v6456 = vperm.slane %v6379, 0
      %v6457 = vperm.slane %v6380, 0
      %v6458 = vperm.slane %v6381, 0
      %v6459 = vperm.slane %v6276, 0
      %v6460 = vperm.slane %v6382, 0
      %v6461 = vperm.slane %v6383, 0
      %v6462 = vperm.slane %v6384, 0
      %v6463 = vperm.slane %v6279, 0
      %v6464 = vperm.slane %v6391, 0
      %v6465 = vperm.slane %v6392, 0
      %v6466 = vperm.slane %v6393, 0
      %v6467 = vperm.slane %v6280, 0
      %v6468 = vperm.slane %v6394, 0
      %v6469 = vperm.slane %v6395, 0
      %v6470 = vperm.slane %v6396, 0
      %v6471 = vperm.slane %v6283, 0
      %v6472 = vperm.slane %v6403, 0
      %v6473 = vperm.slane %v6404, 0
      %v6474 = vperm.slane %v6405, 0
      %v6475 = vperm.slane %v6284, 0
      %v6476 = vperm.slane %v6406, 0
      %v6477 = vperm.slane %v6407, 0
      %v6478 = vperm.slane %v6408, 0
      %v6479 = vsel %vm2288, %v6416, %v6415
      %v6480 = vsel %vm2290, %v6417, %v6479
      %v6481 = vsel %vm2292, %v6418, %v6480
      %v6482 = vsel %vm2294, %v6419, %v6481
      %v6483 = vsel %vm2296, %v6420, %v6482
      %v6484 = vsel %vm2298, %v6421, %v6483
      %v6485 = vsel %vm2300, %v6422, %v6484
      %v6486 = vsel %vm2288, %v6424, %v6423
      %v6487 = vsel %vm2290, %v6425, %v6486
      %v6488 = vsel %vm2292, %v6426, %v6487
      %v6489 = vsel %vm2294, %v6427, %v6488
      %v6490 = vsel %vm2296, %v6428, %v6489
      %v6491 = vsel %vm2298, %v6429, %v6490
      %v6492 = vsel %vm2300, %v6430, %v6491
      %v6493 = vsel %vm2288, %v6432, %v6431
      %v6494 = vsel %vm2290, %v6433, %v6493
      %v6495 = vsel %vm2292, %v6434, %v6494
      %v6496 = vsel %vm2294, %v6435, %v6495
      %v6497 = vsel %vm2296, %v6436, %v6496
      %v6498 = vsel %vm2298, %v6437, %v6497
      %v6499 = vsel %vm2300, %v6438, %v6498
      %v6500 = vsel %vm2288, %v6440, %v6439
      %v6501 = vsel %vm2290, %v6441, %v6500
      %v6502 = vsel %vm2292, %v6442, %v6501
      %v6503 = vsel %vm2294, %v6443, %v6502
      %v6504 = vsel %vm2296, %v6444, %v6503
      %v6505 = vsel %vm2298, %v6445, %v6504
      %v6506 = vsel %vm2300, %v6446, %v6505
      %v6507 = vsel %vm2288, %v6448, %v6447
      %v6508 = vsel %vm2290, %v6449, %v6507
      %v6509 = vsel %vm2292, %v6450, %v6508
      %v6510 = vsel %vm2294, %v6451, %v6509
      %v6511 = vsel %vm2296, %v6452, %v6510
      %v6512 = vsel %vm2298, %v6453, %v6511
      %v6513 = vsel %vm2300, %v6454, %v6512
      %v6514 = vsel %vm2288, %v6456, %v6455
      %v6515 = vsel %vm2290, %v6457, %v6514
      %v6516 = vsel %vm2292, %v6458, %v6515
      %v6517 = vsel %vm2294, %v6459, %v6516
      %v6518 = vsel %vm2296, %v6460, %v6517
      %v6519 = vsel %vm2298, %v6461, %v6518
      %v6520 = vsel %vm2300, %v6462, %v6519
      %v6521 = vsel %vm2288, %v6464, %v6463
      %v6522 = vsel %vm2290, %v6465, %v6521
      %v6523 = vsel %vm2292, %v6466, %v6522
      %v6524 = vsel %vm2294, %v6467, %v6523
      %v6525 = vsel %vm2296, %v6468, %v6524
      %v6526 = vsel %vm2298, %v6469, %v6525
      %v6527 = vsel %vm2300, %v6470, %v6526
      %v6528 = vsel %vm2288, %v6472, %v6471
      %v6529 = vsel %vm2290, %v6473, %v6528
      %v6530 = vsel %vm2292, %v6474, %v6529
      %v6531 = vsel %vm2294, %v6475, %v6530
      %v6532 = vsel %vm2296, %v6476, %v6531
      %v6533 = vsel %vm2298, %v6477, %v6532
      %v6534 = vsel %vm2300, %v6478, %v6533
      %6535 = vrot.lane.b32.xlu0 %v6485, 32
      %v6536 = vpop.permute.xlu0 %6535
      %6537 = vrot.lane.b32.xlu0 %v6492, 32
      %v6538 = vpop.permute.xlu0 %6537
      %6539 = vrot.lane.b32.xlu0 %v6499, 32
      %v6540 = vpop.permute.xlu0 %6539
      %6541 = vrot.lane.b32.xlu0 %v6506, 32
      %v6542 = vpop.permute.xlu0 %6541
      %6543 = vrot.lane.b32.xlu0 %v6513, 32
      %v6544 = vpop.permute.xlu0 %6543
      %6545 = vrot.lane.b32.xlu0 %v6520, 32
      %v6546 = vpop.permute.xlu0 %6545
      %6547 = vrot.lane.b32.xlu0 %v6527, 32
      %v6548 = vpop.permute.xlu0 %6547
      %6549 = vrot.lane.b32.xlu0 %v6534, 32
      %v6550 = vpop.permute.xlu0 %6549
      %vm6559 = vcmask 523520
      %6560 = vst.msk [vmem:[#allocation5] sm:$0xff] %vm6559, %v6536
      %6561 = vst.msk [vmem:[#allocation5 + $0x10] sm:$0xff] %vm6559, %v6538
      %6562 = vst.msk [vmem:[#allocation5 + $0x20] sm:$0xff] %vm6559, %v6540
      %6563 = vst.msk [vmem:[#allocation5 + $0x30] sm:$0xff] %vm6559, %v6542
      %6564 = vst.msk [vmem:[#allocation5 + $0x40] sm:$0xff] %vm6559, %v6544
      %6565 = vst.msk [vmem:[#allocation5 + $0x50] sm:$0xff] %vm6559, %v6546
      %6566 = vst.msk [vmem:[#allocation5 + $0x60] sm:$0xff] %vm6559, %v6548
      %6567 = vst.msk [vmem:[#allocation5 + $0x70] sm:$0xff] %vm6559, %v6550
      %v6568 = vperm.slane %v6257, 0
      %v6569 = vperm.slane %v6325, 0
      %v6570 = vperm.slane %v6326, 0
      %v6571 = vperm.slane %v6327, 0
      %v6572 = vperm.slane %v6258, 0
      %v6573 = vperm.slane %v6328, 0
      %v6574 = vperm.slane %v6329, 0
      %v6575 = vperm.slane %v6330, 0
      %v6576 = vperm.slane %v6261, 0
      %v6577 = vperm.slane %v6337, 0
      %v6578 = vperm.slane %v6338, 0
      %v6579 = vperm.slane %v6339, 0
      %v6580 = vperm.slane %v6262, 0
      %v6581 = vperm.slane %v6340, 0
      %v6582 = vperm.slane %v6341, 0
      %v6583 = vperm.slane %v6342, 0
      %v6584 = vperm.slane %v6265, 0
      %v6585 = vperm.slane %v6349, 0
      %v6586 = vperm.slane %v6350, 0
      %v6587 = vperm.slane %v6351, 0
      %v6588 = vperm.slane %v6266, 0
      %v6589 = vperm.slane %v6352, 0
      %v6590 = vperm.slane %v6353, 0
      %v6591 = vperm.slane %v6354, 0
      %v6592 = vperm.slane %v6269, 0
      %v6593 = vperm.slane %v6361, 0
      %v6594 = vperm.slane %v6362, 0
      %v6595 = vperm.slane %v6363, 0
      %v6596 = vperm.slane %v6270, 0
      %v6597 = vperm.slane %v6364, 0
      %v6598 = vperm.slane %v6365, 0
      %v6599 = vperm.slane %v6366, 0
      %v6600 = vperm.slane %v6273, 0
      %v6601 = vperm.slane %v6373, 0
      %v6602 = vperm.slane %v6374, 0
      %v6603 = vperm.slane %v6375, 0
      %v6604 = vperm.slane %v6274, 0
      %v6605 = vperm.slane %v6376, 0
      %v6606 = vperm.slane %v6377, 0
      %v6607 = vperm.slane %v6378, 0
      %v6608 = vperm.slane %v6277, 0
      %v6609 = vperm.slane %v6385, 0
      %v6610 = vperm.slane %v6386, 0
      %v6611 = vperm.slane %v6387, 0
      %v6612 = vperm.slane %v6278, 0
      %v6613 = vperm.slane %v6388, 0
      %v6614 = vperm.slane %v6389, 0
      %v6615 = vperm.slane %v6390, 0
      %v6616 = vperm.slane %v6281, 0
      %v6617 = vperm.slane %v6397, 0
      %v6618 = vperm.slane %v6398, 0
      %v6619 = vperm.slane %v6399, 0
      %v6620 = vperm.slane %v6282, 0
      %v6621 = vperm.slane %v6400, 0
      %v6622 = vperm.slane %v6401, 0
      %v6623 = vperm.slane %v6402, 0
      %v6624 = vperm.slane %v6285, 0
      %v6625 = vperm.slane %v6409, 0
      %v6626 = vperm.slane %v6410, 0
      %v6627 = vperm.slane %v6411, 0
      %v6628 = vperm.slane %v6286, 0
      %v6629 = vperm.slane %v6412, 0
      %v6630 = vperm.slane %v6413, 0
      %v6631 = vperm.slane %v6414, 0
      %v6632 = vsel %vm2288, %v6569, %v6568
      %v6633 = vsel %vm2290, %v6570, %v6632
      %v6634 = vsel %vm2292, %v6571, %v6633
      %v6635 = vsel %vm2294, %v6572, %v6634
      %v6636 = vsel %vm2296, %v6573, %v6635
      %v6637 = vsel %vm2298, %v6574, %v6636
      %v6638 = vsel %vm2300, %v6575, %v6637
      %v6639 = vsel %vm2288, %v6577, %v6576
      %v6640 = vsel %vm2290, %v6578, %v6639
      %v6641 = vsel %vm2292, %v6579, %v6640
      %v6642 = vsel %vm2294, %v6580, %v6641
      %v6643 = vsel %vm2296, %v6581, %v6642
      %v6644 = vsel %vm2298, %v6582, %v6643
      %v6645 = vsel %vm2300, %v6583, %v6644
      %v6646 = vsel %vm2288, %v6585, %v6584
      %v6647 = vsel %vm2290, %v6586, %v6646
      %v6648 = vsel %vm2292, %v6587, %v6647
      %v6649 = vsel %vm2294, %v6588, %v6648
      %v6650 = vsel %vm2296, %v6589, %v6649
      %v6651 = vsel %vm2298, %v6590, %v6650
      %v6652 = vsel %vm2300, %v6591, %v6651
      %v6653 = vsel %vm2288, %v6593, %v6592
      %v6654 = vsel %vm2290, %v6594, %v6653
      %v6655 = vsel %vm2292, %v6595, %v6654
      %v6656 = vsel %vm2294, %v6596, %v6655
      %v6657 = vsel %vm2296, %v6597, %v6656
      %v6658 = vsel %vm2298, %v6598, %v6657
      %v6659 = vsel %vm2300, %v6599, %v6658
      %v6660 = vsel %vm2288, %v6601, %v6600
      %v6661 = vsel %vm2290, %v6602, %v6660
      %v6662 = vsel %vm2292, %v6603, %v6661
      %v6663 = vsel %vm2294, %v6604, %v6662
      %v6664 = vsel %vm2296, %v6605, %v6663
      %v6665 = vsel %vm2298, %v6606, %v6664
      %v6666 = vsel %vm2300, %v6607, %v6665
      %v6667 = vsel %vm2288, %v6609, %v6608
      %v6668 = vsel %vm2290, %v6610, %v6667
      %v6669 = vsel %vm2292, %v6611, %v6668
      %v6670 = vsel %vm2294, %v6612, %v6669
      %v6671 = vsel %vm2296, %v6613, %v6670
      %v6672 = vsel %vm2298, %v6614, %v6671
      %v6673 = vsel %vm2300, %v6615, %v6672
      %v6674 = vsel %vm2288, %v6617, %v6616
      %v6675 = vsel %vm2290, %v6618, %v6674
      %v6676 = vsel %vm2292, %v6619, %v6675
      %v6677 = vsel %vm2294, %v6620, %v6676
      %v6678 = vsel %vm2296, %v6621, %v6677
      %v6679 = vsel %vm2298, %v6622, %v6678
      %v6680 = vsel %vm2300, %v6623, %v6679
      %v6681 = vsel %vm2288, %v6625, %v6624
      %v6682 = vsel %vm2290, %v6626, %v6681
      %v6683 = vsel %vm2292, %v6627, %v6682
      %v6684 = vsel %vm2294, %v6628, %v6683
      %v6685 = vsel %vm2296, %v6629, %v6684
      %v6686 = vsel %vm2298, %v6630, %v6685
      %v6687 = vsel %vm2300, %v6631, %v6686
      %6688 = vrot.lane.b32.xlu0 %v6638, 32
      %v6689 = vpop.permute.xlu0 %6688
      %6690 = vrot.lane.b32.xlu0 %v6645, 32
      %v6691 = vpop.permute.xlu0 %6690
      %6692 = vrot.lane.b32.xlu0 %v6652, 32
      %v6693 = vpop.permute.xlu0 %6692
      %6694 = vrot.lane.b32.xlu0 %v6659, 32
      %v6695 = vpop.permute.xlu0 %6694
      %6696 = vrot.lane.b32.xlu0 %v6666, 32
      %v6697 = vpop.permute.xlu0 %6696
      %6698 = vrot.lane.b32.xlu0 %v6673, 32
      %v6699 = vpop.permute.xlu0 %6698
      %6700 = vrot.lane.b32.xlu0 %v6680, 32
      %v6701 = vpop.permute.xlu0 %6700
      %6702 = vrot.lane.b32.xlu0 %v6687, 32
      %v6703 = vpop.permute.xlu0 %6702
      %s6712 = scalar_lea.vmem [#allocation4], 16
      %6713 = vst.msk [vmem:[%s6712] sm:$0xff] %vm6559, %v6689
      %6714 = vst.msk [vmem:[%s6712 + $0x10] sm:$0xff] %vm6559, %v6691
      %6715 = vst.msk [vmem:[%s6712 + $0x20] sm:$0xff] %vm6559, %v6693
      %6716 = vst.msk [vmem:[%s6712 + $0x30] sm:$0xff] %vm6559, %v6695
      %6717 = vst.msk [vmem:[%s6712 + $0x40] sm:$0xff] %vm6559, %v6697
      %6718 = vst.msk [vmem:[%s6712 + $0x50] sm:$0xff] %vm6559, %v6699
      %6719 = vst.msk [vmem:[%s6712 + $0x60] sm:$0xff] %vm6559, %v6701
      %6720 = vst.msk [vmem:[%s6712 + $0x70] sm:$0xff] %vm6559, %v6703
      %v6721 = vperm.slane %v6255, 1
      %v6722 = vperm.slane %v6319, 1
      %v6723 = vperm.slane %v6320, 1
      %v6724 = vperm.slane %v6321, 1
      %v6725 = vperm.slane %v6256, 1
      %v6726 = vperm.slane %v6322, 1
      %v6727 = vperm.slane %v6323, 1
      %v6728 = vperm.slane %v6324, 1
      %v6729 = vperm.slane %v6259, 1
      %v6730 = vperm.slane %v6331, 1
      %v6731 = vperm.slane %v6332, 1
      %v6732 = vperm.slane %v6333, 1
      %v6733 = vperm.slane %v6260, 1
      %v6734 = vperm.slane %v6334, 1
      %v6735 = vperm.slane %v6335, 1
      %v6736 = vperm.slane %v6336, 1
      %v6737 = vperm.slane %v6263, 1
      %v6738 = vperm.slane %v6343, 1
      %v6739 = vperm.slane %v6344, 1
      %v6740 = vperm.slane %v6345, 1
      %v6741 = vperm.slane %v6264, 1
      %v6742 = vperm.slane %v6346, 1
      %v6743 = vperm.slane %v6347, 1
      %v6744 = vperm.slane %v6348, 1
      %v6745 = vperm.slane %v6267, 1
      %v6746 = vperm.slane %v6355, 1
      %v6747 = vperm.slane %v6356, 1
      %v6748 = vperm.slane %v6357, 1
      %v6749 = vperm.slane %v6268, 1
      %v6750 = vperm.slane %v6358, 1
      %v6751 = vperm.slane %v6359, 1
      %v6752 = vperm.slane %v6360, 1
      %v6753 = vperm.slane %v6271, 1
      %v6754 = vperm.slane %v6367, 1
      %v6755 = vperm.slane %v6368, 1
      %v6756 = vperm.slane %v6369, 1
      %v6757 = vperm.slane %v6272, 1
      %v6758 = vperm.slane %v6370, 1
      %v6759 = vperm.slane %v6371, 1
      %v6760 = vperm.slane %v6372, 1
      %v6761 = vperm.slane %v6275, 1
      %v6762 = vperm.slane %v6379, 1
      %v6763 = vperm.slane %v6380, 1
      %v6764 = vperm.slane %v6381, 1
      %v6765 = vperm.slane %v6276, 1
      %v6766 = vperm.slane %v6382, 1
      %v6767 = vperm.slane %v6383, 1
      %v6768 = vperm.slane %v6384, 1
      %v6769 = vperm.slane %v6279, 1
      %v6770 = vperm.slane %v6391, 1
      %v6771 = vperm.slane %v6392, 1
      %v6772 = vperm.slane %v6393, 1
      %v6773 = vperm.slane %v6280, 1
      %v6774 = vperm.slane %v6394, 1
      %v6775 = vperm.slane %v6395, 1
      %v6776 = vperm.slane %v6396, 1
      %v6777 = vperm.slane %v6283, 1
      %v6778 = vperm.slane %v6403, 1
      %v6779 = vperm.slane %v6404, 1
      %v6780 = vperm.slane %v6405, 1
      %v6781 = vperm.slane %v6284, 1
      %v6782 = vperm.slane %v6406, 1
      %v6783 = vperm.slane %v6407, 1
      %v6784 = vperm.slane %v6408, 1
      %v6785 = vsel %vm2290, %v6722, %v6721
      %v6786 = vsel %vm2292, %v6723, %v6785
      %v6787 = vsel %vm2294, %v6724, %v6786
      %v6788 = vsel %vm2296, %v6725, %v6787
      %v6789 = vsel %vm2298, %v6726, %v6788
      %v6790 = vsel %vm2300, %v6727, %v6789
      %v6791 = vsel %vm2290, %v6730, %v6729
      %v6792 = vsel %vm2292, %v6731, %v6791
      %v6793 = vsel %vm2294, %v6732, %v6792
      %v6794 = vsel %vm2296, %v6733, %v6793
      %v6795 = vsel %vm2298, %v6734, %v6794
      %v6796 = vsel %vm2300, %v6735, %v6795
      %v6797 = vsel %vm2290, %v6738, %v6737
      %v6798 = vsel %vm2292, %v6739, %v6797
      %v6799 = vsel %vm2294, %v6740, %v6798
      %v6800 = vsel %vm2296, %v6741, %v6799
      %v6801 = vsel %vm2298, %v6742, %v6800
      %v6802 = vsel %vm2300, %v6743, %v6801
      %v6803 = vsel %vm2290, %v6746, %v6745
      %v6804 = vsel %vm2292, %v6747, %v6803
      %v6805 = vsel %vm2294, %v6748, %v6804
      %v6806 = vsel %vm2296, %v6749, %v6805
      %v6807 = vsel %vm2298, %v6750, %v6806
      %v6808 = vsel %vm2300, %v6751, %v6807
      %v6809 = vsel %vm2290, %v6754, %v6753
      %v6810 = vsel %vm2292, %v6755, %v6809
      %v6811 = vsel %vm2294, %v6756, %v6810
      %v6812 = vsel %vm2296, %v6757, %v6811
      %v6813 = vsel %vm2298, %v6758, %v6812
      %v6814 = vsel %vm2300, %v6759, %v6813
      %v6815 = vsel %vm2290, %v6762, %v6761
      %v6816 = vsel %vm2292, %v6763, %v6815
      %v6817 = vsel %vm2294, %v6764, %v6816
      %v6818 = vsel %vm2296, %v6765, %v6817
      %v6819 = vsel %vm2298, %v6766, %v6818
      %v6820 = vsel %vm2300, %v6767, %v6819
      %v6821 = vsel %vm2290, %v6770, %v6769
      %v6822 = vsel %vm2292, %v6771, %v6821
      %v6823 = vsel %vm2294, %v6772, %v6822
      %v6824 = vsel %vm2296, %v6773, %v6823
      %v6825 = vsel %vm2298, %v6774, %v6824
      %v6826 = vsel %vm2300, %v6775, %v6825
      %v6827 = vsel %vm2290, %v6778, %v6777
      %v6828 = vsel %vm2292, %v6779, %v6827
      %v6829 = vsel %vm2294, %v6780, %v6828
      %v6830 = vsel %vm2296, %v6781, %v6829
      %v6831 = vsel %vm2298, %v6782, %v6830
      %v6832 = vsel %vm2300, %v6783, %v6831
      %vm6849 = vcmask 261121
      %6850 = vst.msk [vmem:[#allocation5] sm:$0xfe] %vm6849, %v6790
      %6851 = vst.msk [vmem:[#allocation5 + $0x8] sm:$0x1] %vm389, %v6728
      %6852 = vst.msk [vmem:[#allocation5 + $0x10] sm:$0xfe] %vm6849, %v6796
      %6853 = vst.msk [vmem:[#allocation5 + $0x18] sm:$0x1] %vm389, %v6736
      %6854 = vst.msk [vmem:[#allocation5 + $0x20] sm:$0xfe] %vm6849, %v6802
      %6855 = vst.msk [vmem:[#allocation5 + $0x28] sm:$0x1] %vm389, %v6744
      %6856 = vst.msk [vmem:[#allocation5 + $0x30] sm:$0xfe] %vm6849, %v6808
      %6857 = vst.msk [vmem:[#allocation5 + $0x38] sm:$0x1] %vm389, %v6752
      %6858 = vst.msk [vmem:[#allocation5 + $0x40] sm:$0xfe] %vm6849, %v6814
      %6859 = vst.msk [vmem:[#allocation5 + $0x48] sm:$0x1] %vm389, %v6760
      %6860 = vst.msk [vmem:[#allocation5 + $0x50] sm:$0xfe] %vm6849, %v6820
      %6861 = vst.msk [vmem:[#allocation5 + $0x58] sm:$0x1] %vm389, %v6768
      %6862 = vst.msk [vmem:[#allocation5 + $0x60] sm:$0xfe] %vm6849, %v6826
      %6863 = vst.msk [vmem:[#allocation5 + $0x68] sm:$0x1] %vm389, %v6776
      %6864 = vst.msk [vmem:[#allocation5 + $0x70] sm:$0xfe] %vm6849, %v6832
      %6865 = vst.msk [vmem:[#allocation5 + $0x78] sm:$0x1] %vm389, %v6784
      %v6866 = vperm.slane %v6257, 1
      %v6867 = vperm.slane %v6325, 1
      %v6868 = vperm.slane %v6326, 1
      %v6869 = vperm.slane %v6327, 1
      %v6870 = vperm.slane %v6258, 1
      %v6871 = vperm.slane %v6328, 1
      %v6872 = vperm.slane %v6329, 1
      %v6873 = vperm.slane %v6330, 1
      %v6874 = vperm.slane %v6261, 1
      %v6875 = vperm.slane %v6337, 1
      %v6876 = vperm.slane %v6338, 1
      %v6877 = vperm.slane %v6339, 1
      %v6878 = vperm.slane %v6262, 1
      %v6879 = vperm.slane %v6340, 1
      %v6880 = vperm.slane %v6341, 1
      %v6881 = vperm.slane %v6342, 1
      %v6882 = vperm.slane %v6265, 1
      %v6883 = vperm.slane %v6349, 1
      %v6884 = vperm.slane %v6350, 1
      %v6885 = vperm.slane %v6351, 1
      %v6886 = vperm.slane %v6266, 1
      %v6887 = vperm.slane %v6352, 1
      %v6888 = vperm.slane %v6353, 1
      %v6889 = vperm.slane %v6354, 1
      %v6890 = vperm.slane %v6269, 1
      %v6891 = vperm.slane %v6361, 1
      %v6892 = vperm.slane %v6362, 1
      %v6893 = vperm.slane %v6363, 1
      %v6894 = vperm.slane %v6270, 1
      %v6895 = vperm.slane %v6364, 1
      %v6896 = vperm.slane %v6365, 1
      %v6897 = vperm.slane %v6366, 1
      %v6898 = vperm.slane %v6273, 1
      %v6899 = vperm.slane %v6373, 1
      %v6900 = vperm.slane %v6374, 1
      %v6901 = vperm.slane %v6375, 1
      %v6902 = vperm.slane %v6274, 1
      %v6903 = vperm.slane %v6376, 1
      %v6904 = vperm.slane %v6377, 1
      %v6905 = vperm.slane %v6378, 1
      %v6906 = vperm.slane %v6277, 1
      %v6907 = vperm.slane %v6385, 1
      %v6908 = vperm.slane %v6386, 1
      %v6909 = vperm.slane %v6387, 1
      %v6910 = vperm.slane %v6278, 1
      %v6911 = vperm.slane %v6388, 1
      %v6912 = vperm.slane %v6389, 1
      %v6913 = vperm.slane %v6390, 1
      %v6914 = vperm.slane %v6281, 1
      %v6915 = vperm.slane %v6397, 1
      %v6916 = vperm.slane %v6398, 1
      %v6917 = vperm.slane %v6399, 1
      %v6918 = vperm.slane %v6282, 1
      %v6919 = vperm.slane %v6400, 1
      %v6920 = vperm.slane %v6401, 1
      %v6921 = vperm.slane %v6402, 1
      %v6922 = vperm.slane %v6285, 1
      %v6923 = vperm.slane %v6409, 1
      %v6924 = vperm.slane %v6410, 1
      %v6925 = vperm.slane %v6411, 1
      %v6926 = vperm.slane %v6286, 1
      %v6927 = vperm.slane %v6412, 1
      %v6928 = vperm.slane %v6413, 1
      %v6929 = vperm.slane %v6414, 1
      %v6930 = vsel %vm2290, %v6867, %v6866
      %v6931 = vsel %vm2292, %v6868, %v6930
      %v6932 = vsel %vm2294, %v6869, %v6931
      %v6933 = vsel %vm2296, %v6870, %v6932
      %v6934 = vsel %vm2298, %v6871, %v6933
      %v6935 = vsel %vm2300, %v6872, %v6934
      %v6936 = vsel %vm2290, %v6875, %v6874
      %v6937 = vsel %vm2292, %v6876, %v6936
      %v6938 = vsel %vm2294, %v6877, %v6937
      %v6939 = vsel %vm2296, %v6878, %v6938
      %v6940 = vsel %vm2298, %v6879, %v6939
      %v6941 = vsel %vm2300, %v6880, %v6940
      %v6942 = vsel %vm2290, %v6883, %v6882
      %v6943 = vsel %vm2292, %v6884, %v6942
      %v6944 = vsel %vm2294, %v6885, %v6943
      %v6945 = vsel %vm2296, %v6886, %v6944
      %v6946 = vsel %vm2298, %v6887, %v6945
      %v6947 = vsel %vm2300, %v6888, %v6946
      %v6948 = vsel %vm2290, %v6891, %v6890
      %v6949 = vsel %vm2292, %v6892, %v6948
      %v6950 = vsel %vm2294, %v6893, %v6949
      %v6951 = vsel %vm2296, %v6894, %v6950
      %v6952 = vsel %vm2298, %v6895, %v6951
      %v6953 = vsel %vm2300, %v6896, %v6952
      %v6954 = vsel %vm2290, %v6899, %v6898
      %v6955 = vsel %vm2292, %v6900, %v6954
      %v6956 = vsel %vm2294, %v6901, %v6955
      %v6957 = vsel %vm2296, %v6902, %v6956
      %v6958 = vsel %vm2298, %v6903, %v6957
      %v6959 = vsel %vm2300, %v6904, %v6958
      %v6960 = vsel %vm2290, %v6907, %v6906
      %v6961 = vsel %vm2292, %v6908, %v6960
      %v6962 = vsel %vm2294, %v6909, %v6961
      %v6963 = vsel %vm2296, %v6910, %v6962
      %v6964 = vsel %vm2298, %v6911, %v6963
      %v6965 = vsel %vm2300, %v6912, %v6964
      %v6966 = vsel %vm2290, %v6915, %v6914
      %v6967 = vsel %vm2292, %v6916, %v6966
      %v6968 = vsel %vm2294, %v6917, %v6967
      %v6969 = vsel %vm2296, %v6918, %v6968
      %v6970 = vsel %vm2298, %v6919, %v6969
      %v6971 = vsel %vm2300, %v6920, %v6970
      %v6972 = vsel %vm2290, %v6923, %v6922
      %v6973 = vsel %vm2292, %v6924, %v6972
      %v6974 = vsel %vm2294, %v6925, %v6973
      %v6975 = vsel %vm2296, %v6926, %v6974
      %v6976 = vsel %vm2298, %v6927, %v6975
      %v6977 = vsel %vm2300, %v6928, %v6976
      %6994 = vst.msk [vmem:[%s6712] sm:$0xfe] %vm6849, %v6935
      %6995 = vst.msk [vmem:[%s6712 + $0x8] sm:$0x1] %vm389, %v6873
      %6996 = vst.msk [vmem:[%s6712 + $0x10] sm:$0xfe] %vm6849, %v6941
      %6997 = vst.msk [vmem:[%s6712 + $0x18] sm:$0x1] %vm389, %v6881
      %6998 = vst.msk [vmem:[%s6712 + $0x20] sm:$0xfe] %vm6849, %v6947
      %6999 = vst.msk [vmem:[%s6712 + $0x28] sm:$0x1] %vm389, %v6889
      %7000 = vst.msk [vmem:[%s6712 + $0x30] sm:$0xfe] %vm6849, %v6953
      %7001 = vst.msk [vmem:[%s6712 + $0x38] sm:$0x1] %vm389, %v6897
      %7002 = vst.msk [vmem:[%s6712 + $0x40] sm:$0xfe] %vm6849, %v6959
      %7003 = vst.msk [vmem:[%s6712 + $0x48] sm:$0x1] %vm389, %v6905
      %7004 = vst.msk [vmem:[%s6712 + $0x50] sm:$0xfe] %vm6849, %v6965
      %7005 = vst.msk [vmem:[%s6712 + $0x58] sm:$0x1] %vm389, %v6913
      %7006 = vst.msk [vmem:[%s6712 + $0x60] sm:$0xfe] %vm6849, %v6971
      %7007 = vst.msk [vmem:[%s6712 + $0x68] sm:$0x1] %vm389, %v6921
      %7008 = vst.msk [vmem:[%s6712 + $0x70] sm:$0xfe] %vm6849, %v6977
      %7009 = vst.msk [vmem:[%s6712 + $0x78] sm:$0x1] %vm389, %v6929
      %v7010 = vld [vmem:[#allocation4] sm:$0xff]
      %v7011 = vld [vmem:[#allocation4 + $0x10] sm:$0xff]
      %v7012 = vld [vmem:[#allocation4 + $0x20] sm:$0xff]
      %v7013 = vld [vmem:[#allocation4 + $0x30] sm:$0xff]
      %v7014 = vld [vmem:[#allocation4 + $0x40] sm:$0xff]
      %v7015 = vld [vmem:[#allocation4 + $0x50] sm:$0xff]
      %v7016 = vld [vmem:[#allocation4 + $0x60] sm:$0xff]
      %v7017 = vld [vmem:[#allocation4 + $0x70] sm:$0xff]
      %v7018 = vpack.c.bf16 %v7011, %v7010
      %v7019 = vpack.c.bf16 %v7013, %v7012
      %v7020 = vpack.c.bf16 %v7015, %v7014
      %v7021 = vpack.c.bf16 %v7017, %v7016
      %v7022 = vld [vmem:[%s5] sm:$0xf]
      %v7023 = vld [vmem:[%s5 + $0x4] sm:$0xf]
      %v7024 = vld [vmem:[%s5 + $0x8] sm:$0xf]
      %v7025 = vld [vmem:[%s5 + $0xc] sm:$0xf]
      %v7026 = vld [vmem:[%s5 + $0x10] sm:$0xf]
      %v7027 = vld [vmem:[%s5 + $0x14] sm:$0xf]
      %v7028 = vld [vmem:[%s5 + $0x18] sm:$0xf]
      %v7029 = vld [vmem:[%s5 + $0x1c] sm:$0xf]
      %v7030 = vld [vmem:[#allocation4 + $0x1] sm:$0xff]
      %v7031 = vld [vmem:[#allocation4 + $0x11] sm:$0xff]
      %v7032 = vld [vmem:[#allocation4 + $0x21] sm:$0xff]
      %v7033 = vld [vmem:[#allocation4 + $0x31] sm:$0xff]
      %v7034 = vld [vmem:[#allocation4 + $0x41] sm:$0xff]
      %v7035 = vld [vmem:[#allocation4 + $0x51] sm:$0xff]
      %v7036 = vld [vmem:[#allocation4 + $0x61] sm:$0xff]
      %v7037 = vld [vmem:[#allocation4 + $0x71] sm:$0xff]
      %v7038 = vpack.c.bf16 %v7031, %v7030
      %v7039 = vpack.c.bf16 %v7033, %v7032
      %v7040 = vpack.c.bf16 %v7035, %v7034
      %v7041 = vpack.c.bf16 %v7037, %v7036
      %s7042 = scalar_lea.vmem %s5, 32
      %v7043 = vld [vmem:[%s7042] sm:$0xf]
      %v7044 = vld [vmem:[%s7042 + $0x4] sm:$0xf]
      %v7045 = vld [vmem:[%s7042 + $0x8] sm:$0xf]
      %v7046 = vld [vmem:[%s7042 + $0xc] sm:$0xf]
      %v7047 = vld [vmem:[%s7042 + $0x10] sm:$0xf]
      %v7048 = vld [vmem:[%s7042 + $0x14] sm:$0xf]
      %v7049 = vld [vmem:[%s7042 + $0x18] sm:$0xf]
      %v7050 = vld [vmem:[%s7042 + $0x1c] sm:$0xf]
      %v7059 = vunpack.c.l.b16 %v7043
      %v7060 = vunpack.c.l.b16 %v7044
      %v7061 = vunpack.c.l.b16 %v7045
      %v7062 = vunpack.c.l.b16 %v7046
      %v7063 = vunpack.c.l.b16 %v7047
      %v7064 = vunpack.c.l.b16 %v7048
      %v7065 = vunpack.c.l.b16 %v7049
      %v7066 = vunpack.c.l.b16 %v7050
      %v7067 = vpack.c.b16 %v7060, %v7059
      %v7068 = vpack.c.b16 %v7062, %v7061
      %v7069 = vpack.c.b16 %v7064, %v7063
      %v7070 = vpack.c.b16 %v7066, %v7065
      %v7076 = vsel %vm490, %v7038, 0
      %v7079 = vsel %vm490, %v7039, 0
      %v7082 = vsel %vm490, %v7040, 0
      %v7085 = vsel %vm490, %v7041, 0
      %7087 = vmatpush.bf16.msra.mxu0 0
      %7088 = vmatpush.bf16.msra.mxu0 0
      %7089 = vmatpush.bf16.msra.mxu0 0
      %7090 = vmatpush.bf16.msra.mxu0 0
      %7091 = vmatpush.bf16.msra.mxu0 %v7070
      %7092 = vmatpush.bf16.msra.mxu0 %v7069
      %7093 = vmatpush.bf16.msra.mxu0 %v7068
      %7094 = vmatpush.bf16.msra.mxu0 %v7067
      %7095 = vmatmul.bf16.gmra.mxu0 %v7076
      %v7096 = vpop.f32.mrf.mxu0
      %v7097 = vadd.f32 0.0, %v7096
      %v7098 = vpop.f32.mrf.mxu0
      %v7099 = vadd.f32 0.0, %v7098
      %7100 = vmatmul.bf16.gmra.mxu0 %v7079
      %v7101 = vpop.f32.mrf.mxu0
      %v7102 = vadd.f32 0.0, %v7101
      %v7103 = vpop.f32.mrf.mxu0
      %v7104 = vadd.f32 0.0, %v7103
      %7105 = vmatmul.bf16.gmra.mxu0 %v7082
      %v7106 = vpop.f32.mrf.mxu0
      %v7107 = vadd.f32 0.0, %v7106
      %v7108 = vpop.f32.mrf.mxu0
      %v7109 = vadd.f32 0.0, %v7108
      %7110 = vmatmul.bf16.gmra.mxu0 %v7085
      %v7111 = vpop.f32.mrf.mxu0
      %v7112 = vadd.f32 0.0, %v7111
      %v7113 = vpop.f32.mrf.mxu0
      %v7114 = vadd.f32 0.0, %v7113
      %7115 = vdwg.mxu0
      %v7124 = vunpack.c.l.b16 %v7022
      %v7125 = vunpack.c.l.b16 %v7023
      %v7126 = vunpack.c.l.b16 %v7024
      %v7127 = vunpack.c.l.b16 %v7025
      %v7128 = vunpack.c.l.b16 %v7026
      %v7129 = vunpack.c.l.b16 %v7027
      %v7130 = vunpack.c.l.b16 %v7028
      %v7131 = vunpack.c.l.b16 %v7029
      %v7132 = vpack.c.b16 %v7125, %v7124
      %v7133 = vpack.c.b16 %v7127, %v7126
      %v7134 = vpack.c.b16 %v7129, %v7128
      %v7135 = vpack.c.b16 %v7131, %v7130
      %v7141 = vsel %vm490, %v7018, 0
      %v7144 = vsel %vm490, %v7019, 0
      %v7147 = vsel %vm490, %v7020, 0
      %v7150 = vsel %vm490, %v7021, 0
      %7152 = vmatpush.bf16.msra.mxu0 0
      %7153 = vmatpush.bf16.msra.mxu0 0
      %7154 = vmatpush.bf16.msra.mxu0 0
      %7155 = vmatpush.bf16.msra.mxu0 0
      %7156 = vmatpush.bf16.msra.mxu0 %v7135
      %7157 = vmatpush.bf16.msra.mxu0 %v7134
      %7158 = vmatpush.bf16.msra.mxu0 %v7133
      %7159 = vmatpush.bf16.msra.mxu0 %v7132
      %7160 = vmatmul.bf16.gmra.mxu0 %v7141
      %v7161 = vpop.f32.mrf.mxu0
      %v7162 = vadd.f32 %v7097, %v7161
      %v7163 = vpop.f32.mrf.mxu0
      %v7164 = vadd.f32 %v7099, %v7163
      %7165 = vmatmul.bf16.gmra.mxu0 %v7144
      %v7166 = vpop.f32.mrf.mxu0
      %v7167 = vadd.f32 %v7102, %v7166
      %v7168 = vpop.f32.mrf.mxu0
      %v7169 = vadd.f32 %v7104, %v7168
      %7170 = vmatmul.bf16.gmra.mxu0 %v7147
      %v7171 = vpop.f32.mrf.mxu0
      %v7172 = vadd.f32 %v7107, %v7171
      %v7173 = vpop.f32.mrf.mxu0
      %v7174 = vadd.f32 %v7109, %v7173
      %7175 = vmatmul.bf16.gmra.mxu0 %v7150
      %v7176 = vpop.f32.mrf.mxu0
      %v7177 = vadd.f32 %v7112, %v7176
      %v7178 = vpop.f32.mrf.mxu0
      %v7179 = vadd.f32 %v7114, %v7178
      %7180 = vdwg.mxu0
      %v7181 = vld [vmem:[#allocation5] sm:$0xff]
      %v7182 = vld [vmem:[#allocation5 + $0x10] sm:$0xff]
      %v7183 = vld [vmem:[#allocation5 + $0x20] sm:$0xff]
      %v7184 = vld [vmem:[#allocation5 + $0x30] sm:$0xff]
      %v7185 = vld [vmem:[#allocation5 + $0x40] sm:$0xff]
      %v7186 = vld [vmem:[#allocation5 + $0x50] sm:$0xff]
      %v7187 = vld [vmem:[#allocation5 + $0x60] sm:$0xff]
      %v7188 = vld [vmem:[#allocation5 + $0x70] sm:$0xff]
      %v7189 = vpack.c.bf16 %v7182, %v7181
      %v7190 = vpack.c.bf16 %v7184, %v7183
      %v7191 = vpack.c.bf16 %v7186, %v7185
      %v7192 = vpack.c.bf16 %v7188, %v7187
      %s7193 = scalar_lea.vmem %s5, 64
      %v7194 = vld [vmem:[%s7193] sm:$0xf]
      %v7195 = vld [vmem:[%s7193 + $0x4] sm:$0xf]
      %v7196 = vld [vmem:[%s7193 + $0x8] sm:$0xf]
      %v7197 = vld [vmem:[%s7193 + $0xc] sm:$0xf]
      %v7198 = vld [vmem:[%s7193 + $0x10] sm:$0xf]
      %v7199 = vld [vmem:[%s7193 + $0x14] sm:$0xf]
      %v7200 = vld [vmem:[%s7193 + $0x18] sm:$0xf]
      %v7201 = vld [vmem:[%s7193 + $0x1c] sm:$0xf]
      %v7210 = vunpack.c.l.b16 %v7194
      %v7211 = vunpack.c.l.b16 %v7195
      %v7212 = vunpack.c.l.b16 %v7196
      %v7213 = vunpack.c.l.b16 %v7197
      %v7214 = vunpack.c.l.b16 %v7198
      %v7215 = vunpack.c.l.b16 %v7199
      %v7216 = vunpack.c.l.b16 %v7200
      %v7217 = vunpack.c.l.b16 %v7201
      %v7218 = vpack.c.b16 %v7211, %v7210
      %v7219 = vpack.c.b16 %v7213, %v7212
      %v7220 = vpack.c.b16 %v7215, %v7214
      %v7221 = vpack.c.b16 %v7217, %v7216
      %v7227 = vsel %vm490, %v7189, 0
      %v7230 = vsel %vm490, %v7190, 0
      %v7233 = vsel %vm490, %v7191, 0
      %v7236 = vsel %vm490, %v7192, 0
      %7238 = vmatpush.bf16.msra.mxu0 0
      %7239 = vmatpush.bf16.msra.mxu0 0
      %7240 = vmatpush.bf16.msra.mxu0 0
      %7241 = vmatpush.bf16.msra.mxu0 0
      %7242 = vmatpush.bf16.msra.mxu0 %v7221
      %7243 = vmatpush.bf16.msra.mxu0 %v7220
      %7244 = vmatpush.bf16.msra.mxu0 %v7219
      %7245 = vmatpush.bf16.msra.mxu0 %v7218
      %7246 = vmatmul.bf16.gmra.mxu0 %v7227
      %v7247 = vpop.f32.mrf.mxu0
      %v7248 = vadd.f32 0.0, %v7247
      %v7249 = vpop.f32.mrf.mxu0
      %v7250 = vadd.f32 0.0, %v7249
      %7251 = vmatmul.bf16.gmra.mxu0 %v7230
      %v7252 = vpop.f32.mrf.mxu0
      %v7253 = vadd.f32 0.0, %v7252
      %v7254 = vpop.f32.mrf.mxu0
      %v7255 = vadd.f32 0.0, %v7254
      %7256 = vmatmul.bf16.gmra.mxu0 %v7233
      %v7257 = vpop.f32.mrf.mxu0
      %v7258 = vadd.f32 0.0, %v7257
      %v7259 = vpop.f32.mrf.mxu0
      %v7260 = vadd.f32 0.0, %v7259
      %7261 = vmatmul.bf16.gmra.mxu0 %v7236
      %v7262 = vpop.f32.mrf.mxu0
      %v7263 = vadd.f32 0.0, %v7262
      %v7264 = vpop.f32.mrf.mxu0
      %v7265 = vadd.f32 0.0, %v7264
      %7266 = vdwg.mxu0
      %v7267 = vadd.f32 %v7162, %v7248
      %v7268 = vadd.f32 %v7164, %v7250
      %v7269 = vadd.f32 %v7167, %v7253
      %v7270 = vadd.f32 %v7169, %v7255
      %v7271 = vadd.f32 %v7172, %v7258
      %v7272 = vadd.f32 %v7174, %v7260
      %v7273 = vadd.f32 %v7177, %v7263
      %v7274 = vadd.f32 %v7179, %v7265
      %v7275 = vld [vmem:[#allocation5 + $0x1] sm:$0xff]
      %v7276 = vld [vmem:[#allocation5 + $0x11] sm:$0xff]
      %v7277 = vld [vmem:[#allocation5 + $0x21] sm:$0xff]
      %v7278 = vld [vmem:[#allocation5 + $0x31] sm:$0xff]
      %v7279 = vld [vmem:[#allocation5 + $0x41] sm:$0xff]
      %v7280 = vld [vmem:[#allocation5 + $0x51] sm:$0xff]
      %v7281 = vld [vmem:[#allocation5 + $0x61] sm:$0xff]
      %v7282 = vld [vmem:[#allocation5 + $0x71] sm:$0xff]
      %v7283 = vpack.c.bf16 %v7276, %v7275
      %v7284 = vpack.c.bf16 %v7278, %v7277
      %v7285 = vpack.c.bf16 %v7280, %v7279
      %v7286 = vpack.c.bf16 %v7282, %v7281
      %s7287 = scalar_lea.vmem %s5, 96
      %v7288 = vld [vmem:[%s7287] sm:$0xf]
      %v7289 = vld [vmem:[%s7287 + $0x4] sm:$0xf]
      %v7290 = vld [vmem:[%s7287 + $0x8] sm:$0xf]
      %v7291 = vld [vmem:[%s7287 + $0xc] sm:$0xf]
      %v7292 = vld [vmem:[%s7287 + $0x10] sm:$0xf]
      %v7293 = vld [vmem:[%s7287 + $0x14] sm:$0xf]
      %v7294 = vld [vmem:[%s7287 + $0x18] sm:$0xf]
      %v7295 = vld [vmem:[%s7287 + $0x1c] sm:$0xf]
      %v7304 = vunpack.c.l.b16 %v7288
      %v7305 = vunpack.c.l.b16 %v7289
      %v7306 = vunpack.c.l.b16 %v7290
      %v7307 = vunpack.c.l.b16 %v7291
      %v7308 = vunpack.c.l.b16 %v7292
      %v7309 = vunpack.c.l.b16 %v7293
      %v7310 = vunpack.c.l.b16 %v7294
      %v7311 = vunpack.c.l.b16 %v7295
      %v7312 = vpack.c.b16 %v7305, %v7304
      %v7313 = vpack.c.b16 %v7307, %v7306
      %v7314 = vpack.c.b16 %v7309, %v7308
      %v7315 = vpack.c.b16 %v7311, %v7310
      %v7321 = vsel %vm490, %v7283, 0
      %v7324 = vsel %vm490, %v7284, 0
      %v7327 = vsel %vm490, %v7285, 0
      %v7330 = vsel %vm490, %v7286, 0
      %7332 = vmatpush.bf16.msra.mxu0 0
      %7333 = vmatpush.bf16.msra.mxu0 0
      %7334 = vmatpush.bf16.msra.mxu0 0
      %7335 = vmatpush.bf16.msra.mxu0 0
      %7336 = vmatpush.bf16.msra.mxu0 %v7315
      %7337 = vmatpush.bf16.msra.mxu0 %v7314
      %7338 = vmatpush.bf16.msra.mxu0 %v7313
      %7339 = vmatpush.bf16.msra.mxu0 %v7312
      %7340 = vmatmul.bf16.gmra.mxu0 %v7321
      %v7341 = vpop.f32.mrf.mxu0
      %v7342 = vadd.f32 0.0, %v7341
      %v7343 = vpop.f32.mrf.mxu0
      %v7344 = vadd.f32 0.0, %v7343
      %7345 = vmatmul.bf16.gmra.mxu0 %v7324
      %v7346 = vpop.f32.mrf.mxu0
      %v7347 = vadd.f32 0.0, %v7346
      %v7348 = vpop.f32.mrf.mxu0
      %v7349 = vadd.f32 0.0, %v7348
      %7350 = vmatmul.bf16.gmra.mxu0 %v7327
      %v7351 = vpop.f32.mrf.mxu0
      %v7352 = vadd.f32 0.0, %v7351
      %v7353 = vpop.f32.mrf.mxu0
      %v7354 = vadd.f32 0.0, %v7353
      %7355 = vmatmul.bf16.gmra.mxu0 %v7330
      %v7356 = vpop.f32.mrf.mxu0
      %v7357 = vadd.f32 0.0, %v7356
      %v7358 = vpop.f32.mrf.mxu0
      %v7359 = vadd.f32 0.0, %v7358
      %7360 = vdwg.mxu0
      %v7361 = vadd.f32 %v7267, %v7342
      %v7362 = vadd.f32 %v7268, %v7344
      %v7363 = vadd.f32 %v7269, %v7347
      %v7364 = vadd.f32 %v7270, %v7349
      %v7365 = vadd.f32 %v7271, %v7352
      %v7366 = vadd.f32 %v7272, %v7354
      %v7367 = vadd.f32 %v7273, %v7357
      %v7368 = vadd.f32 %v7274, %v7359
      %v7369 = vld [vmem:[%s6712] sm:$0xff]
      %v7370 = vld [vmem:[%s6712 + $0x10] sm:$0xff]
      %v7371 = vld [vmem:[%s6712 + $0x20] sm:$0xff]
      %v7372 = vld [vmem:[%s6712 + $0x30] sm:$0xff]
      %v7373 = vld [vmem:[%s6712 + $0x40] sm:$0xff]
      %v7374 = vld [vmem:[%s6712 + $0x50] sm:$0xff]
      %v7375 = vld [vmem:[%s6712 + $0x60] sm:$0xff]
      %v7376 = vld [vmem:[%s6712 + $0x70] sm:$0xff]
      %v7377 = vpack.c.bf16 %v7370, %v7369
      %v7378 = vpack.c.bf16 %v7372, %v7371
      %v7379 = vpack.c.bf16 %v7374, %v7373
      %v7380 = vpack.c.bf16 %v7376, %v7375
      %s7381 = scalar_lea.vmem %s5, 128
      %v7382 = vld [vmem:[%s7381] sm:$0xf]
      %v7383 = vld [vmem:[%s7381 + $0x4] sm:$0xf]
      %v7384 = vld [vmem:[%s7381 + $0x8] sm:$0xf]
      %v7385 = vld [vmem:[%s7381 + $0xc] sm:$0xf]
      %v7386 = vld [vmem:[%s7381 + $0x10] sm:$0xf]
      %v7387 = vld [vmem:[%s7381 + $0x14] sm:$0xf]
      %v7388 = vld [vmem:[%s7381 + $0x18] sm:$0xf]
      %v7389 = vld [vmem:[%s7381 + $0x1c] sm:$0xf]
      %v7398 = vunpack.c.l.b16 %v7382
      %v7399 = vunpack.c.l.b16 %v7383
      %v7400 = vunpack.c.l.b16 %v7384
      %v7401 = vunpack.c.l.b16 %v7385
      %v7402 = vunpack.c.l.b16 %v7386
      %v7403 = vunpack.c.l.b16 %v7387
      %v7404 = vunpack.c.l.b16 %v7388
      %v7405 = vunpack.c.l.b16 %v7389
      %v7406 = vpack.c.b16 %v7399, %v7398
      %v7407 = vpack.c.b16 %v7401, %v7400
      %v7408 = vpack.c.b16 %v7403, %v7402
      %v7409 = vpack.c.b16 %v7405, %v7404
      %v7415 = vsel %vm490, %v7377, 0
      %v7418 = vsel %vm490, %v7378, 0
      %v7421 = vsel %vm490, %v7379, 0
      %v7424 = vsel %vm490, %v7380, 0
      %7426 = vmatpush.bf16.msra.mxu0 0
      %7427 = vmatpush.bf16.msra.mxu0 0
      %7428 = vmatpush.bf16.msra.mxu0 0
      %7429 = vmatpush.bf16.msra.mxu0 0
      %7430 = vmatpush.bf16.msra.mxu0 %v7409
      %7431 = vmatpush.bf16.msra.mxu0 %v7408
      %7432 = vmatpush.bf16.msra.mxu0 %v7407
      %7433 = vmatpush.bf16.msra.mxu0 %v7406
      %7434 = vmatmul.bf16.gmra.mxu0 %v7415
      %v7435 = vpop.f32.mrf.mxu0
      %v7436 = vadd.f32 0.0, %v7435
      %v7437 = vpop.f32.mrf.mxu0
      %v7438 = vadd.f32 0.0, %v7437
      %7439 = vmatmul.bf16.gmra.mxu0 %v7418
      %v7440 = vpop.f32.mrf.mxu0
      %v7441 = vadd.f32 0.0, %v7440
      %v7442 = vpop.f32.mrf.mxu0
      %v7443 = vadd.f32 0.0, %v7442
      %7444 = vmatmul.bf16.gmra.mxu0 %v7421
      %v7445 = vpop.f32.mrf.mxu0
      %v7446 = vadd.f32 0.0, %v7445
      %v7447 = vpop.f32.mrf.mxu0
      %v7448 = vadd.f32 0.0, %v7447
      %7449 = vmatmul.bf16.gmra.mxu0 %v7424
      %v7450 = vpop.f32.mrf.mxu0
      %v7451 = vadd.f32 0.0, %v7450
      %v7452 = vpop.f32.mrf.mxu0
      %v7453 = vadd.f32 0.0, %v7452
      %7454 = vdwg.mxu0
      %v7455 = vadd.f32 %v7361, %v7436
      %v7456 = vadd.f32 %v7362, %v7438
      %v7457 = vadd.f32 %v7363, %v7441
      %v7458 = vadd.f32 %v7364, %v7443
      %v7459 = vadd.f32 %v7365, %v7446
      %v7460 = vadd.f32 %v7366, %v7448
      %v7461 = vadd.f32 %v7367, %v7451
      %v7462 = vadd.f32 %v7368, %v7453
      %v7463 = vld [vmem:[%s6712 + $0x1] sm:$0xff]
      %v7464 = vld [vmem:[%s6712 + $0x11] sm:$0xff]
      %v7465 = vld [vmem:[%s6712 + $0x21] sm:$0xff]
      %v7466 = vld [vmem:[%s6712 + $0x31] sm:$0xff]
      %v7467 = vld [vmem:[%s6712 + $0x41] sm:$0xff]
      %v7468 = vld [vmem:[%s6712 + $0x51] sm:$0xff]
      %v7469 = vld [vmem:[%s6712 + $0x61] sm:$0xff]
      %v7470 = vld [vmem:[%s6712 + $0x71] sm:$0xff]
      %v7471 = vpack.c.bf16 %v7464, %v7463
      %v7472 = vpack.c.bf16 %v7466, %v7465
      %v7473 = vpack.c.bf16 %v7468, %v7467
      %v7474 = vpack.c.bf16 %v7470, %v7469
      %s7475 = scalar_lea.vmem %s5, 160
      %v7476 = vld [vmem:[%s7475] sm:$0xf]
      %v7477 = vld [vmem:[%s7475 + $0x4] sm:$0xf]
      %v7478 = vld [vmem:[%s7475 + $0x8] sm:$0xf]
      %v7479 = vld [vmem:[%s7475 + $0xc] sm:$0xf]
      %v7480 = vld [vmem:[%s7475 + $0x10] sm:$0xf]
      %v7481 = vld [vmem:[%s7475 + $0x14] sm:$0xf]
      %v7482 = vld [vmem:[%s7475 + $0x18] sm:$0xf]
      %v7483 = vld [vmem:[%s7475 + $0x1c] sm:$0xf]
      %v7492 = vunpack.c.l.b16 %v7476
      %v7493 = vunpack.c.l.b16 %v7477
      %v7494 = vunpack.c.l.b16 %v7478
      %v7495 = vunpack.c.l.b16 %v7479
      %v7496 = vunpack.c.l.b16 %v7480
      %v7497 = vunpack.c.l.b16 %v7481
      %v7498 = vunpack.c.l.b16 %v7482
      %v7499 = vunpack.c.l.b16 %v7483
      %v7500 = vpack.c.b16 %v7493, %v7492
      %v7501 = vpack.c.b16 %v7495, %v7494
      %v7502 = vpack.c.b16 %v7497, %v7496
      %v7503 = vpack.c.b16 %v7499, %v7498
      %v7509 = vsel %vm490, %v7471, 0
      %v7512 = vsel %vm490, %v7472, 0
      %v7515 = vsel %vm490, %v7473, 0
      %v7518 = vsel %vm490, %v7474, 0
      %7520 = vmatpush.bf16.msra.mxu0 0
      %7521 = vmatpush.bf16.msra.mxu0 0
      %7522 = vmatpush.bf16.msra.mxu0 0
      %7523 = vmatpush.bf16.msra.mxu0 0
      %7524 = vmatpush.bf16.msra.mxu0 %v7503
      %7525 = vmatpush.bf16.msra.mxu0 %v7502
      %7526 = vmatpush.bf16.msra.mxu0 %v7501
      %7527 = vmatpush.bf16.msra.mxu0 %v7500
      %7528 = vmatmul.bf16.gmra.mxu0 %v7509
      %v7529 = vpop.f32.mrf.mxu0
      %v7530 = vadd.f32 0.0, %v7529
      %v7531 = vpop.f32.mrf.mxu0
      %v7532 = vadd.f32 0.0, %v7531
      %7533 = vmatmul.bf16.gmra.mxu0 %v7512
      %v7534 = vpop.f32.mrf.mxu0
      %v7535 = vadd.f32 0.0, %v7534
      %v7536 = vpop.f32.mrf.mxu0
      %v7537 = vadd.f32 0.0, %v7536
      %7538 = vmatmul.bf16.gmra.mxu0 %v7515
      %v7539 = vpop.f32.mrf.mxu0
      %v7540 = vadd.f32 0.0, %v7539
      %v7541 = vpop.f32.mrf.mxu0
      %v7542 = vadd.f32 0.0, %v7541
      %7543 = vmatmul.bf16.gmra.mxu0 %v7518
      %v7544 = vpop.f32.mrf.mxu0
      %v7545 = vadd.f32 0.0, %v7544
      %v7546 = vpop.f32.mrf.mxu0
      %v7547 = vadd.f32 0.0, %v7546
      %7548 = vdwg.mxu0
      %v7549 = vadd.f32 %v7455, %v7530
      %v7550 = vadd.f32 %v7456, %v7532
      %v7551 = vadd.f32 %v7457, %v7535
      %v7552 = vadd.f32 %v7458, %v7537
      %v7553 = vadd.f32 %v7459, %v7540
      %v7554 = vadd.f32 %v7460, %v7542
      %v7555 = vadd.f32 %v7461, %v7545
      %v7556 = vadd.f32 %v7462, %v7547
      %s7557 = scalar_lea.vmem [#allocation5], 16
      %v7558 = vld [vmem:[%s7557] sm:$0xff]
      %v7559 = vld [vmem:[%s7557 + $0x10] sm:$0xff]
      %v7560 = vld [vmem:[%s7557 + $0x20] sm:$0xff]
      %v7561 = vld [vmem:[%s7557 + $0x30] sm:$0xff]
      %v7562 = vld [vmem:[%s7557 + $0x40] sm:$0xff]
      %v7563 = vld [vmem:[%s7557 + $0x50] sm:$0xff]
      %v7564 = vld [vmem:[%s7557 + $0x60] sm:$0xff]
      %v7565 = vld [vmem:[%s7557 + $0x70] sm:$0xff]
      %v7566 = vpack.c.bf16 %v7559, %v7558
      %v7567 = vpack.c.bf16 %v7561, %v7560
      %v7568 = vpack.c.bf16 %v7563, %v7562
      %v7569 = vpack.c.bf16 %v7565, %v7564
      %s7570 = scalar_lea.vmem %s5, 192
      %v7571 = vld [vmem:[%s7570] sm:$0xf]
      %v7572 = vld [vmem:[%s7570 + $0x4] sm:$0xf]
      %v7573 = vld [vmem:[%s7570 + $0x8] sm:$0xf]
      %v7574 = vld [vmem:[%s7570 + $0xc] sm:$0xf]
      %v7575 = vld [vmem:[%s7570 + $0x10] sm:$0xf]
      %v7576 = vld [vmem:[%s7570 + $0x14] sm:$0xf]
      %v7577 = vld [vmem:[%s7570 + $0x18] sm:$0xf]
      %v7578 = vld [vmem:[%s7570 + $0x1c] sm:$0xf]
      %v7587 = vunpack.c.l.b16 %v7571
      %v7588 = vunpack.c.l.b16 %v7572
      %v7589 = vunpack.c.l.b16 %v7573
      %v7590 = vunpack.c.l.b16 %v7574
      %v7591 = vunpack.c.l.b16 %v7575
      %v7592 = vunpack.c.l.b16 %v7576
      %v7593 = vunpack.c.l.b16 %v7577
      %v7594 = vunpack.c.l.b16 %v7578
      %v7595 = vpack.c.b16 %v7588, %v7587
      %v7596 = vpack.c.b16 %v7590, %v7589
      %v7597 = vpack.c.b16 %v7592, %v7591
      %v7598 = vpack.c.b16 %v7594, %v7593
      %v7604 = vsel %vm490, %v7566, 0
      %v7607 = vsel %vm490, %v7567, 0
      %v7610 = vsel %vm490, %v7568, 0
      %v7613 = vsel %vm490, %v7569, 0
      %7615 = vmatpush.bf16.msra.mxu0 0
      %7616 = vmatpush.bf16.msra.mxu0 0
      %7617 = vmatpush.bf16.msra.mxu0 0
      %7618 = vmatpush.bf16.msra.mxu0 0
      %7619 = vmatpush.bf16.msra.mxu0 %v7598
      %7620 = vmatpush.bf16.msra.mxu0 %v7597
      %7621 = vmatpush.bf16.msra.mxu0 %v7596
      %7622 = vmatpush.bf16.msra.mxu0 %v7595
      %7623 = vmatmul.bf16.gmra.mxu0 %v7604
      %v7624 = vpop.f32.mrf.mxu0
      %v7625 = vadd.f32 0.0, %v7624
      %v7626 = vpop.f32.mrf.mxu0
      %v7627 = vadd.f32 0.0, %v7626
      %7628 = vmatmul.bf16.gmra.mxu0 %v7607
      %v7629 = vpop.f32.mrf.mxu0
      %v7630 = vadd.f32 0.0, %v7629
      %v7631 = vpop.f32.mrf.mxu0
      %v7632 = vadd.f32 0.0, %v7631
      %7633 = vmatmul.bf16.gmra.mxu0 %v7610
      %v7634 = vpop.f32.mrf.mxu0
      %v7635 = vadd.f32 0.0, %v7634
      %v7636 = vpop.f32.mrf.mxu0
      %v7637 = vadd.f32 0.0, %v7636
      %7638 = vmatmul.bf16.gmra.mxu0 %v7613
      %v7639 = vpop.f32.mrf.mxu0
      %v7640 = vadd.f32 0.0, %v7639
      %v7641 = vpop.f32.mrf.mxu0
      %v7642 = vadd.f32 0.0, %v7641
      %7643 = vdwg.mxu0
      %v7644 = vadd.f32 %v7549, %v7625
      %v7645 = vadd.f32 %v7550, %v7627
      %v7646 = vadd.f32 %v7551, %v7630
      %v7647 = vadd.f32 %v7552, %v7632
      %v7648 = vadd.f32 %v7553, %v7635
      %v7649 = vadd.f32 %v7554, %v7637
      %v7650 = vadd.f32 %v7555, %v7640
      %v7651 = vadd.f32 %v7556, %v7642
      %v7652 = vld [vmem:[%s7557 + $0x1] sm:$0xff]
      %v7653 = vld [vmem:[%s7557 + $0x11] sm:$0xff]
      %v7654 = vld [vmem:[%s7557 + $0x21] sm:$0xff]
      %v7655 = vld [vmem:[%s7557 + $0x31] sm:$0xff]
      %v7656 = vld [vmem:[%s7557 + $0x41] sm:$0xff]
      %v7657 = vld [vmem:[%s7557 + $0x51] sm:$0xff]
      %v7658 = vld [vmem:[%s7557 + $0x61] sm:$0xff]
      %v7659 = vld [vmem:[%s7557 + $0x71] sm:$0xff]
      %v7660 = vpack.c.bf16 %v7653, %v7652
      %v7661 = vpack.c.bf16 %v7655, %v7654
      %v7662 = vpack.c.bf16 %v7657, %v7656
      %v7663 = vpack.c.bf16 %v7659, %v7658
      %s7664 = scalar_lea.vmem %s5, 224
      %v7665 = vld [vmem:[%s7664] sm:$0xf]
      %v7666 = vld [vmem:[%s7664 + $0x4] sm:$0xf]
      %v7667 = vld [vmem:[%s7664 + $0x8] sm:$0xf]
      %v7668 = vld [vmem:[%s7664 + $0xc] sm:$0xf]
      %v7669 = vld [vmem:[%s7664 + $0x10] sm:$0xf]
      %v7670 = vld [vmem:[%s7664 + $0x14] sm:$0xf]
      %v7671 = vld [vmem:[%s7664 + $0x18] sm:$0xf]
      %v7672 = vld [vmem:[%s7664 + $0x1c] sm:$0xf]
      %v7681 = vunpack.c.l.b16 %v7665
      %v7682 = vunpack.c.l.b16 %v7666
      %v7683 = vunpack.c.l.b16 %v7667
      %v7684 = vunpack.c.l.b16 %v7668
      %v7685 = vunpack.c.l.b16 %v7669
      %v7686 = vunpack.c.l.b16 %v7670
      %v7687 = vunpack.c.l.b16 %v7671
      %v7688 = vunpack.c.l.b16 %v7672
      %v7689 = vpack.c.b16 %v7682, %v7681
      %v7690 = vpack.c.b16 %v7684, %v7683
      %v7691 = vpack.c.b16 %v7686, %v7685
      %v7692 = vpack.c.b16 %v7688, %v7687
      %v7698 = vsel %vm490, %v7660, 0
      %v7701 = vsel %vm490, %v7661, 0
      %v7704 = vsel %vm490, %v7662, 0
      %v7707 = vsel %vm490, %v7663, 0
      %7709 = vmatpush.bf16.msra.mxu0 0
      %7710 = vmatpush.bf16.msra.mxu0 0
      %7711 = vmatpush.bf16.msra.mxu0 0
      %7712 = vmatpush.bf16.msra.mxu0 0
      %7713 = vmatpush.bf16.msra.mxu0 %v7692
      %7714 = vmatpush.bf16.msra.mxu0 %v7691
      %7715 = vmatpush.bf16.msra.mxu0 %v7690
      %7716 = vmatpush.bf16.msra.mxu0 %v7689
      %7717 = vmatmul.bf16.gmra.mxu0 %v7698
      %v7718 = vpop.f32.mrf.mxu0
      %v7719 = vadd.f32 0.0, %v7718
      %v7720 = vpop.f32.mrf.mxu0
      %v7721 = vadd.f32 0.0, %v7720
      %7722 = vmatmul.bf16.gmra.mxu0 %v7701
      %v7723 = vpop.f32.mrf.mxu0
      %v7724 = vadd.f32 0.0, %v7723
      %v7725 = vpop.f32.mrf.mxu0
      %v7726 = vadd.f32 0.0, %v7725
      %7727 = vmatmul.bf16.gmra.mxu0 %v7704
      %v7728 = vpop.f32.mrf.mxu0
      %v7729 = vadd.f32 0.0, %v7728
      %v7730 = vpop.f32.mrf.mxu0
      %v7731 = vadd.f32 0.0, %v7730
      %7732 = vmatmul.bf16.gmra.mxu0 %v7707
      %v7733 = vpop.f32.mrf.mxu0
      %v7734 = vadd.f32 0.0, %v7733
      %v7735 = vpop.f32.mrf.mxu0
      %v7736 = vadd.f32 0.0, %v7735
      %7737 = vdwg.mxu0
      %v7738 = vadd.f32 %v7644, %v7719
      %v7739 = vadd.f32 %v7645, %v7721
      %v7740 = vadd.f32 %v7646, %v7724
      %v7741 = vadd.f32 %v7647, %v7726
      %v7742 = vadd.f32 %v7648, %v7729
      %v7743 = vadd.f32 %v7649, %v7731
      %v7744 = vadd.f32 %v7650, %v7734
      %v7745 = vadd.f32 %v7651, %v7736
      %v7746 = vld [vmem:[%s6] sm:$0x1]
      %v7748 = vperm.slane %v7746, 0
      %v7750 = vadd.f32 %v7738, %v7748
      %v7751 = vadd.f32 %v7739, %v7748
      %v7752 = vadd.f32 %v7740, %v7748
      %v7753 = vadd.f32 %v7741, %v7748
      %v7754 = vadd.f32 %v7742, %v7748
      %v7755 = vadd.f32 %v7743, %v7748
      %v7756 = vadd.f32 %v7744, %v7748
      %v7757 = vadd.f32 %v7745, %v7748
      %v7758 = vmul.f32 %v7750, 0.1
      %v7759 = vmul.f32 %v7751, 0.1
      %v7760 = vmul.f32 %v7752, 0.1
      %v7761 = vmul.f32 %v7753, 0.1
      %v7762 = vmul.f32 %v7754, 0.1
      %v7763 = vmul.f32 %v7755, 0.1
      %v7764 = vmul.f32 %v7756, 0.1
      %v7765 = vmul.f32 %v7757, 0.1
      %v7766 = vmax.f32 %v7750, %v7758
      %v7767 = vmax.f32 %v7751, %v7759
      %v7768 = vmax.f32 %v7752, %v7760
      %v7769 = vmax.f32 %v7753, %v7761
      %v7770 = vmax.f32 %v7754, %v7762
      %v7771 = vmax.f32 %v7755, %v7763
      %v7772 = vmax.f32 %v7756, %v7764
      %v7773 = vmax.f32 %v7757, %v7765
      %v7782 = vrot.slane %v7766, 2
      %v7783 = vrot.slane %v7766, 4
      %v7784 = vrot.slane %v7766, 6
      %v7785 = vrot.slane %v7767, 2
      %v7786 = vrot.slane %v7767, 4
      %v7787 = vrot.slane %v7767, 6
      %v7788 = vrot.slane %v7768, 2
      %v7789 = vrot.slane %v7768, 4
      %v7790 = vrot.slane %v7768, 6
      %v7791 = vrot.slane %v7769, 2
      %v7792 = vrot.slane %v7769, 4
      %v7793 = vrot.slane %v7769, 6
      %v7794 = vrot.slane %v7770, 2
      %v7795 = vrot.slane %v7770, 4
      %v7796 = vrot.slane %v7770, 6
      %v7797 = vrot.slane %v7771, 2
      %v7798 = vrot.slane %v7771, 4
      %v7799 = vrot.slane %v7771, 6
      %v7800 = vrot.slane %v7772, 2
      %v7801 = vrot.slane %v7772, 4
      %v7802 = vrot.slane %v7772, 6
      %v7803 = vrot.slane %v7773, 2
      %v7804 = vrot.slane %v7773, 4
      %v7805 = vrot.slane %v7773, 6
      %v7806 = vperm.slane %v7766, 0
      %v7807 = vperm.slane %v7782, 0
      %v7808 = vperm.slane %v7783, 0
      %v7809 = vperm.slane %v7784, 0
      %v7810 = vperm.slane %v7768, 0
      %v7811 = vperm.slane %v7788, 0
      %v7812 = vperm.slane %v7789, 0
      %v7813 = vperm.slane %v7790, 0
      %v7814 = vperm.slane %v7770, 0
      %v7815 = vperm.slane %v7794, 0
      %v7816 = vperm.slane %v7795, 0
      %v7817 = vperm.slane %v7796, 0
      %v7818 = vperm.slane %v7772, 0
      %v7819 = vperm.slane %v7800, 0
      %v7820 = vperm.slane %v7801, 0
      %v7821 = vperm.slane %v7802, 0
      %v7822 = vsel %vm2288, %v7807, %v7806
      %v7823 = vsel %vm2290, %v7808, %v7822
      %v7824 = vsel %vm2292, %v7809, %v7823
      %v7825 = vsel %vm2288, %v7811, %v7810
      %v7826 = vsel %vm2290, %v7812, %v7825
      %v7827 = vsel %vm2292, %v7813, %v7826
      %v7828 = vsel %vm2288, %v7815, %v7814
      %v7829 = vsel %vm2290, %v7816, %v7828
      %v7830 = vsel %vm2292, %v7817, %v7829
      %v7831 = vsel %vm2288, %v7819, %v7818
      %v7832 = vsel %vm2290, %v7820, %v7831
      %v7833 = vsel %vm2292, %v7821, %v7832
      %7834 = vrot.lane.b32.xlu0 %v7824, 64
      %v7835 = vpop.permute.xlu0 %7834
      %7836 = vrot.lane.b32.xlu0 %v7827, 64
      %v7837 = vpop.permute.xlu0 %7836
      %7838 = vrot.lane.b32.xlu0 %v7830, 64
      %v7839 = vpop.permute.xlu0 %7838
      %7840 = vrot.lane.b32.xlu0 %v7833, 64
      %v7841 = vpop.permute.xlu0 %7840
      %vm7846 = vcmask 1043968
      %7847 = vst.msk [vmem:[#allocation7] sm:$0xf] %vm7846, %v7835
      %7848 = vst.msk [vmem:[#allocation7 + $0x8] sm:$0xf] %vm7846, %v7837
      %7849 = vst.msk [vmem:[#allocation7 + $0x10] sm:$0xf] %vm7846, %v7839
      %7850 = vst.msk [vmem:[#allocation7 + $0x18] sm:$0xf] %vm7846, %v7841
      %v7851 = vperm.slane %v7767, 0
      %v7852 = vperm.slane %v7785, 0
      %v7853 = vperm.slane %v7786, 0
      %v7854 = vperm.slane %v7787, 0
      %v7855 = vperm.slane %v7769, 0
      %v7856 = vperm.slane %v7791, 0
      %v7857 = vperm.slane %v7792, 0
      %v7858 = vperm.slane %v7793, 0
      %v7859 = vperm.slane %v7771, 0
      %v7860 = vperm.slane %v7797, 0
      %v7861 = vperm.slane %v7798, 0
      %v7862 = vperm.slane %v7799, 0
      %v7863 = vperm.slane %v7773, 0
      %v7864 = vperm.slane %v7803, 0
      %v7865 = vperm.slane %v7804, 0
      %v7866 = vperm.slane %v7805, 0
      %v7867 = vsel %vm2288, %v7852, %v7851
      %v7868 = vsel %vm2290, %v7853, %v7867
      %v7869 = vsel %vm2292, %v7854, %v7868
      %v7870 = vsel %vm2288, %v7856, %v7855
      %v7871 = vsel %vm2290, %v7857, %v7870
      %v7872 = vsel %vm2292, %v7858, %v7871
      %v7873 = vsel %vm2288, %v7860, %v7859
      %v7874 = vsel %vm2290, %v7861, %v7873
      %v7875 = vsel %vm2292, %v7862, %v7874
      %v7876 = vsel %vm2288, %v7864, %v7863
      %v7877 = vsel %vm2290, %v7865, %v7876
      %v7878 = vsel %vm2292, %v7866, %v7877
      %7879 = vrot.lane.b32.xlu0 %v7869, 64
      %v7880 = vpop.permute.xlu0 %7879
      %7881 = vrot.lane.b32.xlu0 %v7872, 64
      %v7882 = vpop.permute.xlu0 %7881
      %7883 = vrot.lane.b32.xlu0 %v7875, 64
      %v7884 = vpop.permute.xlu0 %7883
      %7885 = vrot.lane.b32.xlu0 %v7878, 64
      %v7886 = vpop.permute.xlu0 %7885
      %s7891 = scalar_lea.vmem [#allocation6], 8
      %7892 = vst.msk [vmem:[%s7891] sm:$0xf] %vm7846, %v7880
      %7893 = vst.msk [vmem:[%s7891 + $0x8] sm:$0xf] %vm7846, %v7882
      %7894 = vst.msk [vmem:[%s7891 + $0x10] sm:$0xf] %vm7846, %v7884
      %7895 = vst.msk [vmem:[%s7891 + $0x18] sm:$0xf] %vm7846, %v7886
      %v7896 = vperm.slane %v7766, 1
      %v7897 = vperm.slane %v7782, 1
      %v7898 = vperm.slane %v7783, 1
      %v7899 = vperm.slane %v7784, 1
      %v7900 = vperm.slane %v7768, 1
      %v7901 = vperm.slane %v7788, 1
      %v7902 = vperm.slane %v7789, 1
      %v7903 = vperm.slane %v7790, 1
      %v7904 = vperm.slane %v7770, 1
      %v7905 = vperm.slane %v7794, 1
      %v7906 = vperm.slane %v7795, 1
      %v7907 = vperm.slane %v7796, 1
      %v7908 = vperm.slane %v7772, 1
      %v7909 = vperm.slane %v7800, 1
      %v7910 = vperm.slane %v7801, 1
      %v7911 = vperm.slane %v7802, 1
      %v7912 = vsel %vm2290, %v7897, %v7896
      %v7913 = vsel %vm2292, %v7898, %v7912
      %v7914 = vsel %vm2294, %v7899, %v7913
      %v7915 = vsel %vm2290, %v7901, %v7900
      %v7916 = vsel %vm2292, %v7902, %v7915
      %v7917 = vsel %vm2294, %v7903, %v7916
      %v7918 = vsel %vm2290, %v7905, %v7904
      %v7919 = vsel %vm2292, %v7906, %v7918
      %v7920 = vsel %vm2294, %v7907, %v7919
      %v7921 = vsel %vm2290, %v7909, %v7908
      %v7922 = vsel %vm2292, %v7910, %v7921
      %v7923 = vsel %vm2294, %v7911, %v7922
      %vm7928 = vcmask 520193
      %7929 = vst.msk [vmem:[#allocation7] sm:$0x1e] %vm7928, %v7914
      %7930 = vst.msk [vmem:[#allocation7 + $0x8] sm:$0x1e] %vm7928, %v7917
      %7931 = vst.msk [vmem:[#allocation7 + $0x10] sm:$0x1e] %vm7928, %v7920
      %7932 = vst.msk [vmem:[#allocation7 + $0x18] sm:$0x1e] %vm7928, %v7923
      %v7933 = vperm.slane %v7767, 1
      %v7934 = vperm.slane %v7785, 1
      %v7935 = vperm.slane %v7786, 1
      %v7936 = vperm.slane %v7787, 1
      %v7937 = vperm.slane %v7769, 1
      %v7938 = vperm.slane %v7791, 1
      %v7939 = vperm.slane %v7792, 1
      %v7940 = vperm.slane %v7793, 1
      %v7941 = vperm.slane %v7771, 1
      %v7942 = vperm.slane %v7797, 1
      %v7943 = vperm.slane %v7798, 1
      %v7944 = vperm.slane %v7799, 1
      %v7945 = vperm.slane %v7773, 1
      %v7946 = vperm.slane %v7803, 1
      %v7947 = vperm.slane %v7804, 1
      %v7948 = vperm.slane %v7805, 1
      %v7949 = vsel %vm2290, %v7934, %v7933
      %v7950 = vsel %vm2292, %v7935, %v7949
      %v7951 = vsel %vm2294, %v7936, %v7950
      %v7952 = vsel %vm2290, %v7938, %v7937
      %v7953 = vsel %vm2292, %v7939, %v7952
      %v7954 = vsel %vm2294, %v7940, %v7953
      %v7955 = vsel %vm2290, %v7942, %v7941
      %v7956 = vsel %vm2292, %v7943, %v7955
      %v7957 = vsel %vm2294, %v7944, %v7956
      %v7958 = vsel %vm2290, %v7946, %v7945
      %v7959 = vsel %vm2292, %v7947, %v7958
      %v7960 = vsel %vm2294, %v7948, %v7959
      %7965 = vst.msk [vmem:[%s7891] sm:$0x1e] %vm7928, %v7951
      %7966 = vst.msk [vmem:[%s7891 + $0x8] sm:$0x1e] %vm7928, %v7954
      %7967 = vst.msk [vmem:[%s7891 + $0x10] sm:$0x1e] %vm7928, %v7957
      %7968 = vst.msk [vmem:[%s7891 + $0x18] sm:$0x1e] %vm7928, %v7960
      %v7969 = vld [vmem:[#allocation8] sm:$0x1]
      %v7970 = vld [vmem:[#allocation6] sm:$0xf]
      %v7971 = vpack.c.bf16 %v7970, %v7970
      %v7972 = vld [vmem:[%s7] sm:$0xf]
      %v7973 = vld [vmem:[%s7 + $0x4] sm:$0xf]
      %v7974 = vld [vmem:[%s7 + $0x8] sm:$0xf]
      %v7975 = vld [vmem:[%s7 + $0xc] sm:$0xf]
      %v7976 = vld [vmem:[%s7 + $0x10] sm:$0xf]
      %v7977 = vld [vmem:[%s7 + $0x14] sm:$0xf]
      %v7978 = vld [vmem:[%s7 + $0x18] sm:$0xf]
      %v7979 = vld [vmem:[%s7 + $0x1c] sm:$0xf]
      %v7980 = vld [vmem:[%s7 + $0x20] sm:$0xf]
      %v7981 = vld [vmem:[%s7 + $0x24] sm:$0xf]
      %v7982 = vld [vmem:[%s7 + $0x28] sm:$0xf]
      %v7983 = vld [vmem:[%s7 + $0x2c] sm:$0xf]
      %v7984 = vld [vmem:[%s7 + $0x30] sm:$0xf]
      %v7985 = vld [vmem:[%s7 + $0x34] sm:$0xf]
      %v7986 = vld [vmem:[%s7 + $0x38] sm:$0xf]
      %v7987 = vld [vmem:[%s7 + $0x3c] sm:$0xf]
      %v7988 = vld [vmem:[#allocation6 + $0x1] sm:$0xf]
      %v7989 = vpack.c.bf16 %v7988, %v7988
      %s7990 = scalar_lea.vmem %s7, 64
      %v7991 = vld [vmem:[%s7990] sm:$0xf]
      %v7992 = vld [vmem:[%s7990 + $0x4] sm:$0xf]
      %v7993 = vld [vmem:[%s7990 + $0x8] sm:$0xf]
      %v7994 = vld [vmem:[%s7990 + $0xc] sm:$0xf]
      %v7995 = vld [vmem:[%s7990 + $0x10] sm:$0xf]
      %v7996 = vld [vmem:[%s7990 + $0x14] sm:$0xf]
      %v7997 = vld [vmem:[%s7990 + $0x18] sm:$0xf]
      %v7998 = vld [vmem:[%s7990 + $0x1c] sm:$0xf]
      %v7999 = vld [vmem:[%s7990 + $0x20] sm:$0xf]
      %v8000 = vld [vmem:[%s7990 + $0x24] sm:$0xf]
      %v8001 = vld [vmem:[%s7990 + $0x28] sm:$0xf]
      %v8002 = vld [vmem:[%s7990 + $0x2c] sm:$0xf]
      %v8003 = vld [vmem:[%s7990 + $0x30] sm:$0xf]
      %v8004 = vld [vmem:[%s7990 + $0x34] sm:$0xf]
      %v8005 = vld [vmem:[%s7990 + $0x38] sm:$0xf]
      %v8006 = vld [vmem:[%s7990 + $0x3c] sm:$0xf]
      %v8023 = vunpack.c.l.b16 %v7991
      %v8024 = vunpack.c.l.b16 %v7992
      %v8025 = vunpack.c.l.b16 %v7993
      %v8026 = vunpack.c.l.b16 %v7994
      %v8027 = vunpack.c.l.b16 %v7995
      %v8028 = vunpack.c.l.b16 %v7996
      %v8029 = vunpack.c.l.b16 %v7997
      %v8030 = vunpack.c.l.b16 %v7998
      %v8031 = vunpack.c.l.b16 %v7999
      %v8032 = vunpack.c.l.b16 %v8000
      %v8033 = vunpack.c.l.b16 %v8001
      %v8034 = vunpack.c.l.b16 %v8002
      %v8035 = vunpack.c.l.b16 %v8003
      %v8036 = vunpack.c.l.b16 %v8004
      %v8037 = vunpack.c.l.b16 %v8005
      %v8038 = vunpack.c.l.b16 %v8006
      %v8039 = vpack.c.b16 %v8024, %v8023
      %v8040 = vpack.c.b16 %v8026, %v8025
      %v8041 = vpack.c.b16 %v8028, %v8027
      %v8042 = vpack.c.b16 %v8030, %v8029
      %v8043 = vpack.c.b16 %v8032, %v8031
      %v8044 = vpack.c.b16 %v8034, %v8033
      %v8045 = vpack.c.b16 %v8036, %v8035
      %v8046 = vpack.c.b16 %v8038, %v8037
      %8055 = vmatpush.bf16.msra.mxu0 %v8046
      %8056 = vmatpush.bf16.msra.mxu0 %v8045
      %8057 = vmatpush.bf16.msra.mxu0 %v8044
      %8058 = vmatpush.bf16.msra.mxu0 %v8043
      %8059 = vmatpush.bf16.msra.mxu0 %v8042
      %8060 = vmatpush.bf16.msra.mxu0 %v8041
      %8061 = vmatpush.bf16.msra.mxu0 %v8040
      %8062 = vmatpush.bf16.msra.mxu0 %v8039
      %8063 = vmatmul.bf16.gmra.mxu0 %v7989
      %v8064 = vpop.f32.mrf.mxu0
      %v8065 = vadd.f32 0.0, %v8064
      %v8066 = vpop.f32.mrf.mxu0
      %8067 = vdwg.mxu0
      %v8084 = vunpack.c.l.b16 %v7972
      %v8085 = vunpack.c.l.b16 %v7973
      %v8086 = vunpack.c.l.b16 %v7974
      %v8087 = vunpack.c.l.b16 %v7975
      %v8088 = vunpack.c.l.b16 %v7976
      %v8089 = vunpack.c.l.b16 %v7977
      %v8090 = vunpack.c.l.b16 %v7978
      %v8091 = vunpack.c.l.b16 %v7979
      %v8092 = vunpack.c.l.b16 %v7980
      %v8093 = vunpack.c.l.b16 %v7981
      %v8094 = vunpack.c.l.b16 %v7982
      %v8095 = vunpack.c.l.b16 %v7983
      %v8096 = vunpack.c.l.b16 %v7984
      %v8097 = vunpack.c.l.b16 %v7985
      %v8098 = vunpack.c.l.b16 %v7986
      %v8099 = vunpack.c.l.b16 %v7987
      %v8100 = vpack.c.b16 %v8085, %v8084
      %v8101 = vpack.c.b16 %v8087, %v8086
      %v8102 = vpack.c.b16 %v8089, %v8088
      %v8103 = vpack.c.b16 %v8091, %v8090
      %v8104 = vpack.c.b16 %v8093, %v8092
      %v8105 = vpack.c.b16 %v8095, %v8094
      %v8106 = vpack.c.b16 %v8097, %v8096
      %v8107 = vpack.c.b16 %v8099, %v8098
      %8116 = vmatpush.bf16.msra.mxu0 %v8107
      %8117 = vmatpush.bf16.msra.mxu0 %v8106
      %8118 = vmatpush.bf16.msra.mxu0 %v8105
      %8119 = vmatpush.bf16.msra.mxu0 %v8104
      %8120 = vmatpush.bf16.msra.mxu0 %v8103
      %8121 = vmatpush.bf16.msra.mxu0 %v8102
      %8122 = vmatpush.bf16.msra.mxu0 %v8101
      %8123 = vmatpush.bf16.msra.mxu0 %v8100
      %8124 = vmatmul.bf16.gmra.mxu0 %v7971
      %v8125 = vpop.f32.mrf.mxu0
      %v8126 = vadd.f32 %v8065, %v8125
      %v8127 = vpop.f32.mrf.mxu0
      %8128 = vdwg.mxu0
      %v8129 = vld [vmem:[#allocation7] sm:$0xf]
      %v8130 = vpack.c.bf16 %v8129, %v8129
      %s8131 = scalar_lea.vmem %s7, 128
      %v8132 = vld [vmem:[%s8131] sm:$0xf]
      %v8133 = vld [vmem:[%s8131 + $0x4] sm:$0xf]
      %v8134 = vld [vmem:[%s8131 + $0x8] sm:$0xf]
      %v8135 = vld [vmem:[%s8131 + $0xc] sm:$0xf]
      %v8136 = vld [vmem:[%s8131 + $0x10] sm:$0xf]
      %v8137 = vld [vmem:[%s8131 + $0x14] sm:$0xf]
      %v8138 = vld [vmem:[%s8131 + $0x18] sm:$0xf]
      %v8139 = vld [vmem:[%s8131 + $0x1c] sm:$0xf]
      %v8140 = vld [vmem:[%s8131 + $0x20] sm:$0xf]
      %v8141 = vld [vmem:[%s8131 + $0x24] sm:$0xf]
      %v8142 = vld [vmem:[%s8131 + $0x28] sm:$0xf]
      %v8143 = vld [vmem:[%s8131 + $0x2c] sm:$0xf]
      %v8144 = vld [vmem:[%s8131 + $0x30] sm:$0xf]
      %v8145 = vld [vmem:[%s8131 + $0x34] sm:$0xf]
      %v8146 = vld [vmem:[%s8131 + $0x38] sm:$0xf]
      %v8147 = vld [vmem:[%s8131 + $0x3c] sm:$0xf]
      %v8164 = vunpack.c.l.b16 %v8132
      %v8165 = vunpack.c.l.b16 %v8133
      %v8166 = vunpack.c.l.b16 %v8134
      %v8167 = vunpack.c.l.b16 %v8135
      %v8168 = vunpack.c.l.b16 %v8136
      %v8169 = vunpack.c.l.b16 %v8137
      %v8170 = vunpack.c.l.b16 %v8138
      %v8171 = vunpack.c.l.b16 %v8139
      %v8172 = vunpack.c.l.b16 %v8140
      %v8173 = vunpack.c.l.b16 %v8141
      %v8174 = vunpack.c.l.b16 %v8142
      %v8175 = vunpack.c.l.b16 %v8143
      %v8176 = vunpack.c.l.b16 %v8144
      %v8177 = vunpack.c.l.b16 %v8145
      %v8178 = vunpack.c.l.b16 %v8146
      %v8179 = vunpack.c.l.b16 %v8147
      %v8180 = vpack.c.b16 %v8165, %v8164
      %v8181 = vpack.c.b16 %v8167, %v8166
      %v8182 = vpack.c.b16 %v8169, %v8168
      %v8183 = vpack.c.b16 %v8171, %v8170
      %v8184 = vpack.c.b16 %v8173, %v8172
      %v8185 = vpack.c.b16 %v8175, %v8174
      %v8186 = vpack.c.b16 %v8177, %v8176
      %v8187 = vpack.c.b16 %v8179, %v8178
      %8196 = vmatpush.bf16.msra.mxu0 %v8187
      %8197 = vmatpush.bf16.msra.mxu0 %v8186
      %8198 = vmatpush.bf16.msra.mxu0 %v8185
      %8199 = vmatpush.bf16.msra.mxu0 %v8184
      %8200 = vmatpush.bf16.msra.mxu0 %v8183
      %8201 = vmatpush.bf16.msra.mxu0 %v8182
      %8202 = vmatpush.bf16.msra.mxu0 %v8181
      %8203 = vmatpush.bf16.msra.mxu0 %v8180
      %8204 = vmatmul.bf16.gmra.mxu0 %v8130
      %v8205 = vpop.f32.mrf.mxu0
      %v8206 = vadd.f32 0.0, %v8205
      %v8207 = vpop.f32.mrf.mxu0
      %8208 = vdwg.mxu0
      %v8209 = vadd.f32 %v8126, %v8206
      %v8210 = vld [vmem:[#allocation7 + $0x1] sm:$0xf]
      %v8211 = vpack.c.bf16 %v8210, %v8210
      %s8212 = scalar_lea.vmem %s7, 192
      %v8213 = vld [vmem:[%s8212] sm:$0xf]
      %v8214 = vld [vmem:[%s8212 + $0x4] sm:$0xf]
      %v8215 = vld [vmem:[%s8212 + $0x8] sm:$0xf]
      %v8216 = vld [vmem:[%s8212 + $0xc] sm:$0xf]
      %v8217 = vld [vmem:[%s8212 + $0x10] sm:$0xf]
      %v8218 = vld [vmem:[%s8212 + $0x14] sm:$0xf]
      %v8219 = vld [vmem:[%s8212 + $0x18] sm:$0xf]
      %v8220 = vld [vmem:[%s8212 + $0x1c] sm:$0xf]
      %v8221 = vld [vmem:[%s8212 + $0x20] sm:$0xf]
      %v8222 = vld [vmem:[%s8212 + $0x24] sm:$0xf]
      %v8223 = vld [vmem:[%s8212 + $0x28] sm:$0xf]
      %v8224 = vld [vmem:[%s8212 + $0x2c] sm:$0xf]
      %v8225 = vld [vmem:[%s8212 + $0x30] sm:$0xf]
      %v8226 = vld [vmem:[%s8212 + $0x34] sm:$0xf]
      %v8227 = vld [vmem:[%s8212 + $0x38] sm:$0xf]
      %v8228 = vld [vmem:[%s8212 + $0x3c] sm:$0xf]
      %v8245 = vunpack.c.l.b16 %v8213
      %v8246 = vunpack.c.l.b16 %v8214
      %v8247 = vunpack.c.l.b16 %v8215
      %v8248 = vunpack.c.l.b16 %v8216
      %v8249 = vunpack.c.l.b16 %v8217
      %v8250 = vunpack.c.l.b16 %v8218
      %v8251 = vunpack.c.l.b16 %v8219
      %v8252 = vunpack.c.l.b16 %v8220
      %v8253 = vunpack.c.l.b16 %v8221
      %v8254 = vunpack.c.l.b16 %v8222
      %v8255 = vunpack.c.l.b16 %v8223
      %v8256 = vunpack.c.l.b16 %v8224
      %v8257 = vunpack.c.l.b16 %v8225
      %v8258 = vunpack.c.l.b16 %v8226
      %v8259 = vunpack.c.l.b16 %v8227
      %v8260 = vunpack.c.l.b16 %v8228
      %v8261 = vpack.c.b16 %v8246, %v8245
      %v8262 = vpack.c.b16 %v8248, %v8247
      %v8263 = vpack.c.b16 %v8250, %v8249
      %v8264 = vpack.c.b16 %v8252, %v8251
      %v8265 = vpack.c.b16 %v8254, %v8253
      %v8266 = vpack.c.b16 %v8256, %v8255
      %v8267 = vpack.c.b16 %v8258, %v8257
      %v8268 = vpack.c.b16 %v8260, %v8259
      %8277 = vmatpush.bf16.msra.mxu0 %v8268
      %8278 = vmatpush.bf16.msra.mxu0 %v8267
      %8279 = vmatpush.bf16.msra.mxu0 %v8266
      %8280 = vmatpush.bf16.msra.mxu0 %v8265
      %8281 = vmatpush.bf16.msra.mxu0 %v8264
      %8282 = vmatpush.bf16.msra.mxu0 %v8263
      %8283 = vmatpush.bf16.msra.mxu0 %v8262
      %8284 = vmatpush.bf16.msra.mxu0 %v8261
      %8285 = vmatmul.bf16.gmra.mxu0 %v8211
      %v8286 = vpop.f32.mrf.mxu0
      %v8287 = vadd.f32 0.0, %v8286
      %v8288 = vpop.f32.mrf.mxu0
      %8289 = vdwg.mxu0
      %v8290 = vadd.f32 %v8209, %v8287
      %v8291 = vld [vmem:[%s7891] sm:$0xf]
      %v8292 = vpack.c.bf16 %v8291, %v8291
      %s8293 = scalar_lea.vmem %s7, 256
      %v8294 = vld [vmem:[%s8293] sm:$0xf]
      %v8295 = vld [vmem:[%s8293 + $0x4] sm:$0xf]
      %v8296 = vld [vmem:[%s8293 + $0x8] sm:$0xf]
      %v8297 = vld [vmem:[%s8293 + $0xc] sm:$0xf]
      %v8298 = vld [vmem:[%s8293 + $0x10] sm:$0xf]
      %v8299 = vld [vmem:[%s8293 + $0x14] sm:$0xf]
      %v8300 = vld [vmem:[%s8293 + $0x18] sm:$0xf]
      %v8301 = vld [vmem:[%s8293 + $0x1c] sm:$0xf]
      %v8302 = vld [vmem:[%s8293 + $0x20] sm:$0xf]
      %v8303 = vld [vmem:[%s8293 + $0x24] sm:$0xf]
      %v8304 = vld [vmem:[%s8293 + $0x28] sm:$0xf]
      %v8305 = vld [vmem:[%s8293 + $0x2c] sm:$0xf]
      %v8306 = vld [vmem:[%s8293 + $0x30] sm:$0xf]
      %v8307 = vld [vmem:[%s8293 + $0x34] sm:$0xf]
      %v8308 = vld [vmem:[%s8293 + $0x38] sm:$0xf]
      %v8309 = vld [vmem:[%s8293 + $0x3c] sm:$0xf]
      %v8326 = vunpack.c.l.b16 %v8294
      %v8327 = vunpack.c.l.b16 %v8295
      %v8328 = vunpack.c.l.b16 %v8296
      %v8329 = vunpack.c.l.b16 %v8297
      %v8330 = vunpack.c.l.b16 %v8298
      %v8331 = vunpack.c.l.b16 %v8299
      %v8332 = vunpack.c.l.b16 %v8300
      %v8333 = vunpack.c.l.b16 %v8301
      %v8334 = vunpack.c.l.b16 %v8302
      %v8335 = vunpack.c.l.b16 %v8303
      %v8336 = vunpack.c.l.b16 %v8304
      %v8337 = vunpack.c.l.b16 %v8305
      %v8338 = vunpack.c.l.b16 %v8306
      %v8339 = vunpack.c.l.b16 %v8307
      %v8340 = vunpack.c.l.b16 %v8308
      %v8341 = vunpack.c.l.b16 %v8309
      %v8342 = vpack.c.b16 %v8327, %v8326
      %v8343 = vpack.c.b16 %v8329, %v8328
      %v8344 = vpack.c.b16 %v8331, %v8330
      %v8345 = vpack.c.b16 %v8333, %v8332
      %v8346 = vpack.c.b16 %v8335, %v8334
      %v8347 = vpack.c.b16 %v8337, %v8336
      %v8348 = vpack.c.b16 %v8339, %v8338
      %v8349 = vpack.c.b16 %v8341, %v8340
      %8358 = vmatpush.bf16.msra.mxu0 %v8349
      %8359 = vmatpush.bf16.msra.mxu0 %v8348
      %8360 = vmatpush.bf16.msra.mxu0 %v8347
      %8361 = vmatpush.bf16.msra.mxu0 %v8346
      %8362 = vmatpush.bf16.msra.mxu0 %v8345
      %8363 = vmatpush.bf16.msra.mxu0 %v8344
      %8364 = vmatpush.bf16.msra.mxu0 %v8343
      %8365 = vmatpush.bf16.msra.mxu0 %v8342
      %8366 = vmatmul.bf16.gmra.mxu0 %v8292
      %v8367 = vpop.f32.mrf.mxu0
      %v8368 = vadd.f32 0.0, %v8367
      %v8369 = vpop.f32.mrf.mxu0
      %8370 = vdwg.mxu0
      %v8371 = vadd.f32 %v8290, %v8368
      %v8372 = vld [vmem:[%s7891 + $0x1] sm:$0xf]
      %v8373 = vpack.c.bf16 %v8372, %v8372
      %s8374 = scalar_lea.vmem %s7, 320
      %v8375 = vld [vmem:[%s8374] sm:$0xf]
      %v8376 = vld [vmem:[%s8374 + $0x4] sm:$0xf]
      %v8377 = vld [vmem:[%s8374 + $0x8] sm:$0xf]
      %v8378 = vld [vmem:[%s8374 + $0xc] sm:$0xf]
      %v8379 = vld [vmem:[%s8374 + $0x10] sm:$0xf]
      %v8380 = vld [vmem:[%s8374 + $0x14] sm:$0xf]
      %v8381 = vld [vmem:[%s8374 + $0x18] sm:$0xf]
      %v8382 = vld [vmem:[%s8374 + $0x1c] sm:$0xf]
      %v8383 = vld [vmem:[%s8374 + $0x20] sm:$0xf]
      %v8384 = vld [vmem:[%s8374 + $0x24] sm:$0xf]
      %v8385 = vld [vmem:[%s8374 + $0x28] sm:$0xf]
      %v8386 = vld [vmem:[%s8374 + $0x2c] sm:$0xf]
      %v8387 = vld [vmem:[%s8374 + $0x30] sm:$0xf]
      %v8388 = vld [vmem:[%s8374 + $0x34] sm:$0xf]
      %v8389 = vld [vmem:[%s8374 + $0x38] sm:$0xf]
      %v8390 = vld [vmem:[%s8374 + $0x3c] sm:$0xf]
      %v8407 = vunpack.c.l.b16 %v8375
      %v8408 = vunpack.c.l.b16 %v8376
      %v8409 = vunpack.c.l.b16 %v8377
      %v8410 = vunpack.c.l.b16 %v8378
      %v8411 = vunpack.c.l.b16 %v8379
      %v8412 = vunpack.c.l.b16 %v8380
      %v8413 = vunpack.c.l.b16 %v8381
      %v8414 = vunpack.c.l.b16 %v8382
      %v8415 = vunpack.c.l.b16 %v8383
      %v8416 = vunpack.c.l.b16 %v8384
      %v8417 = vunpack.c.l.b16 %v8385
      %v8418 = vunpack.c.l.b16 %v8386
      %v8419 = vunpack.c.l.b16 %v8387
      %v8420 = vunpack.c.l.b16 %v8388
      %v8421 = vunpack.c.l.b16 %v8389
      %v8422 = vunpack.c.l.b16 %v8390
      %v8423 = vpack.c.b16 %v8408, %v8407
      %v8424 = vpack.c.b16 %v8410, %v8409
      %v8425 = vpack.c.b16 %v8412, %v8411
      %v8426 = vpack.c.b16 %v8414, %v8413
      %v8427 = vpack.c.b16 %v8416, %v8415
      %v8428 = vpack.c.b16 %v8418, %v8417
      %v8429 = vpack.c.b16 %v8420, %v8419
      %v8430 = vpack.c.b16 %v8422, %v8421
      %8439 = vmatpush.bf16.msra.mxu0 %v8430
      %8440 = vmatpush.bf16.msra.mxu0 %v8429
      %8441 = vmatpush.bf16.msra.mxu0 %v8428
      %8442 = vmatpush.bf16.msra.mxu0 %v8427
      %8443 = vmatpush.bf16.msra.mxu0 %v8426
      %8444 = vmatpush.bf16.msra.mxu0 %v8425
      %8445 = vmatpush.bf16.msra.mxu0 %v8424
      %8446 = vmatpush.bf16.msra.mxu0 %v8423
      %8447 = vmatmul.bf16.gmra.mxu0 %v8373
      %v8448 = vpop.f32.mrf.mxu0
      %v8449 = vadd.f32 0.0, %v8448
      %v8450 = vpop.f32.mrf.mxu0
      %8451 = vdwg.mxu0
      %v8452 = vadd.f32 %v8371, %v8449
      %s8453 = scalar_lea.vmem [#allocation7], 8
      %v8454 = vld [vmem:[%s8453] sm:$0xf]
      %v8455 = vpack.c.bf16 %v8454, %v8454
      %s8456 = scalar_lea.vmem %s7, 384
      %v8457 = vld [vmem:[%s8456] sm:$0xf]
      %v8458 = vld [vmem:[%s8456 + $0x4] sm:$0xf]
      %v8459 = vld [vmem:[%s8456 + $0x8] sm:$0xf]
      %v8460 = vld [vmem:[%s8456 + $0xc] sm:$0xf]
      %v8461 = vld [vmem:[%s8456 + $0x10] sm:$0xf]
      %v8462 = vld [vmem:[%s8456 + $0x14] sm:$0xf]
      %v8463 = vld [vmem:[%s8456 + $0x18] sm:$0xf]
      %v8464 = vld [vmem:[%s8456 + $0x1c] sm:$0xf]
      %v8465 = vld [vmem:[%s8456 + $0x20] sm:$0xf]
      %v8466 = vld [vmem:[%s8456 + $0x24] sm:$0xf]
      %v8467 = vld [vmem:[%s8456 + $0x28] sm:$0xf]
      %v8468 = vld [vmem:[%s8456 + $0x2c] sm:$0xf]
      %v8469 = vld [vmem:[%s8456 + $0x30] sm:$0xf]
      %v8470 = vld [vmem:[%s8456 + $0x34] sm:$0xf]
      %v8471 = vld [vmem:[%s8456 + $0x38] sm:$0xf]
      %v8472 = vld [vmem:[%s8456 + $0x3c] sm:$0xf]
      %v8489 = vunpack.c.l.b16 %v8457
      %v8490 = vunpack.c.l.b16 %v8458
      %v8491 = vunpack.c.l.b16 %v8459
      %v8492 = vunpack.c.l.b16 %v8460
      %v8493 = vunpack.c.l.b16 %v8461
      %v8494 = vunpack.c.l.b16 %v8462
      %v8495 = vunpack.c.l.b16 %v8463
      %v8496 = vunpack.c.l.b16 %v8464
      %v8497 = vunpack.c.l.b16 %v8465
      %v8498 = vunpack.c.l.b16 %v8466
      %v8499 = vunpack.c.l.b16 %v8467
      %v8500 = vunpack.c.l.b16 %v8468
      %v8501 = vunpack.c.l.b16 %v8469
      %v8502 = vunpack.c.l.b16 %v8470
      %v8503 = vunpack.c.l.b16 %v8471
      %v8504 = vunpack.c.l.b16 %v8472
      %v8505 = vpack.c.b16 %v8490, %v8489
      %v8506 = vpack.c.b16 %v8492, %v8491
      %v8507 = vpack.c.b16 %v8494, %v8493
      %v8508 = vpack.c.b16 %v8496, %v8495
      %v8509 = vpack.c.b16 %v8498, %v8497
      %v8510 = vpack.c.b16 %v8500, %v8499
      %v8511 = vpack.c.b16 %v8502, %v8501
      %v8512 = vpack.c.b16 %v8504, %v8503
      %8521 = vmatpush.bf16.msra.mxu0 %v8512
      %8522 = vmatpush.bf16.msra.mxu0 %v8511
      %8523 = vmatpush.bf16.msra.mxu0 %v8510
      %8524 = vmatpush.bf16.msra.mxu0 %v8509
      %8525 = vmatpush.bf16.msra.mxu0 %v8508
      %8526 = vmatpush.bf16.msra.mxu0 %v8507
      %8527 = vmatpush.bf16.msra.mxu0 %v8506
      %8528 = vmatpush.bf16.msra.mxu0 %v8505
      %8529 = vmatmul.bf16.gmra.mxu0 %v8455
      %v8530 = vpop.f32.mrf.mxu0
      %v8531 = vadd.f32 0.0, %v8530
      %v8532 = vpop.f32.mrf.mxu0
      %8533 = vdwg.mxu0
      %v8534 = vadd.f32 %v8452, %v8531
      %v8535 = vld [vmem:[%s8453 + $0x1] sm:$0xf]
      %v8536 = vpack.c.bf16 %v8535, %v8535
      %s8537 = scalar_lea.vmem %s7, 448
      %v8538 = vld [vmem:[%s8537] sm:$0xf]
      %v8539 = vld [vmem:[%s8537 + $0x4] sm:$0xf]
      %v8540 = vld [vmem:[%s8537 + $0x8] sm:$0xf]
      %v8541 = vld [vmem:[%s8537 + $0xc] sm:$0xf]
      %v8542 = vld [vmem:[%s8537 + $0x10] sm:$0xf]
      %v8543 = vld [vmem:[%s8537 + $0x14] sm:$0xf]
      %v8544 = vld [vmem:[%s8537 + $0x18] sm:$0xf]
      %v8545 = vld [vmem:[%s8537 + $0x1c] sm:$0xf]
      %v8546 = vld [vmem:[%s8537 + $0x20] sm:$0xf]
      %v8547 = vld [vmem:[%s8537 + $0x24] sm:$0xf]
      %v8548 = vld [vmem:[%s8537 + $0x28] sm:$0xf]
      %v8549 = vld [vmem:[%s8537 + $0x2c] sm:$0xf]
      %v8550 = vld [vmem:[%s8537 + $0x30] sm:$0xf]
      %v8551 = vld [vmem:[%s8537 + $0x34] sm:$0xf]
      %v8552 = vld [vmem:[%s8537 + $0x38] sm:$0xf]
      %v8553 = vld [vmem:[%s8537 + $0x3c] sm:$0xf]
      %v8570 = vunpack.c.l.b16 %v8538
      %v8571 = vunpack.c.l.b16 %v8539
      %v8572 = vunpack.c.l.b16 %v8540
      %v8573 = vunpack.c.l.b16 %v8541
      %v8574 = vunpack.c.l.b16 %v8542
      %v8575 = vunpack.c.l.b16 %v8543
      %v8576 = vunpack.c.l.b16 %v8544
      %v8577 = vunpack.c.l.b16 %v8545
      %v8578 = vunpack.c.l.b16 %v8546
      %v8579 = vunpack.c.l.b16 %v8547
      %v8580 = vunpack.c.l.b16 %v8548
      %v8581 = vunpack.c.l.b16 %v8549
      %v8582 = vunpack.c.l.b16 %v8550
      %v8583 = vunpack.c.l.b16 %v8551
      %v8584 = vunpack.c.l.b16 %v8552
      %v8585 = vunpack.c.l.b16 %v8553
      %v8586 = vpack.c.b16 %v8571, %v8570
      %v8587 = vpack.c.b16 %v8573, %v8572
      %v8588 = vpack.c.b16 %v8575, %v8574
      %v8589 = vpack.c.b16 %v8577, %v8576
      %v8590 = vpack.c.b16 %v8579, %v8578
      %v8591 = vpack.c.b16 %v8581, %v8580
      %v8592 = vpack.c.b16 %v8583, %v8582
      %v8593 = vpack.c.b16 %v8585, %v8584
      %8602 = vmatpush.bf16.msra.mxu0 %v8593
      %8603 = vmatpush.bf16.msra.mxu0 %v8592
      %8604 = vmatpush.bf16.msra.mxu0 %v8591
      %8605 = vmatpush.bf16.msra.mxu0 %v8590
      %8606 = vmatpush.bf16.msra.mxu0 %v8589
      %8607 = vmatpush.bf16.msra.mxu0 %v8588
      %8608 = vmatpush.bf16.msra.mxu0 %v8587
      %8609 = vmatpush.bf16.msra.mxu0 %v8586
      %8610 = vmatmul.bf16.gmra.mxu0 %v8536
      %v8611 = vpop.f32.mrf.mxu0
      %v8612 = vadd.f32 0.0, %v8611
      %v8613 = vpop.f32.mrf.mxu0
      %8614 = vdwg.mxu0
      %v8615 = vadd.f32 %v8534, %v8612
      %v8616 = vld [vmem:[%s8] sm:$0x1]
      %v8618 = vperm.slane %v8616, 0
      %v8620 = vadd.f32 %v8615, %v8618
      %v8621 = vmul.f32 %v8620, 0.1
      %v8622 = vmax.f32 %v8620, %v8621
      %v8623 = vld [vmem:[%s9] sm:$0xf]
      %v8624 = vmul.f32 %v8622, %v8623
      %vm8625 = vcmask 1043456
      %v8626 = vsel %vm8625, %v8624, 0.0
      %8627 = vadd.xlane.f32.xlu0 %v8626
      %v8628 = vpop.xlane.xlu0 %8627
      %v8629 = vrot.slane %v8628, 4
      %v8630 = vadd.f32 %v8628, %v8629
      %v8631 = vrot.slane %v8630, 2
      %v8632 = vadd.f32 %v8630, %v8631
      %v8633 = vrot.slane %v8632, 1
      %v8634 = vadd.f32 %v8632, %v8633
      %s8635 = vtos %v8634
      %v8636 = vstv %s8635
      %v8637 = vadd.f32 %v7969, %v8636
      %8638 = vmatpush.bf16.msra.mxu0 %v8046
      %8639 = vmatpush.bf16.msra.mxu0 %v8045
      %8640 = vmatpush.bf16.msra.mxu0 %v8044
      %8641 = vmatpush.bf16.msra.mxu0 %v8043
      %8642 = vmatpush.bf16.msra.mxu0 %v8042
      %8643 = vmatpush.bf16.msra.mxu0 %v8041
      %8644 = vmatpush.bf16.msra.mxu0 %v8040
      %8645 = vmatpush.bf16.msra.mxu0 %v8039
      %8646 = vmatmul.bf16.gmra.mxu0 %v8373
      %v8647 = vpop.f32.mrf.mxu0
      %v8648 = vadd.f32 0.0, %v8647
      %v8649 = vpop.f32.mrf.mxu0
      %8650 = vdwg.mxu0
      %8651 = vmatpush.bf16.msra.mxu0 %v8107
      %8652 = vmatpush.bf16.msra.mxu0 %v8106
      %8653 = vmatpush.bf16.msra.mxu0 %v8105
      %8654 = vmatpush.bf16.msra.mxu0 %v8104
      %8655 = vmatpush.bf16.msra.mxu0 %v8103
      %8656 = vmatpush.bf16.msra.mxu0 %v8102
      %8657 = vmatpush.bf16.msra.mxu0 %v8101
      %8658 = vmatpush.bf16.msra.mxu0 %v8100
      %8659 = vmatmul.bf16.gmra.mxu0 %v8292
      %v8660 = vpop.f32.mrf.mxu0
      %v8661 = vadd.f32 %v8648, %v8660
      %v8662 = vpop.f32.mrf.mxu0
      %8663 = vdwg.mxu0
      %8664 = vmatpush.bf16.msra.mxu0 %v8187
      %8665 = vmatpush.bf16.msra.mxu0 %v8186
      %8666 = vmatpush.bf16.msra.mxu0 %v8185
      %8667 = vmatpush.bf16.msra.mxu0 %v8184
      %8668 = vmatpush.bf16.msra.mxu0 %v8183
      %8669 = vmatpush.bf16.msra.mxu0 %v8182
      %8670 = vmatpush.bf16.msra.mxu0 %v8181
      %8671 = vmatpush.bf16.msra.mxu0 %v8180
      %8672 = vmatmul.bf16.gmra.mxu0 %v8455
      %v8673 = vpop.f32.mrf.mxu0
      %v8674 = vadd.f32 0.0, %v8673
      %v8675 = vpop.f32.mrf.mxu0
      %8676 = vdwg.mxu0
      %v8677 = vadd.f32 %v8661, %v8674
      %8678 = vmatpush.bf16.msra.mxu0 %v8268
      %8679 = vmatpush.bf16.msra.mxu0 %v8267
      %8680 = vmatpush.bf16.msra.mxu0 %v8266
      %8681 = vmatpush.bf16.msra.mxu0 %v8265
      %8682 = vmatpush.bf16.msra.mxu0 %v8264
      %8683 = vmatpush.bf16.msra.mxu0 %v8263
      %8684 = vmatpush.bf16.msra.mxu0 %v8262
      %8685 = vmatpush.bf16.msra.mxu0 %v8261
      %8686 = vmatmul.bf16.gmra.mxu0 %v8536
      %v8687 = vpop.f32.mrf.mxu0
      %v8688 = vadd.f32 0.0, %v8687
      %v8689 = vpop.f32.mrf.mxu0
      %8690 = vdwg.mxu0
      %v8691 = vadd.f32 %v8677, %v8688
      %s8692 = scalar_lea.vmem [#allocation6], 16
      %v8693 = vld [vmem:[%s8692] sm:$0xf]
      %v8694 = vpack.c.bf16 %v8693, %v8693
      %8695 = vmatpush.bf16.msra.mxu0 %v8349
      %8696 = vmatpush.bf16.msra.mxu0 %v8348
      %8697 = vmatpush.bf16.msra.mxu0 %v8347
      %8698 = vmatpush.bf16.msra.mxu0 %v8346
      %8699 = vmatpush.bf16.msra.mxu0 %v8345
      %8700 = vmatpush.bf16.msra.mxu0 %v8344
      %8701 = vmatpush.bf16.msra.mxu0 %v8343
      %8702 = vmatpush.bf16.msra.mxu0 %v8342
      %8703 = vmatmul.bf16.gmra.mxu0 %v8694
      %v8704 = vpop.f32.mrf.mxu0
      %v8705 = vadd.f32 0.0, %v8704
      %v8706 = vpop.f32.mrf.mxu0
      %8707 = vdwg.mxu0
      %v8708 = vadd.f32 %v8691, %v8705
      %v8709 = vld [vmem:[%s8692 + $0x1] sm:$0xf]
      %v8710 = vpack.c.bf16 %v8709, %v8709
      %8711 = vmatpush.bf16.msra.mxu0 %v8430
      %8712 = vmatpush.bf16.msra.mxu0 %v8429
      %8713 = vmatpush.bf16.msra.mxu0 %v8428
      %8714 = vmatpush.bf16.msra.mxu0 %v8427
      %8715 = vmatpush.bf16.msra.mxu0 %v8426
      %8716 = vmatpush.bf16.msra.mxu0 %v8425
      %8717 = vmatpush.bf16.msra.mxu0 %v8424
      %8718 = vmatpush.bf16.msra.mxu0 %v8423
      %8719 = vmatmul.bf16.gmra.mxu0 %v8710
      %v8720 = vpop.f32.mrf.mxu0
      %v8721 = vadd.f32 0.0, %v8720
      %v8722 = vpop.f32.mrf.mxu0
      %8723 = vdwg.mxu0
      %v8724 = vadd.f32 %v8708, %v8721
      %s8725 = scalar_lea.vmem [#allocation7], 16
      %v8726 = vld [vmem:[%s8725] sm:$0xf]
      %v8727 = vpack.c.bf16 %v8726, %v8726
      %8728 = vmatpush.bf16.msra.mxu0 %v8512
      %8729 = vmatpush.bf16.msra.mxu0 %v8511
      %8730 = vmatpush.bf16.msra.mxu0 %v8510
      %8731 = vmatpush.bf16.msra.mxu0 %v8509
      %8732 = vmatpush.bf16.msra.mxu0 %v8508
      %8733 = vmatpush.bf16.msra.mxu0 %v8507
      %8734 = vmatpush.bf16.msra.mxu0 %v8506
      %8735 = vmatpush.bf16.msra.mxu0 %v8505
      %8736 = vmatmul.bf16.gmra.mxu0 %v8727
      %v8737 = vpop.f32.mrf.mxu0
      %v8738 = vadd.f32 0.0, %v8737
      %v8739 = vpop.f32.mrf.mxu0
      %8740 = vdwg.mxu0
      %v8741 = vadd.f32 %v8724, %v8738
      %v8742 = vld [vmem:[%s8725 + $0x1] sm:$0xf]
      %v8743 = vpack.c.bf16 %v8742, %v8742
      %8744 = vmatpush.bf16.msra.mxu0 %v8593
      %8745 = vmatpush.bf16.msra.mxu0 %v8592
      %8746 = vmatpush.bf16.msra.mxu0 %v8591
      %8747 = vmatpush.bf16.msra.mxu0 %v8590
      %8748 = vmatpush.bf16.msra.mxu0 %v8589
      %8749 = vmatpush.bf16.msra.mxu0 %v8588
      %8750 = vmatpush.bf16.msra.mxu0 %v8587
      %8751 = vmatpush.bf16.msra.mxu0 %v8586
      %8752 = vmatmul.bf16.gmra.mxu0 %v8743
      %v8753 = vpop.f32.mrf.mxu0
      %v8754 = vadd.f32 0.0, %v8753
      %v8755 = vpop.f32.mrf.mxu0
      %8756 = vdwg.mxu0
      %v8757 = vadd.f32 %v8741, %v8754
      %v8758 = vadd.f32 %v8757, %v8618
      %v8759 = vmul.f32 %v8758, 0.1
      %v8760 = vmax.f32 %v8758, %v8759
      %s8761 = scalar_lea.vmem %s9, 4
      %v8762 = vld [vmem:[%s8761] sm:$0xf]
      %v8763 = vmul.f32 %v8760, %v8762
      %v8764 = vsel %vm8625, %v8763, 0.0
      %8765 = vadd.xlane.f32.xlu0 %v8764
      %v8766 = vpop.xlane.xlu0 %8765
      %v8767 = vrot.slane %v8766, 4
      %v8768 = vadd.f32 %v8766, %v8767
      %v8769 = vrot.slane %v8768, 2
      %v8770 = vadd.f32 %v8768, %v8769
      %v8771 = vrot.slane %v8770, 1
      %v8772 = vadd.f32 %v8770, %v8771
      %s8773 = vtos %v8772
      %v8774 = vstv %s8773
      %v8775 = vadd.f32 %v8637, %v8774
      %8776 = vmatpush.bf16.msra.mxu0 %v8046
      %8777 = vmatpush.bf16.msra.mxu0 %v8045
      %8778 = vmatpush.bf16.msra.mxu0 %v8044
      %8779 = vmatpush.bf16.msra.mxu0 %v8043
      %8780 = vmatpush.bf16.msra.mxu0 %v8042
      %8781 = vmatpush.bf16.msra.mxu0 %v8041
      %8782 = vmatpush.bf16.msra.mxu0 %v8040
      %8783 = vmatpush.bf16.msra.mxu0 %v8039
      %8784 = vmatmul.bf16.gmra.mxu0 %v8710
      %v8785 = vpop.f32.mrf.mxu0
      %v8786 = vadd.f32 0.0, %v8785
      %v8787 = vpop.f32.mrf.mxu0
      %8788 = vdwg.mxu0
      %8789 = vmatpush.bf16.msra.mxu0 %v8107
      %8790 = vmatpush.bf16.msra.mxu0 %v8106
      %8791 = vmatpush.bf16.msra.mxu0 %v8105
      %8792 = vmatpush.bf16.msra.mxu0 %v8104
      %8793 = vmatpush.bf16.msra.mxu0 %v8103
      %8794 = vmatpush.bf16.msra.mxu0 %v8102
      %8795 = vmatpush.bf16.msra.mxu0 %v8101
      %8796 = vmatpush.bf16.msra.mxu0 %v8100
      %8797 = vmatmul.bf16.gmra.mxu0 %v8694
      %v8798 = vpop.f32.mrf.mxu0
      %v8799 = vadd.f32 %v8786, %v8798
      %v8800 = vpop.f32.mrf.mxu0
      %8801 = vdwg.mxu0
      %8802 = vmatpush.bf16.msra.mxu0 %v8187
      %8803 = vmatpush.bf16.msra.mxu0 %v8186
      %8804 = vmatpush.bf16.msra.mxu0 %v8185
      %8805 = vmatpush.bf16.msra.mxu0 %v8184
      %8806 = vmatpush.bf16.msra.mxu0 %v8183
      %8807 = vmatpush.bf16.msra.mxu0 %v8182
      %8808 = vmatpush.bf16.msra.mxu0 %v8181
      %8809 = vmatpush.bf16.msra.mxu0 %v8180
      %8810 = vmatmul.bf16.gmra.mxu0 %v8727
      %v8811 = vpop.f32.mrf.mxu0
      %v8812 = vadd.f32 0.0, %v8811
      %v8813 = vpop.f32.mrf.mxu0
      %8814 = vdwg.mxu0
      %v8815 = vadd.f32 %v8799, %v8812
      %8816 = vmatpush.bf16.msra.mxu0 %v8268
      %8817 = vmatpush.bf16.msra.mxu0 %v8267
      %8818 = vmatpush.bf16.msra.mxu0 %v8266
      %8819 = vmatpush.bf16.msra.mxu0 %v8265
      %8820 = vmatpush.bf16.msra.mxu0 %v8264
      %8821 = vmatpush.bf16.msra.mxu0 %v8263
      %8822 = vmatpush.bf16.msra.mxu0 %v8262
      %8823 = vmatpush.bf16.msra.mxu0 %v8261
      %8824 = vmatmul.bf16.gmra.mxu0 %v8743
      %v8825 = vpop.f32.mrf.mxu0
      %v8826 = vadd.f32 0.0, %v8825
      %v8827 = vpop.f32.mrf.mxu0
      %8828 = vdwg.mxu0
      %v8829 = vadd.f32 %v8815, %v8826
      %s8830 = scalar_lea.vmem [#allocation6], 24
      %v8831 = vld [vmem:[%s8830] sm:$0xf]
      %v8832 = vpack.c.bf16 %v8831, %v8831
      %8833 = vmatpush.bf16.msra.mxu0 %v8349
      %8834 = vmatpush.bf16.msra.mxu0 %v8348
      %8835 = vmatpush.bf16.msra.mxu0 %v8347
      %8836 = vmatpush.bf16.msra.mxu0 %v8346
      %8837 = vmatpush.bf16.msra.mxu0 %v8345
      %8838 = vmatpush.bf16.msra.mxu0 %v8344
      %8839 = vmatpush.bf16.msra.mxu0 %v8343
      %8840 = vmatpush.bf16.msra.mxu0 %v8342
      %8841 = vmatmul.bf16.gmra.mxu0 %v8832
      %v8842 = vpop.f32.mrf.mxu0
      %v8843 = vadd.f32 0.0, %v8842
      %v8844 = vpop.f32.mrf.mxu0
      %8845 = vdwg.mxu0
      %v8846 = vadd.f32 %v8829, %v8843
      %v8847 = vld [vmem:[%s8830 + $0x1] sm:$0xf]
      %v8848 = vpack.c.bf16 %v8847, %v8847
      %8849 = vmatpush.bf16.msra.mxu0 %v8430
      %8850 = vmatpush.bf16.msra.mxu0 %v8429
      %8851 = vmatpush.bf16.msra.mxu0 %v8428
      %8852 = vmatpush.bf16.msra.mxu0 %v8427
      %8853 = vmatpush.bf16.msra.mxu0 %v8426
      %8854 = vmatpush.bf16.msra.mxu0 %v8425
      %8855 = vmatpush.bf16.msra.mxu0 %v8424
      %8856 = vmatpush.bf16.msra.mxu0 %v8423
      %8857 = vmatmul.bf16.gmra.mxu0 %v8848
      %v8858 = vpop.f32.mrf.mxu0
      %v8859 = vadd.f32 0.0, %v8858
      %v8860 = vpop.f32.mrf.mxu0
      %8861 = vdwg.mxu0
      %v8862 = vadd.f32 %v8846, %v8859
      %s8863 = scalar_lea.vmem [#allocation7], 24
      %v8864 = vld [vmem:[%s8863] sm:$0xf]
      %v8865 = vpack.c.bf16 %v8864, %v8864
      %8866 = vmatpush.bf16.msra.mxu0 %v8512
      %8867 = vmatpush.bf16.msra.mxu0 %v8511
      %8868 = vmatpush.bf16.msra.mxu0 %v8510
      %8869 = vmatpush.bf16.msra.mxu0 %v8509
      %8870 = vmatpush.bf16.msra.mxu0 %v8508
      %8871 = vmatpush.bf16.msra.mxu0 %v8507
      %8872 = vmatpush.bf16.msra.mxu0 %v8506
      %8873 = vmatpush.bf16.msra.mxu0 %v8505
      %8874 = vmatmul.bf16.gmra.mxu0 %v8865
      %v8875 = vpop.f32.mrf.mxu0
      %v8876 = vadd.f32 0.0, %v8875
      %v8877 = vpop.f32.mrf.mxu0
      %8878 = vdwg.mxu0
      %v8879 = vadd.f32 %v8862, %v8876
      %v8880 = vld [vmem:[%s8863 + $0x1] sm:$0xf]
      %v8881 = vpack.c.bf16 %v8880, %v8880
      %8882 = vmatpush.bf16.msra.mxu0 %v8593
      %8883 = vmatpush.bf16.msra.mxu0 %v8592
      %8884 = vmatpush.bf16.msra.mxu0 %v8591
      %8885 = vmatpush.bf16.msra.mxu0 %v8590
      %8886 = vmatpush.bf16.msra.mxu0 %v8589
      %8887 = vmatpush.bf16.msra.mxu0 %v8588
      %8888 = vmatpush.bf16.msra.mxu0 %v8587
      %8889 = vmatpush.bf16.msra.mxu0 %v8586
      %8890 = vmatmul.bf16.gmra.mxu0 %v8881
      %v8891 = vpop.f32.mrf.mxu0
      %v8892 = vadd.f32 0.0, %v8891
      %v8893 = vpop.f32.mrf.mxu0
      %8894 = vdwg.mxu0
      %v8895 = vadd.f32 %v8879, %v8892
      %v8896 = vadd.f32 %v8895, %v8618
      %v8897 = vmul.f32 %v8896, 0.1
      %v8898 = vmax.f32 %v8896, %v8897
      %s8899 = scalar_lea.vmem %s9, 8
      %v8900 = vld [vmem:[%s8899] sm:$0xf]
      %v8901 = vmul.f32 %v8898, %v8900
      %v8902 = vsel %vm8625, %v8901, 0.0
      %8903 = vadd.xlane.f32.xlu0 %v8902
      %v8904 = vpop.xlane.xlu0 %8903
      %v8905 = vrot.slane %v8904, 4
      %v8906 = vadd.f32 %v8904, %v8905
      %v8907 = vrot.slane %v8906, 2
      %v8908 = vadd.f32 %v8906, %v8907
      %v8909 = vrot.slane %v8908, 1
      %v8910 = vadd.f32 %v8908, %v8909
      %s8911 = vtos %v8910
      %v8912 = vstv %s8911
      %v8913 = vadd.f32 %v8775, %v8912
      %8914 = vmatpush.bf16.msra.mxu0 %v8046
      %8915 = vmatpush.bf16.msra.mxu0 %v8045
      %8916 = vmatpush.bf16.msra.mxu0 %v8044
      %8917 = vmatpush.bf16.msra.mxu0 %v8043
      %8918 = vmatpush.bf16.msra.mxu0 %v8042
      %8919 = vmatpush.bf16.msra.mxu0 %v8041
      %8920 = vmatpush.bf16.msra.mxu0 %v8040
      %8921 = vmatpush.bf16.msra.mxu0 %v8039
      %8922 = vmatmul.bf16.gmra.mxu0 %v8848
      %v8923 = vpop.f32.mrf.mxu0
      %v8924 = vadd.f32 0.0, %v8923
      %v8925 = vpop.f32.mrf.mxu0
      %8926 = vdwg.mxu0
      %8927 = vmatpush.bf16.msra.mxu0 %v8107
      %8928 = vmatpush.bf16.msra.mxu0 %v8106
      %8929 = vmatpush.bf16.msra.mxu0 %v8105
      %8930 = vmatpush.bf16.msra.mxu0 %v8104
      %8931 = vmatpush.bf16.msra.mxu0 %v8103
      %8932 = vmatpush.bf16.msra.mxu0 %v8102
      %8933 = vmatpush.bf16.msra.mxu0 %v8101
      %8934 = vmatpush.bf16.msra.mxu0 %v8100
      %8935 = vmatmul.bf16.gmra.mxu0 %v8832
      %v8936 = vpop.f32.mrf.mxu0
      %v8937 = vadd.f32 %v8924, %v8936
      %v8938 = vpop.f32.mrf.mxu0
      %8939 = vdwg.mxu0
      %8940 = vmatpush.bf16.msra.mxu0 %v8187
      %8941 = vmatpush.bf16.msra.mxu0 %v8186
      %8942 = vmatpush.bf16.msra.mxu0 %v8185
      %8943 = vmatpush.bf16.msra.mxu0 %v8184
      %8944 = vmatpush.bf16.msra.mxu0 %v8183
      %8945 = vmatpush.bf16.msra.mxu0 %v8182
      %8946 = vmatpush.bf16.msra.mxu0 %v8181
      %8947 = vmatpush.bf16.msra.mxu0 %v8180
      %8948 = vmatmul.bf16.gmra.mxu0 %v8865
      %v8949 = vpop.f32.mrf.mxu0
      %v8950 = vadd.f32 0.0, %v8949
      %v8951 = vpop.f32.mrf.mxu0
      %8952 = vdwg.mxu0
      %v8953 = vadd.f32 %v8937, %v8950
      %8954 = vmatpush.bf16.msra.mxu0 %v8268
      %8955 = vmatpush.bf16.msra.mxu0 %v8267
      %8956 = vmatpush.bf16.msra.mxu0 %v8266
      %8957 = vmatpush.bf16.msra.mxu0 %v8265
      %8958 = vmatpush.bf16.msra.mxu0 %v8264
      %8959 = vmatpush.bf16.msra.mxu0 %v8263
      %8960 = vmatpush.bf16.msra.mxu0 %v8262
      %8961 = vmatpush.bf16.msra.mxu0 %v8261
      %8962 = vmatmul.bf16.gmra.mxu0 %v8881
      %v8963 = vpop.f32.mrf.mxu0
      %v8964 = vadd.f32 0.0, %v8963
      %v8965 = vpop.f32.mrf.mxu0
      %8966 = vdwg.mxu0
      %v8967 = vadd.f32 %v8953, %v8964
      %s8968 = scalar_lea.vmem [#allocation6], 32
      %v8969 = vld [vmem:[%s8968] sm:$0xf]
      %v8970 = vpack.c.bf16 %v8969, %v8969
      %8971 = vmatpush.bf16.msra.mxu0 %v8349
      %8972 = vmatpush.bf16.msra.mxu0 %v8348
      %8973 = vmatpush.bf16.msra.mxu0 %v8347
      %8974 = vmatpush.bf16.msra.mxu0 %v8346
      %8975 = vmatpush.bf16.msra.mxu0 %v8345
      %8976 = vmatpush.bf16.msra.mxu0 %v8344
      %8977 = vmatpush.bf16.msra.mxu0 %v8343
      %8978 = vmatpush.bf16.msra.mxu0 %v8342
      %8979 = vmatmul.bf16.gmra.mxu0 %v8970
      %v8980 = vpop.f32.mrf.mxu0
      %v8981 = vadd.f32 0.0, %v8980
      %v8982 = vpop.f32.mrf.mxu0
      %8983 = vdwg.mxu0
      %v8984 = vadd.f32 %v8967, %v8981
      %v8985 = vld [vmem:[%s8968 + $0x1] sm:$0xf]
      %v8986 = vpack.c.bf16 %v8985, %v8985
      %8987 = vmatpush.bf16.msra.mxu0 %v8430
      %8988 = vmatpush.bf16.msra.mxu0 %v8429
      %8989 = vmatpush.bf16.msra.mxu0 %v8428
      %8990 = vmatpush.bf16.msra.mxu0 %v8427
      %8991 = vmatpush.bf16.msra.mxu0 %v8426
      %8992 = vmatpush.bf16.msra.mxu0 %v8425
      %8993 = vmatpush.bf16.msra.mxu0 %v8424
      %8994 = vmatpush.bf16.msra.mxu0 %v8423
      %8995 = vmatmul.bf16.gmra.mxu0 %v8986
      %v8996 = vpop.f32.mrf.mxu0
      %v8997 = vadd.f32 0.0, %v8996
      %v8998 = vpop.f32.mrf.mxu0
      %8999 = vdwg.mxu0
      %v9000 = vadd.f32 %v8984, %v8997
      %s9001 = scalar_lea.vmem [#allocation7], 32
      %v9002 = vld [vmem:[%s9001] sm:$0xf]
      %v9003 = vpack.c.bf16 %v9002, %v9002
      %9004 = vmatpush.bf16.msra.mxu0 %v8512
      %9005 = vmatpush.bf16.msra.mxu0 %v8511
      %9006 = vmatpush.bf16.msra.mxu0 %v8510
      %9007 = vmatpush.bf16.msra.mxu0 %v8509
      %9008 = vmatpush.bf16.msra.mxu0 %v8508
      %9009 = vmatpush.bf16.msra.mxu0 %v8507
      %9010 = vmatpush.bf16.msra.mxu0 %v8506
      %9011 = vmatpush.bf16.msra.mxu0 %v8505
      %9012 = vmatmul.bf16.gmra.mxu0 %v9003
      %v9013 = vpop.f32.mrf.mxu0
      %v9014 = vadd.f32 0.0, %v9013
      %v9015 = vpop.f32.mrf.mxu0
      %9016 = vdwg.mxu0
      %v9017 = vadd.f32 %v9000, %v9014
      %v9018 = vld [vmem:[%s9001 + $0x1] sm:$0xf]
      %v9019 = vpack.c.bf16 %v9018, %v9018
      %9020 = vmatpush.bf16.msra.mxu0 %v8593
      %9021 = vmatpush.bf16.msra.mxu0 %v8592
      %9022 = vmatpush.bf16.msra.mxu0 %v8591
      %9023 = vmatpush.bf16.msra.mxu0 %v8590
      %9024 = vmatpush.bf16.msra.mxu0 %v8589
      %9025 = vmatpush.bf16.msra.mxu0 %v8588
      %9026 = vmatpush.bf16.msra.mxu0 %v8587
      %9027 = vmatpush.bf16.msra.mxu0 %v8586
      %9028 = vmatmul.bf16.gmra.mxu0 %v9019
      %v9029 = vpop.f32.mrf.mxu0
      %v9030 = vadd.f32 0.0, %v9029
      %v9031 = vpop.f32.mrf.mxu0
      %9032 = vdwg.mxu0
      %v9033 = vadd.f32 %v9017, %v9030
      %v9034 = vadd.f32 %v9033, %v8618
      %v9035 = vmul.f32 %v9034, 0.1
      %v9036 = vmax.f32 %v9034, %v9035
      %s9037 = scalar_lea.vmem %s9, 12
      %v9038 = vld [vmem:[%s9037] sm:$0xf]
      %v9039 = vmul.f32 %v9036, %v9038
      %v9040 = vsel %vm8625, %v9039, 0.0
      %9041 = vadd.xlane.f32.xlu0 %v9040
      %v9042 = vpop.xlane.xlu0 %9041
      %v9043 = vrot.slane %v9042, 4
      %v9044 = vadd.f32 %v9042, %v9043
      %v9045 = vrot.slane %v9044, 2
      %v9046 = vadd.f32 %v9044, %v9045
      %v9047 = vrot.slane %v9046, 1
      %v9048 = vadd.f32 %v9046, %v9047
      %s9049 = vtos %v9048
      %v9050 = vstv %s9049
      %v9051 = vadd.f32 %v8913, %v9050
      %vm9052 = vcmask 0
      %9053 = vst.msk [vmem:[%s384] sm:$0x1] %vm9052, %v9051
      %p9054 = scmp.lt.s32.totalorder %s24, 1
      %s9055 = scalar_select %p9054, %s24, 1
      %s9056 = scalar_lea.vmem %s11, %s9055
      // Predicated region
      $region65: #{discriminator_forward.1} parent=63 // pred_check
        %p9057 = pneg %p278
      $region66: #{discriminator_forward.1} parent=63 // pred_check_branch
        %9059 = sbr.rel (%p9057) target = $region68
      $region67: #{discriminator_forward.1} parent=63 // pred_region
        _
      $region68: #{discriminator_forward.1} parent=63 // pred_fallthru
        _
    $region64: #{discriminator_forward.1} parent=5 // pred_fallthru
      _
    %p9060 = scmp.le.s32.totalorder 2, %s19
    // Predicated region
    $region69: #{discriminator_forward.1} parent=5 // pred_check
      %p9061 = pneg %p9060
    $region70: #{discriminator_forward.1} parent=5 // pred_check_branch
      %9063 = sbr.rel (%p9061) target = $region72
    $region71: #{discriminator_forward.1} parent=5 // pred_region
      %s9064 = ssub.s32 %s19, 2
      // Predicated region
      $region73: #{discriminator_forward.1} parent=71 // pred_check
        %p9065 = pneg %p284
      $region74: #{discriminator_forward.1} parent=71 // pred_check_branch
        %9067 = sbr.rel (%p9065) target = $region76
      $region75: #{discriminator_forward.1} parent=71 // pred_region
        %p9068 = scmp.lt.s32.totalorder %s25, 1
        %s9069 = scalar_select %p9068, %s25, 1
        %s9070 = scalar_lea.vmem %s11, %s9069
      $region76: #{discriminator_forward.1} parent=71 // pred_fallthru
        _
    $region72: #{discriminator_forward.1} parent=5 // pred_fallthru
      _
  $region6: #{discriminator_forward.1} parent=0 // loop_footer
    %s23 = sadd.s32 1, %s19
  $region7: #{discriminator_forward.1} parent=0 // loop_footer_branch
    %18 = sbr.rel target = $region3
  $region8: #{discriminator_forward.1} parent=0 // loop_exit
    _

</llo_original>
